<compile_context>
chip_gen: v6e
topology: v6e:2x2x1
jax: 0.10.0
libtpu: 0.0.40
codegen_flags: <defaults>
</compile_context>

<pallas_src>
import functools
import math

import jax
import jax.numpy as jnp
from jax.experimental import pallas as pl
from jax.experimental.pallas import tpu as pltpu

LANE = 128      # vreg lane width: each direction's hidden is zero-padded to this
SUBLANE = 8     # vreg sublane count: the batch is zero-padded to a multiple of this


def _round_up(x, m):
    return (x + m - 1) // m * m


# -----------------------------------------------------------------------------
# Fused kernel: encq (all layers) -> encc (all layers) -> MLP head.
# -----------------------------------------------------------------------------
def rnne_fused_kernel(num_layers, Hp, Bp, Tq, Tc, d_mid, *refs):
    """Ref layout (all VMEM):
         q_ref : (Tq*Bp, E) bf16   time-major question embeddings
         c_ref : (Tc*Bp, E) bf16   time-major context embeddings
         per encoder, per layer (5 refs):
           wih    : (E, 2Hp) bf16 for layer 0; (2Hp, 2Hp) bf16 for layer l>0
                    (rows [0:Hp)=fwd-feature rows, [Hp:)=bwd-feature rows of the
                     previous layer's output)
           whh_f  : (Hp, Hp) bf16   fwd recurrent weight (zero-padded)
           whh_b  : (Hp, Hp) bf16   bwd recurrent weight
           bias_f : (1, Hp)  f32    b_ih + b_hh, fwd
           bias_b : (1, Hp)  f32    b_ih + b_hh, bwd
         head (5 refs): w1f (Tc*Hp, d_mid) bf16, w1b (Tc*Hp, d_mid) bf16,
                        b1 (1, d_mid) f32, w2 (d_mid, 2) bf16, b2 (1, 2) f32
         o_ref : (Bp, 2) f32
       All slices are (8,128)-tile aligned: Bp % 8 == 0, Hp % 128 == 0.
    """
    L = num_layers
    f32, bf16 = jnp.float32, jnp.bfloat16

    q_ref, c_ref = refs[0], refs[1]
    pos = 2
    encq_w = [tuple(refs[pos + 5 * l: pos + 5 * (l + 1)]) for l in range(L)]
    pos += 5 * L
    encc_w = [tuple(refs[pos + 5 * l: pos + 5 * (l + 1)]) for l in range(L)]
    pos += 5 * L
    w1f_ref, w1b_ref, b1_ref, w2_ref, b2_ref = refs[pos:pos + 5]
    o_ref = refs[pos + 5]

    def chain(pre_steps, h0, whh_ref):
        """Serial recurrence h_t = tanh(pre_t + h_{t-1} @ Whh); statically unrolled.
        bf16 MXU operands, f32 accumulation, f32 carry + tanh."""
        whh = whh_ref[...]
        h = h0
        hs = []
        for pre in pre_steps:
            h = jnp.tanh(pre + jnp.dot(h.astype(bf16), whh,
                                       preferred_element_type=f32))
            hs.append(h)
        return hs

    def layer0_preacts(x_ref, T, wih_ref, bf_ref, bb_ref):
        """One stacked matmul for the whole sequence (hoisted off the serial path);
        per-step row slices are sublane-aligned, the fwd/bwd split is at lane Hp."""
        xw = jnp.dot(x_ref[...], wih_ref[...], preferred_element_type=f32)
        bf_, bb_ = bf_ref[...], bb_ref[...]
        pf = [xw[t * Bp:(t + 1) * Bp, :Hp] + bf_ for t in range(T)]
        # backward step s consumes the input at original time T-1-s
        pb = [xw[(T - 1 - s) * Bp:(T - s) * Bp, Hp:] + bb_ for s in range(T)]
        return pf, pb

    def next_preacts(hf, hb, T, wih_ref, bf_ref, bb_ref):
        """Projection of the previous layer's outputs, batched into two stacked
        matmuls (one per feature half); no per-step y_t concat is ever built."""
        hf_slab = jnp.concatenate(hf, axis=0).astype(bf16)   # (T*Bp, Hp), time order
        hb_slab = jnp.concatenate(hb, axis=0).astype(bf16)   # (T*Bp, Hp), bwd-step order
        a = jnp.dot(hf_slab, wih_ref[:Hp, :], preferred_element_type=f32)
        b = jnp.dot(hb_slab, wih_ref[Hp:, :], preferred_element_type=f32)
        bf_, bb_ = bf_ref[...], bb_ref[...]
        pf = [a[t * Bp:(t + 1) * Bp, :Hp]
              + b[(T - 1 - t) * Bp:(T - t) * Bp, :Hp] + bf_ for t in range(T)]
        pb = [a[(T - 1 - s) * Bp:(T - s) * Bp, Hp:]
              + b[s * Bp:(s + 1) * Bp, Hp:] + bb_ for s in range(T)]
        return pf, pb

    def run_encoder(x_ref, T, weights, h0s):
        """Per-layer (hf_steps, hb_steps): hf in time order, hb in backward-step
        order (hb[s] is the bwd hidden at original time T-1-s)."""
        outs = []
        hf = hb = None
        for l in range(L):
            wih_ref, whhf_ref, whhb_ref, bf_ref, bb_ref = weights[l]
            if l == 0:
                pf, pb = layer0_preacts(x_ref, T, wih_ref, bf_ref, bb_ref)
            else:
                pf, pb = next_preacts(hf, hb, T, wih_ref, bf_ref, bb_ref)
            h0f, h0b = h0s[l]
            hf = chain(pf, h0f, whhf_ref)   # two independent serial chains; the
            hb = chain(pb, h0b, whhb_ref)   # scheduler interleaves/pipelines them
            outs.append((hf, hb))
        return outs

    zeros_h = jnp.zeros((Bp, Hp), f32)

    # ---- encq: only the per-layer final hidden states are consumed --------------
    q_states = run_encoder(q_ref, Tq, encq_w, [(zeros_h, zeros_h)] * L)
    hid_q = [(hf[Tq - 1], hb[Tq - 1]) for hf, hb in q_states]   # (h_f(Tq-1), h_b(0))

    # ---- encc: seeded with hid_q (PyTorch h_n layout: layer-major, dir-minor) ----
    c_states = run_encoder(c_ref, Tc, encc_w, hid_q)
    hf_top, hb_top = c_states[L - 1]

    # ---- head: flatten replaced by accumulating per-time-slab matmuls -----------
    acc = jnp.zeros((Bp, d_mid), f32)
    for t in range(Tc):
        acc = acc + jnp.dot(hf_top[t].astype(bf16),
                            w1f_ref[t * Hp:(t + 1) * Hp, :],
                            preferred_element_type=f32)
        acc = acc + jnp.dot(hb_top[Tc - 1 - t].astype(bf16),
                            w1b_ref[t * Hp:(t + 1) * Hp, :],
                            preferred_element_type=f32)
    h1 = acc + b1_ref[...]
    # TODO(synk): nn.Dropout(0.1) before Wout is identity at inference.
    out = jnp.dot(h1.astype(bf16), w2_ref[...],
                  preferred_element_type=f32) + b2_ref[...]
    o_ref[...] = out.astype(o_ref.dtype)


# -----------------------------------------------------------------------------
# Wrapper: a single pallas_call for the whole forward pass.
# -----------------------------------------------------------------------------
_VMEM = pl.BlockSpec(memory_space=pltpu.MemorySpace.VMEM)


def rnne_forward(c, q, encq_params, encc_params, head_params,
                 num_layers, hidden_size, hp=LANE):
    """c: (B, Tc, E), q: (B, Tq, E), batch-first like the PyTorch module."""
    B, Tc, E = c.shape
    _, Tq, _ = q.shape
    Hp = hp
    Bp = _round_up(max(B, 1), SUBLANE)
    d_mid = 2 * hidden_size

    # Zero-pad the batch to a sublane multiple (free: those rows already occupy the
    # same vregs) and go time-major once, in bf16, outside the kernel.
    def to_time_major(x, T):
        xp = jnp.pad(x, ((0, Bp - B), (0, 0), (0, 0)))
        return jnp.transpose(xp, (1, 0, 2)).reshape(T * Bp, E).astype(jnp.bfloat16)

    q_tm = to_time_major(q, Tq)
    c_tm = to_time_major(c, Tc)

    flat_w = []
    for layer_params in encq_params:
        flat_w += list(layer_params)
    for layer_params in encc_params:
        flat_w += list(layer_params)
    flat_w += list(head_params)
    inputs = [q_tm, c_tm] + flat_w

    kernel = functools.partial(rnne_fused_kernel,
                               num_layers, Hp, Bp, Tq, Tc, d_mid)

    # Advisory cost so XLA can schedule surrounding ops around one long fused call.
    steps = num_layers * (Tq + Tc)
    flops = (2 * (Tq + Tc) * Bp * E * 2 * Hp
             + 2 * (num_layers - 1) * (Tq + Tc) * Bp * 2 * Hp * 2 * Hp
             + 2 * steps * 2 * Bp * Hp * Hp
             + 2 * Tc * 2 * Bp * Hp * d_mid
             + 2 * Bp * d_mid * 2)
    bytes_accessed = int(sum(x.size * x.dtype.itemsize for x in inputs)) + Bp * 2 * 4
    cost = pl.CostEstimate(flops=int(flops),
                           transcendentals=int(steps * 2 * Bp * Hp),
                           bytes_accessed=bytes_accessed)

    out = pl.pallas_call(
        kernel,
        out_shape=jax.ShapeDtypeStruct((Bp, 2), jnp.float32),
        in_specs=[_VMEM] * len(inputs),
        out_specs=_VMEM,
        compiler_params=pltpu.CompilerParams(vmem_limit_bytes=32 * 1024 * 1024),
        cost_estimate=cost,
    )(*inputs)
    return out[:B].astype(c.dtype)


# -----------------------------------------------------------------------------
# Parameter init (PyTorch-shaped, then packed / lane-padded / bf16-cast).
# -----------------------------------------------------------------------------
def init_rnn_params(key, embed_size, hidden_size, num_layers, hp=LANE):
    """nn.RNN default init U(-1/sqrt(H), 1/sqrt(H)).  Per layer:
    (wih, whh_f, whh_b, bias_f, bias_b), each direction zero-padded to Hp lanes."""
    H, Hp = hidden_size, hp
    P = 2 * Hp
    bound = 1.0 / math.sqrt(H)
    params = []
    for l in range(num_layers):
        in_real = embed_size if l == 0 else 2 * H
        in_pad = embed_size if l == 0 else P
        wih = jnp.zeros((in_pad, P), jnp.float32)
        whh, biases = [], []
        for d in range(2):                                    # 0: forward, 1: backward
            key, k1, k2, k3, k4 = jax.random.split(key, 5)
            w_ih = jax.random.uniform(k1, (H, in_real), jnp.float32, -bound, bound)
            w_hh = jax.random.uniform(k2, (H, H), jnp.float32, -bound, bound)
            b_ih = jax.random.uniform(k3, (H,), jnp.float32, -bound, bound)
            b_hh = jax.random.uniform(k4, (H,), jnp.float32, -bound, bound)
            col = d * Hp
            w_ih_t = w_ih.T                                   # (in_real, H)
            if l == 0:
                wih = wih.at[:in_real, col:col + H].set(w_ih_t)
            else:
                # previous layer output: fwd features -> rows [0:H),
                # bwd features -> rows [Hp:Hp+H) of the padded input axis
                wih = wih.at[0:H, col:col + H].set(w_ih_t[0:H])
                wih = wih.at[Hp:Hp + H, col:col + H].set(w_ih_t[H:2 * H])
            whh_pad = jnp.zeros((Hp, Hp), jnp.float32).at[:H, :H].set(w_hh.T)
            whh.append(whh_pad.astype(jnp.bfloat16))
            biases.append(jnp.zeros((1, Hp), jnp.float32).at[0, :H].set(b_ih + b_hh))
        params.append((wih.astype(jnp.bfloat16), whh[0], whh[1],
                       biases[0], biases[1]))
    return params, key


def xavier_uniform(key, shape):
    fan_out, fan_in = shape
    bound = math.sqrt(6.0 / (fan_in + fan_out))
    return jax.random.uniform(key, shape, jnp.float32, -bound, bound)


def init_head_params(key, hidden_size, c_len, hp=LANE):
    """Wmodel / Wout; Wmodel^T is re-packed into per-time-step, per-direction
    (Hp, d_mid) slabs matching the kernel's padded layer-output layout."""
    H, Hp = hidden_size, hp
    d_in = 2 * H * c_len
    d_mid = 2 * H
    key, k1, k2, k3, k4 = jax.random.split(key, 5)
    w1 = xavier_uniform(k1, (d_mid, d_in))                    # Wmodel.weight
    kb1 = 1.0 / math.sqrt(d_in)
    b1 = jax.random.uniform(k2, (d_mid,), jnp.float32, -kb1, kb1)
    w2 = xavier_uniform(k3, (2, d_mid))                       # Wout.weight
    kb2 = 1.0 / math.sqrt(d_mid)
    b2 = jax.random.uniform(k4, (2,), jnp.float32, -kb2, kb2)

    w1_t = w1.T                                               # (c_len*2H, d_mid)
    w1f = jnp.zeros((c_len * Hp, d_mid), jnp.float32)
    w1b = jnp.zeros((c_len * Hp, d_mid), jnp.float32)
    for t in range(c_len):
        w1f = w1f.at[t * Hp:t * Hp + H, :].set(w1_t[t * 2 * H: t * 2 * H + H, :])
        w1b = w1b.at[t * Hp:t * Hp + H, :].set(w1_t[t * 2 * H + H: (t + 1) * 2 * H, :])
    head = (w1f.astype(jnp.bfloat16), w1b.astype(jnp.bfloat16),
            b1[None, :], w2.T.astype(jnp.bfloat16), b2[None, :])
    return head, key


# -----------------------------------------------------------------------------
if __name__ == "__main__":
    embed_size = 32
    hidden_size = 32
    num_layers = 2
    c_len = 8
    q_len = 8
    bs = 2

    key = jax.random.PRNGKey(0)
    encq_params, key = init_rnn_params(key, embed_size, hidden_size, num_layers)
    encc_params, key = init_rnn_params(key, embed_size, hidden_size, num_layers)
    head_params, key = init_head_params(key, hidden_size, c_len)

    key, kc, kq = jax.random.split(key, 3)
    c = jax.random.normal(kc, (bs, c_len, embed_size), jnp.float32)
    q = jax.random.normal(kq, (bs, q_len, embed_size), jnp.float32)

    fwd = jax.jit(functools.partial(rnne_forward,
                                    encq_params=encq_params,
                                    encc_params=encc_params,
                                    head_params=head_params,
                                    num_layers=num_layers,
                                    hidden_size=hidden_size))
    out = fwd(c, q)
    jax.block_until_ready(out)
    assert out.shape == (bs, 2), out.shape
    print("KERNEL_OK")
</pallas_src>

<mosaic_0001>
module attributes {stable_mosaic.version = 11 : i64} {
  func.func @rnne_fused_kernel(%arg0: memref<64x32xbf16, #tpu.memory_space<vmem>>, %arg1: memref<64x32xbf16, #tpu.memory_space<vmem>>, %arg2: memref<32x256xbf16, #tpu.memory_space<vmem>>, %arg3: memref<128x128xbf16, #tpu.memory_space<vmem>>, %arg4: memref<128x128xbf16, #tpu.memory_space<vmem>>, %arg5: memref<1x128xf32, #tpu.memory_space<vmem>>, %arg6: memref<1x128xf32, #tpu.memory_space<vmem>>, %arg7: memref<256x256xbf16, #tpu.memory_space<vmem>>, %arg8: memref<128x128xbf16, #tpu.memory_space<vmem>>, %arg9: memref<128x128xbf16, #tpu.memory_space<vmem>>, %arg10: memref<1x128xf32, #tpu.memory_space<vmem>>, %arg11: memref<1x128xf32, #tpu.memory_space<vmem>>, %arg12: memref<32x256xbf16, #tpu.memory_space<vmem>>, %arg13: memref<128x128xbf16, #tpu.memory_space<vmem>>, %arg14: memref<128x128xbf16, #tpu.memory_space<vmem>>, %arg15: memref<1x128xf32, #tpu.memory_space<vmem>>, %arg16: memref<1x128xf32, #tpu.memory_space<vmem>>, %arg17: memref<256x256xbf16, #tpu.memory_space<vmem>>, %arg18: memref<128x128xbf16, #tpu.memory_space<vmem>>, %arg19: memref<128x128xbf16, #tpu.memory_space<vmem>>, %arg20: memref<1x128xf32, #tpu.memory_space<vmem>>, %arg21: memref<1x128xf32, #tpu.memory_space<vmem>>, %arg22: memref<1024x64xbf16, #tpu.memory_space<vmem>>, %arg23: memref<1024x64xbf16, #tpu.memory_space<vmem>>, %arg24: memref<1x64xf32, #tpu.memory_space<vmem>>, %arg25: memref<64x2xbf16, #tpu.memory_space<vmem>>, %arg26: memref<1x2xf32, #tpu.memory_space<vmem>>, %arg27: memref<8x2xf32, #tpu.memory_space<vmem>>) attributes {dimension_semantics = [], scalar_prefetch = 0 : i64, scratch_operands = 0 : i64, tpu.core_type = #tpu.core_type<tc>} {
    %cst = arith.constant 0.000000e+00 : f32
    %0 = vector.broadcast %cst : f32 to vector<8x128xf32>
    %c0 = arith.constant 0 : index
    %c0_0 = arith.constant 0 : index
    %1 = vector.load %arg0[%c0, %c0_0] : memref<64x32xbf16, #tpu.memory_space<vmem>>, vector<64x32xbf16>
    %c0_1 = arith.constant 0 : index
    %c0_2 = arith.constant 0 : index
    %2 = vector.load %arg2[%c0_1, %c0_2] : memref<32x256xbf16, #tpu.memory_space<vmem>>, vector<32x256xbf16>
    %cst_3 = arith.constant dense<0.000000e+00> : vector<64x256xf32>
    %3 = tpu.matmul %1, %2, %cst_3 {dimension_numbers = #tpu.dot_dimension_numbers<[1], [0], [0], [1], [0, 0, 1, 1], [], []>} : vector<64x32xbf16>, vector<32x256xbf16>, vector<64x256xf32> -> vector<64x256xf32>
    %c0_4 = arith.constant 0 : index
    %c0_5 = arith.constant 0 : index
    %4 = vector.load %arg5[%c0_4, %c0_5] : memref<1x128xf32, #tpu.memory_space<vmem>>, vector<1x128xf32>
    %c0_6 = arith.constant 0 : index
    %c0_7 = arith.constant 0 : index
    %5 = vector.load %arg6[%c0_6, %c0_7] : memref<1x128xf32, #tpu.memory_space<vmem>>, vector<1x128xf32>
    %6 = vector.extract_strided_slice %3 {offsets = [0, 0], sizes = [8, 128], strides = [1, 1]} : vector<64x256xf32> to vector<8x128xf32>
    %7 = vector.broadcast %4 : vector<1x128xf32> to vector<8x128xf32>
    %8 = arith.addf %6, %7 : vector<8x128xf32>
    %9 = vector.extract_strided_slice %3 {offsets = [8, 0], sizes = [8, 128], strides = [1, 1]} : vector<64x256xf32> to vector<8x128xf32>
    %10 = vector.broadcast %4 : vector<1x128xf32> to vector<8x128xf32>
    %11 = arith.addf %9, %10 : vector<8x128xf32>
    %12 = vector.extract_strided_slice %3 {offsets = [16, 0], sizes = [8, 128], strides = [1, 1]} : vector<64x256xf32> to vector<8x128xf32>
    %13 = vector.broadcast %4 : vector<1x128xf32> to vector<8x128xf32>
    %14 = arith.addf %12, %13 : vector<8x128xf32>
    %15 = vector.extract_strided_slice %3 {offsets = [24, 0], sizes = [8, 128], strides = [1, 1]} : vector<64x256xf32> to vector<8x128xf32>
    %16 = vector.broadcast %4 : vector<1x128xf32> to vector<8x128xf32>
    %17 = arith.addf %15, %16 : vector<8x128xf32>
    %18 = vector.extract_strided_slice %3 {offsets = [32, 0], sizes = [8, 128], strides = [1, 1]} : vector<64x256xf32> to vector<8x128xf32>
    %19 = vector.broadcast %4 : vector<1x128xf32> to vector<8x128xf32>
    %20 = arith.addf %18, %19 : vector<8x128xf32>
    %21 = vector.extract_strided_slice %3 {offsets = [40, 0], sizes = [8, 128], strides = [1, 1]} : vector<64x256xf32> to vector<8x128xf32>
    %22 = vector.broadcast %4 : vector<1x128xf32> to vector<8x128xf32>
    %23 = arith.addf %21, %22 : vector<8x128xf32>
    %24 = vector.extract_strided_slice %3 {offsets = [48, 0], sizes = [8, 128], strides = [1, 1]} : vector<64x256xf32> to vector<8x128xf32>
    %25 = vector.broadcast %4 : vector<1x128xf32> to vector<8x128xf32>
    %26 = arith.addf %24, %25 : vector<8x128xf32>
    %27 = vector.extract_strided_slice %3 {offsets = [56, 0], sizes = [8, 128], strides = [1, 1]} : vector<64x256xf32> to vector<8x128xf32>
    %28 = vector.broadcast %4 : vector<1x128xf32> to vector<8x128xf32>
    %29 = arith.addf %27, %28 : vector<8x128xf32>
    %30 = vector.extract_strided_slice %3 {offsets = [56, 128], sizes = [8, 128], strides = [1, 1]} : vector<64x256xf32> to vector<8x128xf32>
    %31 = vector.broadcast %5 : vector<1x128xf32> to vector<8x128xf32>
    %32 = arith.addf %30, %31 : vector<8x128xf32>
    %33 = vector.extract_strided_slice %3 {offsets = [48, 128], sizes = [8, 128], strides = [1, 1]} : vector<64x256xf32> to vector<8x128xf32>
    %34 = vector.broadcast %5 : vector<1x128xf32> to vector<8x128xf32>
    %35 = arith.addf %33, %34 : vector<8x128xf32>
    %36 = vector.extract_strided_slice %3 {offsets = [40, 128], sizes = [8, 128], strides = [1, 1]} : vector<64x256xf32> to vector<8x128xf32>
    %37 = vector.broadcast %5 : vector<1x128xf32> to vector<8x128xf32>
    %38 = arith.addf %36, %37 : vector<8x128xf32>
    %39 = vector.extract_strided_slice %3 {offsets = [32, 128], sizes = [8, 128], strides = [1, 1]} : vector<64x256xf32> to vector<8x128xf32>
    %40 = vector.broadcast %5 : vector<1x128xf32> to vector<8x128xf32>
    %41 = arith.addf %39, %40 : vector<8x128xf32>
    %42 = vector.extract_strided_slice %3 {offsets = [24, 128], sizes = [8, 128], strides = [1, 1]} : vector<64x256xf32> to vector<8x128xf32>
    %43 = vector.broadcast %5 : vector<1x128xf32> to vector<8x128xf32>
    %44 = arith.addf %42, %43 : vector<8x128xf32>
    %45 = vector.extract_strided_slice %3 {offsets = [16, 128], sizes = [8, 128], strides = [1, 1]} : vector<64x256xf32> to vector<8x128xf32>
    %46 = vector.broadcast %5 : vector<1x128xf32> to vector<8x128xf32>
    %47 = arith.addf %45, %46 : vector<8x128xf32>
    %48 = vector.extract_strided_slice %3 {offsets = [8, 128], sizes = [8, 128], strides = [1, 1]} : vector<64x256xf32> to vector<8x128xf32>
    %49 = vector.broadcast %5 : vector<1x128xf32> to vector<8x128xf32>
    %50 = arith.addf %48, %49 : vector<8x128xf32>
    %51 = vector.extract_strided_slice %3 {offsets = [0, 128], sizes = [8, 128], strides = [1, 1]} : vector<64x256xf32> to vector<8x128xf32>
    %52 = vector.broadcast %5 : vector<1x128xf32> to vector<8x128xf32>
    %53 = arith.addf %51, %52 : vector<8x128xf32>
    %c0_8 = arith.constant 0 : index
    %c0_9 = arith.constant 0 : index
    %54 = vector.load %arg3[%c0_8, %c0_9] : memref<128x128xbf16, #tpu.memory_space<vmem>>, vector<128x128xbf16>
    %55 = arith.truncf %0 : vector<8x128xf32> to vector<8x128xbf16>
    %cst_10 = arith.constant dense<0.000000e+00> : vector<8x128xf32>
    %56 = tpu.matmul %55, %54, %cst_10 {dimension_numbers = #tpu.dot_dimension_numbers<[1], [0], [0], [1], [0, 0, 1, 1], [], []>} : vector<8x128xbf16>, vector<128x128xbf16>, vector<8x128xf32> -> vector<8x128xf32>
    %57 = arith.addf %8, %56 : vector<8x128xf32>
    %58 = math.tanh %57 : vector<8x128xf32>
    %59 = arith.truncf %58 : vector<8x128xf32> to vector<8x128xbf16>
    %cst_11 = arith.constant dense<0.000000e+00> : vector<8x128xf32>
    %60 = tpu.matmul %59, %54, %cst_11 {dimension_numbers = #tpu.dot_dimension_numbers<[1], [0], [0], [1], [0, 0, 1, 1], [], []>} : vector<8x128xbf16>, vector<128x128xbf16>, vector<8x128xf32> -> vector<8x128xf32>
    %61 = arith.addf %11, %60 : vector<8x128xf32>
    %62 = math.tanh %61 : vector<8x128xf32>
    %63 = arith.truncf %62 : vector<8x128xf32> to vector<8x128xbf16>
    %cst_12 = arith.constant dense<0.000000e+00> : vector<8x128xf32>
    %64 = tpu.matmul %63, %54, %cst_12 {dimension_numbers = #tpu.dot_dimension_numbers<[1], [0], [0], [1], [0, 0, 1, 1], [], []>} : vector<8x128xbf16>, vector<128x128xbf16>, vector<8x128xf32> -> vector<8x128xf32>
    %65 = arith.addf %14, %64 : vector<8x128xf32>
    %66 = math.tanh %65 : vector<8x128xf32>
    %67 = arith.truncf %66 : vector<8x128xf32> to vector<8x128xbf16>
    %cst_13 = arith.constant dense<0.000000e+00> : vector<8x128xf32>
    %68 = tpu.matmul %67, %54, %cst_13 {dimension_numbers = #tpu.dot_dimension_numbers<[1], [0], [0], [1], [0, 0, 1, 1], [], []>} : vector<8x128xbf16>, vector<128x128xbf16>, vector<8x128xf32> -> vector<8x128xf32>
    %69 = arith.addf %17, %68 : vector<8x128xf32>
    %70 = math.tanh %69 : vector<8x128xf32>
    %71 = arith.truncf %70 : vector<8x128xf32> to vector<8x128xbf16>
    %cst_14 = arith.constant dense<0.000000e+00> : vector<8x128xf32>
    %72 = tpu.matmul %71, %54, %cst_14 {dimension_numbers = #tpu.dot_dimension_numbers<[1], [0], [0], [1], [0, 0, 1, 1], [], []>} : vector<8x128xbf16>, vector<128x128xbf16>, vector<8x128xf32> -> vector<8x128xf32>
    %73 = arith.addf %20, %72 : vector<8x128xf32>
    %74 = math.tanh %73 : vector<8x128xf32>
    %75 = arith.truncf %74 : vector<8x128xf32> to vector<8x128xbf16>
    %cst_15 = arith.constant dense<0.000000e+00> : vector<8x128xf32>
    %76 = tpu.matmul %75, %54, %cst_15 {dimension_numbers = #tpu.dot_dimension_numbers<[1], [0], [0], [1], [0, 0, 1, 1], [], []>} : vector<8x128xbf16>, vector<128x128xbf16>, vector<8x128xf32> -> vector<8x128xf32>
    %77 = arith.addf %23, %76 : vector<8x128xf32>
    %78 = math.tanh %77 : vector<8x128xf32>
    %79 = arith.truncf %78 : vector<8x128xf32> to vector<8x128xbf16>
    %cst_16 = arith.constant dense<0.000000e+00> : vector<8x128xf32>
    %80 = tpu.matmul %79, %54, %cst_16 {dimension_numbers = #tpu.dot_dimension_numbers<[1], [0], [0], [1], [0, 0, 1, 1], [], []>} : vector<8x128xbf16>, vector<128x128xbf16>, vector<8x128xf32> -> vector<8x128xf32>
    %81 = arith.addf %26, %80 : vector<8x128xf32>
    %82 = math.tanh %81 : vector<8x128xf32>
    %83 = arith.truncf %82 : vector<8x128xf32> to vector<8x128xbf16>
    %cst_17 = arith.constant dense<0.000000e+00> : vector<8x128xf32>
    %84 = tpu.matmul %83, %54, %cst_17 {dimension_numbers = #tpu.dot_dimension_numbers<[1], [0], [0], [1], [0, 0, 1, 1], [], []>} : vector<8x128xbf16>, vector<128x128xbf16>, vector<8x128xf32> -> vector<8x128xf32>
    %85 = arith.addf %29, %84 : vector<8x128xf32>
    %86 = math.tanh %85 : vector<8x128xf32>
    %c0_18 = arith.constant 0 : index
    %c0_19 = arith.constant 0 : index
    %87 = vector.load %arg4[%c0_18, %c0_19] : memref<128x128xbf16, #tpu.memory_space<vmem>>, vector<128x128xbf16>
    %88 = arith.truncf %0 : vector<8x128xf32> to vector<8x128xbf16>
    %cst_20 = arith.constant dense<0.000000e+00> : vector<8x128xf32>
    %89 = tpu.matmul %88, %87, %cst_20 {dimension_numbers = #tpu.dot_dimension_numbers<[1], [0], [0], [1], [0, 0, 1, 1], [], []>} : vector<8x128xbf16>, vector<128x128xbf16>, vector<8x128xf32> -> vector<8x128xf32>
    %90 = arith.addf %32, %89 : vector<8x128xf32>
    %91 = math.tanh %90 : vector<8x128xf32>
    %92 = arith.truncf %91 : vector<8x128xf32> to vector<8x128xbf16>
    %cst_21 = arith.constant dense<0.000000e+00> : vector<8x128xf32>
    %93 = tpu.matmul %92, %87, %cst_21 {dimension_numbers = #tpu.dot_dimension_numbers<[1], [0], [0], [1], [0, 0, 1, 1], [], []>} : vector<8x128xbf16>, vector<128x128xbf16>, vector<8x128xf32> -> vector<8x128xf32>
    %94 = arith.addf %35, %93 : vector<8x128xf32>
    %95 = math.tanh %94 : vector<8x128xf32>
    %96 = arith.truncf %95 : vector<8x128xf32> to vector<8x128xbf16>
    %cst_22 = arith.constant dense<0.000000e+00> : vector<8x128xf32>
    %97 = tpu.matmul %96, %87, %cst_22 {dimension_numbers = #tpu.dot_dimension_numbers<[1], [0], [0], [1], [0, 0, 1, 1], [], []>} : vector<8x128xbf16>, vector<128x128xbf16>, vector<8x128xf32> -> vector<8x128xf32>
    %98 = arith.addf %38, %97 : vector<8x128xf32>
    %99 = math.tanh %98 : vector<8x128xf32>
    %100 = arith.truncf %99 : vector<8x128xf32> to vector<8x128xbf16>
    %cst_23 = arith.constant dense<0.000000e+00> : vector<8x128xf32>
    %101 = tpu.matmul %100, %87, %cst_23 {dimension_numbers = #tpu.dot_dimension_numbers<[1], [0], [0], [1], [0, 0, 1, 1], [], []>} : vector<8x128xbf16>, vector<128x128xbf16>, vector<8x128xf32> -> vector<8x128xf32>
    %102 = arith.addf %41, %101 : vector<8x128xf32>
    %103 = math.tanh %102 : vector<8x128xf32>
    %104 = arith.truncf %103 : vector<8x128xf32> to vector<8x128xbf16>
    %cst_24 = arith.constant dense<0.000000e+00> : vector<8x128xf32>
    %105 = tpu.matmul %104, %87, %cst_24 {dimension_numbers = #tpu.dot_dimension_numbers<[1], [0], [0], [1], [0, 0, 1, 1], [], []>} : vector<8x128xbf16>, vector<128x128xbf16>, vector<8x128xf32> -> vector<8x128xf32>
    %106 = arith.addf %44, %105 : vector<8x128xf32>
    %107 = math.tanh %106 : vector<8x128xf32>
    %108 = arith.truncf %107 : vector<8x128xf32> to vector<8x128xbf16>
    %cst_25 = arith.constant dense<0.000000e+00> : vector<8x128xf32>
    %109 = tpu.matmul %108, %87, %cst_25 {dimension_numbers = #tpu.dot_dimension_numbers<[1], [0], [0], [1], [0, 0, 1, 1], [], []>} : vector<8x128xbf16>, vector<128x128xbf16>, vector<8x128xf32> -> vector<8x128xf32>
    %110 = arith.addf %47, %109 : vector<8x128xf32>
    %111 = math.tanh %110 : vector<8x128xf32>
    %112 = arith.truncf %111 : vector<8x128xf32> to vector<8x128xbf16>
    %cst_26 = arith.constant dense<0.000000e+00> : vector<8x128xf32>
    %113 = tpu.matmul %112, %87, %cst_26 {dimension_numbers = #tpu.dot_dimension_numbers<[1], [0], [0], [1], [0, 0, 1, 1], [], []>} : vector<8x128xbf16>, vector<128x128xbf16>, vector<8x128xf32> -> vector<8x128xf32>
    %114 = arith.addf %50, %113 : vector<8x128xf32>
    %115 = math.tanh %114 : vector<8x128xf32>
    %116 = arith.truncf %115 : vector<8x128xf32> to vector<8x128xbf16>
    %cst_27 = arith.constant dense<0.000000e+00> : vector<8x128xf32>
    %117 = tpu.matmul %116, %87, %cst_27 {dimension_numbers = #tpu.dot_dimension_numbers<[1], [0], [0], [1], [0, 0, 1, 1], [], []>} : vector<8x128xbf16>, vector<128x128xbf16>, vector<8x128xf32> -> vector<8x128xf32>
    %118 = arith.addf %53, %117 : vector<8x128xf32>
    %119 = math.tanh %118 : vector<8x128xf32>
    %120 = tpu.concatenate %58, %62, %66, %70, %74, %78, %82, %86 in 0 : vector<8x128xf32>, vector<8x128xf32>, vector<8x128xf32>, vector<8x128xf32>, vector<8x128xf32>, vector<8x128xf32>, vector<8x128xf32>, vector<8x128xf32> -> vector<64x128xf32>
    %121 = arith.truncf %120 : vector<64x128xf32> to vector<64x128xbf16>
    %122 = tpu.concatenate %91, %95, %99, %103, %107, %111, %115, %119 in 0 : vector<8x128xf32>, vector<8x128xf32>, vector<8x128xf32>, vector<8x128xf32>, vector<8x128xf32>, vector<8x128xf32>, vector<8x128xf32>, vector<8x128xf32> -> vector<64x128xf32>
    %123 = arith.truncf %122 : vector<64x128xf32> to vector<64x128xbf16>
    %c0_28 = arith.constant 0 : index
    %c0_29 = arith.constant 0 : index
    %124 = vector.load %arg7[%c0_28, %c0_29] : memref<256x256xbf16, #tpu.memory_space<vmem>>, vector<128x256xbf16>
    %cst_30 = arith.constant dense<0.000000e+00> : vector<64x256xf32>
    %125 = tpu.matmul %121, %124, %cst_30 {dimension_numbers = #tpu.dot_dimension_numbers<[1], [0], [0], [1], [0, 0, 1, 1], [], []>} : vector<64x128xbf16>, vector<128x256xbf16>, vector<64x256xf32> -> vector<64x256xf32>
    %c128 = arith.constant 128 : index
    %c0_31 = arith.constant 0 : index
    %126 = vector.load %arg7[%c128, %c0_31] : memref<256x256xbf16, #tpu.memory_space<vmem>>, vector<128x256xbf16>
    %cst_32 = arith.constant dense<0.000000e+00> : vector<64x256xf32>
    %127 = tpu.matmul %123, %126, %cst_32 {dimension_numbers = #tpu.dot_dimension_numbers<[1], [0], [0], [1], [0, 0, 1, 1], [], []>} : vector<64x128xbf16>, vector<128x256xbf16>, vector<64x256xf32> -> vector<64x256xf32>
    %c0_33 = arith.constant 0 : index
    %c0_34 = arith.constant 0 : index
    %128 = vector.load %arg10[%c0_33, %c0_34] : memref<1x128xf32, #tpu.memory_space<vmem>>, vector<1x128xf32>
    %c0_35 = arith.constant 0 : index
    %c0_36 = arith.constant 0 : index
    %129 = vector.load %arg11[%c0_35, %c0_36] : memref<1x128xf32, #tpu.memory_space<vmem>>, vector<1x128xf32>
    %130 = vector.extract_strided_slice %125 {offsets = [0, 0], sizes = [8, 128], strides = [1, 1]} : vector<64x256xf32> to vector<8x128xf32>
    %131 = vector.extract_strided_slice %127 {offsets = [56, 0], sizes = [8, 128], strides = [1, 1]} : vector<64x256xf32> to vector<8x128xf32>
    %132 = arith.addf %130, %131 : vector<8x128xf32>
    %133 = vector.broadcast %128 : vector<1x128xf32> to vector<8x128xf32>
    %134 = arith.addf %132, %133 : vector<8x128xf32>
    %135 = vector.extract_strided_slice %125 {offsets = [8, 0], sizes = [8, 128], strides = [1, 1]} : vector<64x256xf32> to vector<8x128xf32>
    %136 = vector.extract_strided_slice %127 {offsets = [48, 0], sizes = [8, 128], strides = [1, 1]} : vector<64x256xf32> to vector<8x128xf32>
    %137 = arith.addf %135, %136 : vector<8x128xf32>
    %138 = vector.broadcast %128 : vector<1x128xf32> to vector<8x128xf32>
    %139 = arith.addf %137, %138 : vector<8x128xf32>
    %140 = vector.extract_strided_slice %125 {offsets = [16, 0], sizes = [8, 128], strides = [1, 1]} : vector<64x256xf32> to vector<8x128xf32>
    %141 = vector.extract_strided_slice %127 {offsets = [40, 0], sizes = [8, 128], strides = [1, 1]} : vector<64x256xf32> to vector<8x128xf32>
    %142 = arith.addf %140, %141 : vector<8x128xf32>
    %143 = vector.broadcast %128 : vector<1x128xf32> to vector<8x128xf32>
    %144 = arith.addf %142, %143 : vector<8x128xf32>
    %145 = vector.extract_strided_slice %125 {offsets = [24, 0], sizes = [8, 128], strides = [1, 1]} : vector<64x256xf32> to vector<8x128xf32>
    %146 = vector.extract_strided_slice %127 {offsets = [32, 0], sizes = [8, 128], strides = [1, 1]} : vector<64x256xf32> to vector<8x128xf32>
    %147 = arith.addf %145, %146 : vector<8x128xf32>
    %148 = vector.broadcast %128 : vector<1x128xf32> to vector<8x128xf32>
    %149 = arith.addf %147, %148 : vector<8x128xf32>
    %150 = vector.extract_strided_slice %125 {offsets = [32, 0], sizes = [8, 128], strides = [1, 1]} : vector<64x256xf32> to vector<8x128xf32>
    %151 = vector.extract_strided_slice %127 {offsets = [24, 0], sizes = [8, 128], strides = [1, 1]} : vector<64x256xf32> to vector<8x128xf32>
    %152 = arith.addf %150, %151 : vector<8x128xf32>
    %153 = vector.broadcast %128 : vector<1x128xf32> to vector<8x128xf32>
    %154 = arith.addf %152, %153 : vector<8x128xf32>
    %155 = vector.extract_strided_slice %125 {offsets = [40, 0], sizes = [8, 128], strides = [1, 1]} : vector<64x256xf32> to vector<8x128xf32>
    %156 = vector.extract_strided_slice %127 {offsets = [16, 0], sizes = [8, 128], strides = [1, 1]} : vector<64x256xf32> to vector<8x128xf32>
    %157 = arith.addf %155, %156 : vector<8x128xf32>
    %158 = vector.broadcast %128 : vector<1x128xf32> to vector<8x128xf32>
    %159 = arith.addf %157, %158 : vector<8x128xf32>
    %160 = vector.extract_strided_slice %125 {offsets = [48, 0], sizes = [8, 128], strides = [1, 1]} : vector<64x256xf32> to vector<8x128xf32>
    %161 = vector.extract_strided_slice %127 {offsets = [8, 0], sizes = [8, 128], strides = [1, 1]} : vector<64x256xf32> to vector<8x128xf32>
    %162 = arith.addf %160, %161 : vector<8x128xf32>
    %163 = vector.broadcast %128 : vector<1x128xf32> to vector<8x128xf32>
    %164 = arith.addf %162, %163 : vector<8x128xf32>
    %165 = vector.extract_strided_slice %125 {offsets = [56, 0], sizes = [8, 128], strides = [1, 1]} : vector<64x256xf32> to vector<8x128xf32>
    %166 = vector.extract_strided_slice %127 {offsets = [0, 0], sizes = [8, 128], strides = [1, 1]} : vector<64x256xf32> to vector<8x128xf32>
    %167 = arith.addf %165, %166 : vector<8x128xf32>
    %168 = vector.broadcast %128 : vector<1x128xf32> to vector<8x128xf32>
    %169 = arith.addf %167, %168 : vector<8x128xf32>
    %170 = vector.extract_strided_slice %125 {offsets = [56, 128], sizes = [8, 128], strides = [1, 1]} : vector<64x256xf32> to vector<8x128xf32>
    %171 = vector.extract_strided_slice %127 {offsets = [0, 128], sizes = [8, 128], strides = [1, 1]} : vector<64x256xf32> to vector<8x128xf32>
    %172 = arith.addf %170, %171 : vector<8x128xf32>
    %173 = vector.broadcast %129 : vector<1x128xf32> to vector<8x128xf32>
    %174 = arith.addf %172, %173 : vector<8x128xf32>
    %175 = vector.extract_strided_slice %125 {offsets = [48, 128], sizes = [8, 128], strides = [1, 1]} : vector<64x256xf32> to vector<8x128xf32>
    %176 = vector.extract_strided_slice %127 {offsets = [8, 128], sizes = [8, 128], strides = [1, 1]} : vector<64x256xf32> to vector<8x128xf32>
    %177 = arith.addf %175, %176 : vector<8x128xf32>
    %178 = vector.broadcast %129 : vector<1x128xf32> to vector<8x128xf32>
    %179 = arith.addf %177, %178 : vector<8x128xf32>
    %180 = vector.extract_strided_slice %125 {offsets = [40, 128], sizes = [8, 128], strides = [1, 1]} : vector<64x256xf32> to vector<8x128xf32>
    %181 = vector.extract_strided_slice %127 {offsets = [16, 128], sizes = [8, 128], strides = [1, 1]} : vector<64x256xf32> to vector<8x128xf32>
    %182 = arith.addf %180, %181 : vector<8x128xf32>
    %183 = vector.broadcast %129 : vector<1x128xf32> to vector<8x128xf32>
    %184 = arith.addf %182, %183 : vector<8x128xf32>
    %185 = vector.extract_strided_slice %125 {offsets = [32, 128], sizes = [8, 128], strides = [1, 1]} : vector<64x256xf32> to vector<8x128xf32>
    %186 = vector.extract_strided_slice %127 {offsets = [24, 128], sizes = [8, 128], strides = [1, 1]} : vector<64x256xf32> to vector<8x128xf32>
    %187 = arith.addf %185, %186 : vector<8x128xf32>
    %188 = vector.broadcast %129 : vector<1x128xf32> to vector<8x128xf32>
    %189 = arith.addf %187, %188 : vector<8x128xf32>
    %190 = vector.extract_strided_slice %125 {offsets = [24, 128], sizes = [8, 128], strides = [1, 1]} : vector<64x256xf32> to vector<8x128xf32>
    %191 = vector.extract_strided_slice %127 {offsets = [32, 128], sizes = [8, 128], strides = [1, 1]} : vector<64x256xf32> to vector<8x128xf32>
    %192 = arith.addf %190, %191 : vector<8x128xf32>
    %193 = vector.broadcast %129 : vector<1x128xf32> to vector<8x128xf32>
    %194 = arith.addf %192, %193 : vector<8x128xf32>
    %195 = vector.extract_strided_slice %125 {offsets = [16, 128], sizes = [8, 128], strides = [1, 1]} : vector<64x256xf32> to vector<8x128xf32>
    %196 = vector.extract_strided_slice %127 {offsets = [40, 128], sizes = [8, 128], strides = [1, 1]} : vector<64x256xf32> to vector<8x128xf32>
    %197 = arith.addf %195, %196 : vector<8x128xf32>
    %198 = vector.broadcast %129 : vector<1x128xf32> to vector<8x128xf32>
    %199 = arith.addf %197, %198 : vector<8x128xf32>
    %200 = vector.extract_strided_slice %125 {offsets = [8, 128], sizes = [8, 128], strides = [1, 1]} : vector<64x256xf32> to vector<8x128xf32>
    %201 = vector.extract_strided_slice %127 {offsets = [48, 128], sizes = [8, 128], strides = [1, 1]} : vector<64x256xf32> to vector<8x128xf32>
    %202 = arith.addf %200, %201 : vector<8x128xf32>
    %203 = vector.broadcast %129 : vector<1x128xf32> to vector<8x128xf32>
    %204 = arith.addf %202, %203 : vector<8x128xf32>
    %205 = vector.extract_strided_slice %125 {offsets = [0, 128], sizes = [8, 128], strides = [1, 1]} : vector<64x256xf32> to vector<8x128xf32>
    %206 = vector.extract_strided_slice %127 {offsets = [56, 128], sizes = [8, 128], strides = [1, 1]} : vector<64x256xf32> to vector<8x128xf32>
    %207 = arith.addf %205, %206 : vector<8x128xf32>
    %208 = vector.broadcast %129 : vector<1x128xf32> to vector<8x128xf32>
    %209 = arith.addf %207, %208 : vector<8x128xf32>
    %c0_37 = arith.constant 0 : index
    %c0_38 = arith.constant 0 : index
    %210 = vector.load %arg8[%c0_37, %c0_38] : memref<128x128xbf16, #tpu.memory_space<vmem>>, vector<128x128xbf16>
    %211 = arith.truncf %0 : vector<8x128xf32> to vector<8x128xbf16>
    %cst_39 = arith.constant dense<0.000000e+00> : vector<8x128xf32>
    %212 = tpu.matmul %211, %210, %cst_39 {dimension_numbers = #tpu.dot_dimension_numbers<[1], [0], [0], [1], [0, 0, 1, 1], [], []>} : vector<8x128xbf16>, vector<128x128xbf16>, vector<8x128xf32> -> vector<8x128xf32>
    %213 = arith.addf %134, %212 : vector<8x128xf32>
    %214 = math.tanh %213 : vector<8x128xf32>
    %215 = arith.truncf %214 : vector<8x128xf32> to vector<8x128xbf16>
    %cst_40 = arith.constant dense<0.000000e+00> : vector<8x128xf32>
    %216 = tpu.matmul %215, %210, %cst_40 {dimension_numbers = #tpu.dot_dimension_numbers<[1], [0], [0], [1], [0, 0, 1, 1], [], []>} : vector<8x128xbf16>, vector<128x128xbf16>, vector<8x128xf32> -> vector<8x128xf32>
    %217 = arith.addf %139, %216 : vector<8x128xf32>
    %218 = math.tanh %217 : vector<8x128xf32>
    %219 = arith.truncf %218 : vector<8x128xf32> to vector<8x128xbf16>
    %cst_41 = arith.constant dense<0.000000e+00> : vector<8x128xf32>
    %220 = tpu.matmul %219, %210, %cst_41 {dimension_numbers = #tpu.dot_dimension_numbers<[1], [0], [0], [1], [0, 0, 1, 1], [], []>} : vector<8x128xbf16>, vector<128x128xbf16>, vector<8x128xf32> -> vector<8x128xf32>
    %221 = arith.addf %144, %220 : vector<8x128xf32>
    %222 = math.tanh %221 : vector<8x128xf32>
    %223 = arith.truncf %222 : vector<8x128xf32> to vector<8x128xbf16>
    %cst_42 = arith.constant dense<0.000000e+00> : vector<8x128xf32>
    %224 = tpu.matmul %223, %210, %cst_42 {dimension_numbers = #tpu.dot_dimension_numbers<[1], [0], [0], [1], [0, 0, 1, 1], [], []>} : vector<8x128xbf16>, vector<128x128xbf16>, vector<8x128xf32> -> vector<8x128xf32>
    %225 = arith.addf %149, %224 : vector<8x128xf32>
    %226 = math.tanh %225 : vector<8x128xf32>
    %227 = arith.truncf %226 : vector<8x128xf32> to vector<8x128xbf16>
    %cst_43 = arith.constant dense<0.000000e+00> : vector<8x128xf32>
    %228 = tpu.matmul %227, %210, %cst_43 {dimension_numbers = #tpu.dot_dimension_numbers<[1], [0], [0], [1], [0, 0, 1, 1], [], []>} : vector<8x128xbf16>, vector<128x128xbf16>, vector<8x128xf32> -> vector<8x128xf32>
    %229 = arith.addf %154, %228 : vector<8x128xf32>
    %230 = math.tanh %229 : vector<8x128xf32>
    %231 = arith.truncf %230 : vector<8x128xf32> to vector<8x128xbf16>
    %cst_44 = arith.constant dense<0.000000e+00> : vector<8x128xf32>
    %232 = tpu.matmul %231, %210, %cst_44 {dimension_numbers = #tpu.dot_dimension_numbers<[1], [0], [0], [1], [0, 0, 1, 1], [], []>} : vector<8x128xbf16>, vector<128x128xbf16>, vector<8x128xf32> -> vector<8x128xf32>
    %233 = arith.addf %159, %232 : vector<8x128xf32>
    %234 = math.tanh %233 : vector<8x128xf32>
    %235 = arith.truncf %234 : vector<8x128xf32> to vector<8x128xbf16>
    %cst_45 = arith.constant dense<0.000000e+00> : vector<8x128xf32>
    %236 = tpu.matmul %235, %210, %cst_45 {dimension_numbers = #tpu.dot_dimension_numbers<[1], [0], [0], [1], [0, 0, 1, 1], [], []>} : vector<8x128xbf16>, vector<128x128xbf16>, vector<8x128xf32> -> vector<8x128xf32>
    %237 = arith.addf %164, %236 : vector<8x128xf32>
    %238 = math.tanh %237 : vector<8x128xf32>
    %239 = arith.truncf %238 : vector<8x128xf32> to vector<8x128xbf16>
    %cst_46 = arith.constant dense<0.000000e+00> : vector<8x128xf32>
    %240 = tpu.matmul %239, %210, %cst_46 {dimension_numbers = #tpu.dot_dimension_numbers<[1], [0], [0], [1], [0, 0, 1, 1], [], []>} : vector<8x128xbf16>, vector<128x128xbf16>, vector<8x128xf32> -> vector<8x128xf32>
    %241 = arith.addf %169, %240 : vector<8x128xf32>
    %242 = math.tanh %241 : vector<8x128xf32>
    %c0_47 = arith.constant 0 : index
    %c0_48 = arith.constant 0 : index
    %243 = vector.load %arg9[%c0_47, %c0_48] : memref<128x128xbf16, #tpu.memory_space<vmem>>, vector<128x128xbf16>
    %244 = arith.truncf %0 : vector<8x128xf32> to vector<8x128xbf16>
    %cst_49 = arith.constant dense<0.000000e+00> : vector<8x128xf32>
    %245 = tpu.matmul %244, %243, %cst_49 {dimension_numbers = #tpu.dot_dimension_numbers<[1], [0], [0], [1], [0, 0, 1, 1], [], []>} : vector<8x128xbf16>, vector<128x128xbf16>, vector<8x128xf32> -> vector<8x128xf32>
    %246 = arith.addf %174, %245 : vector<8x128xf32>
    %247 = math.tanh %246 : vector<8x128xf32>
    %248 = arith.truncf %247 : vector<8x128xf32> to vector<8x128xbf16>
    %cst_50 = arith.constant dense<0.000000e+00> : vector<8x128xf32>
    %249 = tpu.matmul %248, %243, %cst_50 {dimension_numbers = #tpu.dot_dimension_numbers<[1], [0], [0], [1], [0, 0, 1, 1], [], []>} : vector<8x128xbf16>, vector<128x128xbf16>, vector<8x128xf32> -> vector<8x128xf32>
    %250 = arith.addf %179, %249 : vector<8x128xf32>
    %251 = math.tanh %250 : vector<8x128xf32>
    %252 = arith.truncf %251 : vector<8x128xf32> to vector<8x128xbf16>
    %cst_51 = arith.constant dense<0.000000e+00> : vector<8x128xf32>
    %253 = tpu.matmul %252, %243, %cst_51 {dimension_numbers = #tpu.dot_dimension_numbers<[1], [0], [0], [1], [0, 0, 1, 1], [], []>} : vector<8x128xbf16>, vector<128x128xbf16>, vector<8x128xf32> -> vector<8x128xf32>
    %254 = arith.addf %184, %253 : vector<8x128xf32>
    %255 = math.tanh %254 : vector<8x128xf32>
    %256 = arith.truncf %255 : vector<8x128xf32> to vector<8x128xbf16>
    %cst_52 = arith.constant dense<0.000000e+00> : vector<8x128xf32>
    %257 = tpu.matmul %256, %243, %cst_52 {dimension_numbers = #tpu.dot_dimension_numbers<[1], [0], [0], [1], [0, 0, 1, 1], [], []>} : vector<8x128xbf16>, vector<128x128xbf16>, vector<8x128xf32> -> vector<8x128xf32>
    %258 = arith.addf %189, %257 : vector<8x128xf32>
    %259 = math.tanh %258 : vector<8x128xf32>
    %260 = arith.truncf %259 : vector<8x128xf32> to vector<8x128xbf16>
    %cst_53 = arith.constant dense<0.000000e+00> : vector<8x128xf32>
    %261 = tpu.matmul %260, %243, %cst_53 {dimension_numbers = #tpu.dot_dimension_numbers<[1], [0], [0], [1], [0, 0, 1, 1], [], []>} : vector<8x128xbf16>, vector<128x128xbf16>, vector<8x128xf32> -> vector<8x128xf32>
    %262 = arith.addf %194, %261 : vector<8x128xf32>
    %263 = math.tanh %262 : vector<8x128xf32>
    %264 = arith.truncf %263 : vector<8x128xf32> to vector<8x128xbf16>
    %cst_54 = arith.constant dense<0.000000e+00> : vector<8x128xf32>
    %265 = tpu.matmul %264, %243, %cst_54 {dimension_numbers = #tpu.dot_dimension_numbers<[1], [0], [0], [1], [0, 0, 1, 1], [], []>} : vector<8x128xbf16>, vector<128x128xbf16>, vector<8x128xf32> -> vector<8x128xf32>
    %266 = arith.addf %199, %265 : vector<8x128xf32>
    %267 = math.tanh %266 : vector<8x128xf32>
    %268 = arith.truncf %267 : vector<8x128xf32> to vector<8x128xbf16>
    %cst_55 = arith.constant dense<0.000000e+00> : vector<8x128xf32>
    %269 = tpu.matmul %268, %243, %cst_55 {dimension_numbers = #tpu.dot_dimension_numbers<[1], [0], [0], [1], [0, 0, 1, 1], [], []>} : vector<8x128xbf16>, vector<128x128xbf16>, vector<8x128xf32> -> vector<8x128xf32>
    %270 = arith.addf %204, %269 : vector<8x128xf32>
    %271 = math.tanh %270 : vector<8x128xf32>
    %272 = arith.truncf %271 : vector<8x128xf32> to vector<8x128xbf16>
    %cst_56 = arith.constant dense<0.000000e+00> : vector<8x128xf32>
    %273 = tpu.matmul %272, %243, %cst_56 {dimension_numbers = #tpu.dot_dimension_numbers<[1], [0], [0], [1], [0, 0, 1, 1], [], []>} : vector<8x128xbf16>, vector<128x128xbf16>, vector<8x128xf32> -> vector<8x128xf32>
    %274 = arith.addf %209, %273 : vector<8x128xf32>
    %275 = math.tanh %274 : vector<8x128xf32>
    %c0_57 = arith.constant 0 : index
    %c0_58 = arith.constant 0 : index
    %276 = vector.load %arg1[%c0_57, %c0_58] : memref<64x32xbf16, #tpu.memory_space<vmem>>, vector<64x32xbf16>
    %c0_59 = arith.constant 0 : index
    %c0_60 = arith.constant 0 : index
    %277 = vector.load %arg12[%c0_59, %c0_60] : memref<32x256xbf16, #tpu.memory_space<vmem>>, vector<32x256xbf16>
    %cst_61 = arith.constant dense<0.000000e+00> : vector<64x256xf32>
    %278 = tpu.matmul %276, %277, %cst_61 {dimension_numbers = #tpu.dot_dimension_numbers<[1], [0], [0], [1], [0, 0, 1, 1], [], []>} : vector<64x32xbf16>, vector<32x256xbf16>, vector<64x256xf32> -> vector<64x256xf32>
    %c0_62 = arith.constant 0 : index
    %c0_63 = arith.constant 0 : index
    %279 = vector.load %arg15[%c0_62, %c0_63] : memref<1x128xf32, #tpu.memory_space<vmem>>, vector<1x128xf32>
    %c0_64 = arith.constant 0 : index
    %c0_65 = arith.constant 0 : index
    %280 = vector.load %arg16[%c0_64, %c0_65] : memref<1x128xf32, #tpu.memory_space<vmem>>, vector<1x128xf32>
    %281 = vector.extract_strided_slice %278 {offsets = [0, 0], sizes = [8, 128], strides = [1, 1]} : vector<64x256xf32> to vector<8x128xf32>
    %282 = vector.broadcast %279 : vector<1x128xf32> to vector<8x128xf32>
    %283 = arith.addf %281, %282 : vector<8x128xf32>
    %284 = vector.extract_strided_slice %278 {offsets = [8, 0], sizes = [8, 128], strides = [1, 1]} : vector<64x256xf32> to vector<8x128xf32>
    %285 = vector.broadcast %279 : vector<1x128xf32> to vector<8x128xf32>
    %286 = arith.addf %284, %285 : vector<8x128xf32>
    %287 = vector.extract_strided_slice %278 {offsets = [16, 0], sizes = [8, 128], strides = [1, 1]} : vector<64x256xf32> to vector<8x128xf32>
    %288 = vector.broadcast %279 : vector<1x128xf32> to vector<8x128xf32>
    %289 = arith.addf %287, %288 : vector<8x128xf32>
    %290 = vector.extract_strided_slice %278 {offsets = [24, 0], sizes = [8, 128], strides = [1, 1]} : vector<64x256xf32> to vector<8x128xf32>
    %291 = vector.broadcast %279 : vector<1x128xf32> to vector<8x128xf32>
    %292 = arith.addf %290, %291 : vector<8x128xf32>
    %293 = vector.extract_strided_slice %278 {offsets = [32, 0], sizes = [8, 128], strides = [1, 1]} : vector<64x256xf32> to vector<8x128xf32>
    %294 = vector.broadcast %279 : vector<1x128xf32> to vector<8x128xf32>
    %295 = arith.addf %293, %294 : vector<8x128xf32>
    %296 = vector.extract_strided_slice %278 {offsets = [40, 0], sizes = [8, 128], strides = [1, 1]} : vector<64x256xf32> to vector<8x128xf32>
    %297 = vector.broadcast %279 : vector<1x128xf32> to vector<8x128xf32>
    %298 = arith.addf %296, %297 : vector<8x128xf32>
    %299 = vector.extract_strided_slice %278 {offsets = [48, 0], sizes = [8, 128], strides = [1, 1]} : vector<64x256xf32> to vector<8x128xf32>
    %300 = vector.broadcast %279 : vector<1x128xf32> to vector<8x128xf32>
    %301 = arith.addf %299, %300 : vector<8x128xf32>
    %302 = vector.extract_strided_slice %278 {offsets = [56, 0], sizes = [8, 128], strides = [1, 1]} : vector<64x256xf32> to vector<8x128xf32>
    %303 = vector.broadcast %279 : vector<1x128xf32> to vector<8x128xf32>
    %304 = arith.addf %302, %303 : vector<8x128xf32>
    %305 = vector.extract_strided_slice %278 {offsets = [56, 128], sizes = [8, 128], strides = [1, 1]} : vector<64x256xf32> to vector<8x128xf32>
    %306 = vector.broadcast %280 : vector<1x128xf32> to vector<8x128xf32>
    %307 = arith.addf %305, %306 : vector<8x128xf32>
    %308 = vector.extract_strided_slice %278 {offsets = [48, 128], sizes = [8, 128], strides = [1, 1]} : vector<64x256xf32> to vector<8x128xf32>
    %309 = vector.broadcast %280 : vector<1x128xf32> to vector<8x128xf32>
    %310 = arith.addf %308, %309 : vector<8x128xf32>
    %311 = vector.extract_strided_slice %278 {offsets = [40, 128], sizes = [8, 128], strides = [1, 1]} : vector<64x256xf32> to vector<8x128xf32>
    %312 = vector.broadcast %280 : vector<1x128xf32> to vector<8x128xf32>
    %313 = arith.addf %311, %312 : vector<8x128xf32>
    %314 = vector.extract_strided_slice %278 {offsets = [32, 128], sizes = [8, 128], strides = [1, 1]} : vector<64x256xf32> to vector<8x128xf32>
    %315 = vector.broadcast %280 : vector<1x128xf32> to vector<8x128xf32>
    %316 = arith.addf %314, %315 : vector<8x128xf32>
    %317 = vector.extract_strided_slice %278 {offsets = [24, 128], sizes = [8, 128], strides = [1, 1]} : vector<64x256xf32> to vector<8x128xf32>
    %318 = vector.broadcast %280 : vector<1x128xf32> to vector<8x128xf32>
    %319 = arith.addf %317, %318 : vector<8x128xf32>
    %320 = vector.extract_strided_slice %278 {offsets = [16, 128], sizes = [8, 128], strides = [1, 1]} : vector<64x256xf32> to vector<8x128xf32>
    %321 = vector.broadcast %280 : vector<1x128xf32> to vector<8x128xf32>
    %322 = arith.addf %320, %321 : vector<8x128xf32>
    %323 = vector.extract_strided_slice %278 {offsets = [8, 128], sizes = [8, 128], strides = [1, 1]} : vector<64x256xf32> to vector<8x128xf32>
    %324 = vector.broadcast %280 : vector<1x128xf32> to vector<8x128xf32>
    %325 = arith.addf %323, %324 : vector<8x128xf32>
    %326 = vector.extract_strided_slice %278 {offsets = [0, 128], sizes = [8, 128], strides = [1, 1]} : vector<64x256xf32> to vector<8x128xf32>
    %327 = vector.broadcast %280 : vector<1x128xf32> to vector<8x128xf32>
    %328 = arith.addf %326, %327 : vector<8x128xf32>
    %c0_66 = arith.constant 0 : index
    %c0_67 = arith.constant 0 : index
    %329 = vector.load %arg13[%c0_66, %c0_67] : memref<128x128xbf16, #tpu.memory_space<vmem>>, vector<128x128xbf16>
    %330 = arith.truncf %86 : vector<8x128xf32> to vector<8x128xbf16>
    %cst_68 = arith.constant dense<0.000000e+00> : vector<8x128xf32>
    %331 = tpu.matmul %330, %329, %cst_68 {dimension_numbers = #tpu.dot_dimension_numbers<[1], [0], [0], [1], [0, 0, 1, 1], [], []>} : vector<8x128xbf16>, vector<128x128xbf16>, vector<8x128xf32> -> vector<8x128xf32>
    %332 = arith.addf %283, %331 : vector<8x128xf32>
    %333 = math.tanh %332 : vector<8x128xf32>
    %334 = arith.truncf %333 : vector<8x128xf32> to vector<8x128xbf16>
    %cst_69 = arith.constant dense<0.000000e+00> : vector<8x128xf32>
    %335 = tpu.matmul %334, %329, %cst_69 {dimension_numbers = #tpu.dot_dimension_numbers<[1], [0], [0], [1], [0, 0, 1, 1], [], []>} : vector<8x128xbf16>, vector<128x128xbf16>, vector<8x128xf32> -> vector<8x128xf32>
    %336 = arith.addf %286, %335 : vector<8x128xf32>
    %337 = math.tanh %336 : vector<8x128xf32>
    %338 = arith.truncf %337 : vector<8x128xf32> to vector<8x128xbf16>
    %cst_70 = arith.constant dense<0.000000e+00> : vector<8x128xf32>
    %339 = tpu.matmul %338, %329, %cst_70 {dimension_numbers = #tpu.dot_dimension_numbers<[1], [0], [0], [1], [0, 0, 1, 1], [], []>} : vector<8x128xbf16>, vector<128x128xbf16>, vector<8x128xf32> -> vector<8x128xf32>
    %340 = arith.addf %289, %339 : vector<8x128xf32>
    %341 = math.tanh %340 : vector<8x128xf32>
    %342 = arith.truncf %341 : vector<8x128xf32> to vector<8x128xbf16>
    %cst_71 = arith.constant dense<0.000000e+00> : vector<8x128xf32>
    %343 = tpu.matmul %342, %329, %cst_71 {dimension_numbers = #tpu.dot_dimension_numbers<[1], [0], [0], [1], [0, 0, 1, 1], [], []>} : vector<8x128xbf16>, vector<128x128xbf16>, vector<8x128xf32> -> vector<8x128xf32>
    %344 = arith.addf %292, %343 : vector<8x128xf32>
    %345 = math.tanh %344 : vector<8x128xf32>
    %346 = arith.truncf %345 : vector<8x128xf32> to vector<8x128xbf16>
    %cst_72 = arith.constant dense<0.000000e+00> : vector<8x128xf32>
    %347 = tpu.matmul %346, %329, %cst_72 {dimension_numbers = #tpu.dot_dimension_numbers<[1], [0], [0], [1], [0, 0, 1, 1], [], []>} : vector<8x128xbf16>, vector<128x128xbf16>, vector<8x128xf32> -> vector<8x128xf32>
    %348 = arith.addf %295, %347 : vector<8x128xf32>
    %349 = math.tanh %348 : vector<8x128xf32>
    %350 = arith.truncf %349 : vector<8x128xf32> to vector<8x128xbf16>
    %cst_73 = arith.constant dense<0.000000e+00> : vector<8x128xf32>
    %351 = tpu.matmul %350, %329, %cst_73 {dimension_numbers = #tpu.dot_dimension_numbers<[1], [0], [0], [1], [0, 0, 1, 1], [], []>} : vector<8x128xbf16>, vector<128x128xbf16>, vector<8x128xf32> -> vector<8x128xf32>
    %352 = arith.addf %298, %351 : vector<8x128xf32>
    %353 = math.tanh %352 : vector<8x128xf32>
    %354 = arith.truncf %353 : vector<8x128xf32> to vector<8x128xbf16>
    %cst_74 = arith.constant dense<0.000000e+00> : vector<8x128xf32>
    %355 = tpu.matmul %354, %329, %cst_74 {dimension_numbers = #tpu.dot_dimension_numbers<[1], [0], [0], [1], [0, 0, 1, 1], [], []>} : vector<8x128xbf16>, vector<128x128xbf16>, vector<8x128xf32> -> vector<8x128xf32>
    %356 = arith.addf %301, %355 : vector<8x128xf32>
    %357 = math.tanh %356 : vector<8x128xf32>
    %358 = arith.truncf %357 : vector<8x128xf32> to vector<8x128xbf16>
    %cst_75 = arith.constant dense<0.000000e+00> : vector<8x128xf32>
    %359 = tpu.matmul %358, %329, %cst_75 {dimension_numbers = #tpu.dot_dimension_numbers<[1], [0], [0], [1], [0, 0, 1, 1], [], []>} : vector<8x128xbf16>, vector<128x128xbf16>, vector<8x128xf32> -> vector<8x128xf32>
    %360 = arith.addf %304, %359 : vector<8x128xf32>
    %361 = math.tanh %360 : vector<8x128xf32>
    %c0_76 = arith.constant 0 : index
    %c0_77 = arith.constant 0 : index
    %362 = vector.load %arg14[%c0_76, %c0_77] : memref<128x128xbf16, #tpu.memory_space<vmem>>, vector<128x128xbf16>
    %363 = arith.truncf %119 : vector<8x128xf32> to vector<8x128xbf16>
    %cst_78 = arith.constant dense<0.000000e+00> : vector<8x128xf32>
    %364 = tpu.matmul %363, %362, %cst_78 {dimension_numbers = #tpu.dot_dimension_numbers<[1], [0], [0], [1], [0, 0, 1, 1], [], []>} : vector<8x128xbf16>, vector<128x128xbf16>, vector<8x128xf32> -> vector<8x128xf32>
    %365 = arith.addf %307, %364 : vector<8x128xf32>
    %366 = math.tanh %365 : vector<8x128xf32>
    %367 = arith.truncf %366 : vector<8x128xf32> to vector<8x128xbf16>
    %cst_79 = arith.constant dense<0.000000e+00> : vector<8x128xf32>
    %368 = tpu.matmul %367, %362, %cst_79 {dimension_numbers = #tpu.dot_dimension_numbers<[1], [0], [0], [1], [0, 0, 1, 1], [], []>} : vector<8x128xbf16>, vector<128x128xbf16>, vector<8x128xf32> -> vector<8x128xf32>
    %369 = arith.addf %310, %368 : vector<8x128xf32>
    %370 = math.tanh %369 : vector<8x128xf32>
    %371 = arith.truncf %370 : vector<8x128xf32> to vector<8x128xbf16>
    %cst_80 = arith.constant dense<0.000000e+00> : vector<8x128xf32>
    %372 = tpu.matmul %371, %362, %cst_80 {dimension_numbers = #tpu.dot_dimension_numbers<[1], [0], [0], [1], [0, 0, 1, 1], [], []>} : vector<8x128xbf16>, vector<128x128xbf16>, vector<8x128xf32> -> vector<8x128xf32>
    %373 = arith.addf %313, %372 : vector<8x128xf32>
    %374 = math.tanh %373 : vector<8x128xf32>
    %375 = arith.truncf %374 : vector<8x128xf32> to vector<8x128xbf16>
    %cst_81 = arith.constant dense<0.000000e+00> : vector<8x128xf32>
    %376 = tpu.matmul %375, %362, %cst_81 {dimension_numbers = #tpu.dot_dimension_numbers<[1], [0], [0], [1], [0, 0, 1, 1], [], []>} : vector<8x128xbf16>, vector<128x128xbf16>, vector<8x128xf32> -> vector<8x128xf32>
    %377 = arith.addf %316, %376 : vector<8x128xf32>
    %378 = math.tanh %377 : vector<8x128xf32>
    %379 = arith.truncf %378 : vector<8x128xf32> to vector<8x128xbf16>
    %cst_82 = arith.constant dense<0.000000e+00> : vector<8x128xf32>
    %380 = tpu.matmul %379, %362, %cst_82 {dimension_numbers = #tpu.dot_dimension_numbers<[1], [0], [0], [1], [0, 0, 1, 1], [], []>} : vector<8x128xbf16>, vector<128x128xbf16>, vector<8x128xf32> -> vector<8x128xf32>
    %381 = arith.addf %319, %380 : vector<8x128xf32>
    %382 = math.tanh %381 : vector<8x128xf32>
    %383 = arith.truncf %382 : vector<8x128xf32> to vector<8x128xbf16>
    %cst_83 = arith.constant dense<0.000000e+00> : vector<8x128xf32>
    %384 = tpu.matmul %383, %362, %cst_83 {dimension_numbers = #tpu.dot_dimension_numbers<[1], [0], [0], [1], [0, 0, 1, 1], [], []>} : vector<8x128xbf16>, vector<128x128xbf16>, vector<8x128xf32> -> vector<8x128xf32>
    %385 = arith.addf %322, %384 : vector<8x128xf32>
    %386 = math.tanh %385 : vector<8x128xf32>
    %387 = arith.truncf %386 : vector<8x128xf32> to vector<8x128xbf16>
    %cst_84 = arith.constant dense<0.000000e+00> : vector<8x128xf32>
    %388 = tpu.matmul %387, %362, %cst_84 {dimension_numbers = #tpu.dot_dimension_numbers<[1], [0], [0], [1], [0, 0, 1, 1], [], []>} : vector<8x128xbf16>, vector<128x128xbf16>, vector<8x128xf32> -> vector<8x128xf32>
    %389 = arith.addf %325, %388 : vector<8x128xf32>
    %390 = math.tanh %389 : vector<8x128xf32>
    %391 = arith.truncf %390 : vector<8x128xf32> to vector<8x128xbf16>
    %cst_85 = arith.constant dense<0.000000e+00> : vector<8x128xf32>
    %392 = tpu.matmul %391, %362, %cst_85 {dimension_numbers = #tpu.dot_dimension_numbers<[1], [0], [0], [1], [0, 0, 1, 1], [], []>} : vector<8x128xbf16>, vector<128x128xbf16>, vector<8x128xf32> -> vector<8x128xf32>
    %393 = arith.addf %328, %392 : vector<8x128xf32>
    %394 = math.tanh %393 : vector<8x128xf32>
    %395 = tpu.concatenate %333, %337, %341, %345, %349, %353, %357, %361 in 0 : vector<8x128xf32>, vector<8x128xf32>, vector<8x128xf32>, vector<8x128xf32>, vector<8x128xf32>, vector<8x128xf32>, vector<8x128xf32>, vector<8x128xf32> -> vector<64x128xf32>
    %396 = arith.truncf %395 : vector<64x128xf32> to vector<64x128xbf16>
    %397 = tpu.concatenate %366, %370, %374, %378, %382, %386, %390, %394 in 0 : vector<8x128xf32>, vector<8x128xf32>, vector<8x128xf32>, vector<8x128xf32>, vector<8x128xf32>, vector<8x128xf32>, vector<8x128xf32>, vector<8x128xf32> -> vector<64x128xf32>
    %398 = arith.truncf %397 : vector<64x128xf32> to vector<64x128xbf16>
    %c0_86 = arith.constant 0 : index
    %c0_87 = arith.constant 0 : index
    %399 = vector.load %arg17[%c0_86, %c0_87] : memref<256x256xbf16, #tpu.memory_space<vmem>>, vector<128x256xbf16>
    %cst_88 = arith.constant dense<0.000000e+00> : vector<64x256xf32>
    %400 = tpu.matmul %396, %399, %cst_88 {dimension_numbers = #tpu.dot_dimension_numbers<[1], [0], [0], [1], [0, 0, 1, 1], [], []>} : vector<64x128xbf16>, vector<128x256xbf16>, vector<64x256xf32> -> vector<64x256xf32>
    %c128_89 = arith.constant 128 : index
    %c0_90 = arith.constant 0 : index
    %401 = vector.load %arg17[%c128_89, %c0_90] : memref<256x256xbf16, #tpu.memory_space<vmem>>, vector<128x256xbf16>
    %cst_91 = arith.constant dense<0.000000e+00> : vector<64x256xf32>
    %402 = tpu.matmul %398, %401, %cst_91 {dimension_numbers = #tpu.dot_dimension_numbers<[1], [0], [0], [1], [0, 0, 1, 1], [], []>} : vector<64x128xbf16>, vector<128x256xbf16>, vector<64x256xf32> -> vector<64x256xf32>
    %c0_92 = arith.constant 0 : index
    %c0_93 = arith.constant 0 : index
    %403 = vector.load %arg20[%c0_92, %c0_93] : memref<1x128xf32, #tpu.memory_space<vmem>>, vector<1x128xf32>
    %c0_94 = arith.constant 0 : index
    %c0_95 = arith.constant 0 : index
    %404 = vector.load %arg21[%c0_94, %c0_95] : memref<1x128xf32, #tpu.memory_space<vmem>>, vector<1x128xf32>
    %405 = vector.extract_strided_slice %400 {offsets = [0, 0], sizes = [8, 128], strides = [1, 1]} : vector<64x256xf32> to vector<8x128xf32>
    %406 = vector.extract_strided_slice %402 {offsets = [56, 0], sizes = [8, 128], strides = [1, 1]} : vector<64x256xf32> to vector<8x128xf32>
    %407 = arith.addf %405, %406 : vector<8x128xf32>
    %408 = vector.broadcast %403 : vector<1x128xf32> to vector<8x128xf32>
    %409 = arith.addf %407, %408 : vector<8x128xf32>
    %410 = vector.extract_strided_slice %400 {offsets = [8, 0], sizes = [8, 128], strides = [1, 1]} : vector<64x256xf32> to vector<8x128xf32>
    %411 = vector.extract_strided_slice %402 {offsets = [48, 0], sizes = [8, 128], strides = [1, 1]} : vector<64x256xf32> to vector<8x128xf32>
    %412 = arith.addf %410, %411 : vector<8x128xf32>
    %413 = vector.broadcast %403 : vector<1x128xf32> to vector<8x128xf32>
    %414 = arith.addf %412, %413 : vector<8x128xf32>
    %415 = vector.extract_strided_slice %400 {offsets = [16, 0], sizes = [8, 128], strides = [1, 1]} : vector<64x256xf32> to vector<8x128xf32>
    %416 = vector.extract_strided_slice %402 {offsets = [40, 0], sizes = [8, 128], strides = [1, 1]} : vector<64x256xf32> to vector<8x128xf32>
    %417 = arith.addf %415, %416 : vector<8x128xf32>
    %418 = vector.broadcast %403 : vector<1x128xf32> to vector<8x128xf32>
    %419 = arith.addf %417, %418 : vector<8x128xf32>
    %420 = vector.extract_strided_slice %400 {offsets = [24, 0], sizes = [8, 128], strides = [1, 1]} : vector<64x256xf32> to vector<8x128xf32>
    %421 = vector.extract_strided_slice %402 {offsets = [32, 0], sizes = [8, 128], strides = [1, 1]} : vector<64x256xf32> to vector<8x128xf32>
    %422 = arith.addf %420, %421 : vector<8x128xf32>
    %423 = vector.broadcast %403 : vector<1x128xf32> to vector<8x128xf32>
    %424 = arith.addf %422, %423 : vector<8x128xf32>
    %425 = vector.extract_strided_slice %400 {offsets = [32, 0], sizes = [8, 128], strides = [1, 1]} : vector<64x256xf32> to vector<8x128xf32>
    %426 = vector.extract_strided_slice %402 {offsets = [24, 0], sizes = [8, 128], strides = [1, 1]} : vector<64x256xf32> to vector<8x128xf32>
    %427 = arith.addf %425, %426 : vector<8x128xf32>
    %428 = vector.broadcast %403 : vector<1x128xf32> to vector<8x128xf32>
    %429 = arith.addf %427, %428 : vector<8x128xf32>
    %430 = vector.extract_strided_slice %400 {offsets = [40, 0], sizes = [8, 128], strides = [1, 1]} : vector<64x256xf32> to vector<8x128xf32>
    %431 = vector.extract_strided_slice %402 {offsets = [16, 0], sizes = [8, 128], strides = [1, 1]} : vector<64x256xf32> to vector<8x128xf32>
    %432 = arith.addf %430, %431 : vector<8x128xf32>
    %433 = vector.broadcast %403 : vector<1x128xf32> to vector<8x128xf32>
    %434 = arith.addf %432, %433 : vector<8x128xf32>
    %435 = vector.extract_strided_slice %400 {offsets = [48, 0], sizes = [8, 128], strides = [1, 1]} : vector<64x256xf32> to vector<8x128xf32>
    %436 = vector.extract_strided_slice %402 {offsets = [8, 0], sizes = [8, 128], strides = [1, 1]} : vector<64x256xf32> to vector<8x128xf32>
    %437 = arith.addf %435, %436 : vector<8x128xf32>
    %438 = vector.broadcast %403 : vector<1x128xf32> to vector<8x128xf32>
    %439 = arith.addf %437, %438 : vector<8x128xf32>
    %440 = vector.extract_strided_slice %400 {offsets = [56, 0], sizes = [8, 128], strides = [1, 1]} : vector<64x256xf32> to vector<8x128xf32>
    %441 = vector.extract_strided_slice %402 {offsets = [0, 0], sizes = [8, 128], strides = [1, 1]} : vector<64x256xf32> to vector<8x128xf32>
    %442 = arith.addf %440, %441 : vector<8x128xf32>
    %443 = vector.broadcast %403 : vector<1x128xf32> to vector<8x128xf32>
    %444 = arith.addf %442, %443 : vector<8x128xf32>
    %445 = vector.extract_strided_slice %400 {offsets = [56, 128], sizes = [8, 128], strides = [1, 1]} : vector<64x256xf32> to vector<8x128xf32>
    %446 = vector.extract_strided_slice %402 {offsets = [0, 128], sizes = [8, 128], strides = [1, 1]} : vector<64x256xf32> to vector<8x128xf32>
    %447 = arith.addf %445, %446 : vector<8x128xf32>
    %448 = vector.broadcast %404 : vector<1x128xf32> to vector<8x128xf32>
    %449 = arith.addf %447, %448 : vector<8x128xf32>
    %450 = vector.extract_strided_slice %400 {offsets = [48, 128], sizes = [8, 128], strides = [1, 1]} : vector<64x256xf32> to vector<8x128xf32>
    %451 = vector.extract_strided_slice %402 {offsets = [8, 128], sizes = [8, 128], strides = [1, 1]} : vector<64x256xf32> to vector<8x128xf32>
    %452 = arith.addf %450, %451 : vector<8x128xf32>
    %453 = vector.broadcast %404 : vector<1x128xf32> to vector<8x128xf32>
    %454 = arith.addf %452, %453 : vector<8x128xf32>
    %455 = vector.extract_strided_slice %400 {offsets = [40, 128], sizes = [8, 128], strides = [1, 1]} : vector<64x256xf32> to vector<8x128xf32>
    %456 = vector.extract_strided_slice %402 {offsets = [16, 128], sizes = [8, 128], strides = [1, 1]} : vector<64x256xf32> to vector<8x128xf32>
    %457 = arith.addf %455, %456 : vector<8x128xf32>
    %458 = vector.broadcast %404 : vector<1x128xf32> to vector<8x128xf32>
    %459 = arith.addf %457, %458 : vector<8x128xf32>
    %460 = vector.extract_strided_slice %400 {offsets = [32, 128], sizes = [8, 128], strides = [1, 1]} : vector<64x256xf32> to vector<8x128xf32>
    %461 = vector.extract_strided_slice %402 {offsets = [24, 128], sizes = [8, 128], strides = [1, 1]} : vector<64x256xf32> to vector<8x128xf32>
    %462 = arith.addf %460, %461 : vector<8x128xf32>
    %463 = vector.broadcast %404 : vector<1x128xf32> to vector<8x128xf32>
    %464 = arith.addf %462, %463 : vector<8x128xf32>
    %465 = vector.extract_strided_slice %400 {offsets = [24, 128], sizes = [8, 128], strides = [1, 1]} : vector<64x256xf32> to vector<8x128xf32>
    %466 = vector.extract_strided_slice %402 {offsets = [32, 128], sizes = [8, 128], strides = [1, 1]} : vector<64x256xf32> to vector<8x128xf32>
    %467 = arith.addf %465, %466 : vector<8x128xf32>
    %468 = vector.broadcast %404 : vector<1x128xf32> to vector<8x128xf32>
    %469 = arith.addf %467, %468 : vector<8x128xf32>
    %470 = vector.extract_strided_slice %400 {offsets = [16, 128], sizes = [8, 128], strides = [1, 1]} : vector<64x256xf32> to vector<8x128xf32>
    %471 = vector.extract_strided_slice %402 {offsets = [40, 128], sizes = [8, 128], strides = [1, 1]} : vector<64x256xf32> to vector<8x128xf32>
    %472 = arith.addf %470, %471 : vector<8x128xf32>
    %473 = vector.broadcast %404 : vector<1x128xf32> to vector<8x128xf32>
    %474 = arith.addf %472, %473 : vector<8x128xf32>
    %475 = vector.extract_strided_slice %400 {offsets = [8, 128], sizes = [8, 128], strides = [1, 1]} : vector<64x256xf32> to vector<8x128xf32>
    %476 = vector.extract_strided_slice %402 {offsets = [48, 128], sizes = [8, 128], strides = [1, 1]} : vector<64x256xf32> to vector<8x128xf32>
    %477 = arith.addf %475, %476 : vector<8x128xf32>
    %478 = vector.broadcast %404 : vector<1x128xf32> to vector<8x128xf32>
    %479 = arith.addf %477, %478 : vector<8x128xf32>
    %480 = vector.extract_strided_slice %400 {offsets = [0, 128], sizes = [8, 128], strides = [1, 1]} : vector<64x256xf32> to vector<8x128xf32>
    %481 = vector.extract_strided_slice %402 {offsets = [56, 128], sizes = [8, 128], strides = [1, 1]} : vector<64x256xf32> to vector<8x128xf32>
    %482 = arith.addf %480, %481 : vector<8x128xf32>
    %483 = vector.broadcast %404 : vector<1x128xf32> to vector<8x128xf32>
    %484 = arith.addf %482, %483 : vector<8x128xf32>
    %c0_96 = arith.constant 0 : index
    %c0_97 = arith.constant 0 : index
    %485 = vector.load %arg18[%c0_96, %c0_97] : memref<128x128xbf16, #tpu.memory_space<vmem>>, vector<128x128xbf16>
    %486 = arith.truncf %242 : vector<8x128xf32> to vector<8x128xbf16>
    %cst_98 = arith.constant dense<0.000000e+00> : vector<8x128xf32>
    %487 = tpu.matmul %486, %485, %cst_98 {dimension_numbers = #tpu.dot_dimension_numbers<[1], [0], [0], [1], [0, 0, 1, 1], [], []>} : vector<8x128xbf16>, vector<128x128xbf16>, vector<8x128xf32> -> vector<8x128xf32>
    %488 = arith.addf %409, %487 : vector<8x128xf32>
    %489 = math.tanh %488 : vector<8x128xf32>
    %490 = arith.truncf %489 : vector<8x128xf32> to vector<8x128xbf16>
    %cst_99 = arith.constant dense<0.000000e+00> : vector<8x128xf32>
    %491 = tpu.matmul %490, %485, %cst_99 {dimension_numbers = #tpu.dot_dimension_numbers<[1], [0], [0], [1], [0, 0, 1, 1], [], []>} : vector<8x128xbf16>, vector<128x128xbf16>, vector<8x128xf32> -> vector<8x128xf32>
    %492 = arith.addf %414, %491 : vector<8x128xf32>
    %493 = math.tanh %492 : vector<8x128xf32>
    %494 = arith.truncf %493 : vector<8x128xf32> to vector<8x128xbf16>
    %cst_100 = arith.constant dense<0.000000e+00> : vector<8x128xf32>
    %495 = tpu.matmul %494, %485, %cst_100 {dimension_numbers = #tpu.dot_dimension_numbers<[1], [0], [0], [1], [0, 0, 1, 1], [], []>} : vector<8x128xbf16>, vector<128x128xbf16>, vector<8x128xf32> -> vector<8x128xf32>
    %496 = arith.addf %419, %495 : vector<8x128xf32>
    %497 = math.tanh %496 : vector<8x128xf32>
    %498 = arith.truncf %497 : vector<8x128xf32> to vector<8x128xbf16>
    %cst_101 = arith.constant dense<0.000000e+00> : vector<8x128xf32>
    %499 = tpu.matmul %498, %485, %cst_101 {dimension_numbers = #tpu.dot_dimension_numbers<[1], [0], [0], [1], [0, 0, 1, 1], [], []>} : vector<8x128xbf16>, vector<128x128xbf16>, vector<8x128xf32> -> vector<8x128xf32>
    %500 = arith.addf %424, %499 : vector<8x128xf32>
    %501 = math.tanh %500 : vector<8x128xf32>
    %502 = arith.truncf %501 : vector<8x128xf32> to vector<8x128xbf16>
    %cst_102 = arith.constant dense<0.000000e+00> : vector<8x128xf32>
    %503 = tpu.matmul %502, %485, %cst_102 {dimension_numbers = #tpu.dot_dimension_numbers<[1], [0], [0], [1], [0, 0, 1, 1], [], []>} : vector<8x128xbf16>, vector<128x128xbf16>, vector<8x128xf32> -> vector<8x128xf32>
    %504 = arith.addf %429, %503 : vector<8x128xf32>
    %505 = math.tanh %504 : vector<8x128xf32>
    %506 = arith.truncf %505 : vector<8x128xf32> to vector<8x128xbf16>
    %cst_103 = arith.constant dense<0.000000e+00> : vector<8x128xf32>
    %507 = tpu.matmul %506, %485, %cst_103 {dimension_numbers = #tpu.dot_dimension_numbers<[1], [0], [0], [1], [0, 0, 1, 1], [], []>} : vector<8x128xbf16>, vector<128x128xbf16>, vector<8x128xf32> -> vector<8x128xf32>
    %508 = arith.addf %434, %507 : vector<8x128xf32>
    %509 = math.tanh %508 : vector<8x128xf32>
    %510 = arith.truncf %509 : vector<8x128xf32> to vector<8x128xbf16>
    %cst_104 = arith.constant dense<0.000000e+00> : vector<8x128xf32>
    %511 = tpu.matmul %510, %485, %cst_104 {dimension_numbers = #tpu.dot_dimension_numbers<[1], [0], [0], [1], [0, 0, 1, 1], [], []>} : vector<8x128xbf16>, vector<128x128xbf16>, vector<8x128xf32> -> vector<8x128xf32>
    %512 = arith.addf %439, %511 : vector<8x128xf32>
    %513 = math.tanh %512 : vector<8x128xf32>
    %514 = arith.truncf %513 : vector<8x128xf32> to vector<8x128xbf16>
    %cst_105 = arith.constant dense<0.000000e+00> : vector<8x128xf32>
    %515 = tpu.matmul %514, %485, %cst_105 {dimension_numbers = #tpu.dot_dimension_numbers<[1], [0], [0], [1], [0, 0, 1, 1], [], []>} : vector<8x128xbf16>, vector<128x128xbf16>, vector<8x128xf32> -> vector<8x128xf32>
    %516 = arith.addf %444, %515 : vector<8x128xf32>
    %517 = math.tanh %516 : vector<8x128xf32>
    %c0_106 = arith.constant 0 : index
    %c0_107 = arith.constant 0 : index
    %518 = vector.load %arg19[%c0_106, %c0_107] : memref<128x128xbf16, #tpu.memory_space<vmem>>, vector<128x128xbf16>
    %519 = arith.truncf %275 : vector<8x128xf32> to vector<8x128xbf16>
    %cst_108 = arith.constant dense<0.000000e+00> : vector<8x128xf32>
    %520 = tpu.matmul %519, %518, %cst_108 {dimension_numbers = #tpu.dot_dimension_numbers<[1], [0], [0], [1], [0, 0, 1, 1], [], []>} : vector<8x128xbf16>, vector<128x128xbf16>, vector<8x128xf32> -> vector<8x128xf32>
    %521 = arith.addf %449, %520 : vector<8x128xf32>
    %522 = math.tanh %521 : vector<8x128xf32>
    %523 = arith.truncf %522 : vector<8x128xf32> to vector<8x128xbf16>
    %cst_109 = arith.constant dense<0.000000e+00> : vector<8x128xf32>
    %524 = tpu.matmul %523, %518, %cst_109 {dimension_numbers = #tpu.dot_dimension_numbers<[1], [0], [0], [1], [0, 0, 1, 1], [], []>} : vector<8x128xbf16>, vector<128x128xbf16>, vector<8x128xf32> -> vector<8x128xf32>
    %525 = arith.addf %454, %524 : vector<8x128xf32>
    %526 = math.tanh %525 : vector<8x128xf32>
    %527 = arith.truncf %526 : vector<8x128xf32> to vector<8x128xbf16>
    %cst_110 = arith.constant dense<0.000000e+00> : vector<8x128xf32>
    %528 = tpu.matmul %527, %518, %cst_110 {dimension_numbers = #tpu.dot_dimension_numbers<[1], [0], [0], [1], [0, 0, 1, 1], [], []>} : vector<8x128xbf16>, vector<128x128xbf16>, vector<8x128xf32> -> vector<8x128xf32>
    %529 = arith.addf %459, %528 : vector<8x128xf32>
    %530 = math.tanh %529 : vector<8x128xf32>
    %531 = arith.truncf %530 : vector<8x128xf32> to vector<8x128xbf16>
    %cst_111 = arith.constant dense<0.000000e+00> : vector<8x128xf32>
    %532 = tpu.matmul %531, %518, %cst_111 {dimension_numbers = #tpu.dot_dimension_numbers<[1], [0], [0], [1], [0, 0, 1, 1], [], []>} : vector<8x128xbf16>, vector<128x128xbf16>, vector<8x128xf32> -> vector<8x128xf32>
    %533 = arith.addf %464, %532 : vector<8x128xf32>
    %534 = math.tanh %533 : vector<8x128xf32>
    %535 = arith.truncf %534 : vector<8x128xf32> to vector<8x128xbf16>
    %cst_112 = arith.constant dense<0.000000e+00> : vector<8x128xf32>
    %536 = tpu.matmul %535, %518, %cst_112 {dimension_numbers = #tpu.dot_dimension_numbers<[1], [0], [0], [1], [0, 0, 1, 1], [], []>} : vector<8x128xbf16>, vector<128x128xbf16>, vector<8x128xf32> -> vector<8x128xf32>
    %537 = arith.addf %469, %536 : vector<8x128xf32>
    %538 = math.tanh %537 : vector<8x128xf32>
    %539 = arith.truncf %538 : vector<8x128xf32> to vector<8x128xbf16>
    %cst_113 = arith.constant dense<0.000000e+00> : vector<8x128xf32>
    %540 = tpu.matmul %539, %518, %cst_113 {dimension_numbers = #tpu.dot_dimension_numbers<[1], [0], [0], [1], [0, 0, 1, 1], [], []>} : vector<8x128xbf16>, vector<128x128xbf16>, vector<8x128xf32> -> vector<8x128xf32>
    %541 = arith.addf %474, %540 : vector<8x128xf32>
    %542 = math.tanh %541 : vector<8x128xf32>
    %543 = arith.truncf %542 : vector<8x128xf32> to vector<8x128xbf16>
    %cst_114 = arith.constant dense<0.000000e+00> : vector<8x128xf32>
    %544 = tpu.matmul %543, %518, %cst_114 {dimension_numbers = #tpu.dot_dimension_numbers<[1], [0], [0], [1], [0, 0, 1, 1], [], []>} : vector<8x128xbf16>, vector<128x128xbf16>, vector<8x128xf32> -> vector<8x128xf32>
    %545 = arith.addf %479, %544 : vector<8x128xf32>
    %546 = math.tanh %545 : vector<8x128xf32>
    %547 = arith.truncf %546 : vector<8x128xf32> to vector<8x128xbf16>
    %cst_115 = arith.constant dense<0.000000e+00> : vector<8x128xf32>
    %548 = tpu.matmul %547, %518, %cst_115 {dimension_numbers = #tpu.dot_dimension_numbers<[1], [0], [0], [1], [0, 0, 1, 1], [], []>} : vector<8x128xbf16>, vector<128x128xbf16>, vector<8x128xf32> -> vector<8x128xf32>
    %549 = arith.addf %484, %548 : vector<8x128xf32>
    %550 = math.tanh %549 : vector<8x128xf32>
    %cst_116 = arith.constant 0.000000e+00 : f32
    %551 = vector.broadcast %cst_116 : f32 to vector<8x64xf32>
    %552 = arith.truncf %489 : vector<8x128xf32> to vector<8x128xbf16>
    %c0_117 = arith.constant 0 : index
    %c0_118 = arith.constant 0 : index
    %553 = vector.load %arg22[%c0_117, %c0_118] : memref<1024x64xbf16, #tpu.memory_space<vmem>>, vector<128x64xbf16>
    %cst_119 = arith.constant dense<0.000000e+00> : vector<8x64xf32>
    %554 = tpu.matmul %552, %553, %cst_119 {dimension_numbers = #tpu.dot_dimension_numbers<[1], [0], [0], [1], [0, 0, 1, 1], [], []>} : vector<8x128xbf16>, vector<128x64xbf16>, vector<8x64xf32> -> vector<8x64xf32>
    %555 = arith.addf %551, %554 : vector<8x64xf32>
    %556 = arith.truncf %550 : vector<8x128xf32> to vector<8x128xbf16>
    %c0_120 = arith.constant 0 : index
    %c0_121 = arith.constant 0 : index
    %557 = vector.load %arg23[%c0_120, %c0_121] : memref<1024x64xbf16, #tpu.memory_space<vmem>>, vector<128x64xbf16>
    %cst_122 = arith.constant dense<0.000000e+00> : vector<8x64xf32>
    %558 = tpu.matmul %556, %557, %cst_122 {dimension_numbers = #tpu.dot_dimension_numbers<[1], [0], [0], [1], [0, 0, 1, 1], [], []>} : vector<8x128xbf16>, vector<128x64xbf16>, vector<8x64xf32> -> vector<8x64xf32>
    %559 = arith.addf %555, %558 : vector<8x64xf32>
    %560 = arith.truncf %493 : vector<8x128xf32> to vector<8x128xbf16>
    %c128_123 = arith.constant 128 : index
    %c0_124 = arith.constant 0 : index
    %561 = vector.load %arg22[%c128_123, %c0_124] : memref<1024x64xbf16, #tpu.memory_space<vmem>>, vector<128x64xbf16>
    %cst_125 = arith.constant dense<0.000000e+00> : vector<8x64xf32>
    %562 = tpu.matmul %560, %561, %cst_125 {dimension_numbers = #tpu.dot_dimension_numbers<[1], [0], [0], [1], [0, 0, 1, 1], [], []>} : vector<8x128xbf16>, vector<128x64xbf16>, vector<8x64xf32> -> vector<8x64xf32>
    %563 = arith.addf %559, %562 : vector<8x64xf32>
    %564 = arith.truncf %546 : vector<8x128xf32> to vector<8x128xbf16>
    %c128_126 = arith.constant 128 : index
    %c0_127 = arith.constant 0 : index
    %565 = vector.load %arg23[%c128_126, %c0_127] : memref<1024x64xbf16, #tpu.memory_space<vmem>>, vector<128x64xbf16>
    %cst_128 = arith.constant dense<0.000000e+00> : vector<8x64xf32>
    %566 = tpu.matmul %564, %565, %cst_128 {dimension_numbers = #tpu.dot_dimension_numbers<[1], [0], [0], [1], [0, 0, 1, 1], [], []>} : vector<8x128xbf16>, vector<128x64xbf16>, vector<8x64xf32> -> vector<8x64xf32>
    %567 = arith.addf %563, %566 : vector<8x64xf32>
    %568 = arith.truncf %497 : vector<8x128xf32> to vector<8x128xbf16>
    %c256 = arith.constant 256 : index
    %c0_129 = arith.constant 0 : index
    %569 = vector.load %arg22[%c256, %c0_129] : memref<1024x64xbf16, #tpu.memory_space<vmem>>, vector<128x64xbf16>
    %cst_130 = arith.constant dense<0.000000e+00> : vector<8x64xf32>
    %570 = tpu.matmul %568, %569, %cst_130 {dimension_numbers = #tpu.dot_dimension_numbers<[1], [0], [0], [1], [0, 0, 1, 1], [], []>} : vector<8x128xbf16>, vector<128x64xbf16>, vector<8x64xf32> -> vector<8x64xf32>
    %571 = arith.addf %567, %570 : vector<8x64xf32>
    %572 = arith.truncf %542 : vector<8x128xf32> to vector<8x128xbf16>
    %c256_131 = arith.constant 256 : index
    %c0_132 = arith.constant 0 : index
    %573 = vector.load %arg23[%c256_131, %c0_132] : memref<1024x64xbf16, #tpu.memory_space<vmem>>, vector<128x64xbf16>
    %cst_133 = arith.constant dense<0.000000e+00> : vector<8x64xf32>
    %574 = tpu.matmul %572, %573, %cst_133 {dimension_numbers = #tpu.dot_dimension_numbers<[1], [0], [0], [1], [0, 0, 1, 1], [], []>} : vector<8x128xbf16>, vector<128x64xbf16>, vector<8x64xf32> -> vector<8x64xf32>
    %575 = arith.addf %571, %574 : vector<8x64xf32>
    %576 = arith.truncf %501 : vector<8x128xf32> to vector<8x128xbf16>
    %c384 = arith.constant 384 : index
    %c0_134 = arith.constant 0 : index
    %577 = vector.load %arg22[%c384, %c0_134] : memref<1024x64xbf16, #tpu.memory_space<vmem>>, vector<128x64xbf16>
    %cst_135 = arith.constant dense<0.000000e+00> : vector<8x64xf32>
    %578 = tpu.matmul %576, %577, %cst_135 {dimension_numbers = #tpu.dot_dimension_numbers<[1], [0], [0], [1], [0, 0, 1, 1], [], []>} : vector<8x128xbf16>, vector<128x64xbf16>, vector<8x64xf32> -> vector<8x64xf32>
    %579 = arith.addf %575, %578 : vector<8x64xf32>
    %580 = arith.truncf %538 : vector<8x128xf32> to vector<8x128xbf16>
    %c384_136 = arith.constant 384 : index
    %c0_137 = arith.constant 0 : index
    %581 = vector.load %arg23[%c384_136, %c0_137] : memref<1024x64xbf16, #tpu.memory_space<vmem>>, vector<128x64xbf16>
    %cst_138 = arith.constant dense<0.000000e+00> : vector<8x64xf32>
    %582 = tpu.matmul %580, %581, %cst_138 {dimension_numbers = #tpu.dot_dimension_numbers<[1], [0], [0], [1], [0, 0, 1, 1], [], []>} : vector<8x128xbf16>, vector<128x64xbf16>, vector<8x64xf32> -> vector<8x64xf32>
    %583 = arith.addf %579, %582 : vector<8x64xf32>
    %584 = arith.truncf %505 : vector<8x128xf32> to vector<8x128xbf16>
    %c512 = arith.constant 512 : index
    %c0_139 = arith.constant 0 : index
    %585 = vector.load %arg22[%c512, %c0_139] : memref<1024x64xbf16, #tpu.memory_space<vmem>>, vector<128x64xbf16>
    %cst_140 = arith.constant dense<0.000000e+00> : vector<8x64xf32>
    %586 = tpu.matmul %584, %585, %cst_140 {dimension_numbers = #tpu.dot_dimension_numbers<[1], [0], [0], [1], [0, 0, 1, 1], [], []>} : vector<8x128xbf16>, vector<128x64xbf16>, vector<8x64xf32> -> vector<8x64xf32>
    %587 = arith.addf %583, %586 : vector<8x64xf32>
    %588 = arith.truncf %534 : vector<8x128xf32> to vector<8x128xbf16>
    %c512_141 = arith.constant 512 : index
    %c0_142 = arith.constant 0 : index
    %589 = vector.load %arg23[%c512_141, %c0_142] : memref<1024x64xbf16, #tpu.memory_space<vmem>>, vector<128x64xbf16>
    %cst_143 = arith.constant dense<0.000000e+00> : vector<8x64xf32>
    %590 = tpu.matmul %588, %589, %cst_143 {dimension_numbers = #tpu.dot_dimension_numbers<[1], [0], [0], [1], [0, 0, 1, 1], [], []>} : vector<8x128xbf16>, vector<128x64xbf16>, vector<8x64xf32> -> vector<8x64xf32>
    %591 = arith.addf %587, %590 : vector<8x64xf32>
    %592 = arith.truncf %509 : vector<8x128xf32> to vector<8x128xbf16>
    %c640 = arith.constant 640 : index
    %c0_144 = arith.constant 0 : index
    %593 = vector.load %arg22[%c640, %c0_144] : memref<1024x64xbf16, #tpu.memory_space<vmem>>, vector<128x64xbf16>
    %cst_145 = arith.constant dense<0.000000e+00> : vector<8x64xf32>
    %594 = tpu.matmul %592, %593, %cst_145 {dimension_numbers = #tpu.dot_dimension_numbers<[1], [0], [0], [1], [0, 0, 1, 1], [], []>} : vector<8x128xbf16>, vector<128x64xbf16>, vector<8x64xf32> -> vector<8x64xf32>
    %595 = arith.addf %591, %594 : vector<8x64xf32>
    %596 = arith.truncf %530 : vector<8x128xf32> to vector<8x128xbf16>
    %c640_146 = arith.constant 640 : index
    %c0_147 = arith.constant 0 : index
    %597 = vector.load %arg23[%c640_146, %c0_147] : memref<1024x64xbf16, #tpu.memory_space<vmem>>, vector<128x64xbf16>
    %cst_148 = arith.constant dense<0.000000e+00> : vector<8x64xf32>
    %598 = tpu.matmul %596, %597, %cst_148 {dimension_numbers = #tpu.dot_dimension_numbers<[1], [0], [0], [1], [0, 0, 1, 1], [], []>} : vector<8x128xbf16>, vector<128x64xbf16>, vector<8x64xf32> -> vector<8x64xf32>
    %599 = arith.addf %595, %598 : vector<8x64xf32>
    %600 = arith.truncf %513 : vector<8x128xf32> to vector<8x128xbf16>
    %c768 = arith.constant 768 : index
    %c0_149 = arith.constant 0 : index
    %601 = vector.load %arg22[%c768, %c0_149] : memref<1024x64xbf16, #tpu.memory_space<vmem>>, vector<128x64xbf16>
    %cst_150 = arith.constant dense<0.000000e+00> : vector<8x64xf32>
    %602 = tpu.matmul %600, %601, %cst_150 {dimension_numbers = #tpu.dot_dimension_numbers<[1], [0], [0], [1], [0, 0, 1, 1], [], []>} : vector<8x128xbf16>, vector<128x64xbf16>, vector<8x64xf32> -> vector<8x64xf32>
    %603 = arith.addf %599, %602 : vector<8x64xf32>
    %604 = arith.truncf %526 : vector<8x128xf32> to vector<8x128xbf16>
    %c768_151 = arith.constant 768 : index
    %c0_152 = arith.constant 0 : index
    %605 = vector.load %arg23[%c768_151, %c0_152] : memref<1024x64xbf16, #tpu.memory_space<vmem>>, vector<128x64xbf16>
    %cst_153 = arith.constant dense<0.000000e+00> : vector<8x64xf32>
    %606 = tpu.matmul %604, %605, %cst_153 {dimension_numbers = #tpu.dot_dimension_numbers<[1], [0], [0], [1], [0, 0, 1, 1], [], []>} : vector<8x128xbf16>, vector<128x64xbf16>, vector<8x64xf32> -> vector<8x64xf32>
    %607 = arith.addf %603, %606 : vector<8x64xf32>
    %608 = arith.truncf %517 : vector<8x128xf32> to vector<8x128xbf16>
    %c896 = arith.constant 896 : index
    %c0_154 = arith.constant 0 : index
    %609 = vector.load %arg22[%c896, %c0_154] : memref<1024x64xbf16, #tpu.memory_space<vmem>>, vector<128x64xbf16>
    %cst_155 = arith.constant dense<0.000000e+00> : vector<8x64xf32>
    %610 = tpu.matmul %608, %609, %cst_155 {dimension_numbers = #tpu.dot_dimension_numbers<[1], [0], [0], [1], [0, 0, 1, 1], [], []>} : vector<8x128xbf16>, vector<128x64xbf16>, vector<8x64xf32> -> vector<8x64xf32>
    %611 = arith.addf %607, %610 : vector<8x64xf32>
    %612 = arith.truncf %522 : vector<8x128xf32> to vector<8x128xbf16>
    %c896_156 = arith.constant 896 : index
    %c0_157 = arith.constant 0 : index
    %613 = vector.load %arg23[%c896_156, %c0_157] : memref<1024x64xbf16, #tpu.memory_space<vmem>>, vector<128x64xbf16>
    %cst_158 = arith.constant dense<0.000000e+00> : vector<8x64xf32>
    %614 = tpu.matmul %612, %613, %cst_158 {dimension_numbers = #tpu.dot_dimension_numbers<[1], [0], [0], [1], [0, 0, 1, 1], [], []>} : vector<8x128xbf16>, vector<128x64xbf16>, vector<8x64xf32> -> vector<8x64xf32>
    %615 = arith.addf %611, %614 : vector<8x64xf32>
    %c0_159 = arith.constant 0 : index
    %c0_160 = arith.constant 0 : index
    %616 = vector.load %arg24[%c0_159, %c0_160] : memref<1x64xf32, #tpu.memory_space<vmem>>, vector<1x64xf32>
    %617 = vector.broadcast %616 : vector<1x64xf32> to vector<8x64xf32>
    %618 = arith.addf %615, %617 : vector<8x64xf32>
    %619 = arith.truncf %618 : vector<8x64xf32> to vector<8x64xbf16>
    %c0_161 = arith.constant 0 : index
    %c0_162 = arith.constant 0 : index
    %620 = vector.load %arg25[%c0_161, %c0_162] : memref<64x2xbf16, #tpu.memory_space<vmem>>, vector<64x2xbf16>
    %cst_163 = arith.constant dense<0.000000e+00> : vector<8x2xf32>
    %621 = tpu.matmul %619, %620, %cst_163 {dimension_numbers = #tpu.dot_dimension_numbers<[1], [0], [0], [1], [0, 0, 1, 1], [], []>} : vector<8x64xbf16>, vector<64x2xbf16>, vector<8x2xf32> -> vector<8x2xf32>
    %c0_164 = arith.constant 0 : index
    %c0_165 = arith.constant 0 : index
    %622 = vector.load %arg26[%c0_164, %c0_165] : memref<1x2xf32, #tpu.memory_space<vmem>>, vector<1x2xf32>
    %623 = vector.broadcast %622 : vector<1x2xf32> to vector<8x2xf32>
    %624 = arith.addf %621, %623 : vector<8x2xf32>
    %c0_166 = arith.constant 0 : index
    %c0_167 = arith.constant 0 : index
    %625 = vector.load %arg27[%c0_166, %c0_167] : memref<8x2xf32, #tpu.memory_space<vmem>>, vector<8x2xf32>
    tpu.vector_store %arg27[%c0_166, %c0_167], %624 {strides = array<i32>} : memref<8x2xf32, #tpu.memory_space<vmem>>, vector<8x2xf32>,
    return
  }
}

</mosaic_0001>

<llo_original>
// kernel: rnne_forward.1
$region0: #{rnne_forward.1}
  #allocation0 [shape = 'u32[]', space=smem, size = 0x4, offset = 0x4, fixed_abs, tag = 'smem constant byte address 0x4 - core index']
  #allocation1 [shape = 'u32[144,128]{1,0:T(1,128)}', space=vmem, size = 0x12000, scoped, tag = 'internal scratch']
  %s0 = inlined_call_operand.vmem [shape: bf16[64,32], index: 0, kind: input, shape index: {}]
  %s1 = inlined_call_operand.vmem [shape: bf16[64,32], index: 1, kind: input, shape index: {}]
  %s2 = inlined_call_operand.hbm [shape: bf16[32,256], index: 2, kind: input, shape index: {}]
  %s3 = inlined_call_operand.hbm [shape: bf16[128,128], index: 3, kind: input, shape index: {}]
  %s4 = inlined_call_operand.hbm [shape: bf16[128,128], index: 4, kind: input, shape index: {}]
  %s5 = inlined_call_operand.hbm [shape: f32[1,128], index: 5, kind: input, shape index: {}]
  %s6 = inlined_call_operand.hbm [shape: f32[1,128], index: 6, kind: input, shape index: {}]
  %s7 = inlined_call_operand.hbm [shape: bf16[256,256], index: 7, kind: input, shape index: {}]
  %s8 = inlined_call_operand.hbm [shape: bf16[128,128], index: 8, kind: input, shape index: {}]
  %s9 = inlined_call_operand.hbm [shape: bf16[128,128], index: 9, kind: input, shape index: {}]
  %s10 = inlined_call_operand.hbm [shape: f32[1,128], index: 10, kind: input, shape index: {}]
  %s11 = inlined_call_operand.hbm [shape: f32[1,128], index: 11, kind: input, shape index: {}]
  %s12 = inlined_call_operand.hbm [shape: bf16[32,256], index: 12, kind: input, shape index: {}]
  %s13 = inlined_call_operand.hbm [shape: bf16[128,128], index: 13, kind: input, shape index: {}]
  %s14 = inlined_call_operand.hbm [shape: bf16[128,128], index: 14, kind: input, shape index: {}]
  %s15 = inlined_call_operand.hbm [shape: f32[1,128], index: 15, kind: input, shape index: {}]
  %s16 = inlined_call_operand.hbm [shape: f32[1,128], index: 16, kind: input, shape index: {}]
  %s17 = inlined_call_operand.vmem [shape: bf16[256,256], index: 17, kind: input, shape index: {}]
  %s18 = inlined_call_operand.hbm [shape: bf16[128,128], index: 18, kind: input, shape index: {}]
  %s19 = inlined_call_operand.hbm [shape: bf16[128,128], index: 19, kind: input, shape index: {}]
  %s20 = inlined_call_operand.vmem [shape: f32[1,128], index: 20, kind: input, shape index: {}]
  %s21 = inlined_call_operand.vmem [shape: f32[1,128], index: 21, kind: input, shape index: {}]
  %s22 = inlined_call_operand.hbm [shape: bf16[1024,64], index: 22, kind: input, shape index: {}]
  %s23 = inlined_call_operand.hbm [shape: bf16[1024,64], index: 23, kind: input, shape index: {}]
  %s24 = inlined_call_operand.vmem [shape: f32[1,64], index: 24, kind: input, shape index: {}]
  %s25 = inlined_call_operand.vmem [shape: bf16[64,2], index: 25, kind: input, shape index: {}]
  %s26 = inlined_call_operand.vmem [shape: f32[1,2], index: 26, kind: input, shape index: {}]
  %s27 = inlined_call_operand.vmem [shape: f32[8,2], index: 27, kind: output, shape index: {}]
  %s28 = sld [smem:[#allocation0]]
  $region194: #{rnne_forward.1} parent=0
    _
  %s30 = ssub.s32 1, %s28
  %s31 = scalar_select 0, %s30, %s28
  $region1: #{rnne_forward.1} parent=0
    #allocation2 [shape = 'u8[16384]{0}', space=vmem, size = 0x4000, scoped, tag = 'input window, operand 2, single buffered']
    #allocation3 [shape = 's32[1]{0}', space=sflag, size = 0x4, scoped, tag = 'scoped memory for rnne_forward.1']
    #allocation4 [shape = 'u8[32768]{0}', space=vmem, size = 0x8000, scoped, tag = 'input window, operand 3, single buffered']
    #allocation5 [shape = 's32[1]{0}', space=sflag, size = 0x4, scoped, tag = 'scoped memory for rnne_forward.1']
    #allocation6 [shape = 'u8[32768]{0}', space=vmem, size = 0x8000, scoped, tag = 'input window, operand 4, single buffered']
    #allocation7 [shape = 'u8[512]{0}', space=vmem, size = 0x400, scoped, tag = 'input window, operand 5, single buffered']
    #allocation8 [shape = 's32[1]{0}', space=sflag, size = 0x4, scoped, tag = 'scoped memory for rnne_forward.1']
    #allocation9 [shape = 'u8[512]{0}', space=vmem, size = 0x400, scoped, tag = 'input window, operand 6, single buffered']
    #allocation10 [shape = 'u8[131072]{0}', space=vmem, size = 0x20000, scoped, tag = 'input window, operand 7, single buffered']
    #allocation11 [shape = 's32[1]{0}', space=sflag, size = 0x4, scoped, tag = 'scoped memory for rnne_forward.1']
    #allocation12 [shape = 'u8[32768]{0}', space=vmem, size = 0x8000, scoped, tag = 'input window, operand 8, single buffered']
    #allocation13 [shape = 'u8[32768]{0}', space=vmem, size = 0x8000, scoped, tag = 'input window, operand 9, single buffered']
    #allocation14 [shape = 's32[1]{0}', space=sflag, size = 0x4, scoped, tag = 'scoped memory for rnne_forward.1']
    #allocation15 [shape = 'u8[512]{0}', space=vmem, size = 0x400, scoped, tag = 'input window, operand 10, single buffered']
    #allocation16 [shape = 'u8[512]{0}', space=vmem, size = 0x400, scoped, tag = 'input window, operand 11, single buffered']
    #allocation17 [shape = 's32[1]{0}', space=sflag, size = 0x4, scoped, tag = 'scoped memory for rnne_forward.1']
    #allocation18 [shape = 'u8[16384]{0}', space=vmem, size = 0x4000, scoped, tag = 'input window, operand 12, single buffered']
    #allocation19 [shape = 'u8[32768]{0}', space=vmem, size = 0x8000, scoped, tag = 'input window, operand 13, single buffered']
    #allocation20 [shape = 's32[1]{0}', space=sflag, size = 0x4, scoped, tag = 'scoped memory for rnne_forward.1']
    #allocation21 [shape = 'u8[32768]{0}', space=vmem, size = 0x8000, scoped, tag = 'input window, operand 14, single buffered']
    #allocation22 [shape = 'u8[512]{0}', space=vmem, size = 0x400, scoped, tag = 'input window, operand 15, single buffered']
    #allocation23 [shape = 's32[1]{0}', space=sflag, size = 0x4, scoped, tag = 'scoped memory for rnne_forward.1']
    #allocation24 [shape = 'u8[512]{0}', space=vmem, size = 0x400, scoped, tag = 'input window, operand 16, single buffered']
    #allocation25 [shape = 'u8[32768]{0}', space=vmem, size = 0x8000, scoped, tag = 'input window, operand 18, single buffered']
    #allocation26 [shape = 's32[1]{0}', space=sflag, size = 0x4, scoped, tag = 'scoped memory for rnne_forward.1']
    #allocation27 [shape = 'u8[32768]{0}', space=vmem, size = 0x8000, scoped, tag = 'input window, operand 19, single buffered']
    #allocation28 [shape = 'u8[262144]{0}', space=vmem, size = 0x40000, scoped, tag = 'input window, operand 22, single buffered']
    #allocation29 [shape = 's32[1]{0}', space=sflag, size = 0x4, scoped, tag = 'scoped memory for rnne_forward.1']
    #allocation30 [shape = 'u8[262144]{0}', space=vmem, size = 0x40000, scoped, tag = 'input window, operand 23, single buffered']
    %32 = vsyncpa [#allocation3], 0
    %33 = vsyncpa [#allocation5], 0
    %34 = vsyncpa [#allocation8], 0
    %35 = vsyncpa [#allocation11], 0
    %36 = vsyncpa [#allocation14], 0
    %37 = vsyncpa [#allocation17], 0
    %38 = vsyncpa [#allocation20], 0
    %39 = vsyncpa [#allocation23], 0
    %40 = vsyncpa [#allocation26], 0
    %41 = vsyncpa [#allocation29], 0
    // Predicated region
    $region2: #{rnne_forward.1} parent=1 // pred_check
      _
    $region3: #{rnne_forward.1} parent=1 // pred_check_branch
      %43 = sbr.rel (0) target = $region5
    $region4: #{rnne_forward.1} parent=1 // pred_region
      _
    $region5: #{rnne_forward.1} parent=1 // pred_fallthru
      _
    // Predicated region
    $region6: #{rnne_forward.1} parent=1 // pred_check
      _
    $region7: #{rnne_forward.1} parent=1 // pred_check_branch
      %45 = sbr.rel (0) target = $region9
    $region8: #{rnne_forward.1} parent=1 // pred_region
      _
    $region9: #{rnne_forward.1} parent=1 // pred_fallthru
      _
    // Predicated region
    $region10: #{rnne_forward.1} parent=1 // pred_check
      _
    $region11: #{rnne_forward.1} parent=1 // pred_check_branch
      %47 = sbr.rel (0) target = $region13
    $region12: #{rnne_forward.1} parent=1 // pred_region
      %s49 = ssub.s32 512, 512
      %50 = vsyncadd [#allocation3], %s49
      %s51 = sshll.u32 [#allocation2], 4
      %s52 = int_to_ptr.vmem [resolvable:$true] %s51
      %57 = dma.hbm_to_vmem [thread:$0]  %s2, 512, %s52, [#allocation3], 128, 128, 8
    $region13: #{rnne_forward.1} parent=1 // pred_fallthru
      _
    // Predicated region
    $region14: #{rnne_forward.1} parent=1 // pred_check
      _
    $region15: #{rnne_forward.1} parent=1 // pred_check_branch
      %59 = sbr.rel (0) target = $region17
    $region16: #{rnne_forward.1} parent=1 // pred_region
      %s61 = ssub.s32 1024, 1024
      %62 = vsyncadd [#allocation5], %s61
      %s63 = sshll.u32 [#allocation4], 4
      %s64 = int_to_ptr.vmem [resolvable:$true] %s63
      %69 = dma.hbm_to_vmem [thread:$0]  %s3, 1024, %s64, [#allocation5], 64, 64, 4
    $region17: #{rnne_forward.1} parent=1 // pred_fallthru
      _
    // Predicated region
    $region18: #{rnne_forward.1} parent=1 // pred_check
      _
    $region19: #{rnne_forward.1} parent=1 // pred_check_branch
      %71 = sbr.rel (0) target = $region21
    $region20: #{rnne_forward.1} parent=1 // pred_region
      %s73 = ssub.s32 1024, 1024
      %74 = vsyncadd [#allocation5], %s73
      %s75 = sshll.u32 [#allocation6], 4
      %s76 = int_to_ptr.vmem [resolvable:$true] %s75
      %81 = dma.hbm_to_vmem [thread:$0]  %s4, 1024, %s76, [#allocation5], 64, 64, 4
    $region21: #{rnne_forward.1} parent=1 // pred_fallthru
      _
    // Predicated region
    $region22: #{rnne_forward.1} parent=1 // pred_check
      _
    $region23: #{rnne_forward.1} parent=1 // pred_check_branch
      %83 = sbr.rel (0) target = $region25
    $region24: #{rnne_forward.1} parent=1 // pred_region
      %s85 = ssub.s32 16, 16
      %86 = vsyncadd [#allocation8], %s85
      %s88 = sshll.u32 [#allocation7], 4
      %s89 = int_to_ptr.vmem [resolvable:$true] %s88
      %91 = dma.hbm_to_vmem [thread:$0]  %s5, 16, %s89, [#allocation8]
    $region25: #{rnne_forward.1} parent=1 // pred_fallthru
      _
    // Predicated region
    $region26: #{rnne_forward.1} parent=1 // pred_check
      _
    $region27: #{rnne_forward.1} parent=1 // pred_check_branch
      %93 = sbr.rel (0) target = $region29
    $region28: #{rnne_forward.1} parent=1 // pred_region
      %s95 = ssub.s32 16, 16
      %96 = vsyncadd [#allocation8], %s95
      %s98 = sshll.u32 [#allocation9], 4
      %s99 = int_to_ptr.vmem [resolvable:$true] %s98
      %101 = dma.hbm_to_vmem [thread:$0]  %s6, 16, %s99, [#allocation8]
    $region29: #{rnne_forward.1} parent=1 // pred_fallthru
      _
    // Predicated region
    $region30: #{rnne_forward.1} parent=1 // pred_check
      _
    $region31: #{rnne_forward.1} parent=1 // pred_check_branch
      %103 = sbr.rel (0) target = $region33
    $region32: #{rnne_forward.1} parent=1 // pred_region
      %s105 = ssub.s32 4096, 4096
      %106 = vsyncadd [#allocation11], %s105
      %s107 = sshll.u32 [#allocation10], 4
      %s108 = int_to_ptr.vmem [resolvable:$true] %s107
      %113 = dma.hbm_to_vmem [thread:$0]  %s7, 4096, %s108, [#allocation11], 128, 128, 8
    $region33: #{rnne_forward.1} parent=1 // pred_fallthru
      _
    // Predicated region
    $region34: #{rnne_forward.1} parent=1 // pred_check
      _
    $region35: #{rnne_forward.1} parent=1 // pred_check_branch
      %115 = sbr.rel (0) target = $region37
    $region36: #{rnne_forward.1} parent=1 // pred_region
      %s117 = ssub.s32 1024, 1024
      %118 = vsyncadd [#allocation11], %s117
      %s119 = sshll.u32 [#allocation12], 4
      %s120 = int_to_ptr.vmem [resolvable:$true] %s119
      %125 = dma.hbm_to_vmem [thread:$0]  %s8, 1024, %s120, [#allocation11], 64, 64, 4
    $region37: #{rnne_forward.1} parent=1 // pred_fallthru
      _
    // Predicated region
    $region38: #{rnne_forward.1} parent=1 // pred_check
      _
    $region39: #{rnne_forward.1} parent=1 // pred_check_branch
      %127 = sbr.rel (0) target = $region41
    $region40: #{rnne_forward.1} parent=1 // pred_region
      %s129 = ssub.s32 1024, 1024
      %130 = vsyncadd [#allocation14], %s129
      %s131 = sshll.u32 [#allocation13], 4
      %s132 = int_to_ptr.vmem [resolvable:$true] %s131
      %137 = dma.hbm_to_vmem [thread:$0]  %s9, 1024, %s132, [#allocation14], 64, 64, 4
    $region41: #{rnne_forward.1} parent=1 // pred_fallthru
      _
    // Predicated region
    $region42: #{rnne_forward.1} parent=1 // pred_check
      _
    $region43: #{rnne_forward.1} parent=1 // pred_check_branch
      %139 = sbr.rel (0) target = $region45
    $region44: #{rnne_forward.1} parent=1 // pred_region
      %s141 = ssub.s32 16, 16
      %142 = vsyncadd [#allocation14], %s141
      %s144 = sshll.u32 [#allocation15], 4
      %s145 = int_to_ptr.vmem [resolvable:$true] %s144
      %147 = dma.hbm_to_vmem [thread:$0]  %s10, 16, %s145, [#allocation14]
    $region45: #{rnne_forward.1} parent=1 // pred_fallthru
      _
    // Predicated region
    $region46: #{rnne_forward.1} parent=1 // pred_check
      _
    $region47: #{rnne_forward.1} parent=1 // pred_check_branch
      %149 = sbr.rel (0) target = $region49
    $region48: #{rnne_forward.1} parent=1 // pred_region
      %s151 = ssub.s32 16, 16
      %152 = vsyncadd [#allocation17], %s151
      %s154 = sshll.u32 [#allocation16], 4
      %s155 = int_to_ptr.vmem [resolvable:$true] %s154
      %157 = dma.hbm_to_vmem [thread:$0]  %s11, 16, %s155, [#allocation17]
    $region49: #{rnne_forward.1} parent=1 // pred_fallthru
      _
    // Predicated region
    $region50: #{rnne_forward.1} parent=1 // pred_check
      _
    $region51: #{rnne_forward.1} parent=1 // pred_check_branch
      %159 = sbr.rel (0) target = $region53
    $region52: #{rnne_forward.1} parent=1 // pred_region
      %s161 = ssub.s32 512, 512
      %162 = vsyncadd [#allocation17], %s161
      %s163 = sshll.u32 [#allocation18], 4
      %s164 = int_to_ptr.vmem [resolvable:$true] %s163
      %169 = dma.hbm_to_vmem [thread:$0]  %s12, 512, %s164, [#allocation17], 128, 128, 8
    $region53: #{rnne_forward.1} parent=1 // pred_fallthru
      _
    // Predicated region
    $region54: #{rnne_forward.1} parent=1 // pred_check
      _
    $region55: #{rnne_forward.1} parent=1 // pred_check_branch
      %171 = sbr.rel (0) target = $region57
    $region56: #{rnne_forward.1} parent=1 // pred_region
      %s173 = ssub.s32 1024, 1024
      %174 = vsyncadd [#allocation20], %s173
      %s175 = sshll.u32 [#allocation19], 4
      %s176 = int_to_ptr.vmem [resolvable:$true] %s175
      %181 = dma.hbm_to_vmem [thread:$0]  %s13, 1024, %s176, [#allocation20], 64, 64, 4
    $region57: #{rnne_forward.1} parent=1 // pred_fallthru
      _
    // Predicated region
    $region58: #{rnne_forward.1} parent=1 // pred_check
      _
    $region59: #{rnne_forward.1} parent=1 // pred_check_branch
      %183 = sbr.rel (0) target = $region61
    $region60: #{rnne_forward.1} parent=1 // pred_region
      %s185 = ssub.s32 1024, 1024
      %186 = vsyncadd [#allocation20], %s185
      %s187 = sshll.u32 [#allocation21], 4
      %s188 = int_to_ptr.vmem [resolvable:$true] %s187
      %193 = dma.hbm_to_vmem [thread:$0]  %s14, 1024, %s188, [#allocation20], 64, 64, 4
    $region61: #{rnne_forward.1} parent=1 // pred_fallthru
      _
    // Predicated region
    $region62: #{rnne_forward.1} parent=1 // pred_check
      _
    $region63: #{rnne_forward.1} parent=1 // pred_check_branch
      %195 = sbr.rel (0) target = $region65
    $region64: #{rnne_forward.1} parent=1 // pred_region
      %s197 = ssub.s32 16, 16
      %198 = vsyncadd [#allocation23], %s197
      %s200 = sshll.u32 [#allocation22], 4
      %s201 = int_to_ptr.vmem [resolvable:$true] %s200
      %203 = dma.hbm_to_vmem [thread:$0]  %s15, 16, %s201, [#allocation23]
    $region65: #{rnne_forward.1} parent=1 // pred_fallthru
      _
    // Predicated region
    $region66: #{rnne_forward.1} parent=1 // pred_check
      _
    $region67: #{rnne_forward.1} parent=1 // pred_check_branch
      %205 = sbr.rel (0) target = $region69
    $region68: #{rnne_forward.1} parent=1 // pred_region
      %s207 = ssub.s32 16, 16
      %208 = vsyncadd [#allocation23], %s207
      %s210 = sshll.u32 [#allocation24], 4
      %s211 = int_to_ptr.vmem [resolvable:$true] %s210
      %213 = dma.hbm_to_vmem [thread:$0]  %s16, 16, %s211, [#allocation23]
    $region69: #{rnne_forward.1} parent=1 // pred_fallthru
      _
    // Predicated region
    $region70: #{rnne_forward.1} parent=1 // pred_check
      _
    $region71: #{rnne_forward.1} parent=1 // pred_check_branch
      %215 = sbr.rel (0) target = $region73
    $region72: #{rnne_forward.1} parent=1 // pred_region
      _
    $region73: #{rnne_forward.1} parent=1 // pred_fallthru
      _
    // Predicated region
    $region74: #{rnne_forward.1} parent=1 // pred_check
      _
    $region75: #{rnne_forward.1} parent=1 // pred_check_branch
      %217 = sbr.rel (0) target = $region77
    $region76: #{rnne_forward.1} parent=1 // pred_region
      %s219 = ssub.s32 1024, 1024
      %220 = vsyncadd [#allocation26], %s219
      %s221 = sshll.u32 [#allocation25], 4
      %s222 = int_to_ptr.vmem [resolvable:$true] %s221
      %227 = dma.hbm_to_vmem [thread:$0]  %s18, 1024, %s222, [#allocation26], 64, 64, 4
    $region77: #{rnne_forward.1} parent=1 // pred_fallthru
      _
    // Predicated region
    $region78: #{rnne_forward.1} parent=1 // pred_check
      _
    $region79: #{rnne_forward.1} parent=1 // pred_check_branch
      %229 = sbr.rel (0) target = $region81
    $region80: #{rnne_forward.1} parent=1 // pred_region
      %s231 = ssub.s32 1024, 1024
      %232 = vsyncadd [#allocation26], %s231
      %s233 = sshll.u32 [#allocation27], 4
      %s234 = int_to_ptr.vmem [resolvable:$true] %s233
      %239 = dma.hbm_to_vmem [thread:$0]  %s19, 1024, %s234, [#allocation26], 64, 64, 4
    $region81: #{rnne_forward.1} parent=1 // pred_fallthru
      _
    // Predicated region
    $region82: #{rnne_forward.1} parent=1 // pred_check
      _
    $region83: #{rnne_forward.1} parent=1 // pred_check_branch
      %241 = sbr.rel (0) target = $region85
    $region84: #{rnne_forward.1} parent=1 // pred_region
      _
    $region85: #{rnne_forward.1} parent=1 // pred_fallthru
      _
    // Predicated region
    $region86: #{rnne_forward.1} parent=1 // pred_check
      _
    $region87: #{rnne_forward.1} parent=1 // pred_check_branch
      %243 = sbr.rel (0) target = $region89
    $region88: #{rnne_forward.1} parent=1 // pred_region
      _
    $region89: #{rnne_forward.1} parent=1 // pred_fallthru
      _
    // Predicated region
    $region90: #{rnne_forward.1} parent=1 // pred_check
      _
    $region91: #{rnne_forward.1} parent=1 // pred_check_branch
      %245 = sbr.rel (0) target = $region93
    $region92: #{rnne_forward.1} parent=1 // pred_region
      %s247 = ssub.s32 8192, 8192
      %248 = vsyncadd [#allocation29], %s247
      %s249 = sshll.u32 [#allocation28], 4
      %s250 = int_to_ptr.vmem [resolvable:$true] %s249
      %255 = dma.hbm_to_vmem [thread:$0]  %s22, 8192, %s250, [#allocation29], 64, 64, 4
    $region93: #{rnne_forward.1} parent=1 // pred_fallthru
      _
    // Predicated region
    $region94: #{rnne_forward.1} parent=1 // pred_check
      _
    $region95: #{rnne_forward.1} parent=1 // pred_check_branch
      %257 = sbr.rel (0) target = $region97
    $region96: #{rnne_forward.1} parent=1 // pred_region
      %s259 = ssub.s32 8192, 8192
      %260 = vsyncadd [#allocation29], %s259
      %s261 = sshll.u32 [#allocation30], 4
      %s262 = int_to_ptr.vmem [resolvable:$true] %s261
      %267 = dma.hbm_to_vmem [thread:$0]  %s23, 8192, %s262, [#allocation29], 64, 64, 4
    $region97: #{rnne_forward.1} parent=1 // pred_fallthru
      _
    // Predicated region
    $region98: #{rnne_forward.1} parent=1 // pred_check
      _
    $region99: #{rnne_forward.1} parent=1 // pred_check_branch
      %269 = sbr.rel (0) target = $region101
    $region100: #{rnne_forward.1} parent=1 // pred_region
      _
    $region101: #{rnne_forward.1} parent=1 // pred_fallthru
      _
    // Predicated region
    $region102: #{rnne_forward.1} parent=1 // pred_check
      _
    $region103: #{rnne_forward.1} parent=1 // pred_check_branch
      %271 = sbr.rel (0) target = $region105
    $region104: #{rnne_forward.1} parent=1 // pred_region
      _
    $region105: #{rnne_forward.1} parent=1 // pred_fallthru
      _
    // Predicated region
    $region106: #{rnne_forward.1} parent=1 // pred_check
      _
    $region107: #{rnne_forward.1} parent=1 // pred_check_branch
      %273 = sbr.rel (0) target = $region109
    $region108: #{rnne_forward.1} parent=1 // pred_region
      _
    $region109: #{rnne_forward.1} parent=1 // pred_fallthru
      _
    // Predicated region
    $region110: #{rnne_forward.1} parent=1 // pred_check
      _
    $region111: #{rnne_forward.1} parent=1 // pred_check_branch
      %275 = sbr.rel (0) target = $region113
    $region112: #{rnne_forward.1} parent=1 // pred_region
      %276 = dma.done [#allocation3], 512
    $region113: #{rnne_forward.1} parent=1 // pred_fallthru
      _
    // Predicated region
    $region114: #{rnne_forward.1} parent=1 // pred_check
      _
    $region115: #{rnne_forward.1} parent=1 // pred_check_branch
      %278 = sbr.rel (0) target = $region117
    $region116: #{rnne_forward.1} parent=1 // pred_region
      %279 = dma.done [#allocation5], 1024
    $region117: #{rnne_forward.1} parent=1 // pred_fallthru
      _
    // Predicated region
    $region118: #{rnne_forward.1} parent=1 // pred_check
      _
    $region119: #{rnne_forward.1} parent=1 // pred_check_branch
      %281 = sbr.rel (0) target = $region121
    $region120: #{rnne_forward.1} parent=1 // pred_region
      %282 = dma.done [#allocation5], 1024
    $region121: #{rnne_forward.1} parent=1 // pred_fallthru
      _
    // Predicated region
    $region122: #{rnne_forward.1} parent=1 // pred_check
      _
    $region123: #{rnne_forward.1} parent=1 // pred_check_branch
      %284 = sbr.rel (0) target = $region125
    $region124: #{rnne_forward.1} parent=1 // pred_region
      %285 = dma.done [#allocation8], 16
    $region125: #{rnne_forward.1} parent=1 // pred_fallthru
      _
    // Predicated region
    $region126: #{rnne_forward.1} parent=1 // pred_check
      _
    $region127: #{rnne_forward.1} parent=1 // pred_check_branch
      %287 = sbr.rel (0) target = $region129
    $region128: #{rnne_forward.1} parent=1 // pred_region
      %288 = dma.done [#allocation8], 16
    $region129: #{rnne_forward.1} parent=1 // pred_fallthru
      _
    // Predicated region
    $region130: #{rnne_forward.1} parent=1 // pred_check
      _
    $region131: #{rnne_forward.1} parent=1 // pred_check_branch
      %290 = sbr.rel (0) target = $region133
    $region132: #{rnne_forward.1} parent=1 // pred_region
      %291 = dma.done [#allocation11], 4096
    $region133: #{rnne_forward.1} parent=1 // pred_fallthru
      _
    // Predicated region
    $region134: #{rnne_forward.1} parent=1 // pred_check
      _
    $region135: #{rnne_forward.1} parent=1 // pred_check_branch
      %293 = sbr.rel (0) target = $region137
    $region136: #{rnne_forward.1} parent=1 // pred_region
      %294 = dma.done [#allocation11], 1024
    $region137: #{rnne_forward.1} parent=1 // pred_fallthru
      _
    // Predicated region
    $region138: #{rnne_forward.1} parent=1 // pred_check
      _
    $region139: #{rnne_forward.1} parent=1 // pred_check_branch
      %296 = sbr.rel (0) target = $region141
    $region140: #{rnne_forward.1} parent=1 // pred_region
      %297 = dma.done [#allocation14], 1024
    $region141: #{rnne_forward.1} parent=1 // pred_fallthru
      _
    // Predicated region
    $region142: #{rnne_forward.1} parent=1 // pred_check
      _
    $region143: #{rnne_forward.1} parent=1 // pred_check_branch
      %299 = sbr.rel (0) target = $region145
    $region144: #{rnne_forward.1} parent=1 // pred_region
      %300 = dma.done [#allocation14], 16
    $region145: #{rnne_forward.1} parent=1 // pred_fallthru
      _
    // Predicated region
    $region146: #{rnne_forward.1} parent=1 // pred_check
      _
    $region147: #{rnne_forward.1} parent=1 // pred_check_branch
      %302 = sbr.rel (0) target = $region149
    $region148: #{rnne_forward.1} parent=1 // pred_region
      %303 = dma.done [#allocation17], 16
    $region149: #{rnne_forward.1} parent=1 // pred_fallthru
      _
    // Predicated region
    $region150: #{rnne_forward.1} parent=1 // pred_check
      _
    $region151: #{rnne_forward.1} parent=1 // pred_check_branch
      %305 = sbr.rel (0) target = $region153
    $region152: #{rnne_forward.1} parent=1 // pred_region
      %306 = dma.done [#allocation17], 512
    $region153: #{rnne_forward.1} parent=1 // pred_fallthru
      _
    // Predicated region
    $region154: #{rnne_forward.1} parent=1 // pred_check
      _
    $region155: #{rnne_forward.1} parent=1 // pred_check_branch
      %308 = sbr.rel (0) target = $region157
    $region156: #{rnne_forward.1} parent=1 // pred_region
      %309 = dma.done [#allocation20], 1024
    $region157: #{rnne_forward.1} parent=1 // pred_fallthru
      _
    // Predicated region
    $region158: #{rnne_forward.1} parent=1 // pred_check
      _
    $region159: #{rnne_forward.1} parent=1 // pred_check_branch
      %311 = sbr.rel (0) target = $region161
    $region160: #{rnne_forward.1} parent=1 // pred_region
      %312 = dma.done [#allocation20], 1024
    $region161: #{rnne_forward.1} parent=1 // pred_fallthru
      _
    // Predicated region
    $region162: #{rnne_forward.1} parent=1 // pred_check
      _
    $region163: #{rnne_forward.1} parent=1 // pred_check_branch
      %314 = sbr.rel (0) target = $region165
    $region164: #{rnne_forward.1} parent=1 // pred_region
      %315 = dma.done [#allocation23], 16
    $region165: #{rnne_forward.1} parent=1 // pred_fallthru
      _
    // Predicated region
    $region166: #{rnne_forward.1} parent=1 // pred_check
      _
    $region167: #{rnne_forward.1} parent=1 // pred_check_branch
      %317 = sbr.rel (0) target = $region169
    $region168: #{rnne_forward.1} parent=1 // pred_region
      %318 = dma.done [#allocation23], 16
    $region169: #{rnne_forward.1} parent=1 // pred_fallthru
      _
    // Predicated region
    $region170: #{rnne_forward.1} parent=1 // pred_check
      _
    $region171: #{rnne_forward.1} parent=1 // pred_check_branch
      %320 = sbr.rel (0) target = $region173
    $region172: #{rnne_forward.1} parent=1 // pred_region
      %321 = dma.done [#allocation26], 1024
    $region173: #{rnne_forward.1} parent=1 // pred_fallthru
      _
    // Predicated region
    $region174: #{rnne_forward.1} parent=1 // pred_check
      _
    $region175: #{rnne_forward.1} parent=1 // pred_check_branch
      %323 = sbr.rel (0) target = $region177
    $region176: #{rnne_forward.1} parent=1 // pred_region
      %324 = dma.done [#allocation26], 1024
    $region177: #{rnne_forward.1} parent=1 // pred_fallthru
      _
    // Predicated region
    $region178: #{rnne_forward.1} parent=1 // pred_check
      _
    $region179: #{rnne_forward.1} parent=1 // pred_check_branch
      %326 = sbr.rel (0) target = $region181
    $region180: #{rnne_forward.1} parent=1 // pred_region
      %327 = dma.done [#allocation29], 8192
    $region181: #{rnne_forward.1} parent=1 // pred_fallthru
      _
    // Predicated region
    $region182: #{rnne_forward.1} parent=1 // pred_check
      _
    $region183: #{rnne_forward.1} parent=1 // pred_check_branch
      %329 = sbr.rel (0) target = $region185
    $region184: #{rnne_forward.1} parent=1 // pred_region
      %330 = dma.done [#allocation29], 8192
    $region185: #{rnne_forward.1} parent=1 // pred_fallthru
      _
    %v332 = vld [vmem:[%s0] sm:$0xf]
    %v333 = vld [vmem:[%s0 + $0x4] sm:$0xf]
    %v334 = vld [vmem:[%s0 + $0x8] sm:$0xf]
    %v335 = vld [vmem:[%s0 + $0xc] sm:$0xf]
    %v336 = vld [vmem:[%s0 + $0x10] sm:$0xf]
    %v337 = vld [vmem:[%s0 + $0x14] sm:$0xf]
    %v338 = vld [vmem:[%s0 + $0x18] sm:$0xf]
    %v339 = vld [vmem:[%s0 + $0x1c] sm:$0xf]
    %v340 = vld [vmem:[#allocation2] sm:$0xff]
    %v341 = vld [vmem:[#allocation2 + $0x8] sm:$0xff]
    %v342 = vld [vmem:[#allocation2 + $0x10] sm:$0xff]
    %v343 = vld [vmem:[#allocation2 + $0x18] sm:$0xff]
    %v352 = vunpack.c.l.b16 %v332
    %v353 = vunpack.c.l.b16 %v333
    %v354 = vunpack.c.l.b16 %v334
    %v355 = vunpack.c.l.b16 %v335
    %v356 = vunpack.c.l.b16 %v336
    %v357 = vunpack.c.l.b16 %v337
    %v358 = vunpack.c.l.b16 %v338
    %v359 = vunpack.c.l.b16 %v339
    %v360 = vpack.c.b16 %v353, %v352
    %v361 = vpack.c.b16 %v355, %v354
    %v362 = vpack.c.b16 %v357, %v356
    %v363 = vpack.c.b16 %v359, %v358
    %v368 = vunpack.c.l.b16 %v340
    %v369 = vunpack.c.h.b16 %v340
    %v370 = vunpack.c.l.b16 %v341
    %v371 = vunpack.c.h.b16 %v341
    %v372 = vunpack.c.l.b16 %v342
    %v373 = vunpack.c.h.b16 %v342
    %v374 = vunpack.c.l.b16 %v343
    %v375 = vunpack.c.h.b16 %v343
    %v376 = vpack.c.b16 %v370, %v368
    %v377 = vpack.c.b16 %v371, %v369
    %v378 = vpack.c.b16 %v374, %v372
    %v379 = vpack.c.b16 %v375, %v373
    %vm384 = vcmask 261120
    %v386 = vsel %vm384, %v360, 0
    %v389 = vsel %vm384, %v361, 0
    %v392 = vsel %vm384, %v362, 0
    %v395 = vsel %vm384, %v363, 0
    %397 = vmatprep.subr.bf16.mxu0 0
    %398 = vmatpush1.bf16.msra.mxu0 0
    %399 = vmatprep.subr.bf16.mxu0 0
    %400 = vmatpush1.bf16.msra.mxu0 0
    %401 = vmatprep.subr.bf16.mxu0 0
    %402 = vmatpush1.bf16.msra.mxu0 0
    %403 = vmatprep.subr.bf16.mxu0 0
    %404 = vmatpush1.bf16.msra.mxu0 0
    %405 = vmatprep.subr.bf16.mxu0 0
    %406 = vmatpush1.bf16.msra.mxu0 0
    %407 = vmatprep.subr.bf16.mxu0 0
    %408 = vmatpush1.bf16.msra.mxu0 0
    %409 = vmatprep.subr.bf16.mxu0 %v379
    %410 = vmatpush1.bf16.msra.mxu0 %v378
    %411 = vmatprep.subr.bf16.mxu0 %v377
    %412 = vmatpush1.bf16.msra.mxu0 %v376
    %413 = vmatprep.subr.bf16.mxu0 0
    %414 = vmatpush2.bf16.msra.mxu0 0
    %415 = vmatprep.subr.bf16.mxu0 0
    %416 = vmatpush2.bf16.msra.mxu0 0
    %417 = vmatprep.subr.bf16.mxu0 0
    %418 = vmatpush2.bf16.msra.mxu0 0
    %419 = vmatprep.subr.bf16.mxu0 0
    %420 = vmatpush2.bf16.msra.mxu0 0
    %421 = vmatprep.subr.bf16.mxu0 0
    %422 = vmatpush2.bf16.msra.mxu0 0
    %423 = vmatprep.subr.bf16.mxu0 0
    %424 = vmatpush2.bf16.msra.mxu0 0
    %425 = vmatprep.subr.bf16.mxu0 0
    %426 = vmatpush2.bf16.msra.mxu0 0
    %427 = vmatprep.subr.bf16.mxu0 0
    %428 = vmatpush2.bf16.msra.mxu0 0
    %429 = vmatprep.mubr.bf16.mxu0 0
    %430 = vmatmul.mubr.bf16.gmra.mxu0 %v386
    %v431 = vpop.f32.mrf.mxu0
    %v432 = vadd.f32 0.0, %v431
    %v433 = vpop.f32.mrf.mxu0
    %v434 = vadd.f32 0.0, %v433
    %v435 = vpop.f32.mrf.mxu0
    %v436 = vadd.f32 0.0, %v435
    %v437 = vpop.f32.mrf.mxu0
    %v438 = vadd.f32 0.0, %v437
    %439 = vmatprep.mubr.bf16.mxu0 0
    %440 = vmatmul.mubr.bf16.gmra.mxu0 %v389
    %v441 = vpop.f32.mrf.mxu0
    %v442 = vadd.f32 0.0, %v441
    %v443 = vpop.f32.mrf.mxu0
    %v444 = vadd.f32 0.0, %v443
    %v445 = vpop.f32.mrf.mxu0
    %v446 = vadd.f32 0.0, %v445
    %v447 = vpop.f32.mrf.mxu0
    %v448 = vadd.f32 0.0, %v447
    %449 = vmatprep.mubr.bf16.mxu0 0
    %450 = vmatmul.mubr.bf16.gmra.mxu0 %v392
    %v451 = vpop.f32.mrf.mxu0
    %v452 = vadd.f32 0.0, %v451
    %v453 = vpop.f32.mrf.mxu0
    %v454 = vadd.f32 0.0, %v453
    %v455 = vpop.f32.mrf.mxu0
    %v456 = vadd.f32 0.0, %v455
    %v457 = vpop.f32.mrf.mxu0
    %v458 = vadd.f32 0.0, %v457
    %459 = vmatprep.mubr.bf16.mxu0 0
    %460 = vmatmul.mubr.bf16.gmra.mxu0 %v395
    %v461 = vpop.f32.mrf.mxu0
    %v462 = vadd.f32 0.0, %v461
    %v463 = vpop.f32.mrf.mxu0
    %v464 = vadd.f32 0.0, %v463
    %v465 = vpop.f32.mrf.mxu0
    %v466 = vadd.f32 0.0, %v465
    %v467 = vpop.f32.mrf.mxu0
    %v468 = vadd.f32 0.0, %v467
    %469 = vdwg.mxu0
    %v470 = vld [vmem:[#allocation7] sm:$0x1]
    %v471 = vld [vmem:[#allocation9] sm:$0x1]
    %v473 = vlaneseq
    %v474 = vshrl.u32 %v473, 7
    %v475 = vsub.s32 0, %v474
    %v476 = vrot.slane %v470, %v475
    %v478 = vadd.f32 %v432, %v476
    %v479 = vadd.f32 %v436, %v476
    %v480 = vadd.f32 %v442, %v476
    %v481 = vadd.f32 %v446, %v476
    %v482 = vadd.f32 %v452, %v476
    %v483 = vadd.f32 %v456, %v476
    %v484 = vadd.f32 %v462, %v476
    %v485 = vadd.f32 %v466, %v476
    %v487 = vlaneseq
    %v488 = vshrl.u32 %v487, 7
    %v489 = vsub.s32 0, %v488
    %v490 = vrot.slane %v471, %v489
    %v492 = vadd.f32 %v468, %v490
    %v493 = vadd.f32 %v464, %v490
    %v494 = vadd.f32 %v458, %v490
    %v495 = vadd.f32 %v454, %v490
    %v496 = vadd.f32 %v448, %v490
    %v497 = vadd.f32 %v444, %v490
    %v498 = vadd.f32 %v438, %v490
    %v499 = vadd.f32 %v434, %v490
    %v500 = vld [vmem:[#allocation4] sm:$0xf]
    %v501 = vld [vmem:[#allocation4 + $0x4] sm:$0xf]
    %v502 = vld [vmem:[#allocation4 + $0x8] sm:$0xf]
    %v503 = vld [vmem:[#allocation4 + $0xc] sm:$0xf]
    %v504 = vld [vmem:[#allocation4 + $0x10] sm:$0xf]
    %v505 = vld [vmem:[#allocation4 + $0x14] sm:$0xf]
    %v506 = vld [vmem:[#allocation4 + $0x18] sm:$0xf]
    %v507 = vld [vmem:[#allocation4 + $0x1c] sm:$0xf]
    %v508 = vld [vmem:[#allocation4 + $0x20] sm:$0xf]
    %v509 = vld [vmem:[#allocation4 + $0x24] sm:$0xf]
    %v510 = vld [vmem:[#allocation4 + $0x28] sm:$0xf]
    %v511 = vld [vmem:[#allocation4 + $0x2c] sm:$0xf]
    %v512 = vld [vmem:[#allocation4 + $0x30] sm:$0xf]
    %v513 = vld [vmem:[#allocation4 + $0x34] sm:$0xf]
    %v514 = vld [vmem:[#allocation4 + $0x38] sm:$0xf]
    %v515 = vld [vmem:[#allocation4 + $0x3c] sm:$0xf]
    %v532 = vunpack.c.l.b16 %v500
    %v533 = vunpack.c.l.b16 %v501
    %v534 = vunpack.c.l.b16 %v502
    %v535 = vunpack.c.l.b16 %v503
    %v536 = vunpack.c.l.b16 %v504
    %v537 = vunpack.c.l.b16 %v505
    %v538 = vunpack.c.l.b16 %v506
    %v539 = vunpack.c.l.b16 %v507
    %v540 = vunpack.c.l.b16 %v508
    %v541 = vunpack.c.l.b16 %v509
    %v542 = vunpack.c.l.b16 %v510
    %v543 = vunpack.c.l.b16 %v511
    %v544 = vunpack.c.l.b16 %v512
    %v545 = vunpack.c.l.b16 %v513
    %v546 = vunpack.c.l.b16 %v514
    %v547 = vunpack.c.l.b16 %v515
    %v548 = vpack.c.b16 %v533, %v532
    %v549 = vpack.c.b16 %v535, %v534
    %v550 = vpack.c.b16 %v537, %v536
    %v551 = vpack.c.b16 %v539, %v538
    %v552 = vpack.c.b16 %v541, %v540
    %v553 = vpack.c.b16 %v543, %v542
    %v554 = vpack.c.b16 %v545, %v544
    %v555 = vpack.c.b16 %v547, %v546
    %564 = vmatprep.subr.bf16.mxu0 0
    %565 = vmatpush1.bf16.msra.mxu0 %v555
    %566 = vmatprep.subr.bf16.mxu0 0
    %567 = vmatpush1.bf16.msra.mxu0 %v554
    %568 = vmatprep.subr.bf16.mxu0 0
    %569 = vmatpush1.bf16.msra.mxu0 %v553
    %570 = vmatprep.subr.bf16.mxu0 0
    %571 = vmatpush1.bf16.msra.mxu0 %v552
    %572 = vmatprep.subr.bf16.mxu0 0
    %573 = vmatpush1.bf16.msra.mxu0 %v551
    %574 = vmatprep.subr.bf16.mxu0 0
    %575 = vmatpush1.bf16.msra.mxu0 %v550
    %576 = vmatprep.subr.bf16.mxu0 0
    %577 = vmatpush1.bf16.msra.mxu0 %v549
    %578 = vmatprep.subr.bf16.mxu0 0
    %579 = vmatpush1.bf16.msra.mxu0 %v548
    %580 = vmatprep.subr.bf16.mxu0 0
    %581 = vmatpush2.bf16.msra.mxu0 0
    %582 = vmatprep.subr.bf16.mxu0 0
    %583 = vmatpush2.bf16.msra.mxu0 0
    %584 = vmatprep.subr.bf16.mxu0 0
    %585 = vmatpush2.bf16.msra.mxu0 0
    %586 = vmatprep.subr.bf16.mxu0 0
    %587 = vmatpush2.bf16.msra.mxu0 0
    %588 = vmatprep.subr.bf16.mxu0 0
    %589 = vmatpush2.bf16.msra.mxu0 0
    %590 = vmatprep.subr.bf16.mxu0 0
    %591 = vmatpush2.bf16.msra.mxu0 0
    %592 = vmatprep.subr.bf16.mxu0 0
    %593 = vmatpush2.bf16.msra.mxu0 0
    %594 = vmatprep.subr.bf16.mxu0 0
    %595 = vmatpush2.bf16.msra.mxu0 0
    %596 = vmatprep.mubr.bf16.mxu0 0
    %597 = vmatmul.mubr.bf16.gmra.mxu0 0
    %v598 = vpop.f32.mrf.mxu0
    %v599 = vadd.f32 0.0, %v598
    %v600 = vpop.f32.mrf.mxu0
    %v601 = vpop.f32.mrf.mxu0
    %v602 = vpop.f32.mrf.mxu0
    %603 = vdwg.mxu0
    %v604 = vadd.f32 %v478, %v599
    %v605 = vtanh.pop %v604
    %v606 = vpack.c.bf16 %v605, %v605
    %607 = vmatprep.subr.bf16.mxu0 0
    %608 = vmatpush1.bf16.msra.mxu0 %v555
    %609 = vmatprep.subr.bf16.mxu0 0
    %610 = vmatpush1.bf16.msra.mxu0 %v554
    %611 = vmatprep.subr.bf16.mxu0 0
    %612 = vmatpush1.bf16.msra.mxu0 %v553
    %613 = vmatprep.subr.bf16.mxu0 0
    %614 = vmatpush1.bf16.msra.mxu0 %v552
    %615 = vmatprep.subr.bf16.mxu0 0
    %616 = vmatpush1.bf16.msra.mxu0 %v551
    %617 = vmatprep.subr.bf16.mxu0 0
    %618 = vmatpush1.bf16.msra.mxu0 %v550
    %619 = vmatprep.subr.bf16.mxu0 0
    %620 = vmatpush1.bf16.msra.mxu0 %v549
    %621 = vmatprep.subr.bf16.mxu0 0
    %622 = vmatpush1.bf16.msra.mxu0 %v548
    %623 = vmatprep.subr.bf16.mxu0 0
    %624 = vmatpush2.bf16.msra.mxu0 0
    %625 = vmatprep.subr.bf16.mxu0 0
    %626 = vmatpush2.bf16.msra.mxu0 0
    %627 = vmatprep.subr.bf16.mxu0 0
    %628 = vmatpush2.bf16.msra.mxu0 0
    %629 = vmatprep.subr.bf16.mxu0 0
    %630 = vmatpush2.bf16.msra.mxu0 0
    %631 = vmatprep.subr.bf16.mxu0 0
    %632 = vmatpush2.bf16.msra.mxu0 0
    %633 = vmatprep.subr.bf16.mxu0 0
    %634 = vmatpush2.bf16.msra.mxu0 0
    %635 = vmatprep.subr.bf16.mxu0 0
    %636 = vmatpush2.bf16.msra.mxu0 0
    %637 = vmatprep.subr.bf16.mxu0 0
    %638 = vmatpush2.bf16.msra.mxu0 0
    %639 = vmatprep.mubr.bf16.mxu0 0
    %640 = vmatmul.mubr.bf16.gmra.mxu0 %v606
    %v641 = vpop.f32.mrf.mxu0
    %v642 = vadd.f32 0.0, %v641
    %v643 = vpop.f32.mrf.mxu0
    %v644 = vpop.f32.mrf.mxu0
    %v645 = vpop.f32.mrf.mxu0
    %646 = vdwg.mxu0
    %v647 = vadd.f32 %v479, %v642
    %v648 = vtanh.pop %v647
    %v649 = vpack.c.bf16 %v648, %v648
    %650 = vmatprep.subr.bf16.mxu0 0
    %651 = vmatpush1.bf16.msra.mxu0 %v555
    %652 = vmatprep.subr.bf16.mxu0 0
    %653 = vmatpush1.bf16.msra.mxu0 %v554
    %654 = vmatprep.subr.bf16.mxu0 0
    %655 = vmatpush1.bf16.msra.mxu0 %v553
    %656 = vmatprep.subr.bf16.mxu0 0
    %657 = vmatpush1.bf16.msra.mxu0 %v552
    %658 = vmatprep.subr.bf16.mxu0 0
    %659 = vmatpush1.bf16.msra.mxu0 %v551
    %660 = vmatprep.subr.bf16.mxu0 0
    %661 = vmatpush1.bf16.msra.mxu0 %v550
    %662 = vmatprep.subr.bf16.mxu0 0
    %663 = vmatpush1.bf16.msra.mxu0 %v549
    %664 = vmatprep.subr.bf16.mxu0 0
    %665 = vmatpush1.bf16.msra.mxu0 %v548
    %666 = vmatprep.subr.bf16.mxu0 0
    %667 = vmatpush2.bf16.msra.mxu0 0
    %668 = vmatprep.subr.bf16.mxu0 0
    %669 = vmatpush2.bf16.msra.mxu0 0
    %670 = vmatprep.subr.bf16.mxu0 0
    %671 = vmatpush2.bf16.msra.mxu0 0
    %672 = vmatprep.subr.bf16.mxu0 0
    %673 = vmatpush2.bf16.msra.mxu0 0
    %674 = vmatprep.subr.bf16.mxu0 0
    %675 = vmatpush2.bf16.msra.mxu0 0
    %676 = vmatprep.subr.bf16.mxu0 0
    %677 = vmatpush2.bf16.msra.mxu0 0
    %678 = vmatprep.subr.bf16.mxu0 0
    %679 = vmatpush2.bf16.msra.mxu0 0
    %680 = vmatprep.subr.bf16.mxu0 0
    %681 = vmatpush2.bf16.msra.mxu0 0
    %682 = vmatprep.mubr.bf16.mxu0 0
    %683 = vmatmul.mubr.bf16.gmra.mxu0 %v649
    %v684 = vpop.f32.mrf.mxu0
    %v685 = vadd.f32 0.0, %v684
    %v686 = vpop.f32.mrf.mxu0
    %v687 = vpop.f32.mrf.mxu0
    %v688 = vpop.f32.mrf.mxu0
    %689 = vdwg.mxu0
    %v690 = vadd.f32 %v480, %v685
    %v691 = vtanh.pop %v690
    %v692 = vpack.c.bf16 %v691, %v691
    %693 = vmatprep.subr.bf16.mxu0 0
    %694 = vmatpush1.bf16.msra.mxu0 %v555
    %695 = vmatprep.subr.bf16.mxu0 0
    %696 = vmatpush1.bf16.msra.mxu0 %v554
    %697 = vmatprep.subr.bf16.mxu0 0
    %698 = vmatpush1.bf16.msra.mxu0 %v553
    %699 = vmatprep.subr.bf16.mxu0 0
    %700 = vmatpush1.bf16.msra.mxu0 %v552
    %701 = vmatprep.subr.bf16.mxu0 0
    %702 = vmatpush1.bf16.msra.mxu0 %v551
    %703 = vmatprep.subr.bf16.mxu0 0
    %704 = vmatpush1.bf16.msra.mxu0 %v550
    %705 = vmatprep.subr.bf16.mxu0 0
    %706 = vmatpush1.bf16.msra.mxu0 %v549
    %707 = vmatprep.subr.bf16.mxu0 0
    %708 = vmatpush1.bf16.msra.mxu0 %v548
    %709 = vmatprep.subr.bf16.mxu0 0
    %710 = vmatpush2.bf16.msra.mxu0 0
    %711 = vmatprep.subr.bf16.mxu0 0
    %712 = vmatpush2.bf16.msra.mxu0 0
    %713 = vmatprep.subr.bf16.mxu0 0
    %714 = vmatpush2.bf16.msra.mxu0 0
    %715 = vmatprep.subr.bf16.mxu0 0
    %716 = vmatpush2.bf16.msra.mxu0 0
    %717 = vmatprep.subr.bf16.mxu0 0
    %718 = vmatpush2.bf16.msra.mxu0 0
    %719 = vmatprep.subr.bf16.mxu0 0
    %720 = vmatpush2.bf16.msra.mxu0 0
    %721 = vmatprep.subr.bf16.mxu0 0
    %722 = vmatpush2.bf16.msra.mxu0 0
    %723 = vmatprep.subr.bf16.mxu0 0
    %724 = vmatpush2.bf16.msra.mxu0 0
    %725 = vmatprep.mubr.bf16.mxu0 0
    %726 = vmatmul.mubr.bf16.gmra.mxu0 %v692
    %v727 = vpop.f32.mrf.mxu0
    %v728 = vadd.f32 0.0, %v727
    %v729 = vpop.f32.mrf.mxu0
    %v730 = vpop.f32.mrf.mxu0
    %v731 = vpop.f32.mrf.mxu0
    %732 = vdwg.mxu0
    %v733 = vadd.f32 %v481, %v728
    %v734 = vtanh.pop %v733
    %v735 = vpack.c.bf16 %v734, %v734
    %736 = vmatprep.subr.bf16.mxu0 0
    %737 = vmatpush1.bf16.msra.mxu0 %v555
    %738 = vmatprep.subr.bf16.mxu0 0
    %739 = vmatpush1.bf16.msra.mxu0 %v554
    %740 = vmatprep.subr.bf16.mxu0 0
    %741 = vmatpush1.bf16.msra.mxu0 %v553
    %742 = vmatprep.subr.bf16.mxu0 0
    %743 = vmatpush1.bf16.msra.mxu0 %v552
    %744 = vmatprep.subr.bf16.mxu0 0
    %745 = vmatpush1.bf16.msra.mxu0 %v551
    %746 = vmatprep.subr.bf16.mxu0 0
    %747 = vmatpush1.bf16.msra.mxu0 %v550
    %748 = vmatprep.subr.bf16.mxu0 0
    %749 = vmatpush1.bf16.msra.mxu0 %v549
    %750 = vmatprep.subr.bf16.mxu0 0
    %751 = vmatpush1.bf16.msra.mxu0 %v548
    %752 = vmatprep.subr.bf16.mxu0 0
    %753 = vmatpush2.bf16.msra.mxu0 0
    %754 = vmatprep.subr.bf16.mxu0 0
    %755 = vmatpush2.bf16.msra.mxu0 0
    %756 = vmatprep.subr.bf16.mxu0 0
    %757 = vmatpush2.bf16.msra.mxu0 0
    %758 = vmatprep.subr.bf16.mxu0 0
    %759 = vmatpush2.bf16.msra.mxu0 0
    %760 = vmatprep.subr.bf16.mxu0 0
    %761 = vmatpush2.bf16.msra.mxu0 0
    %762 = vmatprep.subr.bf16.mxu0 0
    %763 = vmatpush2.bf16.msra.mxu0 0
    %764 = vmatprep.subr.bf16.mxu0 0
    %765 = vmatpush2.bf16.msra.mxu0 0
    %766 = vmatprep.subr.bf16.mxu0 0
    %767 = vmatpush2.bf16.msra.mxu0 0
    %768 = vmatprep.mubr.bf16.mxu0 0
    %769 = vmatmul.mubr.bf16.gmra.mxu0 %v735
    %v770 = vpop.f32.mrf.mxu0
    %v771 = vadd.f32 0.0, %v770
    %v772 = vpop.f32.mrf.mxu0
    %v773 = vpop.f32.mrf.mxu0
    %v774 = vpop.f32.mrf.mxu0
    %775 = vdwg.mxu0
    %v776 = vadd.f32 %v482, %v771
    %v777 = vtanh.pop %v776
    %v778 = vpack.c.bf16 %v777, %v777
    %779 = vmatprep.subr.bf16.mxu0 0
    %780 = vmatpush1.bf16.msra.mxu0 %v555
    %781 = vmatprep.subr.bf16.mxu0 0
    %782 = vmatpush1.bf16.msra.mxu0 %v554
    %783 = vmatprep.subr.bf16.mxu0 0
    %784 = vmatpush1.bf16.msra.mxu0 %v553
    %785 = vmatprep.subr.bf16.mxu0 0
    %786 = vmatpush1.bf16.msra.mxu0 %v552
    %787 = vmatprep.subr.bf16.mxu0 0
    %788 = vmatpush1.bf16.msra.mxu0 %v551
    %789 = vmatprep.subr.bf16.mxu0 0
    %790 = vmatpush1.bf16.msra.mxu0 %v550
    %791 = vmatprep.subr.bf16.mxu0 0
    %792 = vmatpush1.bf16.msra.mxu0 %v549
    %793 = vmatprep.subr.bf16.mxu0 0
    %794 = vmatpush1.bf16.msra.mxu0 %v548
    %795 = vmatprep.subr.bf16.mxu0 0
    %796 = vmatpush2.bf16.msra.mxu0 0
    %797 = vmatprep.subr.bf16.mxu0 0
    %798 = vmatpush2.bf16.msra.mxu0 0
    %799 = vmatprep.subr.bf16.mxu0 0
    %800 = vmatpush2.bf16.msra.mxu0 0
    %801 = vmatprep.subr.bf16.mxu0 0
    %802 = vmatpush2.bf16.msra.mxu0 0
    %803 = vmatprep.subr.bf16.mxu0 0
    %804 = vmatpush2.bf16.msra.mxu0 0
    %805 = vmatprep.subr.bf16.mxu0 0
    %806 = vmatpush2.bf16.msra.mxu0 0
    %807 = vmatprep.subr.bf16.mxu0 0
    %808 = vmatpush2.bf16.msra.mxu0 0
    %809 = vmatprep.subr.bf16.mxu0 0
    %810 = vmatpush2.bf16.msra.mxu0 0
    %811 = vmatprep.mubr.bf16.mxu0 0
    %812 = vmatmul.mubr.bf16.gmra.mxu0 %v778
    %v813 = vpop.f32.mrf.mxu0
    %v814 = vadd.f32 0.0, %v813
    %v815 = vpop.f32.mrf.mxu0
    %v816 = vpop.f32.mrf.mxu0
    %v817 = vpop.f32.mrf.mxu0
    %818 = vdwg.mxu0
    %v819 = vadd.f32 %v483, %v814
    %v820 = vtanh.pop %v819
    %v821 = vpack.c.bf16 %v820, %v820
    %822 = vmatprep.subr.bf16.mxu0 0
    %823 = vmatpush1.bf16.msra.mxu0 %v555
    %824 = vmatprep.subr.bf16.mxu0 0
    %825 = vmatpush1.bf16.msra.mxu0 %v554
    %826 = vmatprep.subr.bf16.mxu0 0
    %827 = vmatpush1.bf16.msra.mxu0 %v553
    %828 = vmatprep.subr.bf16.mxu0 0
    %829 = vmatpush1.bf16.msra.mxu0 %v552
    %830 = vmatprep.subr.bf16.mxu0 0
    %831 = vmatpush1.bf16.msra.mxu0 %v551
    %832 = vmatprep.subr.bf16.mxu0 0
    %833 = vmatpush1.bf16.msra.mxu0 %v550
    %834 = vmatprep.subr.bf16.mxu0 0
    %835 = vmatpush1.bf16.msra.mxu0 %v549
    %836 = vmatprep.subr.bf16.mxu0 0
    %837 = vmatpush1.bf16.msra.mxu0 %v548
    %838 = vmatprep.subr.bf16.mxu0 0
    %839 = vmatpush2.bf16.msra.mxu0 0
    %840 = vmatprep.subr.bf16.mxu0 0
    %841 = vmatpush2.bf16.msra.mxu0 0
    %842 = vmatprep.subr.bf16.mxu0 0
    %843 = vmatpush2.bf16.msra.mxu0 0
    %844 = vmatprep.subr.bf16.mxu0 0
    %845 = vmatpush2.bf16.msra.mxu0 0
    %846 = vmatprep.subr.bf16.mxu0 0
    %847 = vmatpush2.bf16.msra.mxu0 0
    %848 = vmatprep.subr.bf16.mxu0 0
    %849 = vmatpush2.bf16.msra.mxu0 0
    %850 = vmatprep.subr.bf16.mxu0 0
    %851 = vmatpush2.bf16.msra.mxu0 0
    %852 = vmatprep.subr.bf16.mxu0 0
    %853 = vmatpush2.bf16.msra.mxu0 0
    %854 = vmatprep.mubr.bf16.mxu0 0
    %855 = vmatmul.mubr.bf16.gmra.mxu0 %v821
    %v856 = vpop.f32.mrf.mxu0
    %v857 = vadd.f32 0.0, %v856
    %v858 = vpop.f32.mrf.mxu0
    %v859 = vpop.f32.mrf.mxu0
    %v860 = vpop.f32.mrf.mxu0
    %861 = vdwg.mxu0
    %v862 = vadd.f32 %v484, %v857
    %v863 = vtanh.pop %v862
    %v864 = vpack.c.bf16 %v863, %v863
    %865 = vmatprep.subr.bf16.mxu0 0
    %866 = vmatpush1.bf16.msra.mxu0 %v555
    %867 = vmatprep.subr.bf16.mxu0 0
    %868 = vmatpush1.bf16.msra.mxu0 %v554
    %869 = vmatprep.subr.bf16.mxu0 0
    %870 = vmatpush1.bf16.msra.mxu0 %v553
    %871 = vmatprep.subr.bf16.mxu0 0
    %872 = vmatpush1.bf16.msra.mxu0 %v552
    %873 = vmatprep.subr.bf16.mxu0 0
    %874 = vmatpush1.bf16.msra.mxu0 %v551
    %875 = vmatprep.subr.bf16.mxu0 0
    %876 = vmatpush1.bf16.msra.mxu0 %v550
    %877 = vmatprep.subr.bf16.mxu0 0
    %878 = vmatpush1.bf16.msra.mxu0 %v549
    %879 = vmatprep.subr.bf16.mxu0 0
    %880 = vmatpush1.bf16.msra.mxu0 %v548
    %881 = vmatprep.subr.bf16.mxu0 0
    %882 = vmatpush2.bf16.msra.mxu0 0
    %883 = vmatprep.subr.bf16.mxu0 0
    %884 = vmatpush2.bf16.msra.mxu0 0
    %885 = vmatprep.subr.bf16.mxu0 0
    %886 = vmatpush2.bf16.msra.mxu0 0
    %887 = vmatprep.subr.bf16.mxu0 0
    %888 = vmatpush2.bf16.msra.mxu0 0
    %889 = vmatprep.subr.bf16.mxu0 0
    %890 = vmatpush2.bf16.msra.mxu0 0
    %891 = vmatprep.subr.bf16.mxu0 0
    %892 = vmatpush2.bf16.msra.mxu0 0
    %893 = vmatprep.subr.bf16.mxu0 0
    %894 = vmatpush2.bf16.msra.mxu0 0
    %895 = vmatprep.subr.bf16.mxu0 0
    %896 = vmatpush2.bf16.msra.mxu0 0
    %897 = vmatprep.mubr.bf16.mxu0 0
    %898 = vmatmul.mubr.bf16.gmra.mxu0 %v864
    %v899 = vpop.f32.mrf.mxu0
    %v900 = vadd.f32 0.0, %v899
    %v901 = vpop.f32.mrf.mxu0
    %v902 = vpop.f32.mrf.mxu0
    %v903 = vpop.f32.mrf.mxu0
    %904 = vdwg.mxu0
    %v905 = vadd.f32 %v485, %v900
    %v906 = vtanh.pop %v905
    %v907 = vld [vmem:[#allocation6] sm:$0xf]
    %v908 = vld [vmem:[#allocation6 + $0x4] sm:$0xf]
    %v909 = vld [vmem:[#allocation6 + $0x8] sm:$0xf]
    %v910 = vld [vmem:[#allocation6 + $0xc] sm:$0xf]
    %v911 = vld [vmem:[#allocation6 + $0x10] sm:$0xf]
    %v912 = vld [vmem:[#allocation6 + $0x14] sm:$0xf]
    %v913 = vld [vmem:[#allocation6 + $0x18] sm:$0xf]
    %v914 = vld [vmem:[#allocation6 + $0x1c] sm:$0xf]
    %v915 = vld [vmem:[#allocation6 + $0x20] sm:$0xf]
    %v916 = vld [vmem:[#allocation6 + $0x24] sm:$0xf]
    %v917 = vld [vmem:[#allocation6 + $0x28] sm:$0xf]
    %v918 = vld [vmem:[#allocation6 + $0x2c] sm:$0xf]
    %v919 = vld [vmem:[#allocation6 + $0x30] sm:$0xf]
    %v920 = vld [vmem:[#allocation6 + $0x34] sm:$0xf]
    %v921 = vld [vmem:[#allocation6 + $0x38] sm:$0xf]
    %v922 = vld [vmem:[#allocation6 + $0x3c] sm:$0xf]
    %v939 = vunpack.c.l.b16 %v907
    %v940 = vunpack.c.l.b16 %v908
    %v941 = vunpack.c.l.b16 %v909
    %v942 = vunpack.c.l.b16 %v910
    %v943 = vunpack.c.l.b16 %v911
    %v944 = vunpack.c.l.b16 %v912
    %v945 = vunpack.c.l.b16 %v913
    %v946 = vunpack.c.l.b16 %v914
    %v947 = vunpack.c.l.b16 %v915
    %v948 = vunpack.c.l.b16 %v916
    %v949 = vunpack.c.l.b16 %v917
    %v950 = vunpack.c.l.b16 %v918
    %v951 = vunpack.c.l.b16 %v919
    %v952 = vunpack.c.l.b16 %v920
    %v953 = vunpack.c.l.b16 %v921
    %v954 = vunpack.c.l.b16 %v922
    %v955 = vpack.c.b16 %v940, %v939
    %v956 = vpack.c.b16 %v942, %v941
    %v957 = vpack.c.b16 %v944, %v943
    %v958 = vpack.c.b16 %v946, %v945
    %v959 = vpack.c.b16 %v948, %v947
    %v960 = vpack.c.b16 %v950, %v949
    %v961 = vpack.c.b16 %v952, %v951
    %v962 = vpack.c.b16 %v954, %v953
    %971 = vmatprep.subr.bf16.mxu0 0
    %972 = vmatpush1.bf16.msra.mxu0 %v962
    %973 = vmatprep.subr.bf16.mxu0 0
    %974 = vmatpush1.bf16.msra.mxu0 %v961
    %975 = vmatprep.subr.bf16.mxu0 0
    %976 = vmatpush1.bf16.msra.mxu0 %v960
    %977 = vmatprep.subr.bf16.mxu0 0
    %978 = vmatpush1.bf16.msra.mxu0 %v959
    %979 = vmatprep.subr.bf16.mxu0 0
    %980 = vmatpush1.bf16.msra.mxu0 %v958
    %981 = vmatprep.subr.bf16.mxu0 0
    %982 = vmatpush1.bf16.msra.mxu0 %v957
    %983 = vmatprep.subr.bf16.mxu0 0
    %984 = vmatpush1.bf16.msra.mxu0 %v956
    %985 = vmatprep.subr.bf16.mxu0 0
    %986 = vmatpush1.bf16.msra.mxu0 %v955
    %987 = vmatprep.subr.bf16.mxu0 0
    %988 = vmatpush2.bf16.msra.mxu0 0
    %989 = vmatprep.subr.bf16.mxu0 0
    %990 = vmatpush2.bf16.msra.mxu0 0
    %991 = vmatprep.subr.bf16.mxu0 0
    %992 = vmatpush2.bf16.msra.mxu0 0
    %993 = vmatprep.subr.bf16.mxu0 0
    %994 = vmatpush2.bf16.msra.mxu0 0
    %995 = vmatprep.subr.bf16.mxu0 0
    %996 = vmatpush2.bf16.msra.mxu0 0
    %997 = vmatprep.subr.bf16.mxu0 0
    %998 = vmatpush2.bf16.msra.mxu0 0
    %999 = vmatprep.subr.bf16.mxu0 0
    %1000 = vmatpush2.bf16.msra.mxu0 0
    %1001 = vmatprep.subr.bf16.mxu0 0
    %1002 = vmatpush2.bf16.msra.mxu0 0
    %1003 = vmatprep.mubr.bf16.mxu0 0
    %1004 = vmatmul.mubr.bf16.gmra.mxu0 0
    %v1005 = vpop.f32.mrf.mxu0
    %v1006 = vadd.f32 0.0, %v1005
    %v1007 = vpop.f32.mrf.mxu0
    %v1008 = vpop.f32.mrf.mxu0
    %v1009 = vpop.f32.mrf.mxu0
    %1010 = vdwg.mxu0
    %v1011 = vadd.f32 %v492, %v1006
    %v1012 = vtanh.pop %v1011
    %v1013 = vpack.c.bf16 %v1012, %v1012
    %1014 = vmatprep.subr.bf16.mxu0 0
    %1015 = vmatpush1.bf16.msra.mxu0 %v962
    %1016 = vmatprep.subr.bf16.mxu0 0
    %1017 = vmatpush1.bf16.msra.mxu0 %v961
    %1018 = vmatprep.subr.bf16.mxu0 0
    %1019 = vmatpush1.bf16.msra.mxu0 %v960
    %1020 = vmatprep.subr.bf16.mxu0 0
    %1021 = vmatpush1.bf16.msra.mxu0 %v959
    %1022 = vmatprep.subr.bf16.mxu0 0
    %1023 = vmatpush1.bf16.msra.mxu0 %v958
    %1024 = vmatprep.subr.bf16.mxu0 0
    %1025 = vmatpush1.bf16.msra.mxu0 %v957
    %1026 = vmatprep.subr.bf16.mxu0 0
    %1027 = vmatpush1.bf16.msra.mxu0 %v956
    %1028 = vmatprep.subr.bf16.mxu0 0
    %1029 = vmatpush1.bf16.msra.mxu0 %v955
    %1030 = vmatprep.subr.bf16.mxu0 0
    %1031 = vmatpush2.bf16.msra.mxu0 0
    %1032 = vmatprep.subr.bf16.mxu0 0
    %1033 = vmatpush2.bf16.msra.mxu0 0
    %1034 = vmatprep.subr.bf16.mxu0 0
    %1035 = vmatpush2.bf16.msra.mxu0 0
    %1036 = vmatprep.subr.bf16.mxu0 0
    %1037 = vmatpush2.bf16.msra.mxu0 0
    %1038 = vmatprep.subr.bf16.mxu0 0
    %1039 = vmatpush2.bf16.msra.mxu0 0
    %1040 = vmatprep.subr.bf16.mxu0 0
    %1041 = vmatpush2.bf16.msra.mxu0 0
    %1042 = vmatprep.subr.bf16.mxu0 0
    %1043 = vmatpush2.bf16.msra.mxu0 0
    %1044 = vmatprep.subr.bf16.mxu0 0
    %1045 = vmatpush2.bf16.msra.mxu0 0
    %1046 = vmatprep.mubr.bf16.mxu0 0
    %1047 = vmatmul.mubr.bf16.gmra.mxu0 %v1013
    %v1048 = vpop.f32.mrf.mxu0
    %v1049 = vadd.f32 0.0, %v1048
    %v1050 = vpop.f32.mrf.mxu0
    %v1051 = vpop.f32.mrf.mxu0
    %v1052 = vpop.f32.mrf.mxu0
    %1053 = vdwg.mxu0
    %v1054 = vadd.f32 %v493, %v1049
    %v1055 = vtanh.pop %v1054
    %v1056 = vpack.c.bf16 %v1055, %v1055
    %1057 = vmatprep.subr.bf16.mxu0 0
    %1058 = vmatpush1.bf16.msra.mxu0 %v962
    %1059 = vmatprep.subr.bf16.mxu0 0
    %1060 = vmatpush1.bf16.msra.mxu0 %v961
    %1061 = vmatprep.subr.bf16.mxu0 0
    %1062 = vmatpush1.bf16.msra.mxu0 %v960
    %1063 = vmatprep.subr.bf16.mxu0 0
    %1064 = vmatpush1.bf16.msra.mxu0 %v959
    %1065 = vmatprep.subr.bf16.mxu0 0
    %1066 = vmatpush1.bf16.msra.mxu0 %v958
    %1067 = vmatprep.subr.bf16.mxu0 0
    %1068 = vmatpush1.bf16.msra.mxu0 %v957
    %1069 = vmatprep.subr.bf16.mxu0 0
    %1070 = vmatpush1.bf16.msra.mxu0 %v956
    %1071 = vmatprep.subr.bf16.mxu0 0
    %1072 = vmatpush1.bf16.msra.mxu0 %v955
    %1073 = vmatprep.subr.bf16.mxu0 0
    %1074 = vmatpush2.bf16.msra.mxu0 0
    %1075 = vmatprep.subr.bf16.mxu0 0
    %1076 = vmatpush2.bf16.msra.mxu0 0
    %1077 = vmatprep.subr.bf16.mxu0 0
    %1078 = vmatpush2.bf16.msra.mxu0 0
    %1079 = vmatprep.subr.bf16.mxu0 0
    %1080 = vmatpush2.bf16.msra.mxu0 0
    %1081 = vmatprep.subr.bf16.mxu0 0
    %1082 = vmatpush2.bf16.msra.mxu0 0
    %1083 = vmatprep.subr.bf16.mxu0 0
    %1084 = vmatpush2.bf16.msra.mxu0 0
    %1085 = vmatprep.subr.bf16.mxu0 0
    %1086 = vmatpush2.bf16.msra.mxu0 0
    %1087 = vmatprep.subr.bf16.mxu0 0
    %1088 = vmatpush2.bf16.msra.mxu0 0
    %1089 = vmatprep.mubr.bf16.mxu0 0
    %1090 = vmatmul.mubr.bf16.gmra.mxu0 %v1056
    %v1091 = vpop.f32.mrf.mxu0
    %v1092 = vadd.f32 0.0, %v1091
    %v1093 = vpop.f32.mrf.mxu0
    %v1094 = vpop.f32.mrf.mxu0
    %v1095 = vpop.f32.mrf.mxu0
    %1096 = vdwg.mxu0
    %v1097 = vadd.f32 %v494, %v1092
    %v1098 = vtanh.pop %v1097
    %v1099 = vpack.c.bf16 %v1098, %v1098
    %1100 = vmatprep.subr.bf16.mxu0 0
    %1101 = vmatpush1.bf16.msra.mxu0 %v962
    %1102 = vmatprep.subr.bf16.mxu0 0
    %1103 = vmatpush1.bf16.msra.mxu0 %v961
    %1104 = vmatprep.subr.bf16.mxu0 0
    %1105 = vmatpush1.bf16.msra.mxu0 %v960
    %1106 = vmatprep.subr.bf16.mxu0 0
    %1107 = vmatpush1.bf16.msra.mxu0 %v959
    %1108 = vmatprep.subr.bf16.mxu0 0
    %1109 = vmatpush1.bf16.msra.mxu0 %v958
    %1110 = vmatprep.subr.bf16.mxu0 0
    %1111 = vmatpush1.bf16.msra.mxu0 %v957
    %1112 = vmatprep.subr.bf16.mxu0 0
    %1113 = vmatpush1.bf16.msra.mxu0 %v956
    %1114 = vmatprep.subr.bf16.mxu0 0
    %1115 = vmatpush1.bf16.msra.mxu0 %v955
    %1116 = vmatprep.subr.bf16.mxu0 0
    %1117 = vmatpush2.bf16.msra.mxu0 0
    %1118 = vmatprep.subr.bf16.mxu0 0
    %1119 = vmatpush2.bf16.msra.mxu0 0
    %1120 = vmatprep.subr.bf16.mxu0 0
    %1121 = vmatpush2.bf16.msra.mxu0 0
    %1122 = vmatprep.subr.bf16.mxu0 0
    %1123 = vmatpush2.bf16.msra.mxu0 0
    %1124 = vmatprep.subr.bf16.mxu0 0
    %1125 = vmatpush2.bf16.msra.mxu0 0
    %1126 = vmatprep.subr.bf16.mxu0 0
    %1127 = vmatpush2.bf16.msra.mxu0 0
    %1128 = vmatprep.subr.bf16.mxu0 0
    %1129 = vmatpush2.bf16.msra.mxu0 0
    %1130 = vmatprep.subr.bf16.mxu0 0
    %1131 = vmatpush2.bf16.msra.mxu0 0
    %1132 = vmatprep.mubr.bf16.mxu0 0
    %1133 = vmatmul.mubr.bf16.gmra.mxu0 %v1099
    %v1134 = vpop.f32.mrf.mxu0
    %v1135 = vadd.f32 0.0, %v1134
    %v1136 = vpop.f32.mrf.mxu0
    %v1137 = vpop.f32.mrf.mxu0
    %v1138 = vpop.f32.mrf.mxu0
    %1139 = vdwg.mxu0
    %v1140 = vadd.f32 %v495, %v1135
    %v1141 = vtanh.pop %v1140
    %v1142 = vpack.c.bf16 %v1141, %v1141
    %1143 = vmatprep.subr.bf16.mxu0 0
    %1144 = vmatpush1.bf16.msra.mxu0 %v962
    %1145 = vmatprep.subr.bf16.mxu0 0
    %1146 = vmatpush1.bf16.msra.mxu0 %v961
    %1147 = vmatprep.subr.bf16.mxu0 0
    %1148 = vmatpush1.bf16.msra.mxu0 %v960
    %1149 = vmatprep.subr.bf16.mxu0 0
    %1150 = vmatpush1.bf16.msra.mxu0 %v959
    %1151 = vmatprep.subr.bf16.mxu0 0
    %1152 = vmatpush1.bf16.msra.mxu0 %v958
    %1153 = vmatprep.subr.bf16.mxu0 0
    %1154 = vmatpush1.bf16.msra.mxu0 %v957
    %1155 = vmatprep.subr.bf16.mxu0 0
    %1156 = vmatpush1.bf16.msra.mxu0 %v956
    %1157 = vmatprep.subr.bf16.mxu0 0
    %1158 = vmatpush1.bf16.msra.mxu0 %v955
    %1159 = vmatprep.subr.bf16.mxu0 0
    %1160 = vmatpush2.bf16.msra.mxu0 0
    %1161 = vmatprep.subr.bf16.mxu0 0
    %1162 = vmatpush2.bf16.msra.mxu0 0
    %1163 = vmatprep.subr.bf16.mxu0 0
    %1164 = vmatpush2.bf16.msra.mxu0 0
    %1165 = vmatprep.subr.bf16.mxu0 0
    %1166 = vmatpush2.bf16.msra.mxu0 0
    %1167 = vmatprep.subr.bf16.mxu0 0
    %1168 = vmatpush2.bf16.msra.mxu0 0
    %1169 = vmatprep.subr.bf16.mxu0 0
    %1170 = vmatpush2.bf16.msra.mxu0 0
    %1171 = vmatprep.subr.bf16.mxu0 0
    %1172 = vmatpush2.bf16.msra.mxu0 0
    %1173 = vmatprep.subr.bf16.mxu0 0
    %1174 = vmatpush2.bf16.msra.mxu0 0
    %1175 = vmatprep.mubr.bf16.mxu0 0
    %1176 = vmatmul.mubr.bf16.gmra.mxu0 %v1142
    %v1177 = vpop.f32.mrf.mxu0
    %v1178 = vadd.f32 0.0, %v1177
    %v1179 = vpop.f32.mrf.mxu0
    %v1180 = vpop.f32.mrf.mxu0
    %v1181 = vpop.f32.mrf.mxu0
    %1182 = vdwg.mxu0
    %v1183 = vadd.f32 %v496, %v1178
    %v1184 = vtanh.pop %v1183
    %v1185 = vpack.c.bf16 %v1184, %v1184
    %1186 = vmatprep.subr.bf16.mxu0 0
    %1187 = vmatpush1.bf16.msra.mxu0 %v962
    %1188 = vmatprep.subr.bf16.mxu0 0
    %1189 = vmatpush1.bf16.msra.mxu0 %v961
    %1190 = vmatprep.subr.bf16.mxu0 0
    %1191 = vmatpush1.bf16.msra.mxu0 %v960
    %1192 = vmatprep.subr.bf16.mxu0 0
    %1193 = vmatpush1.bf16.msra.mxu0 %v959
    %1194 = vmatprep.subr.bf16.mxu0 0
    %1195 = vmatpush1.bf16.msra.mxu0 %v958
    %1196 = vmatprep.subr.bf16.mxu0 0
    %1197 = vmatpush1.bf16.msra.mxu0 %v957
    %1198 = vmatprep.subr.bf16.mxu0 0
    %1199 = vmatpush1.bf16.msra.mxu0 %v956
    %1200 = vmatprep.subr.bf16.mxu0 0
    %1201 = vmatpush1.bf16.msra.mxu0 %v955
    %1202 = vmatprep.subr.bf16.mxu0 0
    %1203 = vmatpush2.bf16.msra.mxu0 0
    %1204 = vmatprep.subr.bf16.mxu0 0
    %1205 = vmatpush2.bf16.msra.mxu0 0
    %1206 = vmatprep.subr.bf16.mxu0 0
    %1207 = vmatpush2.bf16.msra.mxu0 0
    %1208 = vmatprep.subr.bf16.mxu0 0
    %1209 = vmatpush2.bf16.msra.mxu0 0
    %1210 = vmatprep.subr.bf16.mxu0 0
    %1211 = vmatpush2.bf16.msra.mxu0 0
    %1212 = vmatprep.subr.bf16.mxu0 0
    %1213 = vmatpush2.bf16.msra.mxu0 0
    %1214 = vmatprep.subr.bf16.mxu0 0
    %1215 = vmatpush2.bf16.msra.mxu0 0
    %1216 = vmatprep.subr.bf16.mxu0 0
    %1217 = vmatpush2.bf16.msra.mxu0 0
    %1218 = vmatprep.mubr.bf16.mxu0 0
    %1219 = vmatmul.mubr.bf16.gmra.mxu0 %v1185
    %v1220 = vpop.f32.mrf.mxu0
    %v1221 = vadd.f32 0.0, %v1220
    %v1222 = vpop.f32.mrf.mxu0
    %v1223 = vpop.f32.mrf.mxu0
    %v1224 = vpop.f32.mrf.mxu0
    %1225 = vdwg.mxu0
    %v1226 = vadd.f32 %v497, %v1221
    %v1227 = vtanh.pop %v1226
    %v1228 = vpack.c.bf16 %v1227, %v1227
    %1229 = vmatprep.subr.bf16.mxu0 0
    %1230 = vmatpush1.bf16.msra.mxu0 %v962
    %1231 = vmatprep.subr.bf16.mxu0 0
    %1232 = vmatpush1.bf16.msra.mxu0 %v961
    %1233 = vmatprep.subr.bf16.mxu0 0
    %1234 = vmatpush1.bf16.msra.mxu0 %v960
    %1235 = vmatprep.subr.bf16.mxu0 0
    %1236 = vmatpush1.bf16.msra.mxu0 %v959
    %1237 = vmatprep.subr.bf16.mxu0 0
    %1238 = vmatpush1.bf16.msra.mxu0 %v958
    %1239 = vmatprep.subr.bf16.mxu0 0
    %1240 = vmatpush1.bf16.msra.mxu0 %v957
    %1241 = vmatprep.subr.bf16.mxu0 0
    %1242 = vmatpush1.bf16.msra.mxu0 %v956
    %1243 = vmatprep.subr.bf16.mxu0 0
    %1244 = vmatpush1.bf16.msra.mxu0 %v955
    %1245 = vmatprep.subr.bf16.mxu0 0
    %1246 = vmatpush2.bf16.msra.mxu0 0
    %1247 = vmatprep.subr.bf16.mxu0 0
    %1248 = vmatpush2.bf16.msra.mxu0 0
    %1249 = vmatprep.subr.bf16.mxu0 0
    %1250 = vmatpush2.bf16.msra.mxu0 0
    %1251 = vmatprep.subr.bf16.mxu0 0
    %1252 = vmatpush2.bf16.msra.mxu0 0
    %1253 = vmatprep.subr.bf16.mxu0 0
    %1254 = vmatpush2.bf16.msra.mxu0 0
    %1255 = vmatprep.subr.bf16.mxu0 0
    %1256 = vmatpush2.bf16.msra.mxu0 0
    %1257 = vmatprep.subr.bf16.mxu0 0
    %1258 = vmatpush2.bf16.msra.mxu0 0
    %1259 = vmatprep.subr.bf16.mxu0 0
    %1260 = vmatpush2.bf16.msra.mxu0 0
    %1261 = vmatprep.mubr.bf16.mxu0 0
    %1262 = vmatmul.mubr.bf16.gmra.mxu0 %v1228
    %v1263 = vpop.f32.mrf.mxu0
    %v1264 = vadd.f32 0.0, %v1263
    %v1265 = vpop.f32.mrf.mxu0
    %v1266 = vpop.f32.mrf.mxu0
    %v1267 = vpop.f32.mrf.mxu0
    %1268 = vdwg.mxu0
    %v1269 = vadd.f32 %v498, %v1264
    %v1270 = vtanh.pop %v1269
    %v1271 = vpack.c.bf16 %v1270, %v1270
    %1272 = vmatprep.subr.bf16.mxu0 0
    %1273 = vmatpush1.bf16.msra.mxu0 %v962
    %1274 = vmatprep.subr.bf16.mxu0 0
    %1275 = vmatpush1.bf16.msra.mxu0 %v961
    %1276 = vmatprep.subr.bf16.mxu0 0
    %1277 = vmatpush1.bf16.msra.mxu0 %v960
    %1278 = vmatprep.subr.bf16.mxu0 0
    %1279 = vmatpush1.bf16.msra.mxu0 %v959
    %1280 = vmatprep.subr.bf16.mxu0 0
    %1281 = vmatpush1.bf16.msra.mxu0 %v958
    %1282 = vmatprep.subr.bf16.mxu0 0
    %1283 = vmatpush1.bf16.msra.mxu0 %v957
    %1284 = vmatprep.subr.bf16.mxu0 0
    %1285 = vmatpush1.bf16.msra.mxu0 %v956
    %1286 = vmatprep.subr.bf16.mxu0 0
    %1287 = vmatpush1.bf16.msra.mxu0 %v955
    %1288 = vmatprep.subr.bf16.mxu0 0
    %1289 = vmatpush2.bf16.msra.mxu0 0
    %1290 = vmatprep.subr.bf16.mxu0 0
    %1291 = vmatpush2.bf16.msra.mxu0 0
    %1292 = vmatprep.subr.bf16.mxu0 0
    %1293 = vmatpush2.bf16.msra.mxu0 0
    %1294 = vmatprep.subr.bf16.mxu0 0
    %1295 = vmatpush2.bf16.msra.mxu0 0
    %1296 = vmatprep.subr.bf16.mxu0 0
    %1297 = vmatpush2.bf16.msra.mxu0 0
    %1298 = vmatprep.subr.bf16.mxu0 0
    %1299 = vmatpush2.bf16.msra.mxu0 0
    %1300 = vmatprep.subr.bf16.mxu0 0
    %1301 = vmatpush2.bf16.msra.mxu0 0
    %1302 = vmatprep.subr.bf16.mxu0 0
    %1303 = vmatpush2.bf16.msra.mxu0 0
    %1304 = vmatprep.mubr.bf16.mxu0 0
    %1305 = vmatmul.mubr.bf16.gmra.mxu0 %v1271
    %v1306 = vpop.f32.mrf.mxu0
    %v1307 = vadd.f32 0.0, %v1306
    %v1308 = vpop.f32.mrf.mxu0
    %v1309 = vpop.f32.mrf.mxu0
    %v1310 = vpop.f32.mrf.mxu0
    %1311 = vdwg.mxu0
    %v1312 = vadd.f32 %v499, %v1307
    %v1313 = vtanh.pop %v1312
    %v1314 = vpack.c.bf16 %v648, %v605
    %v1315 = vpack.c.bf16 %v734, %v691
    %v1316 = vpack.c.bf16 %v820, %v777
    %v1317 = vpack.c.bf16 %v906, %v863
    %v1318 = vpack.c.bf16 %v1055, %v1012
    %v1319 = vpack.c.bf16 %v1141, %v1098
    %v1320 = vpack.c.bf16 %v1227, %v1184
    %v1321 = vpack.c.bf16 %v1313, %v1270
    %v1322 = vld [vmem:[#allocation10] sm:$0xff]
    %v1323 = vld [vmem:[#allocation10 + $0x8] sm:$0xff]
    %v1324 = vld [vmem:[#allocation10 + $0x10] sm:$0xff]
    %v1325 = vld [vmem:[#allocation10 + $0x18] sm:$0xff]
    %v1326 = vld [vmem:[#allocation10 + $0x20] sm:$0xff]
    %v1327 = vld [vmem:[#allocation10 + $0x28] sm:$0xff]
    %v1328 = vld [vmem:[#allocation10 + $0x30] sm:$0xff]
    %v1329 = vld [vmem:[#allocation10 + $0x38] sm:$0xff]
    %v1330 = vld [vmem:[#allocation10 + $0x40] sm:$0xff]
    %v1331 = vld [vmem:[#allocation10 + $0x48] sm:$0xff]
    %v1332 = vld [vmem:[#allocation10 + $0x50] sm:$0xff]
    %v1333 = vld [vmem:[#allocation10 + $0x58] sm:$0xff]
    %v1334 = vld [vmem:[#allocation10 + $0x60] sm:$0xff]
    %v1335 = vld [vmem:[#allocation10 + $0x68] sm:$0xff]
    %v1336 = vld [vmem:[#allocation10 + $0x70] sm:$0xff]
    %v1337 = vld [vmem:[#allocation10 + $0x78] sm:$0xff]
    %v1354 = vunpack.c.l.b16 %v1322
    %v1355 = vunpack.c.h.b16 %v1322
    %v1356 = vunpack.c.l.b16 %v1323
    %v1357 = vunpack.c.h.b16 %v1323
    %v1358 = vunpack.c.l.b16 %v1324
    %v1359 = vunpack.c.h.b16 %v1324
    %v1360 = vunpack.c.l.b16 %v1325
    %v1361 = vunpack.c.h.b16 %v1325
    %v1362 = vunpack.c.l.b16 %v1326
    %v1363 = vunpack.c.h.b16 %v1326
    %v1364 = vunpack.c.l.b16 %v1327
    %v1365 = vunpack.c.h.b16 %v1327
    %v1366 = vunpack.c.l.b16 %v1328
    %v1367 = vunpack.c.h.b16 %v1328
    %v1368 = vunpack.c.l.b16 %v1329
    %v1369 = vunpack.c.h.b16 %v1329
    %v1370 = vunpack.c.l.b16 %v1330
    %v1371 = vunpack.c.h.b16 %v1330
    %v1372 = vunpack.c.l.b16 %v1331
    %v1373 = vunpack.c.h.b16 %v1331
    %v1374 = vunpack.c.l.b16 %v1332
    %v1375 = vunpack.c.h.b16 %v1332
    %v1376 = vunpack.c.l.b16 %v1333
    %v1377 = vunpack.c.h.b16 %v1333
    %v1378 = vunpack.c.l.b16 %v1334
    %v1379 = vunpack.c.h.b16 %v1334
    %v1380 = vunpack.c.l.b16 %v1335
    %v1381 = vunpack.c.h.b16 %v1335
    %v1382 = vunpack.c.l.b16 %v1336
    %v1383 = vunpack.c.h.b16 %v1336
    %v1384 = vunpack.c.l.b16 %v1337
    %v1385 = vunpack.c.h.b16 %v1337
    %v1386 = vpack.c.b16 %v1356, %v1354
    %v1387 = vpack.c.b16 %v1357, %v1355
    %v1388 = vpack.c.b16 %v1360, %v1358
    %v1389 = vpack.c.b16 %v1361, %v1359
    %v1390 = vpack.c.b16 %v1364, %v1362
    %v1391 = vpack.c.b16 %v1365, %v1363
    %v1392 = vpack.c.b16 %v1368, %v1366
    %v1393 = vpack.c.b16 %v1369, %v1367
    %v1394 = vpack.c.b16 %v1372, %v1370
    %v1395 = vpack.c.b16 %v1373, %v1371
    %v1396 = vpack.c.b16 %v1376, %v1374
    %v1397 = vpack.c.b16 %v1377, %v1375
    %v1398 = vpack.c.b16 %v1380, %v1378
    %v1399 = vpack.c.b16 %v1381, %v1379
    %v1400 = vpack.c.b16 %v1384, %v1382
    %v1401 = vpack.c.b16 %v1385, %v1383
    %1418 = vmatprep.subr.bf16.mxu0 %v1401
    %1419 = vmatpush1.bf16.msra.mxu0 %v1400
    %1420 = vmatprep.subr.bf16.mxu0 %v1399
    %1421 = vmatpush1.bf16.msra.mxu0 %v1398
    %1422 = vmatprep.subr.bf16.mxu0 %v1397
    %1423 = vmatpush1.bf16.msra.mxu0 %v1396
    %1424 = vmatprep.subr.bf16.mxu0 %v1395
    %1425 = vmatpush1.bf16.msra.mxu0 %v1394
    %1426 = vmatprep.subr.bf16.mxu0 %v1393
    %1427 = vmatpush1.bf16.msra.mxu0 %v1392
    %1428 = vmatprep.subr.bf16.mxu0 %v1391
    %1429 = vmatpush1.bf16.msra.mxu0 %v1390
    %1430 = vmatprep.subr.bf16.mxu0 %v1389
    %1431 = vmatpush1.bf16.msra.mxu0 %v1388
    %1432 = vmatprep.subr.bf16.mxu0 %v1387
    %1433 = vmatpush1.bf16.msra.mxu0 %v1386
    %1434 = vmatprep.subr.bf16.mxu0 0
    %1435 = vmatpush2.bf16.msra.mxu0 0
    %1436 = vmatprep.subr.bf16.mxu0 0
    %1437 = vmatpush2.bf16.msra.mxu0 0
    %1438 = vmatprep.subr.bf16.mxu0 0
    %1439 = vmatpush2.bf16.msra.mxu0 0
    %1440 = vmatprep.subr.bf16.mxu0 0
    %1441 = vmatpush2.bf16.msra.mxu0 0
    %1442 = vmatprep.subr.bf16.mxu0 0
    %1443 = vmatpush2.bf16.msra.mxu0 0
    %1444 = vmatprep.subr.bf16.mxu0 0
    %1445 = vmatpush2.bf16.msra.mxu0 0
    %1446 = vmatprep.subr.bf16.mxu0 0
    %1447 = vmatpush2.bf16.msra.mxu0 0
    %1448 = vmatprep.subr.bf16.mxu0 0
    %1449 = vmatpush2.bf16.msra.mxu0 0
    %1450 = vmatprep.mubr.bf16.mxu0 0
    %1451 = vmatmul.mubr.bf16.gmra.mxu0 %v1314
    %v1452 = vpop.f32.mrf.mxu0
    %v1453 = vadd.f32 0.0, %v1452
    %v1454 = vpop.f32.mrf.mxu0
    %v1455 = vadd.f32 0.0, %v1454
    %v1456 = vpop.f32.mrf.mxu0
    %v1457 = vadd.f32 0.0, %v1456
    %v1458 = vpop.f32.mrf.mxu0
    %v1459 = vadd.f32 0.0, %v1458
    %1460 = vmatprep.mubr.bf16.mxu0 0
    %1461 = vmatmul.mubr.bf16.gmra.mxu0 %v1315
    %v1462 = vpop.f32.mrf.mxu0
    %v1463 = vadd.f32 0.0, %v1462
    %v1464 = vpop.f32.mrf.mxu0
    %v1465 = vadd.f32 0.0, %v1464
    %v1466 = vpop.f32.mrf.mxu0
    %v1467 = vadd.f32 0.0, %v1466
    %v1468 = vpop.f32.mrf.mxu0
    %v1469 = vadd.f32 0.0, %v1468
    %1470 = vmatprep.mubr.bf16.mxu0 0
    %1471 = vmatmul.mubr.bf16.gmra.mxu0 %v1316
    %v1472 = vpop.f32.mrf.mxu0
    %v1473 = vadd.f32 0.0, %v1472
    %v1474 = vpop.f32.mrf.mxu0
    %v1475 = vadd.f32 0.0, %v1474
    %v1476 = vpop.f32.mrf.mxu0
    %v1477 = vadd.f32 0.0, %v1476
    %v1478 = vpop.f32.mrf.mxu0
    %v1479 = vadd.f32 0.0, %v1478
    %1480 = vmatprep.mubr.bf16.mxu0 0
    %1481 = vmatmul.mubr.bf16.gmra.mxu0 %v1317
    %v1482 = vpop.f32.mrf.mxu0
    %v1483 = vadd.f32 0.0, %v1482
    %v1484 = vpop.f32.mrf.mxu0
    %v1485 = vadd.f32 0.0, %v1484
    %v1486 = vpop.f32.mrf.mxu0
    %v1487 = vadd.f32 0.0, %v1486
    %v1488 = vpop.f32.mrf.mxu0
    %v1489 = vadd.f32 0.0, %v1488
    %1490 = vdwg.mxu0
    %v1491 = vld [vmem:[#allocation10 + $0x80] sm:$0xff]
    %v1492 = vld [vmem:[#allocation10 + $0x88] sm:$0xff]
    %v1493 = vld [vmem:[#allocation10 + $0x90] sm:$0xff]
    %v1494 = vld [vmem:[#allocation10 + $0x98] sm:$0xff]
    %v1495 = vld [vmem:[#allocation10 + $0xa0] sm:$0xff]
    %v1496 = vld [vmem:[#allocation10 + $0xa8] sm:$0xff]
    %v1497 = vld [vmem:[#allocation10 + $0xb0] sm:$0xff]
    %v1498 = vld [vmem:[#allocation10 + $0xb8] sm:$0xff]
    %v1499 = vld [vmem:[#allocation10 + $0xc0] sm:$0xff]
    %v1500 = vld [vmem:[#allocation10 + $0xc8] sm:$0xff]
    %v1501 = vld [vmem:[#allocation10 + $0xd0] sm:$0xff]
    %v1502 = vld [vmem:[#allocation10 + $0xd8] sm:$0xff]
    %v1503 = vld [vmem:[#allocation10 + $0xe0] sm:$0xff]
    %v1504 = vld [vmem:[#allocation10 + $0xe8] sm:$0xff]
    %v1505 = vld [vmem:[#allocation10 + $0xf0] sm:$0xff]
    %v1506 = vld [vmem:[#allocation10 + $0xf8] sm:$0xff]
    %v1523 = vunpack.c.l.b16 %v1491
    %v1524 = vunpack.c.h.b16 %v1491
    %v1525 = vunpack.c.l.b16 %v1492
    %v1526 = vunpack.c.h.b16 %v1492
    %v1527 = vunpack.c.l.b16 %v1493
    %v1528 = vunpack.c.h.b16 %v1493
    %v1529 = vunpack.c.l.b16 %v1494
    %v1530 = vunpack.c.h.b16 %v1494
    %v1531 = vunpack.c.l.b16 %v1495
    %v1532 = vunpack.c.h.b16 %v1495
    %v1533 = vunpack.c.l.b16 %v1496
    %v1534 = vunpack.c.h.b16 %v1496
    %v1535 = vunpack.c.l.b16 %v1497
    %v1536 = vunpack.c.h.b16 %v1497
    %v1537 = vunpack.c.l.b16 %v1498
    %v1538 = vunpack.c.h.b16 %v1498
    %v1539 = vunpack.c.l.b16 %v1499
    %v1540 = vunpack.c.h.b16 %v1499
    %v1541 = vunpack.c.l.b16 %v1500
    %v1542 = vunpack.c.h.b16 %v1500
    %v1543 = vunpack.c.l.b16 %v1501
    %v1544 = vunpack.c.h.b16 %v1501
    %v1545 = vunpack.c.l.b16 %v1502
    %v1546 = vunpack.c.h.b16 %v1502
    %v1547 = vunpack.c.l.b16 %v1503
    %v1548 = vunpack.c.h.b16 %v1503
    %v1549 = vunpack.c.l.b16 %v1504
    %v1550 = vunpack.c.h.b16 %v1504
    %v1551 = vunpack.c.l.b16 %v1505
    %v1552 = vunpack.c.h.b16 %v1505
    %v1553 = vunpack.c.l.b16 %v1506
    %v1554 = vunpack.c.h.b16 %v1506
    %v1555 = vpack.c.b16 %v1525, %v1523
    %v1556 = vpack.c.b16 %v1526, %v1524
    %v1557 = vpack.c.b16 %v1529, %v1527
    %v1558 = vpack.c.b16 %v1530, %v1528
    %v1559 = vpack.c.b16 %v1533, %v1531
    %v1560 = vpack.c.b16 %v1534, %v1532
    %v1561 = vpack.c.b16 %v1537, %v1535
    %v1562 = vpack.c.b16 %v1538, %v1536
    %v1563 = vpack.c.b16 %v1541, %v1539
    %v1564 = vpack.c.b16 %v1542, %v1540
    %v1565 = vpack.c.b16 %v1545, %v1543
    %v1566 = vpack.c.b16 %v1546, %v1544
    %v1567 = vpack.c.b16 %v1549, %v1547
    %v1568 = vpack.c.b16 %v1550, %v1548
    %v1569 = vpack.c.b16 %v1553, %v1551
    %v1570 = vpack.c.b16 %v1554, %v1552
    %1587 = vmatprep.subr.bf16.mxu0 %v1570
    %1588 = vmatpush1.bf16.msra.mxu0 %v1569
    %1589 = vmatprep.subr.bf16.mxu0 %v1568
    %1590 = vmatpush1.bf16.msra.mxu0 %v1567
    %1591 = vmatprep.subr.bf16.mxu0 %v1566
    %1592 = vmatpush1.bf16.msra.mxu0 %v1565
    %1593 = vmatprep.subr.bf16.mxu0 %v1564
    %1594 = vmatpush1.bf16.msra.mxu0 %v1563
    %1595 = vmatprep.subr.bf16.mxu0 %v1562
    %1596 = vmatpush1.bf16.msra.mxu0 %v1561
    %1597 = vmatprep.subr.bf16.mxu0 %v1560
    %1598 = vmatpush1.bf16.msra.mxu0 %v1559
    %1599 = vmatprep.subr.bf16.mxu0 %v1558
    %1600 = vmatpush1.bf16.msra.mxu0 %v1557
    %1601 = vmatprep.subr.bf16.mxu0 %v1556
    %1602 = vmatpush1.bf16.msra.mxu0 %v1555
    %1603 = vmatprep.subr.bf16.mxu0 0
    %1604 = vmatpush2.bf16.msra.mxu0 0
    %1605 = vmatprep.subr.bf16.mxu0 0
    %1606 = vmatpush2.bf16.msra.mxu0 0
    %1607 = vmatprep.subr.bf16.mxu0 0
    %1608 = vmatpush2.bf16.msra.mxu0 0
    %1609 = vmatprep.subr.bf16.mxu0 0
    %1610 = vmatpush2.bf16.msra.mxu0 0
    %1611 = vmatprep.subr.bf16.mxu0 0
    %1612 = vmatpush2.bf16.msra.mxu0 0
    %1613 = vmatprep.subr.bf16.mxu0 0
    %1614 = vmatpush2.bf16.msra.mxu0 0
    %1615 = vmatprep.subr.bf16.mxu0 0
    %1616 = vmatpush2.bf16.msra.mxu0 0
    %1617 = vmatprep.subr.bf16.mxu0 0
    %1618 = vmatpush2.bf16.msra.mxu0 0
    %1619 = vmatprep.mubr.bf16.mxu0 0
    %1620 = vmatmul.mubr.bf16.gmra.mxu0 %v1318
    %v1621 = vpop.f32.mrf.mxu0
    %v1622 = vadd.f32 0.0, %v1621
    %v1623 = vpop.f32.mrf.mxu0
    %v1624 = vadd.f32 0.0, %v1623
    %v1625 = vpop.f32.mrf.mxu0
    %v1626 = vadd.f32 0.0, %v1625
    %v1627 = vpop.f32.mrf.mxu0
    %v1628 = vadd.f32 0.0, %v1627
    %1629 = vmatprep.mubr.bf16.mxu0 0
    %1630 = vmatmul.mubr.bf16.gmra.mxu0 %v1319
    %v1631 = vpop.f32.mrf.mxu0
    %v1632 = vadd.f32 0.0, %v1631
    %v1633 = vpop.f32.mrf.mxu0
    %v1634 = vadd.f32 0.0, %v1633
    %v1635 = vpop.f32.mrf.mxu0
    %v1636 = vadd.f32 0.0, %v1635
    %v1637 = vpop.f32.mrf.mxu0
    %v1638 = vadd.f32 0.0, %v1637
    %1639 = vmatprep.mubr.bf16.mxu0 0
    %1640 = vmatmul.mubr.bf16.gmra.mxu0 %v1320
    %v1641 = vpop.f32.mrf.mxu0
    %v1642 = vadd.f32 0.0, %v1641
    %v1643 = vpop.f32.mrf.mxu0
    %v1644 = vadd.f32 0.0, %v1643
    %v1645 = vpop.f32.mrf.mxu0
    %v1646 = vadd.f32 0.0, %v1645
    %v1647 = vpop.f32.mrf.mxu0
    %v1648 = vadd.f32 0.0, %v1647
    %1649 = vmatprep.mubr.bf16.mxu0 0
    %1650 = vmatmul.mubr.bf16.gmra.mxu0 %v1321
    %v1651 = vpop.f32.mrf.mxu0
    %v1652 = vadd.f32 0.0, %v1651
    %v1653 = vpop.f32.mrf.mxu0
    %v1654 = vadd.f32 0.0, %v1653
    %v1655 = vpop.f32.mrf.mxu0
    %v1656 = vadd.f32 0.0, %v1655
    %v1657 = vpop.f32.mrf.mxu0
    %v1658 = vadd.f32 0.0, %v1657
    %1659 = vdwg.mxu0
    %v1660 = vld [vmem:[#allocation15] sm:$0x1]
    %v1661 = vld [vmem:[#allocation16] sm:$0x1]
    %v1662 = vadd.f32 %v1453, %v1656
    %v1664 = vlaneseq
    %v1665 = vshrl.u32 %v1664, 7
    %v1666 = vsub.s32 0, %v1665
    %v1667 = vrot.slane %v1660, %v1666
    %v1669 = vadd.f32 %v1662, %v1667
    %v1670 = vadd.f32 %v1457, %v1652
    %v1671 = vadd.f32 %v1670, %v1667
    %v1672 = vadd.f32 %v1463, %v1646
    %v1673 = vadd.f32 %v1672, %v1667
    %v1674 = vadd.f32 %v1467, %v1642
    %v1675 = vadd.f32 %v1674, %v1667
    %v1676 = vadd.f32 %v1473, %v1636
    %v1677 = vadd.f32 %v1676, %v1667
    %v1678 = vadd.f32 %v1477, %v1632
    %v1679 = vadd.f32 %v1678, %v1667
    %v1680 = vadd.f32 %v1483, %v1626
    %v1681 = vadd.f32 %v1680, %v1667
    %v1682 = vadd.f32 %v1487, %v1622
    %v1683 = vadd.f32 %v1682, %v1667
    %v1684 = vadd.f32 %v1489, %v1624
    %v1686 = vlaneseq
    %v1687 = vshrl.u32 %v1686, 7
    %v1688 = vsub.s32 0, %v1687
    %v1689 = vrot.slane %v1661, %v1688
    %v1691 = vadd.f32 %v1684, %v1689
    %v1692 = vadd.f32 %v1485, %v1628
    %v1693 = vadd.f32 %v1692, %v1689
    %v1694 = vadd.f32 %v1479, %v1634
    %v1695 = vadd.f32 %v1694, %v1689
    %v1696 = vadd.f32 %v1475, %v1638
    %v1697 = vadd.f32 %v1696, %v1689
    %v1698 = vadd.f32 %v1469, %v1644
    %v1699 = vadd.f32 %v1698, %v1689
    %v1700 = vadd.f32 %v1465, %v1648
    %v1701 = vadd.f32 %v1700, %v1689
    %v1702 = vadd.f32 %v1459, %v1654
    %v1703 = vadd.f32 %v1702, %v1689
    %v1704 = vadd.f32 %v1455, %v1658
    %v1705 = vadd.f32 %v1704, %v1689
    %v1706 = vld [vmem:[#allocation12] sm:$0xf]
    %v1707 = vld [vmem:[#allocation12 + $0x4] sm:$0xf]
    %v1708 = vld [vmem:[#allocation12 + $0x8] sm:$0xf]
    %v1709 = vld [vmem:[#allocation12 + $0xc] sm:$0xf]
    %v1710 = vld [vmem:[#allocation12 + $0x10] sm:$0xf]
    %v1711 = vld [vmem:[#allocation12 + $0x14] sm:$0xf]
    %v1712 = vld [vmem:[#allocation12 + $0x18] sm:$0xf]
    %v1713 = vld [vmem:[#allocation12 + $0x1c] sm:$0xf]
    %v1714 = vld [vmem:[#allocation12 + $0x20] sm:$0xf]
    %v1715 = vld [vmem:[#allocation12 + $0x24] sm:$0xf]
    %v1716 = vld [vmem:[#allocation12 + $0x28] sm:$0xf]
    %v1717 = vld [vmem:[#allocation12 + $0x2c] sm:$0xf]
    %v1718 = vld [vmem:[#allocation12 + $0x30] sm:$0xf]
    %v1719 = vld [vmem:[#allocation12 + $0x34] sm:$0xf]
    %v1720 = vld [vmem:[#allocation12 + $0x38] sm:$0xf]
    %v1721 = vld [vmem:[#allocation12 + $0x3c] sm:$0xf]
    %v1738 = vunpack.c.l.b16 %v1706
    %v1739 = vunpack.c.l.b16 %v1707
    %v1740 = vunpack.c.l.b16 %v1708
    %v1741 = vunpack.c.l.b16 %v1709
    %v1742 = vunpack.c.l.b16 %v1710
    %v1743 = vunpack.c.l.b16 %v1711
    %v1744 = vunpack.c.l.b16 %v1712
    %v1745 = vunpack.c.l.b16 %v1713
    %v1746 = vunpack.c.l.b16 %v1714
    %v1747 = vunpack.c.l.b16 %v1715
    %v1748 = vunpack.c.l.b16 %v1716
    %v1749 = vunpack.c.l.b16 %v1717
    %v1750 = vunpack.c.l.b16 %v1718
    %v1751 = vunpack.c.l.b16 %v1719
    %v1752 = vunpack.c.l.b16 %v1720
    %v1753 = vunpack.c.l.b16 %v1721
    %v1754 = vpack.c.b16 %v1739, %v1738
    %v1755 = vpack.c.b16 %v1741, %v1740
    %v1756 = vpack.c.b16 %v1743, %v1742
    %v1757 = vpack.c.b16 %v1745, %v1744
    %v1758 = vpack.c.b16 %v1747, %v1746
    %v1759 = vpack.c.b16 %v1749, %v1748
    %v1760 = vpack.c.b16 %v1751, %v1750
    %v1761 = vpack.c.b16 %v1753, %v1752
    %1770 = vmatprep.subr.bf16.mxu0 0
    %1771 = vmatpush1.bf16.msra.mxu0 %v1761
    %1772 = vmatprep.subr.bf16.mxu0 0
    %1773 = vmatpush1.bf16.msra.mxu0 %v1760
    %1774 = vmatprep.subr.bf16.mxu0 0
    %1775 = vmatpush1.bf16.msra.mxu0 %v1759
    %1776 = vmatprep.subr.bf16.mxu0 0
    %1777 = vmatpush1.bf16.msra.mxu0 %v1758
    %1778 = vmatprep.subr.bf16.mxu0 0
    %1779 = vmatpush1.bf16.msra.mxu0 %v1757
    %1780 = vmatprep.subr.bf16.mxu0 0
    %1781 = vmatpush1.bf16.msra.mxu0 %v1756
    %1782 = vmatprep.subr.bf16.mxu0 0
    %1783 = vmatpush1.bf16.msra.mxu0 %v1755
    %1784 = vmatprep.subr.bf16.mxu0 0
    %1785 = vmatpush1.bf16.msra.mxu0 %v1754
    %1786 = vmatprep.subr.bf16.mxu0 0
    %1787 = vmatpush2.bf16.msra.mxu0 0
    %1788 = vmatprep.subr.bf16.mxu0 0
    %1789 = vmatpush2.bf16.msra.mxu0 0
    %1790 = vmatprep.subr.bf16.mxu0 0
    %1791 = vmatpush2.bf16.msra.mxu0 0
    %1792 = vmatprep.subr.bf16.mxu0 0
    %1793 = vmatpush2.bf16.msra.mxu0 0
    %1794 = vmatprep.subr.bf16.mxu0 0
    %1795 = vmatpush2.bf16.msra.mxu0 0
    %1796 = vmatprep.subr.bf16.mxu0 0
    %1797 = vmatpush2.bf16.msra.mxu0 0
    %1798 = vmatprep.subr.bf16.mxu0 0
    %1799 = vmatpush2.bf16.msra.mxu0 0
    %1800 = vmatprep.subr.bf16.mxu0 0
    %1801 = vmatpush2.bf16.msra.mxu0 0
    %1802 = vmatprep.mubr.bf16.mxu0 0
    %1803 = vmatmul.mubr.bf16.gmra.mxu0 0
    %v1804 = vpop.f32.mrf.mxu0
    %v1805 = vadd.f32 0.0, %v1804
    %v1806 = vpop.f32.mrf.mxu0
    %v1807 = vpop.f32.mrf.mxu0
    %v1808 = vpop.f32.mrf.mxu0
    %1809 = vdwg.mxu0
    %v1810 = vadd.f32 %v1669, %v1805
    %v1811 = vtanh.pop %v1810
    %v1812 = vpack.c.bf16 %v1811, %v1811
    %1813 = vmatprep.subr.bf16.mxu0 0
    %1814 = vmatpush1.bf16.msra.mxu0 %v1761
    %1815 = vmatprep.subr.bf16.mxu0 0
    %1816 = vmatpush1.bf16.msra.mxu0 %v1760
    %1817 = vmatprep.subr.bf16.mxu0 0
    %1818 = vmatpush1.bf16.msra.mxu0 %v1759
    %1819 = vmatprep.subr.bf16.mxu0 0
    %1820 = vmatpush1.bf16.msra.mxu0 %v1758
    %1821 = vmatprep.subr.bf16.mxu0 0
    %1822 = vmatpush1.bf16.msra.mxu0 %v1757
    %1823 = vmatprep.subr.bf16.mxu0 0
    %1824 = vmatpush1.bf16.msra.mxu0 %v1756
    %1825 = vmatprep.subr.bf16.mxu0 0
    %1826 = vmatpush1.bf16.msra.mxu0 %v1755
    %1827 = vmatprep.subr.bf16.mxu0 0
    %1828 = vmatpush1.bf16.msra.mxu0 %v1754
    %1829 = vmatprep.subr.bf16.mxu0 0
    %1830 = vmatpush2.bf16.msra.mxu0 0
    %1831 = vmatprep.subr.bf16.mxu0 0
    %1832 = vmatpush2.bf16.msra.mxu0 0
    %1833 = vmatprep.subr.bf16.mxu0 0
    %1834 = vmatpush2.bf16.msra.mxu0 0
    %1835 = vmatprep.subr.bf16.mxu0 0
    %1836 = vmatpush2.bf16.msra.mxu0 0
    %1837 = vmatprep.subr.bf16.mxu0 0
    %1838 = vmatpush2.bf16.msra.mxu0 0
    %1839 = vmatprep.subr.bf16.mxu0 0
    %1840 = vmatpush2.bf16.msra.mxu0 0
    %1841 = vmatprep.subr.bf16.mxu0 0
    %1842 = vmatpush2.bf16.msra.mxu0 0
    %1843 = vmatprep.subr.bf16.mxu0 0
    %1844 = vmatpush2.bf16.msra.mxu0 0
    %1845 = vmatprep.mubr.bf16.mxu0 0
    %1846 = vmatmul.mubr.bf16.gmra.mxu0 %v1812
    %v1847 = vpop.f32.mrf.mxu0
    %v1848 = vadd.f32 0.0, %v1847
    %v1849 = vpop.f32.mrf.mxu0
    %v1850 = vpop.f32.mrf.mxu0
    %v1851 = vpop.f32.mrf.mxu0
    %1852 = vdwg.mxu0
    %v1853 = vadd.f32 %v1671, %v1848
    %v1854 = vtanh.pop %v1853
    %v1855 = vpack.c.bf16 %v1854, %v1854
    %1856 = vmatprep.subr.bf16.mxu0 0
    %1857 = vmatpush1.bf16.msra.mxu0 %v1761
    %1858 = vmatprep.subr.bf16.mxu0 0
    %1859 = vmatpush1.bf16.msra.mxu0 %v1760
    %1860 = vmatprep.subr.bf16.mxu0 0
    %1861 = vmatpush1.bf16.msra.mxu0 %v1759
    %1862 = vmatprep.subr.bf16.mxu0 0
    %1863 = vmatpush1.bf16.msra.mxu0 %v1758
    %1864 = vmatprep.subr.bf16.mxu0 0
    %1865 = vmatpush1.bf16.msra.mxu0 %v1757
    %1866 = vmatprep.subr.bf16.mxu0 0
    %1867 = vmatpush1.bf16.msra.mxu0 %v1756
    %1868 = vmatprep.subr.bf16.mxu0 0
    %1869 = vmatpush1.bf16.msra.mxu0 %v1755
    %1870 = vmatprep.subr.bf16.mxu0 0
    %1871 = vmatpush1.bf16.msra.mxu0 %v1754
    %1872 = vmatprep.subr.bf16.mxu0 0
    %1873 = vmatpush2.bf16.msra.mxu0 0
    %1874 = vmatprep.subr.bf16.mxu0 0
    %1875 = vmatpush2.bf16.msra.mxu0 0
    %1876 = vmatprep.subr.bf16.mxu0 0
    %1877 = vmatpush2.bf16.msra.mxu0 0
    %1878 = vmatprep.subr.bf16.mxu0 0
    %1879 = vmatpush2.bf16.msra.mxu0 0
    %1880 = vmatprep.subr.bf16.mxu0 0
    %1881 = vmatpush2.bf16.msra.mxu0 0
    %1882 = vmatprep.subr.bf16.mxu0 0
    %1883 = vmatpush2.bf16.msra.mxu0 0
    %1884 = vmatprep.subr.bf16.mxu0 0
    %1885 = vmatpush2.bf16.msra.mxu0 0
    %1886 = vmatprep.subr.bf16.mxu0 0
    %1887 = vmatpush2.bf16.msra.mxu0 0
    %1888 = vmatprep.mubr.bf16.mxu0 0
    %1889 = vmatmul.mubr.bf16.gmra.mxu0 %v1855
    %v1890 = vpop.f32.mrf.mxu0
    %v1891 = vadd.f32 0.0, %v1890
    %v1892 = vpop.f32.mrf.mxu0
    %v1893 = vpop.f32.mrf.mxu0
    %v1894 = vpop.f32.mrf.mxu0
    %1895 = vdwg.mxu0
    %v1896 = vadd.f32 %v1673, %v1891
    %v1897 = vtanh.pop %v1896
    %v1898 = vpack.c.bf16 %v1897, %v1897
    %1899 = vmatprep.subr.bf16.mxu0 0
    %1900 = vmatpush1.bf16.msra.mxu0 %v1761
    %1901 = vmatprep.subr.bf16.mxu0 0
    %1902 = vmatpush1.bf16.msra.mxu0 %v1760
    %1903 = vmatprep.subr.bf16.mxu0 0
    %1904 = vmatpush1.bf16.msra.mxu0 %v1759
    %1905 = vmatprep.subr.bf16.mxu0 0
    %1906 = vmatpush1.bf16.msra.mxu0 %v1758
    %1907 = vmatprep.subr.bf16.mxu0 0
    %1908 = vmatpush1.bf16.msra.mxu0 %v1757
    %1909 = vmatprep.subr.bf16.mxu0 0
    %1910 = vmatpush1.bf16.msra.mxu0 %v1756
    %1911 = vmatprep.subr.bf16.mxu0 0
    %1912 = vmatpush1.bf16.msra.mxu0 %v1755
    %1913 = vmatprep.subr.bf16.mxu0 0
    %1914 = vmatpush1.bf16.msra.mxu0 %v1754
    %1915 = vmatprep.subr.bf16.mxu0 0
    %1916 = vmatpush2.bf16.msra.mxu0 0
    %1917 = vmatprep.subr.bf16.mxu0 0
    %1918 = vmatpush2.bf16.msra.mxu0 0
    %1919 = vmatprep.subr.bf16.mxu0 0
    %1920 = vmatpush2.bf16.msra.mxu0 0
    %1921 = vmatprep.subr.bf16.mxu0 0
    %1922 = vmatpush2.bf16.msra.mxu0 0
    %1923 = vmatprep.subr.bf16.mxu0 0
    %1924 = vmatpush2.bf16.msra.mxu0 0
    %1925 = vmatprep.subr.bf16.mxu0 0
    %1926 = vmatpush2.bf16.msra.mxu0 0
    %1927 = vmatprep.subr.bf16.mxu0 0
    %1928 = vmatpush2.bf16.msra.mxu0 0
    %1929 = vmatprep.subr.bf16.mxu0 0
    %1930 = vmatpush2.bf16.msra.mxu0 0
    %1931 = vmatprep.mubr.bf16.mxu0 0
    %1932 = vmatmul.mubr.bf16.gmra.mxu0 %v1898
    %v1933 = vpop.f32.mrf.mxu0
    %v1934 = vadd.f32 0.0, %v1933
    %v1935 = vpop.f32.mrf.mxu0
    %v1936 = vpop.f32.mrf.mxu0
    %v1937 = vpop.f32.mrf.mxu0
    %1938 = vdwg.mxu0
    %v1939 = vadd.f32 %v1675, %v1934
    %v1940 = vtanh.pop %v1939
    %v1941 = vpack.c.bf16 %v1940, %v1940
    %1942 = vmatprep.subr.bf16.mxu0 0
    %1943 = vmatpush1.bf16.msra.mxu0 %v1761
    %1944 = vmatprep.subr.bf16.mxu0 0
    %1945 = vmatpush1.bf16.msra.mxu0 %v1760
    %1946 = vmatprep.subr.bf16.mxu0 0
    %1947 = vmatpush1.bf16.msra.mxu0 %v1759
    %1948 = vmatprep.subr.bf16.mxu0 0
    %1949 = vmatpush1.bf16.msra.mxu0 %v1758
    %1950 = vmatprep.subr.bf16.mxu0 0
    %1951 = vmatpush1.bf16.msra.mxu0 %v1757
    %1952 = vmatprep.subr.bf16.mxu0 0
    %1953 = vmatpush1.bf16.msra.mxu0 %v1756
    %1954 = vmatprep.subr.bf16.mxu0 0
    %1955 = vmatpush1.bf16.msra.mxu0 %v1755
    %1956 = vmatprep.subr.bf16.mxu0 0
    %1957 = vmatpush1.bf16.msra.mxu0 %v1754
    %1958 = vmatprep.subr.bf16.mxu0 0
    %1959 = vmatpush2.bf16.msra.mxu0 0
    %1960 = vmatprep.subr.bf16.mxu0 0
    %1961 = vmatpush2.bf16.msra.mxu0 0
    %1962 = vmatprep.subr.bf16.mxu0 0
    %1963 = vmatpush2.bf16.msra.mxu0 0
    %1964 = vmatprep.subr.bf16.mxu0 0
    %1965 = vmatpush2.bf16.msra.mxu0 0
    %1966 = vmatprep.subr.bf16.mxu0 0
    %1967 = vmatpush2.bf16.msra.mxu0 0
    %1968 = vmatprep.subr.bf16.mxu0 0
    %1969 = vmatpush2.bf16.msra.mxu0 0
    %1970 = vmatprep.subr.bf16.mxu0 0
    %1971 = vmatpush2.bf16.msra.mxu0 0
    %1972 = vmatprep.subr.bf16.mxu0 0
    %1973 = vmatpush2.bf16.msra.mxu0 0
    %1974 = vmatprep.mubr.bf16.mxu0 0
    %1975 = vmatmul.mubr.bf16.gmra.mxu0 %v1941
    %v1976 = vpop.f32.mrf.mxu0
    %v1977 = vadd.f32 0.0, %v1976
    %v1978 = vpop.f32.mrf.mxu0
    %v1979 = vpop.f32.mrf.mxu0
    %v1980 = vpop.f32.mrf.mxu0
    %1981 = vdwg.mxu0
    %v1982 = vadd.f32 %v1677, %v1977
    %v1983 = vtanh.pop %v1982
    %v1984 = vpack.c.bf16 %v1983, %v1983
    %1985 = vmatprep.subr.bf16.mxu0 0
    %1986 = vmatpush1.bf16.msra.mxu0 %v1761
    %1987 = vmatprep.subr.bf16.mxu0 0
    %1988 = vmatpush1.bf16.msra.mxu0 %v1760
    %1989 = vmatprep.subr.bf16.mxu0 0
    %1990 = vmatpush1.bf16.msra.mxu0 %v1759
    %1991 = vmatprep.subr.bf16.mxu0 0
    %1992 = vmatpush1.bf16.msra.mxu0 %v1758
    %1993 = vmatprep.subr.bf16.mxu0 0
    %1994 = vmatpush1.bf16.msra.mxu0 %v1757
    %1995 = vmatprep.subr.bf16.mxu0 0
    %1996 = vmatpush1.bf16.msra.mxu0 %v1756
    %1997 = vmatprep.subr.bf16.mxu0 0
    %1998 = vmatpush1.bf16.msra.mxu0 %v1755
    %1999 = vmatprep.subr.bf16.mxu0 0
    %2000 = vmatpush1.bf16.msra.mxu0 %v1754
    %2001 = vmatprep.subr.bf16.mxu0 0
    %2002 = vmatpush2.bf16.msra.mxu0 0
    %2003 = vmatprep.subr.bf16.mxu0 0
    %2004 = vmatpush2.bf16.msra.mxu0 0
    %2005 = vmatprep.subr.bf16.mxu0 0
    %2006 = vmatpush2.bf16.msra.mxu0 0
    %2007 = vmatprep.subr.bf16.mxu0 0
    %2008 = vmatpush2.bf16.msra.mxu0 0
    %2009 = vmatprep.subr.bf16.mxu0 0
    %2010 = vmatpush2.bf16.msra.mxu0 0
    %2011 = vmatprep.subr.bf16.mxu0 0
    %2012 = vmatpush2.bf16.msra.mxu0 0
    %2013 = vmatprep.subr.bf16.mxu0 0
    %2014 = vmatpush2.bf16.msra.mxu0 0
    %2015 = vmatprep.subr.bf16.mxu0 0
    %2016 = vmatpush2.bf16.msra.mxu0 0
    %2017 = vmatprep.mubr.bf16.mxu0 0
    %2018 = vmatmul.mubr.bf16.gmra.mxu0 %v1984
    %v2019 = vpop.f32.mrf.mxu0
    %v2020 = vadd.f32 0.0, %v2019
    %v2021 = vpop.f32.mrf.mxu0
    %v2022 = vpop.f32.mrf.mxu0
    %v2023 = vpop.f32.mrf.mxu0
    %2024 = vdwg.mxu0
    %v2025 = vadd.f32 %v1679, %v2020
    %v2026 = vtanh.pop %v2025
    %v2027 = vpack.c.bf16 %v2026, %v2026
    %2028 = vmatprep.subr.bf16.mxu0 0
    %2029 = vmatpush1.bf16.msra.mxu0 %v1761
    %2030 = vmatprep.subr.bf16.mxu0 0
    %2031 = vmatpush1.bf16.msra.mxu0 %v1760
    %2032 = vmatprep.subr.bf16.mxu0 0
    %2033 = vmatpush1.bf16.msra.mxu0 %v1759
    %2034 = vmatprep.subr.bf16.mxu0 0
    %2035 = vmatpush1.bf16.msra.mxu0 %v1758
    %2036 = vmatprep.subr.bf16.mxu0 0
    %2037 = vmatpush1.bf16.msra.mxu0 %v1757
    %2038 = vmatprep.subr.bf16.mxu0 0
    %2039 = vmatpush1.bf16.msra.mxu0 %v1756
    %2040 = vmatprep.subr.bf16.mxu0 0
    %2041 = vmatpush1.bf16.msra.mxu0 %v1755
    %2042 = vmatprep.subr.bf16.mxu0 0
    %2043 = vmatpush1.bf16.msra.mxu0 %v1754
    %2044 = vmatprep.subr.bf16.mxu0 0
    %2045 = vmatpush2.bf16.msra.mxu0 0
    %2046 = vmatprep.subr.bf16.mxu0 0
    %2047 = vmatpush2.bf16.msra.mxu0 0
    %2048 = vmatprep.subr.bf16.mxu0 0
    %2049 = vmatpush2.bf16.msra.mxu0 0
    %2050 = vmatprep.subr.bf16.mxu0 0
    %2051 = vmatpush2.bf16.msra.mxu0 0
    %2052 = vmatprep.subr.bf16.mxu0 0
    %2053 = vmatpush2.bf16.msra.mxu0 0
    %2054 = vmatprep.subr.bf16.mxu0 0
    %2055 = vmatpush2.bf16.msra.mxu0 0
    %2056 = vmatprep.subr.bf16.mxu0 0
    %2057 = vmatpush2.bf16.msra.mxu0 0
    %2058 = vmatprep.subr.bf16.mxu0 0
    %2059 = vmatpush2.bf16.msra.mxu0 0
    %2060 = vmatprep.mubr.bf16.mxu0 0
    %2061 = vmatmul.mubr.bf16.gmra.mxu0 %v2027
    %v2062 = vpop.f32.mrf.mxu0
    %v2063 = vadd.f32 0.0, %v2062
    %v2064 = vpop.f32.mrf.mxu0
    %v2065 = vpop.f32.mrf.mxu0
    %v2066 = vpop.f32.mrf.mxu0
    %2067 = vdwg.mxu0
    %v2068 = vadd.f32 %v1681, %v2063
    %v2069 = vtanh.pop %v2068
    %v2070 = vpack.c.bf16 %v2069, %v2069
    %2071 = vmatprep.subr.bf16.mxu0 0
    %2072 = vmatpush1.bf16.msra.mxu0 %v1761
    %2073 = vmatprep.subr.bf16.mxu0 0
    %2074 = vmatpush1.bf16.msra.mxu0 %v1760
    %2075 = vmatprep.subr.bf16.mxu0 0
    %2076 = vmatpush1.bf16.msra.mxu0 %v1759
    %2077 = vmatprep.subr.bf16.mxu0 0
    %2078 = vmatpush1.bf16.msra.mxu0 %v1758
    %2079 = vmatprep.subr.bf16.mxu0 0
    %2080 = vmatpush1.bf16.msra.mxu0 %v1757
    %2081 = vmatprep.subr.bf16.mxu0 0
    %2082 = vmatpush1.bf16.msra.mxu0 %v1756
    %2083 = vmatprep.subr.bf16.mxu0 0
    %2084 = vmatpush1.bf16.msra.mxu0 %v1755
    %2085 = vmatprep.subr.bf16.mxu0 0
    %2086 = vmatpush1.bf16.msra.mxu0 %v1754
    %2087 = vmatprep.subr.bf16.mxu0 0
    %2088 = vmatpush2.bf16.msra.mxu0 0
    %2089 = vmatprep.subr.bf16.mxu0 0
    %2090 = vmatpush2.bf16.msra.mxu0 0
    %2091 = vmatprep.subr.bf16.mxu0 0
    %2092 = vmatpush2.bf16.msra.mxu0 0
    %2093 = vmatprep.subr.bf16.mxu0 0
    %2094 = vmatpush2.bf16.msra.mxu0 0
    %2095 = vmatprep.subr.bf16.mxu0 0
    %2096 = vmatpush2.bf16.msra.mxu0 0
    %2097 = vmatprep.subr.bf16.mxu0 0
    %2098 = vmatpush2.bf16.msra.mxu0 0
    %2099 = vmatprep.subr.bf16.mxu0 0
    %2100 = vmatpush2.bf16.msra.mxu0 0
    %2101 = vmatprep.subr.bf16.mxu0 0
    %2102 = vmatpush2.bf16.msra.mxu0 0
    %2103 = vmatprep.mubr.bf16.mxu0 0
    %2104 = vmatmul.mubr.bf16.gmra.mxu0 %v2070
    %v2105 = vpop.f32.mrf.mxu0
    %v2106 = vadd.f32 0.0, %v2105
    %v2107 = vpop.f32.mrf.mxu0
    %v2108 = vpop.f32.mrf.mxu0
    %v2109 = vpop.f32.mrf.mxu0
    %2110 = vdwg.mxu0
    %v2111 = vadd.f32 %v1683, %v2106
    %v2112 = vtanh.pop %v2111
    %v2113 = vld [vmem:[#allocation13] sm:$0xf]
    %v2114 = vld [vmem:[#allocation13 + $0x4] sm:$0xf]
    %v2115 = vld [vmem:[#allocation13 + $0x8] sm:$0xf]
    %v2116 = vld [vmem:[#allocation13 + $0xc] sm:$0xf]
    %v2117 = vld [vmem:[#allocation13 + $0x10] sm:$0xf]
    %v2118 = vld [vmem:[#allocation13 + $0x14] sm:$0xf]
    %v2119 = vld [vmem:[#allocation13 + $0x18] sm:$0xf]
    %v2120 = vld [vmem:[#allocation13 + $0x1c] sm:$0xf]
    %v2121 = vld [vmem:[#allocation13 + $0x20] sm:$0xf]
    %v2122 = vld [vmem:[#allocation13 + $0x24] sm:$0xf]
    %v2123 = vld [vmem:[#allocation13 + $0x28] sm:$0xf]
    %v2124 = vld [vmem:[#allocation13 + $0x2c] sm:$0xf]
    %v2125 = vld [vmem:[#allocation13 + $0x30] sm:$0xf]
    %v2126 = vld [vmem:[#allocation13 + $0x34] sm:$0xf]
    %v2127 = vld [vmem:[#allocation13 + $0x38] sm:$0xf]
    %v2128 = vld [vmem:[#allocation13 + $0x3c] sm:$0xf]
    %v2145 = vunpack.c.l.b16 %v2113
    %v2146 = vunpack.c.l.b16 %v2114
    %v2147 = vunpack.c.l.b16 %v2115
    %v2148 = vunpack.c.l.b16 %v2116
    %v2149 = vunpack.c.l.b16 %v2117
    %v2150 = vunpack.c.l.b16 %v2118
    %v2151 = vunpack.c.l.b16 %v2119
    %v2152 = vunpack.c.l.b16 %v2120
    %v2153 = vunpack.c.l.b16 %v2121
    %v2154 = vunpack.c.l.b16 %v2122
    %v2155 = vunpack.c.l.b16 %v2123
    %v2156 = vunpack.c.l.b16 %v2124
    %v2157 = vunpack.c.l.b16 %v2125
    %v2158 = vunpack.c.l.b16 %v2126
    %v2159 = vunpack.c.l.b16 %v2127
    %v2160 = vunpack.c.l.b16 %v2128
    %v2161 = vpack.c.b16 %v2146, %v2145
    %v2162 = vpack.c.b16 %v2148, %v2147
    %v2163 = vpack.c.b16 %v2150, %v2149
    %v2164 = vpack.c.b16 %v2152, %v2151
    %v2165 = vpack.c.b16 %v2154, %v2153
    %v2166 = vpack.c.b16 %v2156, %v2155
    %v2167 = vpack.c.b16 %v2158, %v2157
    %v2168 = vpack.c.b16 %v2160, %v2159
    %2177 = vmatprep.subr.bf16.mxu0 0
    %2178 = vmatpush1.bf16.msra.mxu0 %v2168
    %2179 = vmatprep.subr.bf16.mxu0 0
    %2180 = vmatpush1.bf16.msra.mxu0 %v2167
    %2181 = vmatprep.subr.bf16.mxu0 0
    %2182 = vmatpush1.bf16.msra.mxu0 %v2166
    %2183 = vmatprep.subr.bf16.mxu0 0
    %2184 = vmatpush1.bf16.msra.mxu0 %v2165
    %2185 = vmatprep.subr.bf16.mxu0 0
    %2186 = vmatpush1.bf16.msra.mxu0 %v2164
    %2187 = vmatprep.subr.bf16.mxu0 0
    %2188 = vmatpush1.bf16.msra.mxu0 %v2163
    %2189 = vmatprep.subr.bf16.mxu0 0
    %2190 = vmatpush1.bf16.msra.mxu0 %v2162
    %2191 = vmatprep.subr.bf16.mxu0 0
    %2192 = vmatpush1.bf16.msra.mxu0 %v2161
    %2193 = vmatprep.subr.bf16.mxu0 0
    %2194 = vmatpush2.bf16.msra.mxu0 0
    %2195 = vmatprep.subr.bf16.mxu0 0
    %2196 = vmatpush2.bf16.msra.mxu0 0
    %2197 = vmatprep.subr.bf16.mxu0 0
    %2198 = vmatpush2.bf16.msra.mxu0 0
    %2199 = vmatprep.subr.bf16.mxu0 0
    %2200 = vmatpush2.bf16.msra.mxu0 0
    %2201 = vmatprep.subr.bf16.mxu0 0
    %2202 = vmatpush2.bf16.msra.mxu0 0
    %2203 = vmatprep.subr.bf16.mxu0 0
    %2204 = vmatpush2.bf16.msra.mxu0 0
    %2205 = vmatprep.subr.bf16.mxu0 0
    %2206 = vmatpush2.bf16.msra.mxu0 0
    %2207 = vmatprep.subr.bf16.mxu0 0
    %2208 = vmatpush2.bf16.msra.mxu0 0
    %2209 = vmatprep.mubr.bf16.mxu0 0
    %2210 = vmatmul.mubr.bf16.gmra.mxu0 0
    %v2211 = vpop.f32.mrf.mxu0
    %v2212 = vadd.f32 0.0, %v2211
    %v2213 = vpop.f32.mrf.mxu0
    %v2214 = vpop.f32.mrf.mxu0
    %v2215 = vpop.f32.mrf.mxu0
    %2216 = vdwg.mxu0
    %v2217 = vadd.f32 %v1691, %v2212
    %v2218 = vtanh.pop %v2217
    %v2219 = vpack.c.bf16 %v2218, %v2218
    %2220 = vmatprep.subr.bf16.mxu0 0
    %2221 = vmatpush1.bf16.msra.mxu0 %v2168
    %2222 = vmatprep.subr.bf16.mxu0 0
    %2223 = vmatpush1.bf16.msra.mxu0 %v2167
    %2224 = vmatprep.subr.bf16.mxu0 0
    %2225 = vmatpush1.bf16.msra.mxu0 %v2166
    %2226 = vmatprep.subr.bf16.mxu0 0
    %2227 = vmatpush1.bf16.msra.mxu0 %v2165
    %2228 = vmatprep.subr.bf16.mxu0 0
    %2229 = vmatpush1.bf16.msra.mxu0 %v2164
    %2230 = vmatprep.subr.bf16.mxu0 0
    %2231 = vmatpush1.bf16.msra.mxu0 %v2163
    %2232 = vmatprep.subr.bf16.mxu0 0
    %2233 = vmatpush1.bf16.msra.mxu0 %v2162
    %2234 = vmatprep.subr.bf16.mxu0 0
    %2235 = vmatpush1.bf16.msra.mxu0 %v2161
    %2236 = vmatprep.subr.bf16.mxu0 0
    %2237 = vmatpush2.bf16.msra.mxu0 0
    %2238 = vmatprep.subr.bf16.mxu0 0
    %2239 = vmatpush2.bf16.msra.mxu0 0
    %2240 = vmatprep.subr.bf16.mxu0 0
    %2241 = vmatpush2.bf16.msra.mxu0 0
    %2242 = vmatprep.subr.bf16.mxu0 0
    %2243 = vmatpush2.bf16.msra.mxu0 0
    %2244 = vmatprep.subr.bf16.mxu0 0
    %2245 = vmatpush2.bf16.msra.mxu0 0
    %2246 = vmatprep.subr.bf16.mxu0 0
    %2247 = vmatpush2.bf16.msra.mxu0 0
    %2248 = vmatprep.subr.bf16.mxu0 0
    %2249 = vmatpush2.bf16.msra.mxu0 0
    %2250 = vmatprep.subr.bf16.mxu0 0
    %2251 = vmatpush2.bf16.msra.mxu0 0
    %2252 = vmatprep.mubr.bf16.mxu0 0
    %2253 = vmatmul.mubr.bf16.gmra.mxu0 %v2219
    %v2254 = vpop.f32.mrf.mxu0
    %v2255 = vadd.f32 0.0, %v2254
    %v2256 = vpop.f32.mrf.mxu0
    %v2257 = vpop.f32.mrf.mxu0
    %v2258 = vpop.f32.mrf.mxu0
    %2259 = vdwg.mxu0
    %v2260 = vadd.f32 %v1693, %v2255
    %v2261 = vtanh.pop %v2260
    %v2262 = vpack.c.bf16 %v2261, %v2261
    %2263 = vmatprep.subr.bf16.mxu0 0
    %2264 = vmatpush1.bf16.msra.mxu0 %v2168
    %2265 = vmatprep.subr.bf16.mxu0 0
    %2266 = vmatpush1.bf16.msra.mxu0 %v2167
    %2267 = vmatprep.subr.bf16.mxu0 0
    %2268 = vmatpush1.bf16.msra.mxu0 %v2166
    %2269 = vmatprep.subr.bf16.mxu0 0
    %2270 = vmatpush1.bf16.msra.mxu0 %v2165
    %2271 = vmatprep.subr.bf16.mxu0 0
    %2272 = vmatpush1.bf16.msra.mxu0 %v2164
    %2273 = vmatprep.subr.bf16.mxu0 0
    %2274 = vmatpush1.bf16.msra.mxu0 %v2163
    %2275 = vmatprep.subr.bf16.mxu0 0
    %2276 = vmatpush1.bf16.msra.mxu0 %v2162
    %2277 = vmatprep.subr.bf16.mxu0 0
    %2278 = vmatpush1.bf16.msra.mxu0 %v2161
    %2279 = vmatprep.subr.bf16.mxu0 0
    %2280 = vmatpush2.bf16.msra.mxu0 0
    %2281 = vmatprep.subr.bf16.mxu0 0
    %2282 = vmatpush2.bf16.msra.mxu0 0
    %2283 = vmatprep.subr.bf16.mxu0 0
    %2284 = vmatpush2.bf16.msra.mxu0 0
    %2285 = vmatprep.subr.bf16.mxu0 0
    %2286 = vmatpush2.bf16.msra.mxu0 0
    %2287 = vmatprep.subr.bf16.mxu0 0
    %2288 = vmatpush2.bf16.msra.mxu0 0
    %2289 = vmatprep.subr.bf16.mxu0 0
    %2290 = vmatpush2.bf16.msra.mxu0 0
    %2291 = vmatprep.subr.bf16.mxu0 0
    %2292 = vmatpush2.bf16.msra.mxu0 0
    %2293 = vmatprep.subr.bf16.mxu0 0
    %2294 = vmatpush2.bf16.msra.mxu0 0
    %2295 = vmatprep.mubr.bf16.mxu0 0
    %2296 = vmatmul.mubr.bf16.gmra.mxu0 %v2262
    %v2297 = vpop.f32.mrf.mxu0
    %v2298 = vadd.f32 0.0, %v2297
    %v2299 = vpop.f32.mrf.mxu0
    %v2300 = vpop.f32.mrf.mxu0
    %v2301 = vpop.f32.mrf.mxu0
    %2302 = vdwg.mxu0
    %v2303 = vadd.f32 %v1695, %v2298
    %v2304 = vtanh.pop %v2303
    %v2305 = vpack.c.bf16 %v2304, %v2304
    %2306 = vmatprep.subr.bf16.mxu0 0
    %2307 = vmatpush1.bf16.msra.mxu0 %v2168
    %2308 = vmatprep.subr.bf16.mxu0 0
    %2309 = vmatpush1.bf16.msra.mxu0 %v2167
    %2310 = vmatprep.subr.bf16.mxu0 0
    %2311 = vmatpush1.bf16.msra.mxu0 %v2166
    %2312 = vmatprep.subr.bf16.mxu0 0
    %2313 = vmatpush1.bf16.msra.mxu0 %v2165
    %2314 = vmatprep.subr.bf16.mxu0 0
    %2315 = vmatpush1.bf16.msra.mxu0 %v2164
    %2316 = vmatprep.subr.bf16.mxu0 0
    %2317 = vmatpush1.bf16.msra.mxu0 %v2163
    %2318 = vmatprep.subr.bf16.mxu0 0
    %2319 = vmatpush1.bf16.msra.mxu0 %v2162
    %2320 = vmatprep.subr.bf16.mxu0 0
    %2321 = vmatpush1.bf16.msra.mxu0 %v2161
    %2322 = vmatprep.subr.bf16.mxu0 0
    %2323 = vmatpush2.bf16.msra.mxu0 0
    %2324 = vmatprep.subr.bf16.mxu0 0
    %2325 = vmatpush2.bf16.msra.mxu0 0
    %2326 = vmatprep.subr.bf16.mxu0 0
    %2327 = vmatpush2.bf16.msra.mxu0 0
    %2328 = vmatprep.subr.bf16.mxu0 0
    %2329 = vmatpush2.bf16.msra.mxu0 0
    %2330 = vmatprep.subr.bf16.mxu0 0
    %2331 = vmatpush2.bf16.msra.mxu0 0
    %2332 = vmatprep.subr.bf16.mxu0 0
    %2333 = vmatpush2.bf16.msra.mxu0 0
    %2334 = vmatprep.subr.bf16.mxu0 0
    %2335 = vmatpush2.bf16.msra.mxu0 0
    %2336 = vmatprep.subr.bf16.mxu0 0
    %2337 = vmatpush2.bf16.msra.mxu0 0
    %2338 = vmatprep.mubr.bf16.mxu0 0
    %2339 = vmatmul.mubr.bf16.gmra.mxu0 %v2305
    %v2340 = vpop.f32.mrf.mxu0
    %v2341 = vadd.f32 0.0, %v2340
    %v2342 = vpop.f32.mrf.mxu0
    %v2343 = vpop.f32.mrf.mxu0
    %v2344 = vpop.f32.mrf.mxu0
    %2345 = vdwg.mxu0
    %v2346 = vadd.f32 %v1697, %v2341
    %v2347 = vtanh.pop %v2346
    %v2348 = vpack.c.bf16 %v2347, %v2347
    %2349 = vmatprep.subr.bf16.mxu0 0
    %2350 = vmatpush1.bf16.msra.mxu0 %v2168
    %2351 = vmatprep.subr.bf16.mxu0 0
    %2352 = vmatpush1.bf16.msra.mxu0 %v2167
    %2353 = vmatprep.subr.bf16.mxu0 0
    %2354 = vmatpush1.bf16.msra.mxu0 %v2166
    %2355 = vmatprep.subr.bf16.mxu0 0
    %2356 = vmatpush1.bf16.msra.mxu0 %v2165
    %2357 = vmatprep.subr.bf16.mxu0 0
    %2358 = vmatpush1.bf16.msra.mxu0 %v2164
    %2359 = vmatprep.subr.bf16.mxu0 0
    %2360 = vmatpush1.bf16.msra.mxu0 %v2163
    %2361 = vmatprep.subr.bf16.mxu0 0
    %2362 = vmatpush1.bf16.msra.mxu0 %v2162
    %2363 = vmatprep.subr.bf16.mxu0 0
    %2364 = vmatpush1.bf16.msra.mxu0 %v2161
    %2365 = vmatprep.subr.bf16.mxu0 0
    %2366 = vmatpush2.bf16.msra.mxu0 0
    %2367 = vmatprep.subr.bf16.mxu0 0
    %2368 = vmatpush2.bf16.msra.mxu0 0
    %2369 = vmatprep.subr.bf16.mxu0 0
    %2370 = vmatpush2.bf16.msra.mxu0 0
    %2371 = vmatprep.subr.bf16.mxu0 0
    %2372 = vmatpush2.bf16.msra.mxu0 0
    %2373 = vmatprep.subr.bf16.mxu0 0
    %2374 = vmatpush2.bf16.msra.mxu0 0
    %2375 = vmatprep.subr.bf16.mxu0 0
    %2376 = vmatpush2.bf16.msra.mxu0 0
    %2377 = vmatprep.subr.bf16.mxu0 0
    %2378 = vmatpush2.bf16.msra.mxu0 0
    %2379 = vmatprep.subr.bf16.mxu0 0
    %2380 = vmatpush2.bf16.msra.mxu0 0
    %2381 = vmatprep.mubr.bf16.mxu0 0
    %2382 = vmatmul.mubr.bf16.gmra.mxu0 %v2348
    %v2383 = vpop.f32.mrf.mxu0
    %v2384 = vadd.f32 0.0, %v2383
    %v2385 = vpop.f32.mrf.mxu0
    %v2386 = vpop.f32.mrf.mxu0
    %v2387 = vpop.f32.mrf.mxu0
    %2388 = vdwg.mxu0
    %v2389 = vadd.f32 %v1699, %v2384
    %v2390 = vtanh.pop %v2389
    %v2391 = vpack.c.bf16 %v2390, %v2390
    %2392 = vmatprep.subr.bf16.mxu0 0
    %2393 = vmatpush1.bf16.msra.mxu0 %v2168
    %2394 = vmatprep.subr.bf16.mxu0 0
    %2395 = vmatpush1.bf16.msra.mxu0 %v2167
    %2396 = vmatprep.subr.bf16.mxu0 0
    %2397 = vmatpush1.bf16.msra.mxu0 %v2166
    %2398 = vmatprep.subr.bf16.mxu0 0
    %2399 = vmatpush1.bf16.msra.mxu0 %v2165
    %2400 = vmatprep.subr.bf16.mxu0 0
    %2401 = vmatpush1.bf16.msra.mxu0 %v2164
    %2402 = vmatprep.subr.bf16.mxu0 0
    %2403 = vmatpush1.bf16.msra.mxu0 %v2163
    %2404 = vmatprep.subr.bf16.mxu0 0
    %2405 = vmatpush1.bf16.msra.mxu0 %v2162
    %2406 = vmatprep.subr.bf16.mxu0 0
    %2407 = vmatpush1.bf16.msra.mxu0 %v2161
    %2408 = vmatprep.subr.bf16.mxu0 0
    %2409 = vmatpush2.bf16.msra.mxu0 0
    %2410 = vmatprep.subr.bf16.mxu0 0
    %2411 = vmatpush2.bf16.msra.mxu0 0
    %2412 = vmatprep.subr.bf16.mxu0 0
    %2413 = vmatpush2.bf16.msra.mxu0 0
    %2414 = vmatprep.subr.bf16.mxu0 0
    %2415 = vmatpush2.bf16.msra.mxu0 0
    %2416 = vmatprep.subr.bf16.mxu0 0
    %2417 = vmatpush2.bf16.msra.mxu0 0
    %2418 = vmatprep.subr.bf16.mxu0 0
    %2419 = vmatpush2.bf16.msra.mxu0 0
    %2420 = vmatprep.subr.bf16.mxu0 0
    %2421 = vmatpush2.bf16.msra.mxu0 0
    %2422 = vmatprep.subr.bf16.mxu0 0
    %2423 = vmatpush2.bf16.msra.mxu0 0
    %2424 = vmatprep.mubr.bf16.mxu0 0
    %2425 = vmatmul.mubr.bf16.gmra.mxu0 %v2391
    %v2426 = vpop.f32.mrf.mxu0
    %v2427 = vadd.f32 0.0, %v2426
    %v2428 = vpop.f32.mrf.mxu0
    %v2429 = vpop.f32.mrf.mxu0
    %v2430 = vpop.f32.mrf.mxu0
    %2431 = vdwg.mxu0
    %v2432 = vadd.f32 %v1701, %v2427
    %v2433 = vtanh.pop %v2432
    %v2434 = vpack.c.bf16 %v2433, %v2433
    %2435 = vmatprep.subr.bf16.mxu0 0
    %2436 = vmatpush1.bf16.msra.mxu0 %v2168
    %2437 = vmatprep.subr.bf16.mxu0 0
    %2438 = vmatpush1.bf16.msra.mxu0 %v2167
    %2439 = vmatprep.subr.bf16.mxu0 0
    %2440 = vmatpush1.bf16.msra.mxu0 %v2166
    %2441 = vmatprep.subr.bf16.mxu0 0
    %2442 = vmatpush1.bf16.msra.mxu0 %v2165
    %2443 = vmatprep.subr.bf16.mxu0 0
    %2444 = vmatpush1.bf16.msra.mxu0 %v2164
    %2445 = vmatprep.subr.bf16.mxu0 0
    %2446 = vmatpush1.bf16.msra.mxu0 %v2163
    %2447 = vmatprep.subr.bf16.mxu0 0
    %2448 = vmatpush1.bf16.msra.mxu0 %v2162
    %2449 = vmatprep.subr.bf16.mxu0 0
    %2450 = vmatpush1.bf16.msra.mxu0 %v2161
    %2451 = vmatprep.subr.bf16.mxu0 0
    %2452 = vmatpush2.bf16.msra.mxu0 0
    %2453 = vmatprep.subr.bf16.mxu0 0
    %2454 = vmatpush2.bf16.msra.mxu0 0
    %2455 = vmatprep.subr.bf16.mxu0 0
    %2456 = vmatpush2.bf16.msra.mxu0 0
    %2457 = vmatprep.subr.bf16.mxu0 0
    %2458 = vmatpush2.bf16.msra.mxu0 0
    %2459 = vmatprep.subr.bf16.mxu0 0
    %2460 = vmatpush2.bf16.msra.mxu0 0
    %2461 = vmatprep.subr.bf16.mxu0 0
    %2462 = vmatpush2.bf16.msra.mxu0 0
    %2463 = vmatprep.subr.bf16.mxu0 0
    %2464 = vmatpush2.bf16.msra.mxu0 0
    %2465 = vmatprep.subr.bf16.mxu0 0
    %2466 = vmatpush2.bf16.msra.mxu0 0
    %2467 = vmatprep.mubr.bf16.mxu0 0
    %2468 = vmatmul.mubr.bf16.gmra.mxu0 %v2434
    %v2469 = vpop.f32.mrf.mxu0
    %v2470 = vadd.f32 0.0, %v2469
    %v2471 = vpop.f32.mrf.mxu0
    %v2472 = vpop.f32.mrf.mxu0
    %v2473 = vpop.f32.mrf.mxu0
    %2474 = vdwg.mxu0
    %v2475 = vadd.f32 %v1703, %v2470
    %v2476 = vtanh.pop %v2475
    %v2477 = vpack.c.bf16 %v2476, %v2476
    %2478 = vmatprep.subr.bf16.mxu0 0
    %2479 = vmatpush1.bf16.msra.mxu0 %v2168
    %2480 = vmatprep.subr.bf16.mxu0 0
    %2481 = vmatpush1.bf16.msra.mxu0 %v2167
    %2482 = vmatprep.subr.bf16.mxu0 0
    %2483 = vmatpush1.bf16.msra.mxu0 %v2166
    %2484 = vmatprep.subr.bf16.mxu0 0
    %2485 = vmatpush1.bf16.msra.mxu0 %v2165
    %2486 = vmatprep.subr.bf16.mxu0 0
    %2487 = vmatpush1.bf16.msra.mxu0 %v2164
    %2488 = vmatprep.subr.bf16.mxu0 0
    %2489 = vmatpush1.bf16.msra.mxu0 %v2163
    %2490 = vmatprep.subr.bf16.mxu0 0
    %2491 = vmatpush1.bf16.msra.mxu0 %v2162
    %2492 = vmatprep.subr.bf16.mxu0 0
    %2493 = vmatpush1.bf16.msra.mxu0 %v2161
    %2494 = vmatprep.subr.bf16.mxu0 0
    %2495 = vmatpush2.bf16.msra.mxu0 0
    %2496 = vmatprep.subr.bf16.mxu0 0
    %2497 = vmatpush2.bf16.msra.mxu0 0
    %2498 = vmatprep.subr.bf16.mxu0 0
    %2499 = vmatpush2.bf16.msra.mxu0 0
    %2500 = vmatprep.subr.bf16.mxu0 0
    %2501 = vmatpush2.bf16.msra.mxu0 0
    %2502 = vmatprep.subr.bf16.mxu0 0
    %2503 = vmatpush2.bf16.msra.mxu0 0
    %2504 = vmatprep.subr.bf16.mxu0 0
    %2505 = vmatpush2.bf16.msra.mxu0 0
    %2506 = vmatprep.subr.bf16.mxu0 0
    %2507 = vmatpush2.bf16.msra.mxu0 0
    %2508 = vmatprep.subr.bf16.mxu0 0
    %2509 = vmatpush2.bf16.msra.mxu0 0
    %2510 = vmatprep.mubr.bf16.mxu0 0
    %2511 = vmatmul.mubr.bf16.gmra.mxu0 %v2477
    %v2512 = vpop.f32.mrf.mxu0
    %v2513 = vadd.f32 0.0, %v2512
    %v2514 = vpop.f32.mrf.mxu0
    %v2515 = vpop.f32.mrf.mxu0
    %v2516 = vpop.f32.mrf.mxu0
    %2517 = vdwg.mxu0
    %v2518 = vadd.f32 %v1705, %v2513
    %v2519 = vtanh.pop %v2518
    %v2520 = vld [vmem:[%s1] sm:$0xf]
    %v2521 = vld [vmem:[%s1 + $0x4] sm:$0xf]
    %v2522 = vld [vmem:[%s1 + $0x8] sm:$0xf]
    %v2523 = vld [vmem:[%s1 + $0xc] sm:$0xf]
    %v2524 = vld [vmem:[%s1 + $0x10] sm:$0xf]
    %v2525 = vld [vmem:[%s1 + $0x14] sm:$0xf]
    %v2526 = vld [vmem:[%s1 + $0x18] sm:$0xf]
    %v2527 = vld [vmem:[%s1 + $0x1c] sm:$0xf]
    %v2528 = vld [vmem:[#allocation18] sm:$0xff]
    %v2529 = vld [vmem:[#allocation18 + $0x8] sm:$0xff]
    %v2530 = vld [vmem:[#allocation18 + $0x10] sm:$0xff]
    %v2531 = vld [vmem:[#allocation18 + $0x18] sm:$0xff]
    %v2540 = vunpack.c.l.b16 %v2520
    %v2541 = vunpack.c.l.b16 %v2521
    %v2542 = vunpack.c.l.b16 %v2522
    %v2543 = vunpack.c.l.b16 %v2523
    %v2544 = vunpack.c.l.b16 %v2524
    %v2545 = vunpack.c.l.b16 %v2525
    %v2546 = vunpack.c.l.b16 %v2526
    %v2547 = vunpack.c.l.b16 %v2527
    %v2548 = vpack.c.b16 %v2541, %v2540
    %v2549 = vpack.c.b16 %v2543, %v2542
    %v2550 = vpack.c.b16 %v2545, %v2544
    %v2551 = vpack.c.b16 %v2547, %v2546
    %v2556 = vunpack.c.l.b16 %v2528
    %v2557 = vunpack.c.h.b16 %v2528
    %v2558 = vunpack.c.l.b16 %v2529
    %v2559 = vunpack.c.h.b16 %v2529
    %v2560 = vunpack.c.l.b16 %v2530
    %v2561 = vunpack.c.h.b16 %v2530
    %v2562 = vunpack.c.l.b16 %v2531
    %v2563 = vunpack.c.h.b16 %v2531
    %v2564 = vpack.c.b16 %v2558, %v2556
    %v2565 = vpack.c.b16 %v2559, %v2557
    %v2566 = vpack.c.b16 %v2562, %v2560
    %v2567 = vpack.c.b16 %v2563, %v2561
    %v2573 = vsel %vm384, %v2548, 0
    %v2576 = vsel %vm384, %v2549, 0
    %v2579 = vsel %vm384, %v2550, 0
    %v2582 = vsel %vm384, %v2551, 0
    %2584 = vmatprep.subr.bf16.mxu0 0
    %2585 = vmatpush1.bf16.msra.mxu0 0
    %2586 = vmatprep.subr.bf16.mxu0 0
    %2587 = vmatpush1.bf16.msra.mxu0 0
    %2588 = vmatprep.subr.bf16.mxu0 0
    %2589 = vmatpush1.bf16.msra.mxu0 0
    %2590 = vmatprep.subr.bf16.mxu0 0
    %2591 = vmatpush1.bf16.msra.mxu0 0
    %2592 = vmatprep.subr.bf16.mxu0 0
    %2593 = vmatpush1.bf16.msra.mxu0 0
    %2594 = vmatprep.subr.bf16.mxu0 0
    %2595 = vmatpush1.bf16.msra.mxu0 0
    %2596 = vmatprep.subr.bf16.mxu0 %v2567
    %2597 = vmatpush1.bf16.msra.mxu0 %v2566
    %2598 = vmatprep.subr.bf16.mxu0 %v2565
    %2599 = vmatpush1.bf16.msra.mxu0 %v2564
    %2600 = vmatprep.subr.bf16.mxu0 0
    %2601 = vmatpush2.bf16.msra.mxu0 0
    %2602 = vmatprep.subr.bf16.mxu0 0
    %2603 = vmatpush2.bf16.msra.mxu0 0
    %2604 = vmatprep.subr.bf16.mxu0 0
    %2605 = vmatpush2.bf16.msra.mxu0 0
    %2606 = vmatprep.subr.bf16.mxu0 0
    %2607 = vmatpush2.bf16.msra.mxu0 0
    %2608 = vmatprep.subr.bf16.mxu0 0
    %2609 = vmatpush2.bf16.msra.mxu0 0
    %2610 = vmatprep.subr.bf16.mxu0 0
    %2611 = vmatpush2.bf16.msra.mxu0 0
    %2612 = vmatprep.subr.bf16.mxu0 0
    %2613 = vmatpush2.bf16.msra.mxu0 0
    %2614 = vmatprep.subr.bf16.mxu0 0
    %2615 = vmatpush2.bf16.msra.mxu0 0
    %2616 = vmatprep.mubr.bf16.mxu0 0
    %2617 = vmatmul.mubr.bf16.gmra.mxu0 %v2573
    %v2618 = vpop.f32.mrf.mxu0
    %v2619 = vadd.f32 0.0, %v2618
    %v2620 = vpop.f32.mrf.mxu0
    %v2621 = vadd.f32 0.0, %v2620
    %v2622 = vpop.f32.mrf.mxu0
    %v2623 = vadd.f32 0.0, %v2622
    %v2624 = vpop.f32.mrf.mxu0
    %v2625 = vadd.f32 0.0, %v2624
    %2626 = vmatprep.mubr.bf16.mxu0 0
    %2627 = vmatmul.mubr.bf16.gmra.mxu0 %v2576
    %v2628 = vpop.f32.mrf.mxu0
    %v2629 = vadd.f32 0.0, %v2628
    %v2630 = vpop.f32.mrf.mxu0
    %v2631 = vadd.f32 0.0, %v2630
    %v2632 = vpop.f32.mrf.mxu0
    %v2633 = vadd.f32 0.0, %v2632
    %v2634 = vpop.f32.mrf.mxu0
    %v2635 = vadd.f32 0.0, %v2634
    %2636 = vmatprep.mubr.bf16.mxu0 0
    %2637 = vmatmul.mubr.bf16.gmra.mxu0 %v2579
    %v2638 = vpop.f32.mrf.mxu0
    %v2639 = vadd.f32 0.0, %v2638
    %v2640 = vpop.f32.mrf.mxu0
    %v2641 = vadd.f32 0.0, %v2640
    %v2642 = vpop.f32.mrf.mxu0
    %v2643 = vadd.f32 0.0, %v2642
    %v2644 = vpop.f32.mrf.mxu0
    %v2645 = vadd.f32 0.0, %v2644
    %2646 = vmatprep.mubr.bf16.mxu0 0
    %2647 = vmatmul.mubr.bf16.gmra.mxu0 %v2582
    %v2648 = vpop.f32.mrf.mxu0
    %v2649 = vadd.f32 0.0, %v2648
    %v2650 = vpop.f32.mrf.mxu0
    %v2651 = vadd.f32 0.0, %v2650
    %v2652 = vpop.f32.mrf.mxu0
    %v2653 = vadd.f32 0.0, %v2652
    %v2654 = vpop.f32.mrf.mxu0
    %v2655 = vadd.f32 0.0, %v2654
    %2656 = vdwg.mxu0
    %v2657 = vld [vmem:[#allocation22] sm:$0x1]
    %v2658 = vld [vmem:[#allocation24] sm:$0x1]
    %v2660 = vlaneseq
    %v2661 = vshrl.u32 %v2660, 7
    %v2662 = vsub.s32 0, %v2661
    %v2663 = vrot.slane %v2657, %v2662
    %v2665 = vadd.f32 %v2619, %v2663
    %v2666 = vadd.f32 %v2623, %v2663
    %v2667 = vadd.f32 %v2629, %v2663
    %v2668 = vadd.f32 %v2633, %v2663
    %v2669 = vadd.f32 %v2639, %v2663
    %v2670 = vadd.f32 %v2643, %v2663
    %v2671 = vadd.f32 %v2649, %v2663
    %v2672 = vadd.f32 %v2653, %v2663
    %v2674 = vlaneseq
    %v2675 = vshrl.u32 %v2674, 7
    %v2676 = vsub.s32 0, %v2675
    %v2677 = vrot.slane %v2658, %v2676
    %v2679 = vadd.f32 %v2655, %v2677
    %v2680 = vadd.f32 %v2651, %v2677
    %v2681 = vadd.f32 %v2645, %v2677
    %v2682 = vadd.f32 %v2641, %v2677
    %v2683 = vadd.f32 %v2635, %v2677
    %v2684 = vadd.f32 %v2631, %v2677
    %v2685 = vadd.f32 %v2625, %v2677
    %v2686 = vadd.f32 %v2621, %v2677
    %v2687 = vld [vmem:[#allocation19] sm:$0xf]
    %v2688 = vld [vmem:[#allocation19 + $0x4] sm:$0xf]
    %v2689 = vld [vmem:[#allocation19 + $0x8] sm:$0xf]
    %v2690 = vld [vmem:[#allocation19 + $0xc] sm:$0xf]
    %v2691 = vld [vmem:[#allocation19 + $0x10] sm:$0xf]
    %v2692 = vld [vmem:[#allocation19 + $0x14] sm:$0xf]
    %v2693 = vld [vmem:[#allocation19 + $0x18] sm:$0xf]
    %v2694 = vld [vmem:[#allocation19 + $0x1c] sm:$0xf]
    %v2695 = vld [vmem:[#allocation19 + $0x20] sm:$0xf]
    %v2696 = vld [vmem:[#allocation19 + $0x24] sm:$0xf]
    %v2697 = vld [vmem:[#allocation19 + $0x28] sm:$0xf]
    %v2698 = vld [vmem:[#allocation19 + $0x2c] sm:$0xf]
    %v2699 = vld [vmem:[#allocation19 + $0x30] sm:$0xf]
    %v2700 = vld [vmem:[#allocation19 + $0x34] sm:$0xf]
    %v2701 = vld [vmem:[#allocation19 + $0x38] sm:$0xf]
    %v2702 = vld [vmem:[#allocation19 + $0x3c] sm:$0xf]
    %v2703 = vpack.c.bf16 %v906, %v906
    %v2720 = vunpack.c.l.b16 %v2687
    %v2721 = vunpack.c.l.b16 %v2688
    %v2722 = vunpack.c.l.b16 %v2689
    %v2723 = vunpack.c.l.b16 %v2690
    %v2724 = vunpack.c.l.b16 %v2691
    %v2725 = vunpack.c.l.b16 %v2692
    %v2726 = vunpack.c.l.b16 %v2693
    %v2727 = vunpack.c.l.b16 %v2694
    %v2728 = vunpack.c.l.b16 %v2695
    %v2729 = vunpack.c.l.b16 %v2696
    %v2730 = vunpack.c.l.b16 %v2697
    %v2731 = vunpack.c.l.b16 %v2698
    %v2732 = vunpack.c.l.b16 %v2699
    %v2733 = vunpack.c.l.b16 %v2700
    %v2734 = vunpack.c.l.b16 %v2701
    %v2735 = vunpack.c.l.b16 %v2702
    %v2736 = vpack.c.b16 %v2721, %v2720
    %v2737 = vpack.c.b16 %v2723, %v2722
    %v2738 = vpack.c.b16 %v2725, %v2724
    %v2739 = vpack.c.b16 %v2727, %v2726
    %v2740 = vpack.c.b16 %v2729, %v2728
    %v2741 = vpack.c.b16 %v2731, %v2730
    %v2742 = vpack.c.b16 %v2733, %v2732
    %v2743 = vpack.c.b16 %v2735, %v2734
    %2752 = vmatprep.subr.bf16.mxu0 0
    %2753 = vmatpush1.bf16.msra.mxu0 %v2743
    %2754 = vmatprep.subr.bf16.mxu0 0
    %2755 = vmatpush1.bf16.msra.mxu0 %v2742
    %2756 = vmatprep.subr.bf16.mxu0 0
    %2757 = vmatpush1.bf16.msra.mxu0 %v2741
    %2758 = vmatprep.subr.bf16.mxu0 0
    %2759 = vmatpush1.bf16.msra.mxu0 %v2740
    %2760 = vmatprep.subr.bf16.mxu0 0
    %2761 = vmatpush1.bf16.msra.mxu0 %v2739
    %2762 = vmatprep.subr.bf16.mxu0 0
    %2763 = vmatpush1.bf16.msra.mxu0 %v2738
    %2764 = vmatprep.subr.bf16.mxu0 0
    %2765 = vmatpush1.bf16.msra.mxu0 %v2737
    %2766 = vmatprep.subr.bf16.mxu0 0
    %2767 = vmatpush1.bf16.msra.mxu0 %v2736
    %2768 = vmatprep.subr.bf16.mxu0 0
    %2769 = vmatpush2.bf16.msra.mxu0 0
    %2770 = vmatprep.subr.bf16.mxu0 0
    %2771 = vmatpush2.bf16.msra.mxu0 0
    %2772 = vmatprep.subr.bf16.mxu0 0
    %2773 = vmatpush2.bf16.msra.mxu0 0
    %2774 = vmatprep.subr.bf16.mxu0 0
    %2775 = vmatpush2.bf16.msra.mxu0 0
    %2776 = vmatprep.subr.bf16.mxu0 0
    %2777 = vmatpush2.bf16.msra.mxu0 0
    %2778 = vmatprep.subr.bf16.mxu0 0
    %2779 = vmatpush2.bf16.msra.mxu0 0
    %2780 = vmatprep.subr.bf16.mxu0 0
    %2781 = vmatpush2.bf16.msra.mxu0 0
    %2782 = vmatprep.subr.bf16.mxu0 0
    %2783 = vmatpush2.bf16.msra.mxu0 0
    %2784 = vmatprep.mubr.bf16.mxu0 0
    %2785 = vmatmul.mubr.bf16.gmra.mxu0 %v2703
    %v2786 = vpop.f32.mrf.mxu0
    %v2787 = vadd.f32 0.0, %v2786
    %v2788 = vpop.f32.mrf.mxu0
    %v2789 = vpop.f32.mrf.mxu0
    %v2790 = vpop.f32.mrf.mxu0
    %2791 = vdwg.mxu0
    %v2792 = vadd.f32 %v2665, %v2787
    %v2793 = vtanh.pop %v2792
    %v2794 = vpack.c.bf16 %v2793, %v2793
    %2795 = vmatprep.subr.bf16.mxu0 0
    %2796 = vmatpush1.bf16.msra.mxu0 %v2743
    %2797 = vmatprep.subr.bf16.mxu0 0
    %2798 = vmatpush1.bf16.msra.mxu0 %v2742
    %2799 = vmatprep.subr.bf16.mxu0 0
    %2800 = vmatpush1.bf16.msra.mxu0 %v2741
    %2801 = vmatprep.subr.bf16.mxu0 0
    %2802 = vmatpush1.bf16.msra.mxu0 %v2740
    %2803 = vmatprep.subr.bf16.mxu0 0
    %2804 = vmatpush1.bf16.msra.mxu0 %v2739
    %2805 = vmatprep.subr.bf16.mxu0 0
    %2806 = vmatpush1.bf16.msra.mxu0 %v2738
    %2807 = vmatprep.subr.bf16.mxu0 0
    %2808 = vmatpush1.bf16.msra.mxu0 %v2737
    %2809 = vmatprep.subr.bf16.mxu0 0
    %2810 = vmatpush1.bf16.msra.mxu0 %v2736
    %2811 = vmatprep.subr.bf16.mxu0 0
    %2812 = vmatpush2.bf16.msra.mxu0 0
    %2813 = vmatprep.subr.bf16.mxu0 0
    %2814 = vmatpush2.bf16.msra.mxu0 0
    %2815 = vmatprep.subr.bf16.mxu0 0
    %2816 = vmatpush2.bf16.msra.mxu0 0
    %2817 = vmatprep.subr.bf16.mxu0 0
    %2818 = vmatpush2.bf16.msra.mxu0 0
    %2819 = vmatprep.subr.bf16.mxu0 0
    %2820 = vmatpush2.bf16.msra.mxu0 0
    %2821 = vmatprep.subr.bf16.mxu0 0
    %2822 = vmatpush2.bf16.msra.mxu0 0
    %2823 = vmatprep.subr.bf16.mxu0 0
    %2824 = vmatpush2.bf16.msra.mxu0 0
    %2825 = vmatprep.subr.bf16.mxu0 0
    %2826 = vmatpush2.bf16.msra.mxu0 0
    %2827 = vmatprep.mubr.bf16.mxu0 0
    %2828 = vmatmul.mubr.bf16.gmra.mxu0 %v2794
    %v2829 = vpop.f32.mrf.mxu0
    %v2830 = vadd.f32 0.0, %v2829
    %v2831 = vpop.f32.mrf.mxu0
    %v2832 = vpop.f32.mrf.mxu0
    %v2833 = vpop.f32.mrf.mxu0
    %2834 = vdwg.mxu0
    %v2835 = vadd.f32 %v2666, %v2830
    %v2836 = vtanh.pop %v2835
    %v2837 = vpack.c.bf16 %v2836, %v2836
    %2838 = vmatprep.subr.bf16.mxu0 0
    %2839 = vmatpush1.bf16.msra.mxu0 %v2743
    %2840 = vmatprep.subr.bf16.mxu0 0
    %2841 = vmatpush1.bf16.msra.mxu0 %v2742
    %2842 = vmatprep.subr.bf16.mxu0 0
    %2843 = vmatpush1.bf16.msra.mxu0 %v2741
    %2844 = vmatprep.subr.bf16.mxu0 0
    %2845 = vmatpush1.bf16.msra.mxu0 %v2740
    %2846 = vmatprep.subr.bf16.mxu0 0
    %2847 = vmatpush1.bf16.msra.mxu0 %v2739
    %2848 = vmatprep.subr.bf16.mxu0 0
    %2849 = vmatpush1.bf16.msra.mxu0 %v2738
    %2850 = vmatprep.subr.bf16.mxu0 0
    %2851 = vmatpush1.bf16.msra.mxu0 %v2737
    %2852 = vmatprep.subr.bf16.mxu0 0
    %2853 = vmatpush1.bf16.msra.mxu0 %v2736
    %2854 = vmatprep.subr.bf16.mxu0 0
    %2855 = vmatpush2.bf16.msra.mxu0 0
    %2856 = vmatprep.subr.bf16.mxu0 0
    %2857 = vmatpush2.bf16.msra.mxu0 0
    %2858 = vmatprep.subr.bf16.mxu0 0
    %2859 = vmatpush2.bf16.msra.mxu0 0
    %2860 = vmatprep.subr.bf16.mxu0 0
    %2861 = vmatpush2.bf16.msra.mxu0 0
    %2862 = vmatprep.subr.bf16.mxu0 0
    %2863 = vmatpush2.bf16.msra.mxu0 0
    %2864 = vmatprep.subr.bf16.mxu0 0
    %2865 = vmatpush2.bf16.msra.mxu0 0
    %2866 = vmatprep.subr.bf16.mxu0 0
    %2867 = vmatpush2.bf16.msra.mxu0 0
    %2868 = vmatprep.subr.bf16.mxu0 0
    %2869 = vmatpush2.bf16.msra.mxu0 0
    %2870 = vmatprep.mubr.bf16.mxu0 0
    %2871 = vmatmul.mubr.bf16.gmra.mxu0 %v2837
    %v2872 = vpop.f32.mrf.mxu0
    %v2873 = vadd.f32 0.0, %v2872
    %v2874 = vpop.f32.mrf.mxu0
    %v2875 = vpop.f32.mrf.mxu0
    %v2876 = vpop.f32.mrf.mxu0
    %2877 = vdwg.mxu0
    %v2878 = vadd.f32 %v2667, %v2873
    %v2879 = vtanh.pop %v2878
    %v2880 = vpack.c.bf16 %v2879, %v2879
    %2881 = vmatprep.subr.bf16.mxu0 0
    %2882 = vmatpush1.bf16.msra.mxu0 %v2743
    %2883 = vmatprep.subr.bf16.mxu0 0
    %2884 = vmatpush1.bf16.msra.mxu0 %v2742
    %2885 = vmatprep.subr.bf16.mxu0 0
    %2886 = vmatpush1.bf16.msra.mxu0 %v2741
    %2887 = vmatprep.subr.bf16.mxu0 0
    %2888 = vmatpush1.bf16.msra.mxu0 %v2740
    %2889 = vmatprep.subr.bf16.mxu0 0
    %2890 = vmatpush1.bf16.msra.mxu0 %v2739
    %2891 = vmatprep.subr.bf16.mxu0 0
    %2892 = vmatpush1.bf16.msra.mxu0 %v2738
    %2893 = vmatprep.subr.bf16.mxu0 0
    %2894 = vmatpush1.bf16.msra.mxu0 %v2737
    %2895 = vmatprep.subr.bf16.mxu0 0
    %2896 = vmatpush1.bf16.msra.mxu0 %v2736
    %2897 = vmatprep.subr.bf16.mxu0 0
    %2898 = vmatpush2.bf16.msra.mxu0 0
    %2899 = vmatprep.subr.bf16.mxu0 0
    %2900 = vmatpush2.bf16.msra.mxu0 0
    %2901 = vmatprep.subr.bf16.mxu0 0
    %2902 = vmatpush2.bf16.msra.mxu0 0
    %2903 = vmatprep.subr.bf16.mxu0 0
    %2904 = vmatpush2.bf16.msra.mxu0 0
    %2905 = vmatprep.subr.bf16.mxu0 0
    %2906 = vmatpush2.bf16.msra.mxu0 0
    %2907 = vmatprep.subr.bf16.mxu0 0
    %2908 = vmatpush2.bf16.msra.mxu0 0
    %2909 = vmatprep.subr.bf16.mxu0 0
    %2910 = vmatpush2.bf16.msra.mxu0 0
    %2911 = vmatprep.subr.bf16.mxu0 0
    %2912 = vmatpush2.bf16.msra.mxu0 0
    %2913 = vmatprep.mubr.bf16.mxu0 0
    %2914 = vmatmul.mubr.bf16.gmra.mxu0 %v2880
    %v2915 = vpop.f32.mrf.mxu0
    %v2916 = vadd.f32 0.0, %v2915
    %v2917 = vpop.f32.mrf.mxu0
    %v2918 = vpop.f32.mrf.mxu0
    %v2919 = vpop.f32.mrf.mxu0
    %2920 = vdwg.mxu0
    %v2921 = vadd.f32 %v2668, %v2916
    %v2922 = vtanh.pop %v2921
    %v2923 = vpack.c.bf16 %v2922, %v2922
    %2924 = vmatprep.subr.bf16.mxu0 0
    %2925 = vmatpush1.bf16.msra.mxu0 %v2743
    %2926 = vmatprep.subr.bf16.mxu0 0
    %2927 = vmatpush1.bf16.msra.mxu0 %v2742
    %2928 = vmatprep.subr.bf16.mxu0 0
    %2929 = vmatpush1.bf16.msra.mxu0 %v2741
    %2930 = vmatprep.subr.bf16.mxu0 0
    %2931 = vmatpush1.bf16.msra.mxu0 %v2740
    %2932 = vmatprep.subr.bf16.mxu0 0
    %2933 = vmatpush1.bf16.msra.mxu0 %v2739
    %2934 = vmatprep.subr.bf16.mxu0 0
    %2935 = vmatpush1.bf16.msra.mxu0 %v2738
    %2936 = vmatprep.subr.bf16.mxu0 0
    %2937 = vmatpush1.bf16.msra.mxu0 %v2737
    %2938 = vmatprep.subr.bf16.mxu0 0
    %2939 = vmatpush1.bf16.msra.mxu0 %v2736
    %2940 = vmatprep.subr.bf16.mxu0 0
    %2941 = vmatpush2.bf16.msra.mxu0 0
    %2942 = vmatprep.subr.bf16.mxu0 0
    %2943 = vmatpush2.bf16.msra.mxu0 0
    %2944 = vmatprep.subr.bf16.mxu0 0
    %2945 = vmatpush2.bf16.msra.mxu0 0
    %2946 = vmatprep.subr.bf16.mxu0 0
    %2947 = vmatpush2.bf16.msra.mxu0 0
    %2948 = vmatprep.subr.bf16.mxu0 0
    %2949 = vmatpush2.bf16.msra.mxu0 0
    %2950 = vmatprep.subr.bf16.mxu0 0
    %2951 = vmatpush2.bf16.msra.mxu0 0
    %2952 = vmatprep.subr.bf16.mxu0 0
    %2953 = vmatpush2.bf16.msra.mxu0 0
    %2954 = vmatprep.subr.bf16.mxu0 0
    %2955 = vmatpush2.bf16.msra.mxu0 0
    %2956 = vmatprep.mubr.bf16.mxu0 0
    %2957 = vmatmul.mubr.bf16.gmra.mxu0 %v2923
    %v2958 = vpop.f32.mrf.mxu0
    %v2959 = vadd.f32 0.0, %v2958
    %v2960 = vpop.f32.mrf.mxu0
    %v2961 = vpop.f32.mrf.mxu0
    %v2962 = vpop.f32.mrf.mxu0
    %2963 = vdwg.mxu0
    %v2964 = vadd.f32 %v2669, %v2959
    %v2965 = vtanh.pop %v2964
    %v2966 = vpack.c.bf16 %v2965, %v2965
    %2967 = vmatprep.subr.bf16.mxu0 0
    %2968 = vmatpush1.bf16.msra.mxu0 %v2743
    %2969 = vmatprep.subr.bf16.mxu0 0
    %2970 = vmatpush1.bf16.msra.mxu0 %v2742
    %2971 = vmatprep.subr.bf16.mxu0 0
    %2972 = vmatpush1.bf16.msra.mxu0 %v2741
    %2973 = vmatprep.subr.bf16.mxu0 0
    %2974 = vmatpush1.bf16.msra.mxu0 %v2740
    %2975 = vmatprep.subr.bf16.mxu0 0
    %2976 = vmatpush1.bf16.msra.mxu0 %v2739
    %2977 = vmatprep.subr.bf16.mxu0 0
    %2978 = vmatpush1.bf16.msra.mxu0 %v2738
    %2979 = vmatprep.subr.bf16.mxu0 0
    %2980 = vmatpush1.bf16.msra.mxu0 %v2737
    %2981 = vmatprep.subr.bf16.mxu0 0
    %2982 = vmatpush1.bf16.msra.mxu0 %v2736
    %2983 = vmatprep.subr.bf16.mxu0 0
    %2984 = vmatpush2.bf16.msra.mxu0 0
    %2985 = vmatprep.subr.bf16.mxu0 0
    %2986 = vmatpush2.bf16.msra.mxu0 0
    %2987 = vmatprep.subr.bf16.mxu0 0
    %2988 = vmatpush2.bf16.msra.mxu0 0
    %2989 = vmatprep.subr.bf16.mxu0 0
    %2990 = vmatpush2.bf16.msra.mxu0 0
    %2991 = vmatprep.subr.bf16.mxu0 0
    %2992 = vmatpush2.bf16.msra.mxu0 0
    %2993 = vmatprep.subr.bf16.mxu0 0
    %2994 = vmatpush2.bf16.msra.mxu0 0
    %2995 = vmatprep.subr.bf16.mxu0 0
    %2996 = vmatpush2.bf16.msra.mxu0 0
    %2997 = vmatprep.subr.bf16.mxu0 0
    %2998 = vmatpush2.bf16.msra.mxu0 0
    %2999 = vmatprep.mubr.bf16.mxu0 0
    %3000 = vmatmul.mubr.bf16.gmra.mxu0 %v2966
    %v3001 = vpop.f32.mrf.mxu0
    %v3002 = vadd.f32 0.0, %v3001
    %v3003 = vpop.f32.mrf.mxu0
    %v3004 = vpop.f32.mrf.mxu0
    %v3005 = vpop.f32.mrf.mxu0
    %3006 = vdwg.mxu0
    %v3007 = vadd.f32 %v2670, %v3002
    %v3008 = vtanh.pop %v3007
    %v3009 = vpack.c.bf16 %v3008, %v3008
    %3010 = vmatprep.subr.bf16.mxu0 0
    %3011 = vmatpush1.bf16.msra.mxu0 %v2743
    %3012 = vmatprep.subr.bf16.mxu0 0
    %3013 = vmatpush1.bf16.msra.mxu0 %v2742
    %3014 = vmatprep.subr.bf16.mxu0 0
    %3015 = vmatpush1.bf16.msra.mxu0 %v2741
    %3016 = vmatprep.subr.bf16.mxu0 0
    %3017 = vmatpush1.bf16.msra.mxu0 %v2740
    %3018 = vmatprep.subr.bf16.mxu0 0
    %3019 = vmatpush1.bf16.msra.mxu0 %v2739
    %3020 = vmatprep.subr.bf16.mxu0 0
    %3021 = vmatpush1.bf16.msra.mxu0 %v2738
    %3022 = vmatprep.subr.bf16.mxu0 0
    %3023 = vmatpush1.bf16.msra.mxu0 %v2737
    %3024 = vmatprep.subr.bf16.mxu0 0
    %3025 = vmatpush1.bf16.msra.mxu0 %v2736
    %3026 = vmatprep.subr.bf16.mxu0 0
    %3027 = vmatpush2.bf16.msra.mxu0 0
    %3028 = vmatprep.subr.bf16.mxu0 0
    %3029 = vmatpush2.bf16.msra.mxu0 0
    %3030 = vmatprep.subr.bf16.mxu0 0
    %3031 = vmatpush2.bf16.msra.mxu0 0
    %3032 = vmatprep.subr.bf16.mxu0 0
    %3033 = vmatpush2.bf16.msra.mxu0 0
    %3034 = vmatprep.subr.bf16.mxu0 0
    %3035 = vmatpush2.bf16.msra.mxu0 0
    %3036 = vmatprep.subr.bf16.mxu0 0
    %3037 = vmatpush2.bf16.msra.mxu0 0
    %3038 = vmatprep.subr.bf16.mxu0 0
    %3039 = vmatpush2.bf16.msra.mxu0 0
    %3040 = vmatprep.subr.bf16.mxu0 0
    %3041 = vmatpush2.bf16.msra.mxu0 0
    %3042 = vmatprep.mubr.bf16.mxu0 0
    %3043 = vmatmul.mubr.bf16.gmra.mxu0 %v3009
    %v3044 = vpop.f32.mrf.mxu0
    %v3045 = vadd.f32 0.0, %v3044
    %v3046 = vpop.f32.mrf.mxu0
    %v3047 = vpop.f32.mrf.mxu0
    %v3048 = vpop.f32.mrf.mxu0
    %3049 = vdwg.mxu0
    %v3050 = vadd.f32 %v2671, %v3045
    %v3051 = vtanh.pop %v3050
    %v3052 = vpack.c.bf16 %v3051, %v3051
    %3053 = vmatprep.subr.bf16.mxu0 0
    %3054 = vmatpush1.bf16.msra.mxu0 %v2743
    %3055 = vmatprep.subr.bf16.mxu0 0
    %3056 = vmatpush1.bf16.msra.mxu0 %v2742
    %3057 = vmatprep.subr.bf16.mxu0 0
    %3058 = vmatpush1.bf16.msra.mxu0 %v2741
    %3059 = vmatprep.subr.bf16.mxu0 0
    %3060 = vmatpush1.bf16.msra.mxu0 %v2740
    %3061 = vmatprep.subr.bf16.mxu0 0
    %3062 = vmatpush1.bf16.msra.mxu0 %v2739
    %3063 = vmatprep.subr.bf16.mxu0 0
    %3064 = vmatpush1.bf16.msra.mxu0 %v2738
    %3065 = vmatprep.subr.bf16.mxu0 0
    %3066 = vmatpush1.bf16.msra.mxu0 %v2737
    %3067 = vmatprep.subr.bf16.mxu0 0
    %3068 = vmatpush1.bf16.msra.mxu0 %v2736
    %3069 = vmatprep.subr.bf16.mxu0 0
    %3070 = vmatpush2.bf16.msra.mxu0 0
    %3071 = vmatprep.subr.bf16.mxu0 0
    %3072 = vmatpush2.bf16.msra.mxu0 0
    %3073 = vmatprep.subr.bf16.mxu0 0
    %3074 = vmatpush2.bf16.msra.mxu0 0
    %3075 = vmatprep.subr.bf16.mxu0 0
    %3076 = vmatpush2.bf16.msra.mxu0 0
    %3077 = vmatprep.subr.bf16.mxu0 0
    %3078 = vmatpush2.bf16.msra.mxu0 0
    %3079 = vmatprep.subr.bf16.mxu0 0
    %3080 = vmatpush2.bf16.msra.mxu0 0
    %3081 = vmatprep.subr.bf16.mxu0 0
    %3082 = vmatpush2.bf16.msra.mxu0 0
    %3083 = vmatprep.subr.bf16.mxu0 0
    %3084 = vmatpush2.bf16.msra.mxu0 0
    %3085 = vmatprep.mubr.bf16.mxu0 0
    %3086 = vmatmul.mubr.bf16.gmra.mxu0 %v3052
    %v3087 = vpop.f32.mrf.mxu0
    %v3088 = vadd.f32 0.0, %v3087
    %v3089 = vpop.f32.mrf.mxu0
    %v3090 = vpop.f32.mrf.mxu0
    %v3091 = vpop.f32.mrf.mxu0
    %3092 = vdwg.mxu0
    %v3093 = vadd.f32 %v2672, %v3088
    %v3094 = vtanh.pop %v3093
    %v3095 = vld [vmem:[#allocation21] sm:$0xf]
    %v3096 = vld [vmem:[#allocation21 + $0x4] sm:$0xf]
    %v3097 = vld [vmem:[#allocation21 + $0x8] sm:$0xf]
    %v3098 = vld [vmem:[#allocation21 + $0xc] sm:$0xf]
    %v3099 = vld [vmem:[#allocation21 + $0x10] sm:$0xf]
    %v3100 = vld [vmem:[#allocation21 + $0x14] sm:$0xf]
    %v3101 = vld [vmem:[#allocation21 + $0x18] sm:$0xf]
    %v3102 = vld [vmem:[#allocation21 + $0x1c] sm:$0xf]
    %v3103 = vld [vmem:[#allocation21 + $0x20] sm:$0xf]
    %v3104 = vld [vmem:[#allocation21 + $0x24] sm:$0xf]
    %v3105 = vld [vmem:[#allocation21 + $0x28] sm:$0xf]
    %v3106 = vld [vmem:[#allocation21 + $0x2c] sm:$0xf]
    %v3107 = vld [vmem:[#allocation21 + $0x30] sm:$0xf]
    %v3108 = vld [vmem:[#allocation21 + $0x34] sm:$0xf]
    %v3109 = vld [vmem:[#allocation21 + $0x38] sm:$0xf]
    %v3110 = vld [vmem:[#allocation21 + $0x3c] sm:$0xf]
    %v3111 = vpack.c.bf16 %v1313, %v1313
    %v3128 = vunpack.c.l.b16 %v3095
    %v3129 = vunpack.c.l.b16 %v3096
    %v3130 = vunpack.c.l.b16 %v3097
    %v3131 = vunpack.c.l.b16 %v3098
    %v3132 = vunpack.c.l.b16 %v3099
    %v3133 = vunpack.c.l.b16 %v3100
    %v3134 = vunpack.c.l.b16 %v3101
    %v3135 = vunpack.c.l.b16 %v3102
    %v3136 = vunpack.c.l.b16 %v3103
    %v3137 = vunpack.c.l.b16 %v3104
    %v3138 = vunpack.c.l.b16 %v3105
    %v3139 = vunpack.c.l.b16 %v3106
    %v3140 = vunpack.c.l.b16 %v3107
    %v3141 = vunpack.c.l.b16 %v3108
    %v3142 = vunpack.c.l.b16 %v3109
    %v3143 = vunpack.c.l.b16 %v3110
    %v3144 = vpack.c.b16 %v3129, %v3128
    %v3145 = vpack.c.b16 %v3131, %v3130
    %v3146 = vpack.c.b16 %v3133, %v3132
    %v3147 = vpack.c.b16 %v3135, %v3134
    %v3148 = vpack.c.b16 %v3137, %v3136
    %v3149 = vpack.c.b16 %v3139, %v3138
    %v3150 = vpack.c.b16 %v3141, %v3140
    %v3151 = vpack.c.b16 %v3143, %v3142
    %3160 = vmatprep.subr.bf16.mxu0 0
    %3161 = vmatpush1.bf16.msra.mxu0 %v3151
    %3162 = vmatprep.subr.bf16.mxu0 0
    %3163 = vmatpush1.bf16.msra.mxu0 %v3150
    %3164 = vmatprep.subr.bf16.mxu0 0
    %3165 = vmatpush1.bf16.msra.mxu0 %v3149
    %3166 = vmatprep.subr.bf16.mxu0 0
    %3167 = vmatpush1.bf16.msra.mxu0 %v3148
    %3168 = vmatprep.subr.bf16.mxu0 0
    %3169 = vmatpush1.bf16.msra.mxu0 %v3147
    %3170 = vmatprep.subr.bf16.mxu0 0
    %3171 = vmatpush1.bf16.msra.mxu0 %v3146
    %3172 = vmatprep.subr.bf16.mxu0 0
    %3173 = vmatpush1.bf16.msra.mxu0 %v3145
    %3174 = vmatprep.subr.bf16.mxu0 0
    %3175 = vmatpush1.bf16.msra.mxu0 %v3144
    %3176 = vmatprep.subr.bf16.mxu0 0
    %3177 = vmatpush2.bf16.msra.mxu0 0
    %3178 = vmatprep.subr.bf16.mxu0 0
    %3179 = vmatpush2.bf16.msra.mxu0 0
    %3180 = vmatprep.subr.bf16.mxu0 0
    %3181 = vmatpush2.bf16.msra.mxu0 0
    %3182 = vmatprep.subr.bf16.mxu0 0
    %3183 = vmatpush2.bf16.msra.mxu0 0
    %3184 = vmatprep.subr.bf16.mxu0 0
    %3185 = vmatpush2.bf16.msra.mxu0 0
    %3186 = vmatprep.subr.bf16.mxu0 0
    %3187 = vmatpush2.bf16.msra.mxu0 0
    %3188 = vmatprep.subr.bf16.mxu0 0
    %3189 = vmatpush2.bf16.msra.mxu0 0
    %3190 = vmatprep.subr.bf16.mxu0 0
    %3191 = vmatpush2.bf16.msra.mxu0 0
    %3192 = vmatprep.mubr.bf16.mxu0 0
    %3193 = vmatmul.mubr.bf16.gmra.mxu0 %v3111
    %v3194 = vpop.f32.mrf.mxu0
    %v3195 = vadd.f32 0.0, %v3194
    %v3196 = vpop.f32.mrf.mxu0
    %v3197 = vpop.f32.mrf.mxu0
    %v3198 = vpop.f32.mrf.mxu0
    %3199 = vdwg.mxu0
    %v3200 = vadd.f32 %v2679, %v3195
    %v3201 = vtanh.pop %v3200
    %v3202 = vpack.c.bf16 %v3201, %v3201
    %3203 = vmatprep.subr.bf16.mxu0 0
    %3204 = vmatpush1.bf16.msra.mxu0 %v3151
    %3205 = vmatprep.subr.bf16.mxu0 0
    %3206 = vmatpush1.bf16.msra.mxu0 %v3150
    %3207 = vmatprep.subr.bf16.mxu0 0
    %3208 = vmatpush1.bf16.msra.mxu0 %v3149
    %3209 = vmatprep.subr.bf16.mxu0 0
    %3210 = vmatpush1.bf16.msra.mxu0 %v3148
    %3211 = vmatprep.subr.bf16.mxu0 0
    %3212 = vmatpush1.bf16.msra.mxu0 %v3147
    %3213 = vmatprep.subr.bf16.mxu0 0
    %3214 = vmatpush1.bf16.msra.mxu0 %v3146
    %3215 = vmatprep.subr.bf16.mxu0 0
    %3216 = vmatpush1.bf16.msra.mxu0 %v3145
    %3217 = vmatprep.subr.bf16.mxu0 0
    %3218 = vmatpush1.bf16.msra.mxu0 %v3144
    %3219 = vmatprep.subr.bf16.mxu0 0
    %3220 = vmatpush2.bf16.msra.mxu0 0
    %3221 = vmatprep.subr.bf16.mxu0 0
    %3222 = vmatpush2.bf16.msra.mxu0 0
    %3223 = vmatprep.subr.bf16.mxu0 0
    %3224 = vmatpush2.bf16.msra.mxu0 0
    %3225 = vmatprep.subr.bf16.mxu0 0
    %3226 = vmatpush2.bf16.msra.mxu0 0
    %3227 = vmatprep.subr.bf16.mxu0 0
    %3228 = vmatpush2.bf16.msra.mxu0 0
    %3229 = vmatprep.subr.bf16.mxu0 0
    %3230 = vmatpush2.bf16.msra.mxu0 0
    %3231 = vmatprep.subr.bf16.mxu0 0
    %3232 = vmatpush2.bf16.msra.mxu0 0
    %3233 = vmatprep.subr.bf16.mxu0 0
    %3234 = vmatpush2.bf16.msra.mxu0 0
    %3235 = vmatprep.mubr.bf16.mxu0 0
    %3236 = vmatmul.mubr.bf16.gmra.mxu0 %v3202
    %v3237 = vpop.f32.mrf.mxu0
    %v3238 = vadd.f32 0.0, %v3237
    %v3239 = vpop.f32.mrf.mxu0
    %v3240 = vpop.f32.mrf.mxu0
    %v3241 = vpop.f32.mrf.mxu0
    %3242 = vdwg.mxu0
    %v3243 = vadd.f32 %v2680, %v3238
    %v3244 = vtanh.pop %v3243
    %v3245 = vpack.c.bf16 %v3244, %v3244
    %3246 = vmatprep.subr.bf16.mxu0 0
    %3247 = vmatpush1.bf16.msra.mxu0 %v3151
    %3248 = vmatprep.subr.bf16.mxu0 0
    %3249 = vmatpush1.bf16.msra.mxu0 %v3150
    %3250 = vmatprep.subr.bf16.mxu0 0
    %3251 = vmatpush1.bf16.msra.mxu0 %v3149
    %3252 = vmatprep.subr.bf16.mxu0 0
    %3253 = vmatpush1.bf16.msra.mxu0 %v3148
    %3254 = vmatprep.subr.bf16.mxu0 0
    %3255 = vmatpush1.bf16.msra.mxu0 %v3147
    %3256 = vmatprep.subr.bf16.mxu0 0
    %3257 = vmatpush1.bf16.msra.mxu0 %v3146
    %3258 = vmatprep.subr.bf16.mxu0 0
    %3259 = vmatpush1.bf16.msra.mxu0 %v3145
    %3260 = vmatprep.subr.bf16.mxu0 0
    %3261 = vmatpush1.bf16.msra.mxu0 %v3144
    %3262 = vmatprep.subr.bf16.mxu0 0
    %3263 = vmatpush2.bf16.msra.mxu0 0
    %3264 = vmatprep.subr.bf16.mxu0 0
    %3265 = vmatpush2.bf16.msra.mxu0 0
    %3266 = vmatprep.subr.bf16.mxu0 0
    %3267 = vmatpush2.bf16.msra.mxu0 0
    %3268 = vmatprep.subr.bf16.mxu0 0
    %3269 = vmatpush2.bf16.msra.mxu0 0
    %3270 = vmatprep.subr.bf16.mxu0 0
    %3271 = vmatpush2.bf16.msra.mxu0 0
    %3272 = vmatprep.subr.bf16.mxu0 0
    %3273 = vmatpush2.bf16.msra.mxu0 0
    %3274 = vmatprep.subr.bf16.mxu0 0
    %3275 = vmatpush2.bf16.msra.mxu0 0
    %3276 = vmatprep.subr.bf16.mxu0 0
    %3277 = vmatpush2.bf16.msra.mxu0 0
    %3278 = vmatprep.mubr.bf16.mxu0 0
    %3279 = vmatmul.mubr.bf16.gmra.mxu0 %v3245
    %v3280 = vpop.f32.mrf.mxu0
    %v3281 = vadd.f32 0.0, %v3280
    %v3282 = vpop.f32.mrf.mxu0
    %v3283 = vpop.f32.mrf.mxu0
    %v3284 = vpop.f32.mrf.mxu0
    %3285 = vdwg.mxu0
    %v3286 = vadd.f32 %v2681, %v3281
    %v3287 = vtanh.pop %v3286
    %v3288 = vpack.c.bf16 %v3287, %v3287
    %3289 = vmatprep.subr.bf16.mxu0 0
    %3290 = vmatpush1.bf16.msra.mxu0 %v3151
    %3291 = vmatprep.subr.bf16.mxu0 0
    %3292 = vmatpush1.bf16.msra.mxu0 %v3150
    %3293 = vmatprep.subr.bf16.mxu0 0
    %3294 = vmatpush1.bf16.msra.mxu0 %v3149
    %3295 = vmatprep.subr.bf16.mxu0 0
    %3296 = vmatpush1.bf16.msra.mxu0 %v3148
    %3297 = vmatprep.subr.bf16.mxu0 0
    %3298 = vmatpush1.bf16.msra.mxu0 %v3147
    %3299 = vmatprep.subr.bf16.mxu0 0
    %3300 = vmatpush1.bf16.msra.mxu0 %v3146
    %3301 = vmatprep.subr.bf16.mxu0 0
    %3302 = vmatpush1.bf16.msra.mxu0 %v3145
    %3303 = vmatprep.subr.bf16.mxu0 0
    %3304 = vmatpush1.bf16.msra.mxu0 %v3144
    %3305 = vmatprep.subr.bf16.mxu0 0
    %3306 = vmatpush2.bf16.msra.mxu0 0
    %3307 = vmatprep.subr.bf16.mxu0 0
    %3308 = vmatpush2.bf16.msra.mxu0 0
    %3309 = vmatprep.subr.bf16.mxu0 0
    %3310 = vmatpush2.bf16.msra.mxu0 0
    %3311 = vmatprep.subr.bf16.mxu0 0
    %3312 = vmatpush2.bf16.msra.mxu0 0
    %3313 = vmatprep.subr.bf16.mxu0 0
    %3314 = vmatpush2.bf16.msra.mxu0 0
    %3315 = vmatprep.subr.bf16.mxu0 0
    %3316 = vmatpush2.bf16.msra.mxu0 0
    %3317 = vmatprep.subr.bf16.mxu0 0
    %3318 = vmatpush2.bf16.msra.mxu0 0
    %3319 = vmatprep.subr.bf16.mxu0 0
    %3320 = vmatpush2.bf16.msra.mxu0 0
    %3321 = vmatprep.mubr.bf16.mxu0 0
    %3322 = vmatmul.mubr.bf16.gmra.mxu0 %v3288
    %v3323 = vpop.f32.mrf.mxu0
    %v3324 = vadd.f32 0.0, %v3323
    %v3325 = vpop.f32.mrf.mxu0
    %v3326 = vpop.f32.mrf.mxu0
    %v3327 = vpop.f32.mrf.mxu0
    %3328 = vdwg.mxu0
    %v3329 = vadd.f32 %v2682, %v3324
    %v3330 = vtanh.pop %v3329
    %v3331 = vpack.c.bf16 %v3330, %v3330
    %3332 = vmatprep.subr.bf16.mxu0 0
    %3333 = vmatpush1.bf16.msra.mxu0 %v3151
    %3334 = vmatprep.subr.bf16.mxu0 0
    %3335 = vmatpush1.bf16.msra.mxu0 %v3150
    %3336 = vmatprep.subr.bf16.mxu0 0
    %3337 = vmatpush1.bf16.msra.mxu0 %v3149
    %3338 = vmatprep.subr.bf16.mxu0 0
    %3339 = vmatpush1.bf16.msra.mxu0 %v3148
    %3340 = vmatprep.subr.bf16.mxu0 0
    %3341 = vmatpush1.bf16.msra.mxu0 %v3147
    %3342 = vmatprep.subr.bf16.mxu0 0
    %3343 = vmatpush1.bf16.msra.mxu0 %v3146
    %3344 = vmatprep.subr.bf16.mxu0 0
    %3345 = vmatpush1.bf16.msra.mxu0 %v3145
    %3346 = vmatprep.subr.bf16.mxu0 0
    %3347 = vmatpush1.bf16.msra.mxu0 %v3144
    %3348 = vmatprep.subr.bf16.mxu0 0
    %3349 = vmatpush2.bf16.msra.mxu0 0
    %3350 = vmatprep.subr.bf16.mxu0 0
    %3351 = vmatpush2.bf16.msra.mxu0 0
    %3352 = vmatprep.subr.bf16.mxu0 0
    %3353 = vmatpush2.bf16.msra.mxu0 0
    %3354 = vmatprep.subr.bf16.mxu0 0
    %3355 = vmatpush2.bf16.msra.mxu0 0
    %3356 = vmatprep.subr.bf16.mxu0 0
    %3357 = vmatpush2.bf16.msra.mxu0 0
    %3358 = vmatprep.subr.bf16.mxu0 0
    %3359 = vmatpush2.bf16.msra.mxu0 0
    %3360 = vmatprep.subr.bf16.mxu0 0
    %3361 = vmatpush2.bf16.msra.mxu0 0
    %3362 = vmatprep.subr.bf16.mxu0 0
    %3363 = vmatpush2.bf16.msra.mxu0 0
    %3364 = vmatprep.mubr.bf16.mxu0 0
    %3365 = vmatmul.mubr.bf16.gmra.mxu0 %v3331
    %v3366 = vpop.f32.mrf.mxu0
    %v3367 = vadd.f32 0.0, %v3366
    %v3368 = vpop.f32.mrf.mxu0
    %v3369 = vpop.f32.mrf.mxu0
    %v3370 = vpop.f32.mrf.mxu0
    %3371 = vdwg.mxu0
    %v3372 = vadd.f32 %v2683, %v3367
    %v3373 = vtanh.pop %v3372
    %v3374 = vpack.c.bf16 %v3373, %v3373
    %3375 = vmatprep.subr.bf16.mxu0 0
    %3376 = vmatpush1.bf16.msra.mxu0 %v3151
    %3377 = vmatprep.subr.bf16.mxu0 0
    %3378 = vmatpush1.bf16.msra.mxu0 %v3150
    %3379 = vmatprep.subr.bf16.mxu0 0
    %3380 = vmatpush1.bf16.msra.mxu0 %v3149
    %3381 = vmatprep.subr.bf16.mxu0 0
    %3382 = vmatpush1.bf16.msra.mxu0 %v3148
    %3383 = vmatprep.subr.bf16.mxu0 0
    %3384 = vmatpush1.bf16.msra.mxu0 %v3147
    %3385 = vmatprep.subr.bf16.mxu0 0
    %3386 = vmatpush1.bf16.msra.mxu0 %v3146
    %3387 = vmatprep.subr.bf16.mxu0 0
    %3388 = vmatpush1.bf16.msra.mxu0 %v3145
    %3389 = vmatprep.subr.bf16.mxu0 0
    %3390 = vmatpush1.bf16.msra.mxu0 %v3144
    %3391 = vmatprep.subr.bf16.mxu0 0
    %3392 = vmatpush2.bf16.msra.mxu0 0
    %3393 = vmatprep.subr.bf16.mxu0 0
    %3394 = vmatpush2.bf16.msra.mxu0 0
    %3395 = vmatprep.subr.bf16.mxu0 0
    %3396 = vmatpush2.bf16.msra.mxu0 0
    %3397 = vmatprep.subr.bf16.mxu0 0
    %3398 = vmatpush2.bf16.msra.mxu0 0
    %3399 = vmatprep.subr.bf16.mxu0 0
    %3400 = vmatpush2.bf16.msra.mxu0 0
    %3401 = vmatprep.subr.bf16.mxu0 0
    %3402 = vmatpush2.bf16.msra.mxu0 0
    %3403 = vmatprep.subr.bf16.mxu0 0
    %3404 = vmatpush2.bf16.msra.mxu0 0
    %3405 = vmatprep.subr.bf16.mxu0 0
    %3406 = vmatpush2.bf16.msra.mxu0 0
    %3407 = vmatprep.mubr.bf16.mxu0 0
    %3408 = vmatmul.mubr.bf16.gmra.mxu0 %v3374
    %v3409 = vpop.f32.mrf.mxu0
    %v3410 = vadd.f32 0.0, %v3409
    %v3411 = vpop.f32.mrf.mxu0
    %v3412 = vpop.f32.mrf.mxu0
    %v3413 = vpop.f32.mrf.mxu0
    %3414 = vdwg.mxu0
    %v3415 = vadd.f32 %v2684, %v3410
    %v3416 = vtanh.pop %v3415
    %v3417 = vpack.c.bf16 %v3416, %v3416
    %3418 = vmatprep.subr.bf16.mxu0 0
    %3419 = vmatpush1.bf16.msra.mxu0 %v3151
    %3420 = vmatprep.subr.bf16.mxu0 0
    %3421 = vmatpush1.bf16.msra.mxu0 %v3150
    %3422 = vmatprep.subr.bf16.mxu0 0
    %3423 = vmatpush1.bf16.msra.mxu0 %v3149
    %3424 = vmatprep.subr.bf16.mxu0 0
    %3425 = vmatpush1.bf16.msra.mxu0 %v3148
    %3426 = vmatprep.subr.bf16.mxu0 0
    %3427 = vmatpush1.bf16.msra.mxu0 %v3147
    %3428 = vmatprep.subr.bf16.mxu0 0
    %3429 = vmatpush1.bf16.msra.mxu0 %v3146
    %3430 = vmatprep.subr.bf16.mxu0 0
    %3431 = vmatpush1.bf16.msra.mxu0 %v3145
    %3432 = vmatprep.subr.bf16.mxu0 0
    %3433 = vmatpush1.bf16.msra.mxu0 %v3144
    %3434 = vmatprep.subr.bf16.mxu0 0
    %3435 = vmatpush2.bf16.msra.mxu0 0
    %3436 = vmatprep.subr.bf16.mxu0 0
    %3437 = vmatpush2.bf16.msra.mxu0 0
    %3438 = vmatprep.subr.bf16.mxu0 0
    %3439 = vmatpush2.bf16.msra.mxu0 0
    %3440 = vmatprep.subr.bf16.mxu0 0
    %3441 = vmatpush2.bf16.msra.mxu0 0
    %3442 = vmatprep.subr.bf16.mxu0 0
    %3443 = vmatpush2.bf16.msra.mxu0 0
    %3444 = vmatprep.subr.bf16.mxu0 0
    %3445 = vmatpush2.bf16.msra.mxu0 0
    %3446 = vmatprep.subr.bf16.mxu0 0
    %3447 = vmatpush2.bf16.msra.mxu0 0
    %3448 = vmatprep.subr.bf16.mxu0 0
    %3449 = vmatpush2.bf16.msra.mxu0 0
    %3450 = vmatprep.mubr.bf16.mxu0 0
    %3451 = vmatmul.mubr.bf16.gmra.mxu0 %v3417
    %v3452 = vpop.f32.mrf.mxu0
    %v3453 = vadd.f32 0.0, %v3452
    %v3454 = vpop.f32.mrf.mxu0
    %v3455 = vpop.f32.mrf.mxu0
    %v3456 = vpop.f32.mrf.mxu0
    %3457 = vdwg.mxu0
    %v3458 = vadd.f32 %v2685, %v3453
    %v3459 = vtanh.pop %v3458
    %v3460 = vpack.c.bf16 %v3459, %v3459
    %3461 = vmatprep.subr.bf16.mxu0 0
    %3462 = vmatpush1.bf16.msra.mxu0 %v3151
    %3463 = vmatprep.subr.bf16.mxu0 0
    %3464 = vmatpush1.bf16.msra.mxu0 %v3150
    %3465 = vmatprep.subr.bf16.mxu0 0
    %3466 = vmatpush1.bf16.msra.mxu0 %v3149
    %3467 = vmatprep.subr.bf16.mxu0 0
    %3468 = vmatpush1.bf16.msra.mxu0 %v3148
    %3469 = vmatprep.subr.bf16.mxu0 0
    %3470 = vmatpush1.bf16.msra.mxu0 %v3147
    %3471 = vmatprep.subr.bf16.mxu0 0
    %3472 = vmatpush1.bf16.msra.mxu0 %v3146
    %3473 = vmatprep.subr.bf16.mxu0 0
    %3474 = vmatpush1.bf16.msra.mxu0 %v3145
    %3475 = vmatprep.subr.bf16.mxu0 0
    %3476 = vmatpush1.bf16.msra.mxu0 %v3144
    %3477 = vmatprep.subr.bf16.mxu0 0
    %3478 = vmatpush2.bf16.msra.mxu0 0
    %3479 = vmatprep.subr.bf16.mxu0 0
    %3480 = vmatpush2.bf16.msra.mxu0 0
    %3481 = vmatprep.subr.bf16.mxu0 0
    %3482 = vmatpush2.bf16.msra.mxu0 0
    %3483 = vmatprep.subr.bf16.mxu0 0
    %3484 = vmatpush2.bf16.msra.mxu0 0
    %3485 = vmatprep.subr.bf16.mxu0 0
    %3486 = vmatpush2.bf16.msra.mxu0 0
    %3487 = vmatprep.subr.bf16.mxu0 0
    %3488 = vmatpush2.bf16.msra.mxu0 0
    %3489 = vmatprep.subr.bf16.mxu0 0
    %3490 = vmatpush2.bf16.msra.mxu0 0
    %3491 = vmatprep.subr.bf16.mxu0 0
    %3492 = vmatpush2.bf16.msra.mxu0 0
    %3493 = vmatprep.mubr.bf16.mxu0 0
    %3494 = vmatmul.mubr.bf16.gmra.mxu0 %v3460
    %v3495 = vpop.f32.mrf.mxu0
    %v3496 = vadd.f32 0.0, %v3495
    %v3497 = vpop.f32.mrf.mxu0
    %v3498 = vpop.f32.mrf.mxu0
    %v3499 = vpop.f32.mrf.mxu0
    %3500 = vdwg.mxu0
    %v3501 = vadd.f32 %v2686, %v3496
    %v3502 = vtanh.pop %v3501
    %v3503 = vpack.c.bf16 %v2836, %v2793
    %v3504 = vpack.c.bf16 %v2922, %v2879
    %v3505 = vpack.c.bf16 %v3008, %v2965
    %v3506 = vpack.c.bf16 %v3094, %v3051
    %v3507 = vpack.c.bf16 %v3244, %v3201
    %v3508 = vpack.c.bf16 %v3330, %v3287
    %v3509 = vpack.c.bf16 %v3416, %v3373
    %v3510 = vpack.c.bf16 %v3502, %v3459
    %v3511 = vld [vmem:[%s17] sm:$0xff]
    %v3512 = vld [vmem:[%s17 + $0x8] sm:$0xff]
    %v3513 = vld [vmem:[%s17 + $0x10] sm:$0xff]
    %v3514 = vld [vmem:[%s17 + $0x18] sm:$0xff]
    %v3515 = vld [vmem:[%s17 + $0x20] sm:$0xff]
    %v3516 = vld [vmem:[%s17 + $0x28] sm:$0xff]
    %v3517 = vld [vmem:[%s17 + $0x30] sm:$0xff]
    %v3518 = vld [vmem:[%s17 + $0x38] sm:$0xff]
    %v3519 = vld [vmem:[%s17 + $0x40] sm:$0xff]
    %v3520 = vld [vmem:[%s17 + $0x48] sm:$0xff]
    %v3521 = vld [vmem:[%s17 + $0x50] sm:$0xff]
    %v3522 = vld [vmem:[%s17 + $0x58] sm:$0xff]
    %v3523 = vld [vmem:[%s17 + $0x60] sm:$0xff]
    %v3524 = vld [vmem:[%s17 + $0x68] sm:$0xff]
    %v3525 = vld [vmem:[%s17 + $0x70] sm:$0xff]
    %v3526 = vld [vmem:[%s17 + $0x78] sm:$0xff]
    %v3543 = vunpack.c.l.b16 %v3511
    %v3544 = vunpack.c.h.b16 %v3511
    %v3545 = vunpack.c.l.b16 %v3512
    %v3546 = vunpack.c.h.b16 %v3512
    %v3547 = vunpack.c.l.b16 %v3513
    %v3548 = vunpack.c.h.b16 %v3513
    %v3549 = vunpack.c.l.b16 %v3514
    %v3550 = vunpack.c.h.b16 %v3514
    %v3551 = vunpack.c.l.b16 %v3515
    %v3552 = vunpack.c.h.b16 %v3515
    %v3553 = vunpack.c.l.b16 %v3516
    %v3554 = vunpack.c.h.b16 %v3516
    %v3555 = vunpack.c.l.b16 %v3517
    %v3556 = vunpack.c.h.b16 %v3517
    %v3557 = vunpack.c.l.b16 %v3518
    %v3558 = vunpack.c.h.b16 %v3518
    %v3559 = vunpack.c.l.b16 %v3519
    %v3560 = vunpack.c.h.b16 %v3519
    %v3561 = vunpack.c.l.b16 %v3520
    %v3562 = vunpack.c.h.b16 %v3520
    %v3563 = vunpack.c.l.b16 %v3521
    %v3564 = vunpack.c.h.b16 %v3521
    %v3565 = vunpack.c.l.b16 %v3522
    %v3566 = vunpack.c.h.b16 %v3522
    %v3567 = vunpack.c.l.b16 %v3523
    %v3568 = vunpack.c.h.b16 %v3523
    %v3569 = vunpack.c.l.b16 %v3524
    %v3570 = vunpack.c.h.b16 %v3524
    %v3571 = vunpack.c.l.b16 %v3525
    %v3572 = vunpack.c.h.b16 %v3525
    %v3573 = vunpack.c.l.b16 %v3526
    %v3574 = vunpack.c.h.b16 %v3526
    %v3575 = vpack.c.b16 %v3545, %v3543
    %v3576 = vpack.c.b16 %v3546, %v3544
    %v3577 = vpack.c.b16 %v3549, %v3547
    %v3578 = vpack.c.b16 %v3550, %v3548
    %v3579 = vpack.c.b16 %v3553, %v3551
    %v3580 = vpack.c.b16 %v3554, %v3552
    %v3581 = vpack.c.b16 %v3557, %v3555
    %v3582 = vpack.c.b16 %v3558, %v3556
    %v3583 = vpack.c.b16 %v3561, %v3559
    %v3584 = vpack.c.b16 %v3562, %v3560
    %v3585 = vpack.c.b16 %v3565, %v3563
    %v3586 = vpack.c.b16 %v3566, %v3564
    %v3587 = vpack.c.b16 %v3569, %v3567
    %v3588 = vpack.c.b16 %v3570, %v3568
    %v3589 = vpack.c.b16 %v3573, %v3571
    %v3590 = vpack.c.b16 %v3574, %v3572
    %3607 = vmatprep.subr.bf16.mxu0 %v3590
    %3608 = vmatpush1.bf16.msra.mxu0 %v3589
    %3609 = vmatprep.subr.bf16.mxu0 %v3588
    %3610 = vmatpush1.bf16.msra.mxu0 %v3587
    %3611 = vmatprep.subr.bf16.mxu0 %v3586
    %3612 = vmatpush1.bf16.msra.mxu0 %v3585
    %3613 = vmatprep.subr.bf16.mxu0 %v3584
    %3614 = vmatpush1.bf16.msra.mxu0 %v3583
    %3615 = vmatprep.subr.bf16.mxu0 %v3582
    %3616 = vmatpush1.bf16.msra.mxu0 %v3581
    %3617 = vmatprep.subr.bf16.mxu0 %v3580
    %3618 = vmatpush1.bf16.msra.mxu0 %v3579
    %3619 = vmatprep.subr.bf16.mxu0 %v3578
    %3620 = vmatpush1.bf16.msra.mxu0 %v3577
    %3621 = vmatprep.subr.bf16.mxu0 %v3576
    %3622 = vmatpush1.bf16.msra.mxu0 %v3575
    %3623 = vmatprep.subr.bf16.mxu0 0
    %3624 = vmatpush2.bf16.msra.mxu0 0
    %3625 = vmatprep.subr.bf16.mxu0 0
    %3626 = vmatpush2.bf16.msra.mxu0 0
    %3627 = vmatprep.subr.bf16.mxu0 0
    %3628 = vmatpush2.bf16.msra.mxu0 0
    %3629 = vmatprep.subr.bf16.mxu0 0
    %3630 = vmatpush2.bf16.msra.mxu0 0
    %3631 = vmatprep.subr.bf16.mxu0 0
    %3632 = vmatpush2.bf16.msra.mxu0 0
    %3633 = vmatprep.subr.bf16.mxu0 0
    %3634 = vmatpush2.bf16.msra.mxu0 0
    %3635 = vmatprep.subr.bf16.mxu0 0
    %3636 = vmatpush2.bf16.msra.mxu0 0
    %3637 = vmatprep.subr.bf16.mxu0 0
    %3638 = vmatpush2.bf16.msra.mxu0 0
    %3639 = vmatprep.mubr.bf16.mxu0 0
    %3640 = vmatmul.mubr.bf16.gmra.mxu0 %v3503
    %v3641 = vpop.f32.mrf.mxu0
    %v3642 = vadd.f32 0.0, %v3641
    %v3643 = vpop.f32.mrf.mxu0
    %v3644 = vadd.f32 0.0, %v3643
    %v3645 = vpop.f32.mrf.mxu0
    %v3646 = vadd.f32 0.0, %v3645
    %v3647 = vpop.f32.mrf.mxu0
    %v3648 = vadd.f32 0.0, %v3647
    %3649 = vmatprep.mubr.bf16.mxu0 0
    %3650 = vmatmul.mubr.bf16.gmra.mxu0 %v3504
    %v3651 = vpop.f32.mrf.mxu0
    %v3652 = vadd.f32 0.0, %v3651
    %v3653 = vpop.f32.mrf.mxu0
    %v3654 = vadd.f32 0.0, %v3653
    %v3655 = vpop.f32.mrf.mxu0
    %v3656 = vadd.f32 0.0, %v3655
    %v3657 = vpop.f32.mrf.mxu0
    %v3658 = vadd.f32 0.0, %v3657
    %3659 = vmatprep.mubr.bf16.mxu0 0
    %3660 = vmatmul.mubr.bf16.gmra.mxu0 %v3505
    %v3661 = vpop.f32.mrf.mxu0
    %v3662 = vadd.f32 0.0, %v3661
    %v3663 = vpop.f32.mrf.mxu0
    %v3664 = vadd.f32 0.0, %v3663
    %v3665 = vpop.f32.mrf.mxu0
    %v3666 = vadd.f32 0.0, %v3665
    %v3667 = vpop.f32.mrf.mxu0
    %v3668 = vadd.f32 0.0, %v3667
    %3669 = vmatprep.mubr.bf16.mxu0 0
    %3670 = vmatmul.mubr.bf16.gmra.mxu0 %v3506
    %v3671 = vpop.f32.mrf.mxu0
    %v3672 = vadd.f32 0.0, %v3671
    %v3673 = vpop.f32.mrf.mxu0
    %v3674 = vadd.f32 0.0, %v3673
    %v3675 = vpop.f32.mrf.mxu0
    %v3676 = vadd.f32 0.0, %v3675
    %v3677 = vpop.f32.mrf.mxu0
    %v3678 = vadd.f32 0.0, %v3677
    %3679 = vdwg.mxu0
    %v3680 = vld [vmem:[%s17 + $0x80] sm:$0xff]
    %v3681 = vld [vmem:[%s17 + $0x88] sm:$0xff]
    %v3682 = vld [vmem:[%s17 + $0x90] sm:$0xff]
    %v3683 = vld [vmem:[%s17 + $0x98] sm:$0xff]
    %v3684 = vld [vmem:[%s17 + $0xa0] sm:$0xff]
    %v3685 = vld [vmem:[%s17 + $0xa8] sm:$0xff]
    %v3686 = vld [vmem:[%s17 + $0xb0] sm:$0xff]
    %v3687 = vld [vmem:[%s17 + $0xb8] sm:$0xff]
    %v3688 = vld [vmem:[%s17 + $0xc0] sm:$0xff]
    %v3689 = vld [vmem:[%s17 + $0xc8] sm:$0xff]
    %v3690 = vld [vmem:[%s17 + $0xd0] sm:$0xff]
    %v3691 = vld [vmem:[%s17 + $0xd8] sm:$0xff]
    %v3692 = vld [vmem:[%s17 + $0xe0] sm:$0xff]
    %v3693 = vld [vmem:[%s17 + $0xe8] sm:$0xff]
    %v3694 = vld [vmem:[%s17 + $0xf0] sm:$0xff]
    %v3695 = vld [vmem:[%s17 + $0xf8] sm:$0xff]
    %v3712 = vunpack.c.l.b16 %v3680
    %v3713 = vunpack.c.h.b16 %v3680
    %v3714 = vunpack.c.l.b16 %v3681
    %v3715 = vunpack.c.h.b16 %v3681
    %v3716 = vunpack.c.l.b16 %v3682
    %v3717 = vunpack.c.h.b16 %v3682
    %v3718 = vunpack.c.l.b16 %v3683
    %v3719 = vunpack.c.h.b16 %v3683
    %v3720 = vunpack.c.l.b16 %v3684
    %v3721 = vunpack.c.h.b16 %v3684
    %v3722 = vunpack.c.l.b16 %v3685
    %v3723 = vunpack.c.h.b16 %v3685
    %v3724 = vunpack.c.l.b16 %v3686
    %v3725 = vunpack.c.h.b16 %v3686
    %v3726 = vunpack.c.l.b16 %v3687
    %v3727 = vunpack.c.h.b16 %v3687
    %v3728 = vunpack.c.l.b16 %v3688
    %v3729 = vunpack.c.h.b16 %v3688
    %v3730 = vunpack.c.l.b16 %v3689
    %v3731 = vunpack.c.h.b16 %v3689
    %v3732 = vunpack.c.l.b16 %v3690
    %v3733 = vunpack.c.h.b16 %v3690
    %v3734 = vunpack.c.l.b16 %v3691
    %v3735 = vunpack.c.h.b16 %v3691
    %v3736 = vunpack.c.l.b16 %v3692
    %v3737 = vunpack.c.h.b16 %v3692
    %v3738 = vunpack.c.l.b16 %v3693
    %v3739 = vunpack.c.h.b16 %v3693
    %v3740 = vunpack.c.l.b16 %v3694
    %v3741 = vunpack.c.h.b16 %v3694
    %v3742 = vunpack.c.l.b16 %v3695
    %v3743 = vunpack.c.h.b16 %v3695
    %v3744 = vpack.c.b16 %v3714, %v3712
    %v3745 = vpack.c.b16 %v3715, %v3713
    %v3746 = vpack.c.b16 %v3718, %v3716
    %v3747 = vpack.c.b16 %v3719, %v3717
    %v3748 = vpack.c.b16 %v3722, %v3720
    %v3749 = vpack.c.b16 %v3723, %v3721
    %v3750 = vpack.c.b16 %v3726, %v3724
    %v3751 = vpack.c.b16 %v3727, %v3725
    %v3752 = vpack.c.b16 %v3730, %v3728
    %v3753 = vpack.c.b16 %v3731, %v3729
    %v3754 = vpack.c.b16 %v3734, %v3732
    %v3755 = vpack.c.b16 %v3735, %v3733
    %v3756 = vpack.c.b16 %v3738, %v3736
    %v3757 = vpack.c.b16 %v3739, %v3737
    %v3758 = vpack.c.b16 %v3742, %v3740
    %v3759 = vpack.c.b16 %v3743, %v3741
    %3776 = vmatprep.subr.bf16.mxu0 %v3759
    %3777 = vmatpush1.bf16.msra.mxu0 %v3758
    %3778 = vmatprep.subr.bf16.mxu0 %v3757
    %3779 = vmatpush1.bf16.msra.mxu0 %v3756
    %3780 = vmatprep.subr.bf16.mxu0 %v3755
    %3781 = vmatpush1.bf16.msra.mxu0 %v3754
    %3782 = vmatprep.subr.bf16.mxu0 %v3753
    %3783 = vmatpush1.bf16.msra.mxu0 %v3752
    %3784 = vmatprep.subr.bf16.mxu0 %v3751
    %3785 = vmatpush1.bf16.msra.mxu0 %v3750
    %3786 = vmatprep.subr.bf16.mxu0 %v3749
    %3787 = vmatpush1.bf16.msra.mxu0 %v3748
    %3788 = vmatprep.subr.bf16.mxu0 %v3747
    %3789 = vmatpush1.bf16.msra.mxu0 %v3746
    %3790 = vmatprep.subr.bf16.mxu0 %v3745
    %3791 = vmatpush1.bf16.msra.mxu0 %v3744
    %3792 = vmatprep.subr.bf16.mxu0 0
    %3793 = vmatpush2.bf16.msra.mxu0 0
    %3794 = vmatprep.subr.bf16.mxu0 0
    %3795 = vmatpush2.bf16.msra.mxu0 0
    %3796 = vmatprep.subr.bf16.mxu0 0
    %3797 = vmatpush2.bf16.msra.mxu0 0
    %3798 = vmatprep.subr.bf16.mxu0 0
    %3799 = vmatpush2.bf16.msra.mxu0 0
    %3800 = vmatprep.subr.bf16.mxu0 0
    %3801 = vmatpush2.bf16.msra.mxu0 0
    %3802 = vmatprep.subr.bf16.mxu0 0
    %3803 = vmatpush2.bf16.msra.mxu0 0
    %3804 = vmatprep.subr.bf16.mxu0 0
    %3805 = vmatpush2.bf16.msra.mxu0 0
    %3806 = vmatprep.subr.bf16.mxu0 0
    %3807 = vmatpush2.bf16.msra.mxu0 0
    %3808 = vmatprep.mubr.bf16.mxu0 0
    %3809 = vmatmul.mubr.bf16.gmra.mxu0 %v3507
    %v3810 = vpop.f32.mrf.mxu0
    %v3811 = vadd.f32 0.0, %v3810
    %v3812 = vpop.f32.mrf.mxu0
    %v3813 = vadd.f32 0.0, %v3812
    %v3814 = vpop.f32.mrf.mxu0
    %v3815 = vadd.f32 0.0, %v3814
    %v3816 = vpop.f32.mrf.mxu0
    %v3817 = vadd.f32 0.0, %v3816
    %3818 = vmatprep.mubr.bf16.mxu0 0
    %3819 = vmatmul.mubr.bf16.gmra.mxu0 %v3508
    %v3820 = vpop.f32.mrf.mxu0
    %v3821 = vadd.f32 0.0, %v3820
    %v3822 = vpop.f32.mrf.mxu0
    %v3823 = vadd.f32 0.0, %v3822
    %v3824 = vpop.f32.mrf.mxu0
    %v3825 = vadd.f32 0.0, %v3824
    %v3826 = vpop.f32.mrf.mxu0
    %v3827 = vadd.f32 0.0, %v3826
    %3828 = vmatprep.mubr.bf16.mxu0 0
    %3829 = vmatmul.mubr.bf16.gmra.mxu0 %v3509
    %v3830 = vpop.f32.mrf.mxu0
    %v3831 = vadd.f32 0.0, %v3830
    %v3832 = vpop.f32.mrf.mxu0
    %v3833 = vadd.f32 0.0, %v3832
    %v3834 = vpop.f32.mrf.mxu0
    %v3835 = vadd.f32 0.0, %v3834
    %v3836 = vpop.f32.mrf.mxu0
    %v3837 = vadd.f32 0.0, %v3836
    %3838 = vmatprep.mubr.bf16.mxu0 0
    %3839 = vmatmul.mubr.bf16.gmra.mxu0 %v3510
    %v3840 = vpop.f32.mrf.mxu0
    %v3841 = vadd.f32 0.0, %v3840
    %v3842 = vpop.f32.mrf.mxu0
    %v3843 = vadd.f32 0.0, %v3842
    %v3844 = vpop.f32.mrf.mxu0
    %v3845 = vadd.f32 0.0, %v3844
    %v3846 = vpop.f32.mrf.mxu0
    %v3847 = vadd.f32 0.0, %v3846
    %3848 = vdwg.mxu0
    %v3849 = vld [vmem:[%s20] sm:$0x1]
    %v3850 = vld [vmem:[%s21] sm:$0x1]
    %v3851 = vadd.f32 %v3642, %v3845
    %v3853 = vlaneseq
    %v3854 = vshrl.u32 %v3853, 7
    %v3855 = vsub.s32 0, %v3854
    %v3856 = vrot.slane %v3849, %v3855
    %v3858 = vadd.f32 %v3851, %v3856
    %v3859 = vadd.f32 %v3646, %v3841
    %v3860 = vadd.f32 %v3859, %v3856
    %v3861 = vadd.f32 %v3652, %v3835
    %v3862 = vadd.f32 %v3861, %v3856
    %v3863 = vadd.f32 %v3656, %v3831
    %v3864 = vadd.f32 %v3863, %v3856
    %v3865 = vadd.f32 %v3662, %v3825
    %v3866 = vadd.f32 %v3865, %v3856
    %v3867 = vadd.f32 %v3666, %v3821
    %v3868 = vadd.f32 %v3867, %v3856
    %v3869 = vadd.f32 %v3672, %v3815
    %v3870 = vadd.f32 %v3869, %v3856
    %v3871 = vadd.f32 %v3676, %v3811
    %v3872 = vadd.f32 %v3871, %v3856
    %v3873 = vadd.f32 %v3678, %v3813
    %v3875 = vlaneseq
    %v3876 = vshrl.u32 %v3875, 7
    %v3877 = vsub.s32 0, %v3876
    %v3878 = vrot.slane %v3850, %v3877
    %v3880 = vadd.f32 %v3873, %v3878
    %v3881 = vadd.f32 %v3674, %v3817
    %v3882 = vadd.f32 %v3881, %v3878
    %v3883 = vadd.f32 %v3668, %v3823
    %v3884 = vadd.f32 %v3883, %v3878
    %v3885 = vadd.f32 %v3664, %v3827
    %v3886 = vadd.f32 %v3885, %v3878
    %v3887 = vadd.f32 %v3658, %v3833
    %v3888 = vadd.f32 %v3887, %v3878
    %v3889 = vadd.f32 %v3654, %v3837
    %v3890 = vadd.f32 %v3889, %v3878
    %v3891 = vadd.f32 %v3648, %v3843
    %v3892 = vadd.f32 %v3891, %v3878
    %v3893 = vadd.f32 %v3644, %v3847
    %v3894 = vadd.f32 %v3893, %v3878
    %v3895 = vld [vmem:[#allocation25] sm:$0xf]
    %v3896 = vld [vmem:[#allocation25 + $0x4] sm:$0xf]
    %v3897 = vld [vmem:[#allocation25 + $0x8] sm:$0xf]
    %v3898 = vld [vmem:[#allocation25 + $0xc] sm:$0xf]
    %v3899 = vld [vmem:[#allocation25 + $0x10] sm:$0xf]
    %v3900 = vld [vmem:[#allocation25 + $0x14] sm:$0xf]
    %v3901 = vld [vmem:[#allocation25 + $0x18] sm:$0xf]
    %v3902 = vld [vmem:[#allocation25 + $0x1c] sm:$0xf]
    %v3903 = vld [vmem:[#allocation25 + $0x20] sm:$0xf]
    %v3904 = vld [vmem:[#allocation25 + $0x24] sm:$0xf]
    %v3905 = vld [vmem:[#allocation25 + $0x28] sm:$0xf]
    %v3906 = vld [vmem:[#allocation25 + $0x2c] sm:$0xf]
    %v3907 = vld [vmem:[#allocation25 + $0x30] sm:$0xf]
    %v3908 = vld [vmem:[#allocation25 + $0x34] sm:$0xf]
    %v3909 = vld [vmem:[#allocation25 + $0x38] sm:$0xf]
    %v3910 = vld [vmem:[#allocation25 + $0x3c] sm:$0xf]
    %v3911 = vpack.c.bf16 %v2112, %v2112
    %v3928 = vunpack.c.l.b16 %v3895
    %v3929 = vunpack.c.l.b16 %v3896
    %v3930 = vunpack.c.l.b16 %v3897
    %v3931 = vunpack.c.l.b16 %v3898
    %v3932 = vunpack.c.l.b16 %v3899
    %v3933 = vunpack.c.l.b16 %v3900
    %v3934 = vunpack.c.l.b16 %v3901
    %v3935 = vunpack.c.l.b16 %v3902
    %v3936 = vunpack.c.l.b16 %v3903
    %v3937 = vunpack.c.l.b16 %v3904
    %v3938 = vunpack.c.l.b16 %v3905
    %v3939 = vunpack.c.l.b16 %v3906
    %v3940 = vunpack.c.l.b16 %v3907
    %v3941 = vunpack.c.l.b16 %v3908
    %v3942 = vunpack.c.l.b16 %v3909
    %v3943 = vunpack.c.l.b16 %v3910
    %v3944 = vpack.c.b16 %v3929, %v3928
    %v3945 = vpack.c.b16 %v3931, %v3930
    %v3946 = vpack.c.b16 %v3933, %v3932
    %v3947 = vpack.c.b16 %v3935, %v3934
    %v3948 = vpack.c.b16 %v3937, %v3936
    %v3949 = vpack.c.b16 %v3939, %v3938
    %v3950 = vpack.c.b16 %v3941, %v3940
    %v3951 = vpack.c.b16 %v3943, %v3942
    %3960 = vmatprep.subr.bf16.mxu0 0
    %3961 = vmatpush1.bf16.msra.mxu0 %v3951
    %3962 = vmatprep.subr.bf16.mxu0 0
    %3963 = vmatpush1.bf16.msra.mxu0 %v3950
    %3964 = vmatprep.subr.bf16.mxu0 0
    %3965 = vmatpush1.bf16.msra.mxu0 %v3949
    %3966 = vmatprep.subr.bf16.mxu0 0
    %3967 = vmatpush1.bf16.msra.mxu0 %v3948
    %3968 = vmatprep.subr.bf16.mxu0 0
    %3969 = vmatpush1.bf16.msra.mxu0 %v3947
    %3970 = vmatprep.subr.bf16.mxu0 0
    %3971 = vmatpush1.bf16.msra.mxu0 %v3946
    %3972 = vmatprep.subr.bf16.mxu0 0
    %3973 = vmatpush1.bf16.msra.mxu0 %v3945
    %3974 = vmatprep.subr.bf16.mxu0 0
    %3975 = vmatpush1.bf16.msra.mxu0 %v3944
    %3976 = vmatprep.subr.bf16.mxu0 0
    %3977 = vmatpush2.bf16.msra.mxu0 0
    %3978 = vmatprep.subr.bf16.mxu0 0
    %3979 = vmatpush2.bf16.msra.mxu0 0
    %3980 = vmatprep.subr.bf16.mxu0 0
    %3981 = vmatpush2.bf16.msra.mxu0 0
    %3982 = vmatprep.subr.bf16.mxu0 0
    %3983 = vmatpush2.bf16.msra.mxu0 0
    %3984 = vmatprep.subr.bf16.mxu0 0
    %3985 = vmatpush2.bf16.msra.mxu0 0
    %3986 = vmatprep.subr.bf16.mxu0 0
    %3987 = vmatpush2.bf16.msra.mxu0 0
    %3988 = vmatprep.subr.bf16.mxu0 0
    %3989 = vmatpush2.bf16.msra.mxu0 0
    %3990 = vmatprep.subr.bf16.mxu0 0
    %3991 = vmatpush2.bf16.msra.mxu0 0
    %3992 = vmatprep.mubr.bf16.mxu0 0
    %3993 = vmatmul.mubr.bf16.gmra.mxu0 %v3911
    %v3994 = vpop.f32.mrf.mxu0
    %v3995 = vadd.f32 0.0, %v3994
    %v3996 = vpop.f32.mrf.mxu0
    %v3997 = vpop.f32.mrf.mxu0
    %v3998 = vpop.f32.mrf.mxu0
    %3999 = vdwg.mxu0
    %v4000 = vadd.f32 %v3858, %v3995
    %v4001 = vtanh.pop %v4000
    %v4002 = vpack.c.bf16 %v4001, %v4001
    %4003 = vmatprep.subr.bf16.mxu0 0
    %4004 = vmatpush1.bf16.msra.mxu0 %v3951
    %4005 = vmatprep.subr.bf16.mxu0 0
    %4006 = vmatpush1.bf16.msra.mxu0 %v3950
    %4007 = vmatprep.subr.bf16.mxu0 0
    %4008 = vmatpush1.bf16.msra.mxu0 %v3949
    %4009 = vmatprep.subr.bf16.mxu0 0
    %4010 = vmatpush1.bf16.msra.mxu0 %v3948
    %4011 = vmatprep.subr.bf16.mxu0 0
    %4012 = vmatpush1.bf16.msra.mxu0 %v3947
    %4013 = vmatprep.subr.bf16.mxu0 0
    %4014 = vmatpush1.bf16.msra.mxu0 %v3946
    %4015 = vmatprep.subr.bf16.mxu0 0
    %4016 = vmatpush1.bf16.msra.mxu0 %v3945
    %4017 = vmatprep.subr.bf16.mxu0 0
    %4018 = vmatpush1.bf16.msra.mxu0 %v3944
    %4019 = vmatprep.subr.bf16.mxu0 0
    %4020 = vmatpush2.bf16.msra.mxu0 0
    %4021 = vmatprep.subr.bf16.mxu0 0
    %4022 = vmatpush2.bf16.msra.mxu0 0
    %4023 = vmatprep.subr.bf16.mxu0 0
    %4024 = vmatpush2.bf16.msra.mxu0 0
    %4025 = vmatprep.subr.bf16.mxu0 0
    %4026 = vmatpush2.bf16.msra.mxu0 0
    %4027 = vmatprep.subr.bf16.mxu0 0
    %4028 = vmatpush2.bf16.msra.mxu0 0
    %4029 = vmatprep.subr.bf16.mxu0 0
    %4030 = vmatpush2.bf16.msra.mxu0 0
    %4031 = vmatprep.subr.bf16.mxu0 0
    %4032 = vmatpush2.bf16.msra.mxu0 0
    %4033 = vmatprep.subr.bf16.mxu0 0
    %4034 = vmatpush2.bf16.msra.mxu0 0
    %4035 = vmatprep.mubr.bf16.mxu0 0
    %4036 = vmatmul.mubr.bf16.gmra.mxu0 %v4002
    %v4037 = vpop.f32.mrf.mxu0
    %v4038 = vadd.f32 0.0, %v4037
    %v4039 = vpop.f32.mrf.mxu0
    %v4040 = vpop.f32.mrf.mxu0
    %v4041 = vpop.f32.mrf.mxu0
    %4042 = vdwg.mxu0
    %v4043 = vadd.f32 %v3860, %v4038
    %v4044 = vtanh.pop %v4043
    %v4045 = vpack.c.bf16 %v4044, %v4044
    %4046 = vmatprep.subr.bf16.mxu0 0
    %4047 = vmatpush1.bf16.msra.mxu0 %v3951
    %4048 = vmatprep.subr.bf16.mxu0 0
    %4049 = vmatpush1.bf16.msra.mxu0 %v3950
    %4050 = vmatprep.subr.bf16.mxu0 0
    %4051 = vmatpush1.bf16.msra.mxu0 %v3949
    %4052 = vmatprep.subr.bf16.mxu0 0
    %4053 = vmatpush1.bf16.msra.mxu0 %v3948
    %4054 = vmatprep.subr.bf16.mxu0 0
    %4055 = vmatpush1.bf16.msra.mxu0 %v3947
    %4056 = vmatprep.subr.bf16.mxu0 0
    %4057 = vmatpush1.bf16.msra.mxu0 %v3946
    %4058 = vmatprep.subr.bf16.mxu0 0
    %4059 = vmatpush1.bf16.msra.mxu0 %v3945
    %4060 = vmatprep.subr.bf16.mxu0 0
    %4061 = vmatpush1.bf16.msra.mxu0 %v3944
    %4062 = vmatprep.subr.bf16.mxu0 0
    %4063 = vmatpush2.bf16.msra.mxu0 0
    %4064 = vmatprep.subr.bf16.mxu0 0
    %4065 = vmatpush2.bf16.msra.mxu0 0
    %4066 = vmatprep.subr.bf16.mxu0 0
    %4067 = vmatpush2.bf16.msra.mxu0 0
    %4068 = vmatprep.subr.bf16.mxu0 0
    %4069 = vmatpush2.bf16.msra.mxu0 0
    %4070 = vmatprep.subr.bf16.mxu0 0
    %4071 = vmatpush2.bf16.msra.mxu0 0
    %4072 = vmatprep.subr.bf16.mxu0 0
    %4073 = vmatpush2.bf16.msra.mxu0 0
    %4074 = vmatprep.subr.bf16.mxu0 0
    %4075 = vmatpush2.bf16.msra.mxu0 0
    %4076 = vmatprep.subr.bf16.mxu0 0
    %4077 = vmatpush2.bf16.msra.mxu0 0
    %4078 = vmatprep.mubr.bf16.mxu0 0
    %4079 = vmatmul.mubr.bf16.gmra.mxu0 %v4045
    %v4080 = vpop.f32.mrf.mxu0
    %v4081 = vadd.f32 0.0, %v4080
    %v4082 = vpop.f32.mrf.mxu0
    %v4083 = vpop.f32.mrf.mxu0
    %v4084 = vpop.f32.mrf.mxu0
    %4085 = vdwg.mxu0
    %v4086 = vadd.f32 %v3862, %v4081
    %v4087 = vtanh.pop %v4086
    %v4088 = vpack.c.bf16 %v4087, %v4087
    %4089 = vmatprep.subr.bf16.mxu0 0
    %4090 = vmatpush1.bf16.msra.mxu0 %v3951
    %4091 = vmatprep.subr.bf16.mxu0 0
    %4092 = vmatpush1.bf16.msra.mxu0 %v3950
    %4093 = vmatprep.subr.bf16.mxu0 0
    %4094 = vmatpush1.bf16.msra.mxu0 %v3949
    %4095 = vmatprep.subr.bf16.mxu0 0
    %4096 = vmatpush1.bf16.msra.mxu0 %v3948
    %4097 = vmatprep.subr.bf16.mxu0 0
    %4098 = vmatpush1.bf16.msra.mxu0 %v3947
    %4099 = vmatprep.subr.bf16.mxu0 0
    %4100 = vmatpush1.bf16.msra.mxu0 %v3946
    %4101 = vmatprep.subr.bf16.mxu0 0
    %4102 = vmatpush1.bf16.msra.mxu0 %v3945
    %4103 = vmatprep.subr.bf16.mxu0 0
    %4104 = vmatpush1.bf16.msra.mxu0 %v3944
    %4105 = vmatprep.subr.bf16.mxu0 0
    %4106 = vmatpush2.bf16.msra.mxu0 0
    %4107 = vmatprep.subr.bf16.mxu0 0
    %4108 = vmatpush2.bf16.msra.mxu0 0
    %4109 = vmatprep.subr.bf16.mxu0 0
    %4110 = vmatpush2.bf16.msra.mxu0 0
    %4111 = vmatprep.subr.bf16.mxu0 0
    %4112 = vmatpush2.bf16.msra.mxu0 0
    %4113 = vmatprep.subr.bf16.mxu0 0
    %4114 = vmatpush2.bf16.msra.mxu0 0
    %4115 = vmatprep.subr.bf16.mxu0 0
    %4116 = vmatpush2.bf16.msra.mxu0 0
    %4117 = vmatprep.subr.bf16.mxu0 0
    %4118 = vmatpush2.bf16.msra.mxu0 0
    %4119 = vmatprep.subr.bf16.mxu0 0
    %4120 = vmatpush2.bf16.msra.mxu0 0
    %4121 = vmatprep.mubr.bf16.mxu0 0
    %4122 = vmatmul.mubr.bf16.gmra.mxu0 %v4088
    %v4123 = vpop.f32.mrf.mxu0
    %v4124 = vadd.f32 0.0, %v4123
    %v4125 = vpop.f32.mrf.mxu0
    %v4126 = vpop.f32.mrf.mxu0
    %v4127 = vpop.f32.mrf.mxu0
    %4128 = vdwg.mxu0
    %v4129 = vadd.f32 %v3864, %v4124
    %v4130 = vtanh.pop %v4129
    %v4131 = vpack.c.bf16 %v4130, %v4130
    %4132 = vmatprep.subr.bf16.mxu0 0
    %4133 = vmatpush1.bf16.msra.mxu0 %v3951
    %4134 = vmatprep.subr.bf16.mxu0 0
    %4135 = vmatpush1.bf16.msra.mxu0 %v3950
    %4136 = vmatprep.subr.bf16.mxu0 0
    %4137 = vmatpush1.bf16.msra.mxu0 %v3949
    %4138 = vmatprep.subr.bf16.mxu0 0
    %4139 = vmatpush1.bf16.msra.mxu0 %v3948
    %4140 = vmatprep.subr.bf16.mxu0 0
    %4141 = vmatpush1.bf16.msra.mxu0 %v3947
    %4142 = vmatprep.subr.bf16.mxu0 0
    %4143 = vmatpush1.bf16.msra.mxu0 %v3946
    %4144 = vmatprep.subr.bf16.mxu0 0
    %4145 = vmatpush1.bf16.msra.mxu0 %v3945
    %4146 = vmatprep.subr.bf16.mxu0 0
    %4147 = vmatpush1.bf16.msra.mxu0 %v3944
    %4148 = vmatprep.subr.bf16.mxu0 0
    %4149 = vmatpush2.bf16.msra.mxu0 0
    %4150 = vmatprep.subr.bf16.mxu0 0
    %4151 = vmatpush2.bf16.msra.mxu0 0
    %4152 = vmatprep.subr.bf16.mxu0 0
    %4153 = vmatpush2.bf16.msra.mxu0 0
    %4154 = vmatprep.subr.bf16.mxu0 0
    %4155 = vmatpush2.bf16.msra.mxu0 0
    %4156 = vmatprep.subr.bf16.mxu0 0
    %4157 = vmatpush2.bf16.msra.mxu0 0
    %4158 = vmatprep.subr.bf16.mxu0 0
    %4159 = vmatpush2.bf16.msra.mxu0 0
    %4160 = vmatprep.subr.bf16.mxu0 0
    %4161 = vmatpush2.bf16.msra.mxu0 0
    %4162 = vmatprep.subr.bf16.mxu0 0
    %4163 = vmatpush2.bf16.msra.mxu0 0
    %4164 = vmatprep.mubr.bf16.mxu0 0
    %4165 = vmatmul.mubr.bf16.gmra.mxu0 %v4131
    %v4166 = vpop.f32.mrf.mxu0
    %v4167 = vadd.f32 0.0, %v4166
    %v4168 = vpop.f32.mrf.mxu0
    %v4169 = vpop.f32.mrf.mxu0
    %v4170 = vpop.f32.mrf.mxu0
    %4171 = vdwg.mxu0
    %v4172 = vadd.f32 %v3866, %v4167
    %v4173 = vtanh.pop %v4172
    %v4174 = vpack.c.bf16 %v4173, %v4173
    %4175 = vmatprep.subr.bf16.mxu0 0
    %4176 = vmatpush1.bf16.msra.mxu0 %v3951
    %4177 = vmatprep.subr.bf16.mxu0 0
    %4178 = vmatpush1.bf16.msra.mxu0 %v3950
    %4179 = vmatprep.subr.bf16.mxu0 0
    %4180 = vmatpush1.bf16.msra.mxu0 %v3949
    %4181 = vmatprep.subr.bf16.mxu0 0
    %4182 = vmatpush1.bf16.msra.mxu0 %v3948
    %4183 = vmatprep.subr.bf16.mxu0 0
    %4184 = vmatpush1.bf16.msra.mxu0 %v3947
    %4185 = vmatprep.subr.bf16.mxu0 0
    %4186 = vmatpush1.bf16.msra.mxu0 %v3946
    %4187 = vmatprep.subr.bf16.mxu0 0
    %4188 = vmatpush1.bf16.msra.mxu0 %v3945
    %4189 = vmatprep.subr.bf16.mxu0 0
    %4190 = vmatpush1.bf16.msra.mxu0 %v3944
    %4191 = vmatprep.subr.bf16.mxu0 0
    %4192 = vmatpush2.bf16.msra.mxu0 0
    %4193 = vmatprep.subr.bf16.mxu0 0
    %4194 = vmatpush2.bf16.msra.mxu0 0
    %4195 = vmatprep.subr.bf16.mxu0 0
    %4196 = vmatpush2.bf16.msra.mxu0 0
    %4197 = vmatprep.subr.bf16.mxu0 0
    %4198 = vmatpush2.bf16.msra.mxu0 0
    %4199 = vmatprep.subr.bf16.mxu0 0
    %4200 = vmatpush2.bf16.msra.mxu0 0
    %4201 = vmatprep.subr.bf16.mxu0 0
    %4202 = vmatpush2.bf16.msra.mxu0 0
    %4203 = vmatprep.subr.bf16.mxu0 0
    %4204 = vmatpush2.bf16.msra.mxu0 0
    %4205 = vmatprep.subr.bf16.mxu0 0
    %4206 = vmatpush2.bf16.msra.mxu0 0
    %4207 = vmatprep.mubr.bf16.mxu0 0
    %4208 = vmatmul.mubr.bf16.gmra.mxu0 %v4174
    %v4209 = vpop.f32.mrf.mxu0
    %v4210 = vadd.f32 0.0, %v4209
    %v4211 = vpop.f32.mrf.mxu0
    %v4212 = vpop.f32.mrf.mxu0
    %v4213 = vpop.f32.mrf.mxu0
    %4214 = vdwg.mxu0
    %v4215 = vadd.f32 %v3868, %v4210
    %v4216 = vtanh.pop %v4215
    %v4217 = vpack.c.bf16 %v4216, %v4216
    %4218 = vmatprep.subr.bf16.mxu0 0
    %4219 = vmatpush1.bf16.msra.mxu0 %v3951
    %4220 = vmatprep.subr.bf16.mxu0 0
    %4221 = vmatpush1.bf16.msra.mxu0 %v3950
    %4222 = vmatprep.subr.bf16.mxu0 0
    %4223 = vmatpush1.bf16.msra.mxu0 %v3949
    %4224 = vmatprep.subr.bf16.mxu0 0
    %4225 = vmatpush1.bf16.msra.mxu0 %v3948
    %4226 = vmatprep.subr.bf16.mxu0 0
    %4227 = vmatpush1.bf16.msra.mxu0 %v3947
    %4228 = vmatprep.subr.bf16.mxu0 0
    %4229 = vmatpush1.bf16.msra.mxu0 %v3946
    %4230 = vmatprep.subr.bf16.mxu0 0
    %4231 = vmatpush1.bf16.msra.mxu0 %v3945
    %4232 = vmatprep.subr.bf16.mxu0 0
    %4233 = vmatpush1.bf16.msra.mxu0 %v3944
    %4234 = vmatprep.subr.bf16.mxu0 0
    %4235 = vmatpush2.bf16.msra.mxu0 0
    %4236 = vmatprep.subr.bf16.mxu0 0
    %4237 = vmatpush2.bf16.msra.mxu0 0
    %4238 = vmatprep.subr.bf16.mxu0 0
    %4239 = vmatpush2.bf16.msra.mxu0 0
    %4240 = vmatprep.subr.bf16.mxu0 0
    %4241 = vmatpush2.bf16.msra.mxu0 0
    %4242 = vmatprep.subr.bf16.mxu0 0
    %4243 = vmatpush2.bf16.msra.mxu0 0
    %4244 = vmatprep.subr.bf16.mxu0 0
    %4245 = vmatpush2.bf16.msra.mxu0 0
    %4246 = vmatprep.subr.bf16.mxu0 0
    %4247 = vmatpush2.bf16.msra.mxu0 0
    %4248 = vmatprep.subr.bf16.mxu0 0
    %4249 = vmatpush2.bf16.msra.mxu0 0
    %4250 = vmatprep.mubr.bf16.mxu0 0
    %4251 = vmatmul.mubr.bf16.gmra.mxu0 %v4217
    %v4252 = vpop.f32.mrf.mxu0
    %v4253 = vadd.f32 0.0, %v4252
    %v4254 = vpop.f32.mrf.mxu0
    %v4255 = vpop.f32.mrf.mxu0
    %v4256 = vpop.f32.mrf.mxu0
    %4257 = vdwg.mxu0
    %v4258 = vadd.f32 %v3870, %v4253
    %v4259 = vtanh.pop %v4258
    %v4260 = vpack.c.bf16 %v4259, %v4259
    %4261 = vmatprep.subr.bf16.mxu0 0
    %4262 = vmatpush1.bf16.msra.mxu0 %v3951
    %4263 = vmatprep.subr.bf16.mxu0 0
    %4264 = vmatpush1.bf16.msra.mxu0 %v3950
    %4265 = vmatprep.subr.bf16.mxu0 0
    %4266 = vmatpush1.bf16.msra.mxu0 %v3949
    %4267 = vmatprep.subr.bf16.mxu0 0
    %4268 = vmatpush1.bf16.msra.mxu0 %v3948
    %4269 = vmatprep.subr.bf16.mxu0 0
    %4270 = vmatpush1.bf16.msra.mxu0 %v3947
    %4271 = vmatprep.subr.bf16.mxu0 0
    %4272 = vmatpush1.bf16.msra.mxu0 %v3946
    %4273 = vmatprep.subr.bf16.mxu0 0
    %4274 = vmatpush1.bf16.msra.mxu0 %v3945
    %4275 = vmatprep.subr.bf16.mxu0 0
    %4276 = vmatpush1.bf16.msra.mxu0 %v3944
    %4277 = vmatprep.subr.bf16.mxu0 0
    %4278 = vmatpush2.bf16.msra.mxu0 0
    %4279 = vmatprep.subr.bf16.mxu0 0
    %4280 = vmatpush2.bf16.msra.mxu0 0
    %4281 = vmatprep.subr.bf16.mxu0 0
    %4282 = vmatpush2.bf16.msra.mxu0 0
    %4283 = vmatprep.subr.bf16.mxu0 0
    %4284 = vmatpush2.bf16.msra.mxu0 0
    %4285 = vmatprep.subr.bf16.mxu0 0
    %4286 = vmatpush2.bf16.msra.mxu0 0
    %4287 = vmatprep.subr.bf16.mxu0 0
    %4288 = vmatpush2.bf16.msra.mxu0 0
    %4289 = vmatprep.subr.bf16.mxu0 0
    %4290 = vmatpush2.bf16.msra.mxu0 0
    %4291 = vmatprep.subr.bf16.mxu0 0
    %4292 = vmatpush2.bf16.msra.mxu0 0
    %4293 = vmatprep.mubr.bf16.mxu0 0
    %4294 = vmatmul.mubr.bf16.gmra.mxu0 %v4260
    %v4295 = vpop.f32.mrf.mxu0
    %v4296 = vadd.f32 0.0, %v4295
    %v4297 = vpop.f32.mrf.mxu0
    %v4298 = vpop.f32.mrf.mxu0
    %v4299 = vpop.f32.mrf.mxu0
    %4300 = vdwg.mxu0
    %v4301 = vadd.f32 %v3872, %v4296
    %v4302 = vtanh.pop %v4301
    %v4303 = vld [vmem:[#allocation27] sm:$0xf]
    %v4304 = vld [vmem:[#allocation27 + $0x4] sm:$0xf]
    %v4305 = vld [vmem:[#allocation27 + $0x8] sm:$0xf]
    %v4306 = vld [vmem:[#allocation27 + $0xc] sm:$0xf]
    %v4307 = vld [vmem:[#allocation27 + $0x10] sm:$0xf]
    %v4308 = vld [vmem:[#allocation27 + $0x14] sm:$0xf]
    %v4309 = vld [vmem:[#allocation27 + $0x18] sm:$0xf]
    %v4310 = vld [vmem:[#allocation27 + $0x1c] sm:$0xf]
    %v4311 = vld [vmem:[#allocation27 + $0x20] sm:$0xf]
    %v4312 = vld [vmem:[#allocation27 + $0x24] sm:$0xf]
    %v4313 = vld [vmem:[#allocation27 + $0x28] sm:$0xf]
    %v4314 = vld [vmem:[#allocation27 + $0x2c] sm:$0xf]
    %v4315 = vld [vmem:[#allocation27 + $0x30] sm:$0xf]
    %v4316 = vld [vmem:[#allocation27 + $0x34] sm:$0xf]
    %v4317 = vld [vmem:[#allocation27 + $0x38] sm:$0xf]
    %v4318 = vld [vmem:[#allocation27 + $0x3c] sm:$0xf]
    %v4319 = vpack.c.bf16 %v2519, %v2519
    %v4336 = vunpack.c.l.b16 %v4303
    %v4337 = vunpack.c.l.b16 %v4304
    %v4338 = vunpack.c.l.b16 %v4305
    %v4339 = vunpack.c.l.b16 %v4306
    %v4340 = vunpack.c.l.b16 %v4307
    %v4341 = vunpack.c.l.b16 %v4308
    %v4342 = vunpack.c.l.b16 %v4309
    %v4343 = vunpack.c.l.b16 %v4310
    %v4344 = vunpack.c.l.b16 %v4311
    %v4345 = vunpack.c.l.b16 %v4312
    %v4346 = vunpack.c.l.b16 %v4313
    %v4347 = vunpack.c.l.b16 %v4314
    %v4348 = vunpack.c.l.b16 %v4315
    %v4349 = vunpack.c.l.b16 %v4316
    %v4350 = vunpack.c.l.b16 %v4317
    %v4351 = vunpack.c.l.b16 %v4318
    %v4352 = vpack.c.b16 %v4337, %v4336
    %v4353 = vpack.c.b16 %v4339, %v4338
    %v4354 = vpack.c.b16 %v4341, %v4340
    %v4355 = vpack.c.b16 %v4343, %v4342
    %v4356 = vpack.c.b16 %v4345, %v4344
    %v4357 = vpack.c.b16 %v4347, %v4346
    %v4358 = vpack.c.b16 %v4349, %v4348
    %v4359 = vpack.c.b16 %v4351, %v4350
    %4368 = vmatprep.subr.bf16.mxu0 0
    %4369 = vmatpush1.bf16.msra.mxu0 %v4359
    %4370 = vmatprep.subr.bf16.mxu0 0
    %4371 = vmatpush1.bf16.msra.mxu0 %v4358
    %4372 = vmatprep.subr.bf16.mxu0 0
    %4373 = vmatpush1.bf16.msra.mxu0 %v4357
    %4374 = vmatprep.subr.bf16.mxu0 0
    %4375 = vmatpush1.bf16.msra.mxu0 %v4356
    %4376 = vmatprep.subr.bf16.mxu0 0
    %4377 = vmatpush1.bf16.msra.mxu0 %v4355
    %4378 = vmatprep.subr.bf16.mxu0 0
    %4379 = vmatpush1.bf16.msra.mxu0 %v4354
    %4380 = vmatprep.subr.bf16.mxu0 0
    %4381 = vmatpush1.bf16.msra.mxu0 %v4353
    %4382 = vmatprep.subr.bf16.mxu0 0
    %4383 = vmatpush1.bf16.msra.mxu0 %v4352
    %4384 = vmatprep.subr.bf16.mxu0 0
    %4385 = vmatpush2.bf16.msra.mxu0 0
    %4386 = vmatprep.subr.bf16.mxu0 0
    %4387 = vmatpush2.bf16.msra.mxu0 0
    %4388 = vmatprep.subr.bf16.mxu0 0
    %4389 = vmatpush2.bf16.msra.mxu0 0
    %4390 = vmatprep.subr.bf16.mxu0 0
    %4391 = vmatpush2.bf16.msra.mxu0 0
    %4392 = vmatprep.subr.bf16.mxu0 0
    %4393 = vmatpush2.bf16.msra.mxu0 0
    %4394 = vmatprep.subr.bf16.mxu0 0
    %4395 = vmatpush2.bf16.msra.mxu0 0
    %4396 = vmatprep.subr.bf16.mxu0 0
    %4397 = vmatpush2.bf16.msra.mxu0 0
    %4398 = vmatprep.subr.bf16.mxu0 0
    %4399 = vmatpush2.bf16.msra.mxu0 0
    %4400 = vmatprep.mubr.bf16.mxu0 0
    %4401 = vmatmul.mubr.bf16.gmra.mxu0 %v4319
    %v4402 = vpop.f32.mrf.mxu0
    %v4403 = vadd.f32 0.0, %v4402
    %v4404 = vpop.f32.mrf.mxu0
    %v4405 = vpop.f32.mrf.mxu0
    %v4406 = vpop.f32.mrf.mxu0
    %4407 = vdwg.mxu0
    %v4408 = vadd.f32 %v3880, %v4403
    %v4409 = vtanh.pop %v4408
    %v4410 = vpack.c.bf16 %v4409, %v4409
    %4411 = vmatprep.subr.bf16.mxu0 0
    %4412 = vmatpush1.bf16.msra.mxu0 %v4359
    %4413 = vmatprep.subr.bf16.mxu0 0
    %4414 = vmatpush1.bf16.msra.mxu0 %v4358
    %4415 = vmatprep.subr.bf16.mxu0 0
    %4416 = vmatpush1.bf16.msra.mxu0 %v4357
    %4417 = vmatprep.subr.bf16.mxu0 0
    %4418 = vmatpush1.bf16.msra.mxu0 %v4356
    %4419 = vmatprep.subr.bf16.mxu0 0
    %4420 = vmatpush1.bf16.msra.mxu0 %v4355
    %4421 = vmatprep.subr.bf16.mxu0 0
    %4422 = vmatpush1.bf16.msra.mxu0 %v4354
    %4423 = vmatprep.subr.bf16.mxu0 0
    %4424 = vmatpush1.bf16.msra.mxu0 %v4353
    %4425 = vmatprep.subr.bf16.mxu0 0
    %4426 = vmatpush1.bf16.msra.mxu0 %v4352
    %4427 = vmatprep.subr.bf16.mxu0 0
    %4428 = vmatpush2.bf16.msra.mxu0 0
    %4429 = vmatprep.subr.bf16.mxu0 0
    %4430 = vmatpush2.bf16.msra.mxu0 0
    %4431 = vmatprep.subr.bf16.mxu0 0
    %4432 = vmatpush2.bf16.msra.mxu0 0
    %4433 = vmatprep.subr.bf16.mxu0 0
    %4434 = vmatpush2.bf16.msra.mxu0 0
    %4435 = vmatprep.subr.bf16.mxu0 0
    %4436 = vmatpush2.bf16.msra.mxu0 0
    %4437 = vmatprep.subr.bf16.mxu0 0
    %4438 = vmatpush2.bf16.msra.mxu0 0
    %4439 = vmatprep.subr.bf16.mxu0 0
    %4440 = vmatpush2.bf16.msra.mxu0 0
    %4441 = vmatprep.subr.bf16.mxu0 0
    %4442 = vmatpush2.bf16.msra.mxu0 0
    %4443 = vmatprep.mubr.bf16.mxu0 0
    %4444 = vmatmul.mubr.bf16.gmra.mxu0 %v4410
    %v4445 = vpop.f32.mrf.mxu0
    %v4446 = vadd.f32 0.0, %v4445
    %v4447 = vpop.f32.mrf.mxu0
    %v4448 = vpop.f32.mrf.mxu0
    %v4449 = vpop.f32.mrf.mxu0
    %4450 = vdwg.mxu0
    %v4451 = vadd.f32 %v3882, %v4446
    %v4452 = vtanh.pop %v4451
    %v4453 = vpack.c.bf16 %v4452, %v4452
    %4454 = vmatprep.subr.bf16.mxu0 0
    %4455 = vmatpush1.bf16.msra.mxu0 %v4359
    %4456 = vmatprep.subr.bf16.mxu0 0
    %4457 = vmatpush1.bf16.msra.mxu0 %v4358
    %4458 = vmatprep.subr.bf16.mxu0 0
    %4459 = vmatpush1.bf16.msra.mxu0 %v4357
    %4460 = vmatprep.subr.bf16.mxu0 0
    %4461 = vmatpush1.bf16.msra.mxu0 %v4356
    %4462 = vmatprep.subr.bf16.mxu0 0
    %4463 = vmatpush1.bf16.msra.mxu0 %v4355
    %4464 = vmatprep.subr.bf16.mxu0 0
    %4465 = vmatpush1.bf16.msra.mxu0 %v4354
    %4466 = vmatprep.subr.bf16.mxu0 0
    %4467 = vmatpush1.bf16.msra.mxu0 %v4353
    %4468 = vmatprep.subr.bf16.mxu0 0
    %4469 = vmatpush1.bf16.msra.mxu0 %v4352
    %4470 = vmatprep.subr.bf16.mxu0 0
    %4471 = vmatpush2.bf16.msra.mxu0 0
    %4472 = vmatprep.subr.bf16.mxu0 0
    %4473 = vmatpush2.bf16.msra.mxu0 0
    %4474 = vmatprep.subr.bf16.mxu0 0
    %4475 = vmatpush2.bf16.msra.mxu0 0
    %4476 = vmatprep.subr.bf16.mxu0 0
    %4477 = vmatpush2.bf16.msra.mxu0 0
    %4478 = vmatprep.subr.bf16.mxu0 0
    %4479 = vmatpush2.bf16.msra.mxu0 0
    %4480 = vmatprep.subr.bf16.mxu0 0
    %4481 = vmatpush2.bf16.msra.mxu0 0
    %4482 = vmatprep.subr.bf16.mxu0 0
    %4483 = vmatpush2.bf16.msra.mxu0 0
    %4484 = vmatprep.subr.bf16.mxu0 0
    %4485 = vmatpush2.bf16.msra.mxu0 0
    %4486 = vmatprep.mubr.bf16.mxu0 0
    %4487 = vmatmul.mubr.bf16.gmra.mxu0 %v4453
    %v4488 = vpop.f32.mrf.mxu0
    %v4489 = vadd.f32 0.0, %v4488
    %v4490 = vpop.f32.mrf.mxu0
    %v4491 = vpop.f32.mrf.mxu0
    %v4492 = vpop.f32.mrf.mxu0
    %4493 = vdwg.mxu0
    %v4494 = vadd.f32 %v3884, %v4489
    %v4495 = vtanh.pop %v4494
    %v4496 = vpack.c.bf16 %v4495, %v4495
    %4497 = vmatprep.subr.bf16.mxu0 0
    %4498 = vmatpush1.bf16.msra.mxu0 %v4359
    %4499 = vmatprep.subr.bf16.mxu0 0
    %4500 = vmatpush1.bf16.msra.mxu0 %v4358
    %4501 = vmatprep.subr.bf16.mxu0 0
    %4502 = vmatpush1.bf16.msra.mxu0 %v4357
    %4503 = vmatprep.subr.bf16.mxu0 0
    %4504 = vmatpush1.bf16.msra.mxu0 %v4356
    %4505 = vmatprep.subr.bf16.mxu0 0
    %4506 = vmatpush1.bf16.msra.mxu0 %v4355
    %4507 = vmatprep.subr.bf16.mxu0 0
    %4508 = vmatpush1.bf16.msra.mxu0 %v4354
    %4509 = vmatprep.subr.bf16.mxu0 0
    %4510 = vmatpush1.bf16.msra.mxu0 %v4353
    %4511 = vmatprep.subr.bf16.mxu0 0
    %4512 = vmatpush1.bf16.msra.mxu0 %v4352
    %4513 = vmatprep.subr.bf16.mxu0 0
    %4514 = vmatpush2.bf16.msra.mxu0 0
    %4515 = vmatprep.subr.bf16.mxu0 0
    %4516 = vmatpush2.bf16.msra.mxu0 0
    %4517 = vmatprep.subr.bf16.mxu0 0
    %4518 = vmatpush2.bf16.msra.mxu0 0
    %4519 = vmatprep.subr.bf16.mxu0 0
    %4520 = vmatpush2.bf16.msra.mxu0 0
    %4521 = vmatprep.subr.bf16.mxu0 0
    %4522 = vmatpush2.bf16.msra.mxu0 0
    %4523 = vmatprep.subr.bf16.mxu0 0
    %4524 = vmatpush2.bf16.msra.mxu0 0
    %4525 = vmatprep.subr.bf16.mxu0 0
    %4526 = vmatpush2.bf16.msra.mxu0 0
    %4527 = vmatprep.subr.bf16.mxu0 0
    %4528 = vmatpush2.bf16.msra.mxu0 0
    %4529 = vmatprep.mubr.bf16.mxu0 0
    %4530 = vmatmul.mubr.bf16.gmra.mxu0 %v4496
    %v4531 = vpop.f32.mrf.mxu0
    %v4532 = vadd.f32 0.0, %v4531
    %v4533 = vpop.f32.mrf.mxu0
    %v4534 = vpop.f32.mrf.mxu0
    %v4535 = vpop.f32.mrf.mxu0
    %4536 = vdwg.mxu0
    %v4537 = vadd.f32 %v3886, %v4532
    %v4538 = vtanh.pop %v4537
    %v4539 = vpack.c.bf16 %v4538, %v4538
    %4540 = vmatprep.subr.bf16.mxu0 0
    %4541 = vmatpush1.bf16.msra.mxu0 %v4359
    %4542 = vmatprep.subr.bf16.mxu0 0
    %4543 = vmatpush1.bf16.msra.mxu0 %v4358
    %4544 = vmatprep.subr.bf16.mxu0 0
    %4545 = vmatpush1.bf16.msra.mxu0 %v4357
    %4546 = vmatprep.subr.bf16.mxu0 0
    %4547 = vmatpush1.bf16.msra.mxu0 %v4356
    %4548 = vmatprep.subr.bf16.mxu0 0
    %4549 = vmatpush1.bf16.msra.mxu0 %v4355
    %4550 = vmatprep.subr.bf16.mxu0 0
    %4551 = vmatpush1.bf16.msra.mxu0 %v4354
    %4552 = vmatprep.subr.bf16.mxu0 0
    %4553 = vmatpush1.bf16.msra.mxu0 %v4353
    %4554 = vmatprep.subr.bf16.mxu0 0
    %4555 = vmatpush1.bf16.msra.mxu0 %v4352
    %4556 = vmatprep.subr.bf16.mxu0 0
    %4557 = vmatpush2.bf16.msra.mxu0 0
    %4558 = vmatprep.subr.bf16.mxu0 0
    %4559 = vmatpush2.bf16.msra.mxu0 0
    %4560 = vmatprep.subr.bf16.mxu0 0
    %4561 = vmatpush2.bf16.msra.mxu0 0
    %4562 = vmatprep.subr.bf16.mxu0 0
    %4563 = vmatpush2.bf16.msra.mxu0 0
    %4564 = vmatprep.subr.bf16.mxu0 0
    %4565 = vmatpush2.bf16.msra.mxu0 0
    %4566 = vmatprep.subr.bf16.mxu0 0
    %4567 = vmatpush2.bf16.msra.mxu0 0
    %4568 = vmatprep.subr.bf16.mxu0 0
    %4569 = vmatpush2.bf16.msra.mxu0 0
    %4570 = vmatprep.subr.bf16.mxu0 0
    %4571 = vmatpush2.bf16.msra.mxu0 0
    %4572 = vmatprep.mubr.bf16.mxu0 0
    %4573 = vmatmul.mubr.bf16.gmra.mxu0 %v4539
    %v4574 = vpop.f32.mrf.mxu0
    %v4575 = vadd.f32 0.0, %v4574
    %v4576 = vpop.f32.mrf.mxu0
    %v4577 = vpop.f32.mrf.mxu0
    %v4578 = vpop.f32.mrf.mxu0
    %4579 = vdwg.mxu0
    %v4580 = vadd.f32 %v3888, %v4575
    %v4581 = vtanh.pop %v4580
    %v4582 = vpack.c.bf16 %v4581, %v4581
    %4583 = vmatprep.subr.bf16.mxu0 0
    %4584 = vmatpush1.bf16.msra.mxu0 %v4359
    %4585 = vmatprep.subr.bf16.mxu0 0
    %4586 = vmatpush1.bf16.msra.mxu0 %v4358
    %4587 = vmatprep.subr.bf16.mxu0 0
    %4588 = vmatpush1.bf16.msra.mxu0 %v4357
    %4589 = vmatprep.subr.bf16.mxu0 0
    %4590 = vmatpush1.bf16.msra.mxu0 %v4356
    %4591 = vmatprep.subr.bf16.mxu0 0
    %4592 = vmatpush1.bf16.msra.mxu0 %v4355
    %4593 = vmatprep.subr.bf16.mxu0 0
    %4594 = vmatpush1.bf16.msra.mxu0 %v4354
    %4595 = vmatprep.subr.bf16.mxu0 0
    %4596 = vmatpush1.bf16.msra.mxu0 %v4353
    %4597 = vmatprep.subr.bf16.mxu0 0
    %4598 = vmatpush1.bf16.msra.mxu0 %v4352
    %4599 = vmatprep.subr.bf16.mxu0 0
    %4600 = vmatpush2.bf16.msra.mxu0 0
    %4601 = vmatprep.subr.bf16.mxu0 0
    %4602 = vmatpush2.bf16.msra.mxu0 0
    %4603 = vmatprep.subr.bf16.mxu0 0
    %4604 = vmatpush2.bf16.msra.mxu0 0
    %4605 = vmatprep.subr.bf16.mxu0 0
    %4606 = vmatpush2.bf16.msra.mxu0 0
    %4607 = vmatprep.subr.bf16.mxu0 0
    %4608 = vmatpush2.bf16.msra.mxu0 0
    %4609 = vmatprep.subr.bf16.mxu0 0
    %4610 = vmatpush2.bf16.msra.mxu0 0
    %4611 = vmatprep.subr.bf16.mxu0 0
    %4612 = vmatpush2.bf16.msra.mxu0 0
    %4613 = vmatprep.subr.bf16.mxu0 0
    %4614 = vmatpush2.bf16.msra.mxu0 0
    %4615 = vmatprep.mubr.bf16.mxu0 0
    %4616 = vmatmul.mubr.bf16.gmra.mxu0 %v4582
    %v4617 = vpop.f32.mrf.mxu0
    %v4618 = vadd.f32 0.0, %v4617
    %v4619 = vpop.f32.mrf.mxu0
    %v4620 = vpop.f32.mrf.mxu0
    %v4621 = vpop.f32.mrf.mxu0
    %4622 = vdwg.mxu0
    %v4623 = vadd.f32 %v3890, %v4618
    %v4624 = vtanh.pop %v4623
    %v4625 = vpack.c.bf16 %v4624, %v4624
    %4626 = vmatprep.subr.bf16.mxu0 0
    %4627 = vmatpush1.bf16.msra.mxu0 %v4359
    %4628 = vmatprep.subr.bf16.mxu0 0
    %4629 = vmatpush1.bf16.msra.mxu0 %v4358
    %4630 = vmatprep.subr.bf16.mxu0 0
    %4631 = vmatpush1.bf16.msra.mxu0 %v4357
    %4632 = vmatprep.subr.bf16.mxu0 0
    %4633 = vmatpush1.bf16.msra.mxu0 %v4356
    %4634 = vmatprep.subr.bf16.mxu0 0
    %4635 = vmatpush1.bf16.msra.mxu0 %v4355
    %4636 = vmatprep.subr.bf16.mxu0 0
    %4637 = vmatpush1.bf16.msra.mxu0 %v4354
    %4638 = vmatprep.subr.bf16.mxu0 0
    %4639 = vmatpush1.bf16.msra.mxu0 %v4353
    %4640 = vmatprep.subr.bf16.mxu0 0
    %4641 = vmatpush1.bf16.msra.mxu0 %v4352
    %4642 = vmatprep.subr.bf16.mxu0 0
    %4643 = vmatpush2.bf16.msra.mxu0 0
    %4644 = vmatprep.subr.bf16.mxu0 0
    %4645 = vmatpush2.bf16.msra.mxu0 0
    %4646 = vmatprep.subr.bf16.mxu0 0
    %4647 = vmatpush2.bf16.msra.mxu0 0
    %4648 = vmatprep.subr.bf16.mxu0 0
    %4649 = vmatpush2.bf16.msra.mxu0 0
    %4650 = vmatprep.subr.bf16.mxu0 0
    %4651 = vmatpush2.bf16.msra.mxu0 0
    %4652 = vmatprep.subr.bf16.mxu0 0
    %4653 = vmatpush2.bf16.msra.mxu0 0
    %4654 = vmatprep.subr.bf16.mxu0 0
    %4655 = vmatpush2.bf16.msra.mxu0 0
    %4656 = vmatprep.subr.bf16.mxu0 0
    %4657 = vmatpush2.bf16.msra.mxu0 0
    %4658 = vmatprep.mubr.bf16.mxu0 0
    %4659 = vmatmul.mubr.bf16.gmra.mxu0 %v4625
    %v4660 = vpop.f32.mrf.mxu0
    %v4661 = vadd.f32 0.0, %v4660
    %v4662 = vpop.f32.mrf.mxu0
    %v4663 = vpop.f32.mrf.mxu0
    %v4664 = vpop.f32.mrf.mxu0
    %4665 = vdwg.mxu0
    %v4666 = vadd.f32 %v3892, %v4661
    %v4667 = vtanh.pop %v4666
    %v4668 = vpack.c.bf16 %v4667, %v4667
    %4669 = vmatprep.subr.bf16.mxu0 0
    %4670 = vmatpush1.bf16.msra.mxu0 %v4359
    %4671 = vmatprep.subr.bf16.mxu0 0
    %4672 = vmatpush1.bf16.msra.mxu0 %v4358
    %4673 = vmatprep.subr.bf16.mxu0 0
    %4674 = vmatpush1.bf16.msra.mxu0 %v4357
    %4675 = vmatprep.subr.bf16.mxu0 0
    %4676 = vmatpush1.bf16.msra.mxu0 %v4356
    %4677 = vmatprep.subr.bf16.mxu0 0
    %4678 = vmatpush1.bf16.msra.mxu0 %v4355
    %4679 = vmatprep.subr.bf16.mxu0 0
    %4680 = vmatpush1.bf16.msra.mxu0 %v4354
    %4681 = vmatprep.subr.bf16.mxu0 0
    %4682 = vmatpush1.bf16.msra.mxu0 %v4353
    %4683 = vmatprep.subr.bf16.mxu0 0
    %4684 = vmatpush1.bf16.msra.mxu0 %v4352
    %4685 = vmatprep.subr.bf16.mxu0 0
    %4686 = vmatpush2.bf16.msra.mxu0 0
    %4687 = vmatprep.subr.bf16.mxu0 0
    %4688 = vmatpush2.bf16.msra.mxu0 0
    %4689 = vmatprep.subr.bf16.mxu0 0
    %4690 = vmatpush2.bf16.msra.mxu0 0
    %4691 = vmatprep.subr.bf16.mxu0 0
    %4692 = vmatpush2.bf16.msra.mxu0 0
    %4693 = vmatprep.subr.bf16.mxu0 0
    %4694 = vmatpush2.bf16.msra.mxu0 0
    %4695 = vmatprep.subr.bf16.mxu0 0
    %4696 = vmatpush2.bf16.msra.mxu0 0
    %4697 = vmatprep.subr.bf16.mxu0 0
    %4698 = vmatpush2.bf16.msra.mxu0 0
    %4699 = vmatprep.subr.bf16.mxu0 0
    %4700 = vmatpush2.bf16.msra.mxu0 0
    %4701 = vmatprep.mubr.bf16.mxu0 0
    %4702 = vmatmul.mubr.bf16.gmra.mxu0 %v4668
    %v4703 = vpop.f32.mrf.mxu0
    %v4704 = vadd.f32 0.0, %v4703
    %v4705 = vpop.f32.mrf.mxu0
    %v4706 = vpop.f32.mrf.mxu0
    %v4707 = vpop.f32.mrf.mxu0
    %4708 = vdwg.mxu0
    %v4709 = vadd.f32 %v3894, %v4704
    %v4710 = vtanh.pop %v4709
    %v4711 = vld [vmem:[#allocation28] sm:$0xf]
    %v4712 = vld [vmem:[#allocation28 + $0x4] sm:$0xf]
    %v4713 = vld [vmem:[#allocation28 + $0x8] sm:$0xf]
    %v4714 = vld [vmem:[#allocation28 + $0xc] sm:$0xf]
    %v4715 = vld [vmem:[#allocation28 + $0x10] sm:$0xf]
    %v4716 = vld [vmem:[#allocation28 + $0x14] sm:$0xf]
    %v4717 = vld [vmem:[#allocation28 + $0x18] sm:$0xf]
    %v4718 = vld [vmem:[#allocation28 + $0x1c] sm:$0xf]
    %v4719 = vld [vmem:[#allocation28 + $0x20] sm:$0xf]
    %v4720 = vld [vmem:[#allocation28 + $0x24] sm:$0xf]
    %v4721 = vld [vmem:[#allocation28 + $0x28] sm:$0xf]
    %v4722 = vld [vmem:[#allocation28 + $0x2c] sm:$0xf]
    %v4723 = vld [vmem:[#allocation28 + $0x30] sm:$0xf]
    %v4724 = vld [vmem:[#allocation28 + $0x34] sm:$0xf]
    %v4725 = vld [vmem:[#allocation28 + $0x38] sm:$0xf]
    %v4726 = vld [vmem:[#allocation28 + $0x3c] sm:$0xf]
    %v4727 = vpack.c.bf16 %v4710, %v4710
    %v4728 = vld [vmem:[#allocation30] sm:$0xf]
    %v4729 = vld [vmem:[#allocation30 + $0x4] sm:$0xf]
    %v4730 = vld [vmem:[#allocation30 + $0x8] sm:$0xf]
    %v4731 = vld [vmem:[#allocation30 + $0xc] sm:$0xf]
    %v4732 = vld [vmem:[#allocation30 + $0x10] sm:$0xf]
    %v4733 = vld [vmem:[#allocation30 + $0x14] sm:$0xf]
    %v4734 = vld [vmem:[#allocation30 + $0x18] sm:$0xf]
    %v4735 = vld [vmem:[#allocation30 + $0x1c] sm:$0xf]
    %v4736 = vld [vmem:[#allocation30 + $0x20] sm:$0xf]
    %v4737 = vld [vmem:[#allocation30 + $0x24] sm:$0xf]
    %v4738 = vld [vmem:[#allocation30 + $0x28] sm:$0xf]
    %v4739 = vld [vmem:[#allocation30 + $0x2c] sm:$0xf]
    %v4740 = vld [vmem:[#allocation30 + $0x30] sm:$0xf]
    %v4741 = vld [vmem:[#allocation30 + $0x34] sm:$0xf]
    %v4742 = vld [vmem:[#allocation30 + $0x38] sm:$0xf]
    %v4743 = vld [vmem:[#allocation30 + $0x3c] sm:$0xf]
    %v4760 = vunpack.c.l.b16 %v4728
    %v4761 = vunpack.c.l.b16 %v4729
    %v4762 = vunpack.c.l.b16 %v4730
    %v4763 = vunpack.c.l.b16 %v4731
    %v4764 = vunpack.c.l.b16 %v4732
    %v4765 = vunpack.c.l.b16 %v4733
    %v4766 = vunpack.c.l.b16 %v4734
    %v4767 = vunpack.c.l.b16 %v4735
    %v4768 = vunpack.c.l.b16 %v4736
    %v4769 = vunpack.c.l.b16 %v4737
    %v4770 = vunpack.c.l.b16 %v4738
    %v4771 = vunpack.c.l.b16 %v4739
    %v4772 = vunpack.c.l.b16 %v4740
    %v4773 = vunpack.c.l.b16 %v4741
    %v4774 = vunpack.c.l.b16 %v4742
    %v4775 = vunpack.c.l.b16 %v4743
    %v4776 = vpack.c.b16 %v4761, %v4760
    %v4777 = vpack.c.b16 %v4763, %v4762
    %v4778 = vpack.c.b16 %v4765, %v4764
    %v4779 = vpack.c.b16 %v4767, %v4766
    %v4780 = vpack.c.b16 %v4769, %v4768
    %v4781 = vpack.c.b16 %v4771, %v4770
    %v4782 = vpack.c.b16 %v4773, %v4772
    %v4783 = vpack.c.b16 %v4775, %v4774
    %4792 = vmatprep.subr.bf16.mxu0 0
    %4793 = vmatpush1.bf16.msra.mxu0 %v4783
    %4794 = vmatprep.subr.bf16.mxu0 0
    %4795 = vmatpush1.bf16.msra.mxu0 %v4782
    %4796 = vmatprep.subr.bf16.mxu0 0
    %4797 = vmatpush1.bf16.msra.mxu0 %v4781
    %4798 = vmatprep.subr.bf16.mxu0 0
    %4799 = vmatpush1.bf16.msra.mxu0 %v4780
    %4800 = vmatprep.subr.bf16.mxu0 0
    %4801 = vmatpush1.bf16.msra.mxu0 %v4779
    %4802 = vmatprep.subr.bf16.mxu0 0
    %4803 = vmatpush1.bf16.msra.mxu0 %v4778
    %4804 = vmatprep.subr.bf16.mxu0 0
    %4805 = vmatpush1.bf16.msra.mxu0 %v4777
    %4806 = vmatprep.subr.bf16.mxu0 0
    %4807 = vmatpush1.bf16.msra.mxu0 %v4776
    %4808 = vmatprep.subr.bf16.mxu0 0
    %4809 = vmatpush2.bf16.msra.mxu0 0
    %4810 = vmatprep.subr.bf16.mxu0 0
    %4811 = vmatpush2.bf16.msra.mxu0 0
    %4812 = vmatprep.subr.bf16.mxu0 0
    %4813 = vmatpush2.bf16.msra.mxu0 0
    %4814 = vmatprep.subr.bf16.mxu0 0
    %4815 = vmatpush2.bf16.msra.mxu0 0
    %4816 = vmatprep.subr.bf16.mxu0 0
    %4817 = vmatpush2.bf16.msra.mxu0 0
    %4818 = vmatprep.subr.bf16.mxu0 0
    %4819 = vmatpush2.bf16.msra.mxu0 0
    %4820 = vmatprep.subr.bf16.mxu0 0
    %4821 = vmatpush2.bf16.msra.mxu0 0
    %4822 = vmatprep.subr.bf16.mxu0 0
    %4823 = vmatpush2.bf16.msra.mxu0 0
    %4824 = vmatprep.mubr.bf16.mxu0 0
    %4825 = vmatmul.mubr.bf16.gmra.mxu0 %v4727
    %v4826 = vpop.f32.mrf.mxu0
    %v4827 = vadd.f32 0.0, %v4826
    %v4828 = vpop.f32.mrf.mxu0
    %v4829 = vpop.f32.mrf.mxu0
    %v4830 = vpop.f32.mrf.mxu0
    %4831 = vdwg.mxu0
    %v4848 = vunpack.c.l.b16 %v4711
    %v4849 = vunpack.c.l.b16 %v4712
    %v4850 = vunpack.c.l.b16 %v4713
    %v4851 = vunpack.c.l.b16 %v4714
    %v4852 = vunpack.c.l.b16 %v4715
    %v4853 = vunpack.c.l.b16 %v4716
    %v4854 = vunpack.c.l.b16 %v4717
    %v4855 = vunpack.c.l.b16 %v4718
    %v4856 = vunpack.c.l.b16 %v4719
    %v4857 = vunpack.c.l.b16 %v4720
    %v4858 = vunpack.c.l.b16 %v4721
    %v4859 = vunpack.c.l.b16 %v4722
    %v4860 = vunpack.c.l.b16 %v4723
    %v4861 = vunpack.c.l.b16 %v4724
    %v4862 = vunpack.c.l.b16 %v4725
    %v4863 = vunpack.c.l.b16 %v4726
    %v4864 = vpack.c.b16 %v4849, %v4848
    %v4865 = vpack.c.b16 %v4851, %v4850
    %v4866 = vpack.c.b16 %v4853, %v4852
    %v4867 = vpack.c.b16 %v4855, %v4854
    %v4868 = vpack.c.b16 %v4857, %v4856
    %v4869 = vpack.c.b16 %v4859, %v4858
    %v4870 = vpack.c.b16 %v4861, %v4860
    %v4871 = vpack.c.b16 %v4863, %v4862
    %4880 = vmatprep.subr.bf16.mxu0 0
    %4881 = vmatpush1.bf16.msra.mxu0 %v4871
    %4882 = vmatprep.subr.bf16.mxu0 0
    %4883 = vmatpush1.bf16.msra.mxu0 %v4870
    %4884 = vmatprep.subr.bf16.mxu0 0
    %4885 = vmatpush1.bf16.msra.mxu0 %v4869
    %4886 = vmatprep.subr.bf16.mxu0 0
    %4887 = vmatpush1.bf16.msra.mxu0 %v4868
    %4888 = vmatprep.subr.bf16.mxu0 0
    %4889 = vmatpush1.bf16.msra.mxu0 %v4867
    %4890 = vmatprep.subr.bf16.mxu0 0
    %4891 = vmatpush1.bf16.msra.mxu0 %v4866
    %4892 = vmatprep.subr.bf16.mxu0 0
    %4893 = vmatpush1.bf16.msra.mxu0 %v4865
    %4894 = vmatprep.subr.bf16.mxu0 0
    %4895 = vmatpush1.bf16.msra.mxu0 %v4864
    %4896 = vmatprep.subr.bf16.mxu0 0
    %4897 = vmatpush2.bf16.msra.mxu0 0
    %4898 = vmatprep.subr.bf16.mxu0 0
    %4899 = vmatpush2.bf16.msra.mxu0 0
    %4900 = vmatprep.subr.bf16.mxu0 0
    %4901 = vmatpush2.bf16.msra.mxu0 0
    %4902 = vmatprep.subr.bf16.mxu0 0
    %4903 = vmatpush2.bf16.msra.mxu0 0
    %4904 = vmatprep.subr.bf16.mxu0 0
    %4905 = vmatpush2.bf16.msra.mxu0 0
    %4906 = vmatprep.subr.bf16.mxu0 0
    %4907 = vmatpush2.bf16.msra.mxu0 0
    %4908 = vmatprep.subr.bf16.mxu0 0
    %4909 = vmatpush2.bf16.msra.mxu0 0
    %4910 = vmatprep.subr.bf16.mxu0 0
    %4911 = vmatpush2.bf16.msra.mxu0 0
    %4912 = vmatprep.mubr.bf16.mxu0 0
    %4913 = vmatmul.mubr.bf16.gmra.mxu0 %v4002
    %v4914 = vpop.f32.mrf.mxu0
    %v4915 = vadd.f32 %v4827, %v4914
    %v4916 = vpop.f32.mrf.mxu0
    %v4917 = vpop.f32.mrf.mxu0
    %v4918 = vpop.f32.mrf.mxu0
    %4919 = vdwg.mxu0
    %v4920 = vld [vmem:[#allocation28 + $0x40] sm:$0xf]
    %v4921 = vld [vmem:[#allocation28 + $0x44] sm:$0xf]
    %v4922 = vld [vmem:[#allocation28 + $0x48] sm:$0xf]
    %v4923 = vld [vmem:[#allocation28 + $0x4c] sm:$0xf]
    %v4924 = vld [vmem:[#allocation28 + $0x50] sm:$0xf]
    %v4925 = vld [vmem:[#allocation28 + $0x54] sm:$0xf]
    %v4926 = vld [vmem:[#allocation28 + $0x58] sm:$0xf]
    %v4927 = vld [vmem:[#allocation28 + $0x5c] sm:$0xf]
    %v4928 = vld [vmem:[#allocation28 + $0x60] sm:$0xf]
    %v4929 = vld [vmem:[#allocation28 + $0x64] sm:$0xf]
    %v4930 = vld [vmem:[#allocation28 + $0x68] sm:$0xf]
    %v4931 = vld [vmem:[#allocation28 + $0x6c] sm:$0xf]
    %v4932 = vld [vmem:[#allocation28 + $0x70] sm:$0xf]
    %v4933 = vld [vmem:[#allocation28 + $0x74] sm:$0xf]
    %v4934 = vld [vmem:[#allocation28 + $0x78] sm:$0xf]
    %v4935 = vld [vmem:[#allocation28 + $0x7c] sm:$0xf]
    %v4952 = vunpack.c.l.b16 %v4920
    %v4953 = vunpack.c.l.b16 %v4921
    %v4954 = vunpack.c.l.b16 %v4922
    %v4955 = vunpack.c.l.b16 %v4923
    %v4956 = vunpack.c.l.b16 %v4924
    %v4957 = vunpack.c.l.b16 %v4925
    %v4958 = vunpack.c.l.b16 %v4926
    %v4959 = vunpack.c.l.b16 %v4927
    %v4960 = vunpack.c.l.b16 %v4928
    %v4961 = vunpack.c.l.b16 %v4929
    %v4962 = vunpack.c.l.b16 %v4930
    %v4963 = vunpack.c.l.b16 %v4931
    %v4964 = vunpack.c.l.b16 %v4932
    %v4965 = vunpack.c.l.b16 %v4933
    %v4966 = vunpack.c.l.b16 %v4934
    %v4967 = vunpack.c.l.b16 %v4935
    %v4968 = vpack.c.b16 %v4953, %v4952
    %v4969 = vpack.c.b16 %v4955, %v4954
    %v4970 = vpack.c.b16 %v4957, %v4956
    %v4971 = vpack.c.b16 %v4959, %v4958
    %v4972 = vpack.c.b16 %v4961, %v4960
    %v4973 = vpack.c.b16 %v4963, %v4962
    %v4974 = vpack.c.b16 %v4965, %v4964
    %v4975 = vpack.c.b16 %v4967, %v4966
    %4984 = vmatprep.subr.bf16.mxu0 0
    %4985 = vmatpush1.bf16.msra.mxu0 %v4975
    %4986 = vmatprep.subr.bf16.mxu0 0
    %4987 = vmatpush1.bf16.msra.mxu0 %v4974
    %4988 = vmatprep.subr.bf16.mxu0 0
    %4989 = vmatpush1.bf16.msra.mxu0 %v4973
    %4990 = vmatprep.subr.bf16.mxu0 0
    %4991 = vmatpush1.bf16.msra.mxu0 %v4972
    %4992 = vmatprep.subr.bf16.mxu0 0
    %4993 = vmatpush1.bf16.msra.mxu0 %v4971
    %4994 = vmatprep.subr.bf16.mxu0 0
    %4995 = vmatpush1.bf16.msra.mxu0 %v4970
    %4996 = vmatprep.subr.bf16.mxu0 0
    %4997 = vmatpush1.bf16.msra.mxu0 %v4969
    %4998 = vmatprep.subr.bf16.mxu0 0
    %4999 = vmatpush1.bf16.msra.mxu0 %v4968
    %5000 = vmatprep.subr.bf16.mxu0 0
    %5001 = vmatpush2.bf16.msra.mxu0 0
    %5002 = vmatprep.subr.bf16.mxu0 0
    %5003 = vmatpush2.bf16.msra.mxu0 0
    %5004 = vmatprep.subr.bf16.mxu0 0
    %5005 = vmatpush2.bf16.msra.mxu0 0
    %5006 = vmatprep.subr.bf16.mxu0 0
    %5007 = vmatpush2.bf16.msra.mxu0 0
    %5008 = vmatprep.subr.bf16.mxu0 0
    %5009 = vmatpush2.bf16.msra.mxu0 0
    %5010 = vmatprep.subr.bf16.mxu0 0
    %5011 = vmatpush2.bf16.msra.mxu0 0
    %5012 = vmatprep.subr.bf16.mxu0 0
    %5013 = vmatpush2.bf16.msra.mxu0 0
    %5014 = vmatprep.subr.bf16.mxu0 0
    %5015 = vmatpush2.bf16.msra.mxu0 0
    %5016 = vmatprep.mubr.bf16.mxu0 0
    %5017 = vmatmul.mubr.bf16.gmra.mxu0 %v4045
    %v5018 = vpop.f32.mrf.mxu0
    %v5019 = vadd.f32 0.0, %v5018
    %v5020 = vpop.f32.mrf.mxu0
    %v5021 = vpop.f32.mrf.mxu0
    %v5022 = vpop.f32.mrf.mxu0
    %5023 = vdwg.mxu0
    %v5024 = vadd.f32 %v4915, %v5019
    %v5025 = vld [vmem:[#allocation30 + $0x40] sm:$0xf]
    %v5026 = vld [vmem:[#allocation30 + $0x44] sm:$0xf]
    %v5027 = vld [vmem:[#allocation30 + $0x48] sm:$0xf]
    %v5028 = vld [vmem:[#allocation30 + $0x4c] sm:$0xf]
    %v5029 = vld [vmem:[#allocation30 + $0x50] sm:$0xf]
    %v5030 = vld [vmem:[#allocation30 + $0x54] sm:$0xf]
    %v5031 = vld [vmem:[#allocation30 + $0x58] sm:$0xf]
    %v5032 = vld [vmem:[#allocation30 + $0x5c] sm:$0xf]
    %v5033 = vld [vmem:[#allocation30 + $0x60] sm:$0xf]
    %v5034 = vld [vmem:[#allocation30 + $0x64] sm:$0xf]
    %v5035 = vld [vmem:[#allocation30 + $0x68] sm:$0xf]
    %v5036 = vld [vmem:[#allocation30 + $0x6c] sm:$0xf]
    %v5037 = vld [vmem:[#allocation30 + $0x70] sm:$0xf]
    %v5038 = vld [vmem:[#allocation30 + $0x74] sm:$0xf]
    %v5039 = vld [vmem:[#allocation30 + $0x78] sm:$0xf]
    %v5040 = vld [vmem:[#allocation30 + $0x7c] sm:$0xf]
    %v5057 = vunpack.c.l.b16 %v5025
    %v5058 = vunpack.c.l.b16 %v5026
    %v5059 = vunpack.c.l.b16 %v5027
    %v5060 = vunpack.c.l.b16 %v5028
    %v5061 = vunpack.c.l.b16 %v5029
    %v5062 = vunpack.c.l.b16 %v5030
    %v5063 = vunpack.c.l.b16 %v5031
    %v5064 = vunpack.c.l.b16 %v5032
    %v5065 = vunpack.c.l.b16 %v5033
    %v5066 = vunpack.c.l.b16 %v5034
    %v5067 = vunpack.c.l.b16 %v5035
    %v5068 = vunpack.c.l.b16 %v5036
    %v5069 = vunpack.c.l.b16 %v5037
    %v5070 = vunpack.c.l.b16 %v5038
    %v5071 = vunpack.c.l.b16 %v5039
    %v5072 = vunpack.c.l.b16 %v5040
    %v5073 = vpack.c.b16 %v5058, %v5057
    %v5074 = vpack.c.b16 %v5060, %v5059
    %v5075 = vpack.c.b16 %v5062, %v5061
    %v5076 = vpack.c.b16 %v5064, %v5063
    %v5077 = vpack.c.b16 %v5066, %v5065
    %v5078 = vpack.c.b16 %v5068, %v5067
    %v5079 = vpack.c.b16 %v5070, %v5069
    %v5080 = vpack.c.b16 %v5072, %v5071
    %5089 = vmatprep.subr.bf16.mxu0 0
    %5090 = vmatpush1.bf16.msra.mxu0 %v5080
    %5091 = vmatprep.subr.bf16.mxu0 0
    %5092 = vmatpush1.bf16.msra.mxu0 %v5079
    %5093 = vmatprep.subr.bf16.mxu0 0
    %5094 = vmatpush1.bf16.msra.mxu0 %v5078
    %5095 = vmatprep.subr.bf16.mxu0 0
    %5096 = vmatpush1.bf16.msra.mxu0 %v5077
    %5097 = vmatprep.subr.bf16.mxu0 0
    %5098 = vmatpush1.bf16.msra.mxu0 %v5076
    %5099 = vmatprep.subr.bf16.mxu0 0
    %5100 = vmatpush1.bf16.msra.mxu0 %v5075
    %5101 = vmatprep.subr.bf16.mxu0 0
    %5102 = vmatpush1.bf16.msra.mxu0 %v5074
    %5103 = vmatprep.subr.bf16.mxu0 0
    %5104 = vmatpush1.bf16.msra.mxu0 %v5073
    %5105 = vmatprep.subr.bf16.mxu0 0
    %5106 = vmatpush2.bf16.msra.mxu0 0
    %5107 = vmatprep.subr.bf16.mxu0 0
    %5108 = vmatpush2.bf16.msra.mxu0 0
    %5109 = vmatprep.subr.bf16.mxu0 0
    %5110 = vmatpush2.bf16.msra.mxu0 0
    %5111 = vmatprep.subr.bf16.mxu0 0
    %5112 = vmatpush2.bf16.msra.mxu0 0
    %5113 = vmatprep.subr.bf16.mxu0 0
    %5114 = vmatpush2.bf16.msra.mxu0 0
    %5115 = vmatprep.subr.bf16.mxu0 0
    %5116 = vmatpush2.bf16.msra.mxu0 0
    %5117 = vmatprep.subr.bf16.mxu0 0
    %5118 = vmatpush2.bf16.msra.mxu0 0
    %5119 = vmatprep.subr.bf16.mxu0 0
    %5120 = vmatpush2.bf16.msra.mxu0 0
    %5121 = vmatprep.mubr.bf16.mxu0 0
    %5122 = vmatmul.mubr.bf16.gmra.mxu0 %v4668
    %v5123 = vpop.f32.mrf.mxu0
    %v5124 = vadd.f32 0.0, %v5123
    %v5125 = vpop.f32.mrf.mxu0
    %v5126 = vpop.f32.mrf.mxu0
    %v5127 = vpop.f32.mrf.mxu0
    %5128 = vdwg.mxu0
    %v5129 = vadd.f32 %v5024, %v5124
    %v5130 = vld [vmem:[#allocation28 + $0x80] sm:$0xf]
    %v5131 = vld [vmem:[#allocation28 + $0x84] sm:$0xf]
    %v5132 = vld [vmem:[#allocation28 + $0x88] sm:$0xf]
    %v5133 = vld [vmem:[#allocation28 + $0x8c] sm:$0xf]
    %v5134 = vld [vmem:[#allocation28 + $0x90] sm:$0xf]
    %v5135 = vld [vmem:[#allocation28 + $0x94] sm:$0xf]
    %v5136 = vld [vmem:[#allocation28 + $0x98] sm:$0xf]
    %v5137 = vld [vmem:[#allocation28 + $0x9c] sm:$0xf]
    %v5138 = vld [vmem:[#allocation28 + $0xa0] sm:$0xf]
    %v5139 = vld [vmem:[#allocation28 + $0xa4] sm:$0xf]
    %v5140 = vld [vmem:[#allocation28 + $0xa8] sm:$0xf]
    %v5141 = vld [vmem:[#allocation28 + $0xac] sm:$0xf]
    %v5142 = vld [vmem:[#allocation28 + $0xb0] sm:$0xf]
    %v5143 = vld [vmem:[#allocation28 + $0xb4] sm:$0xf]
    %v5144 = vld [vmem:[#allocation28 + $0xb8] sm:$0xf]
    %v5145 = vld [vmem:[#allocation28 + $0xbc] sm:$0xf]
    %v5162 = vunpack.c.l.b16 %v5130
    %v5163 = vunpack.c.l.b16 %v5131
    %v5164 = vunpack.c.l.b16 %v5132
    %v5165 = vunpack.c.l.b16 %v5133
    %v5166 = vunpack.c.l.b16 %v5134
    %v5167 = vunpack.c.l.b16 %v5135
    %v5168 = vunpack.c.l.b16 %v5136
    %v5169 = vunpack.c.l.b16 %v5137
    %v5170 = vunpack.c.l.b16 %v5138
    %v5171 = vunpack.c.l.b16 %v5139
    %v5172 = vunpack.c.l.b16 %v5140
    %v5173 = vunpack.c.l.b16 %v5141
    %v5174 = vunpack.c.l.b16 %v5142
    %v5175 = vunpack.c.l.b16 %v5143
    %v5176 = vunpack.c.l.b16 %v5144
    %v5177 = vunpack.c.l.b16 %v5145
    %v5178 = vpack.c.b16 %v5163, %v5162
    %v5179 = vpack.c.b16 %v5165, %v5164
    %v5180 = vpack.c.b16 %v5167, %v5166
    %v5181 = vpack.c.b16 %v5169, %v5168
    %v5182 = vpack.c.b16 %v5171, %v5170
    %v5183 = vpack.c.b16 %v5173, %v5172
    %v5184 = vpack.c.b16 %v5175, %v5174
    %v5185 = vpack.c.b16 %v5177, %v5176
    %5194 = vmatprep.subr.bf16.mxu0 0
    %5195 = vmatpush1.bf16.msra.mxu0 %v5185
    %5196 = vmatprep.subr.bf16.mxu0 0
    %5197 = vmatpush1.bf16.msra.mxu0 %v5184
    %5198 = vmatprep.subr.bf16.mxu0 0
    %5199 = vmatpush1.bf16.msra.mxu0 %v5183
    %5200 = vmatprep.subr.bf16.mxu0 0
    %5201 = vmatpush1.bf16.msra.mxu0 %v5182
    %5202 = vmatprep.subr.bf16.mxu0 0
    %5203 = vmatpush1.bf16.msra.mxu0 %v5181
    %5204 = vmatprep.subr.bf16.mxu0 0
    %5205 = vmatpush1.bf16.msra.mxu0 %v5180
    %5206 = vmatprep.subr.bf16.mxu0 0
    %5207 = vmatpush1.bf16.msra.mxu0 %v5179
    %5208 = vmatprep.subr.bf16.mxu0 0
    %5209 = vmatpush1.bf16.msra.mxu0 %v5178
    %5210 = vmatprep.subr.bf16.mxu0 0
    %5211 = vmatpush2.bf16.msra.mxu0 0
    %5212 = vmatprep.subr.bf16.mxu0 0
    %5213 = vmatpush2.bf16.msra.mxu0 0
    %5214 = vmatprep.subr.bf16.mxu0 0
    %5215 = vmatpush2.bf16.msra.mxu0 0
    %5216 = vmatprep.subr.bf16.mxu0 0
    %5217 = vmatpush2.bf16.msra.mxu0 0
    %5218 = vmatprep.subr.bf16.mxu0 0
    %5219 = vmatpush2.bf16.msra.mxu0 0
    %5220 = vmatprep.subr.bf16.mxu0 0
    %5221 = vmatpush2.bf16.msra.mxu0 0
    %5222 = vmatprep.subr.bf16.mxu0 0
    %5223 = vmatpush2.bf16.msra.mxu0 0
    %5224 = vmatprep.subr.bf16.mxu0 0
    %5225 = vmatpush2.bf16.msra.mxu0 0
    %5226 = vmatprep.mubr.bf16.mxu0 0
    %5227 = vmatmul.mubr.bf16.gmra.mxu0 %v4088
    %v5228 = vpop.f32.mrf.mxu0
    %v5229 = vadd.f32 0.0, %v5228
    %v5230 = vpop.f32.mrf.mxu0
    %v5231 = vpop.f32.mrf.mxu0
    %v5232 = vpop.f32.mrf.mxu0
    %5233 = vdwg.mxu0
    %v5234 = vadd.f32 %v5129, %v5229
    %v5235 = vld [vmem:[#allocation30 + $0x80] sm:$0xf]
    %v5236 = vld [vmem:[#allocation30 + $0x84] sm:$0xf]
    %v5237 = vld [vmem:[#allocation30 + $0x88] sm:$0xf]
    %v5238 = vld [vmem:[#allocation30 + $0x8c] sm:$0xf]
    %v5239 = vld [vmem:[#allocation30 + $0x90] sm:$0xf]
    %v5240 = vld [vmem:[#allocation30 + $0x94] sm:$0xf]
    %v5241 = vld [vmem:[#allocation30 + $0x98] sm:$0xf]
    %v5242 = vld [vmem:[#allocation30 + $0x9c] sm:$0xf]
    %v5243 = vld [vmem:[#allocation30 + $0xa0] sm:$0xf]
    %v5244 = vld [vmem:[#allocation30 + $0xa4] sm:$0xf]
    %v5245 = vld [vmem:[#allocation30 + $0xa8] sm:$0xf]
    %v5246 = vld [vmem:[#allocation30 + $0xac] sm:$0xf]
    %v5247 = vld [vmem:[#allocation30 + $0xb0] sm:$0xf]
    %v5248 = vld [vmem:[#allocation30 + $0xb4] sm:$0xf]
    %v5249 = vld [vmem:[#allocation30 + $0xb8] sm:$0xf]
    %v5250 = vld [vmem:[#allocation30 + $0xbc] sm:$0xf]
    %v5267 = vunpack.c.l.b16 %v5235
    %v5268 = vunpack.c.l.b16 %v5236
    %v5269 = vunpack.c.l.b16 %v5237
    %v5270 = vunpack.c.l.b16 %v5238
    %v5271 = vunpack.c.l.b16 %v5239
    %v5272 = vunpack.c.l.b16 %v5240
    %v5273 = vunpack.c.l.b16 %v5241
    %v5274 = vunpack.c.l.b16 %v5242
    %v5275 = vunpack.c.l.b16 %v5243
    %v5276 = vunpack.c.l.b16 %v5244
    %v5277 = vunpack.c.l.b16 %v5245
    %v5278 = vunpack.c.l.b16 %v5246
    %v5279 = vunpack.c.l.b16 %v5247
    %v5280 = vunpack.c.l.b16 %v5248
    %v5281 = vunpack.c.l.b16 %v5249
    %v5282 = vunpack.c.l.b16 %v5250
    %v5283 = vpack.c.b16 %v5268, %v5267
    %v5284 = vpack.c.b16 %v5270, %v5269
    %v5285 = vpack.c.b16 %v5272, %v5271
    %v5286 = vpack.c.b16 %v5274, %v5273
    %v5287 = vpack.c.b16 %v5276, %v5275
    %v5288 = vpack.c.b16 %v5278, %v5277
    %v5289 = vpack.c.b16 %v5280, %v5279
    %v5290 = vpack.c.b16 %v5282, %v5281
    %5299 = vmatprep.subr.bf16.mxu0 0
    %5300 = vmatpush1.bf16.msra.mxu0 %v5290
    %5301 = vmatprep.subr.bf16.mxu0 0
    %5302 = vmatpush1.bf16.msra.mxu0 %v5289
    %5303 = vmatprep.subr.bf16.mxu0 0
    %5304 = vmatpush1.bf16.msra.mxu0 %v5288
    %5305 = vmatprep.subr.bf16.mxu0 0
    %5306 = vmatpush1.bf16.msra.mxu0 %v5287
    %5307 = vmatprep.subr.bf16.mxu0 0
    %5308 = vmatpush1.bf16.msra.mxu0 %v5286
    %5309 = vmatprep.subr.bf16.mxu0 0
    %5310 = vmatpush1.bf16.msra.mxu0 %v5285
    %5311 = vmatprep.subr.bf16.mxu0 0
    %5312 = vmatpush1.bf16.msra.mxu0 %v5284
    %5313 = vmatprep.subr.bf16.mxu0 0
    %5314 = vmatpush1.bf16.msra.mxu0 %v5283
    %5315 = vmatprep.subr.bf16.mxu0 0
    %5316 = vmatpush2.bf16.msra.mxu0 0
    %5317 = vmatprep.subr.bf16.mxu0 0
    %5318 = vmatpush2.bf16.msra.mxu0 0
    %5319 = vmatprep.subr.bf16.mxu0 0
    %5320 = vmatpush2.bf16.msra.mxu0 0
    %5321 = vmatprep.subr.bf16.mxu0 0
    %5322 = vmatpush2.bf16.msra.mxu0 0
    %5323 = vmatprep.subr.bf16.mxu0 0
    %5324 = vmatpush2.bf16.msra.mxu0 0
    %5325 = vmatprep.subr.bf16.mxu0 0
    %5326 = vmatpush2.bf16.msra.mxu0 0
    %5327 = vmatprep.subr.bf16.mxu0 0
    %5328 = vmatpush2.bf16.msra.mxu0 0
    %5329 = vmatprep.subr.bf16.mxu0 0
    %5330 = vmatpush2.bf16.msra.mxu0 0
    %5331 = vmatprep.mubr.bf16.mxu0 0
    %5332 = vmatmul.mubr.bf16.gmra.mxu0 %v4625
    %v5333 = vpop.f32.mrf.mxu0
    %v5334 = vadd.f32 0.0, %v5333
    %v5335 = vpop.f32.mrf.mxu0
    %v5336 = vpop.f32.mrf.mxu0
    %v5337 = vpop.f32.mrf.mxu0
    %5338 = vdwg.mxu0
    %v5339 = vadd.f32 %v5234, %v5334
    %v5340 = vld [vmem:[#allocation28 + $0xc0] sm:$0xf]
    %v5341 = vld [vmem:[#allocation28 + $0xc4] sm:$0xf]
    %v5342 = vld [vmem:[#allocation28 + $0xc8] sm:$0xf]
    %v5343 = vld [vmem:[#allocation28 + $0xcc] sm:$0xf]
    %v5344 = vld [vmem:[#allocation28 + $0xd0] sm:$0xf]
    %v5345 = vld [vmem:[#allocation28 + $0xd4] sm:$0xf]
    %v5346 = vld [vmem:[#allocation28 + $0xd8] sm:$0xf]
    %v5347 = vld [vmem:[#allocation28 + $0xdc] sm:$0xf]
    %v5348 = vld [vmem:[#allocation28 + $0xe0] sm:$0xf]
    %v5349 = vld [vmem:[#allocation28 + $0xe4] sm:$0xf]
    %v5350 = vld [vmem:[#allocation28 + $0xe8] sm:$0xf]
    %v5351 = vld [vmem:[#allocation28 + $0xec] sm:$0xf]
    %v5352 = vld [vmem:[#allocation28 + $0xf0] sm:$0xf]
    %v5353 = vld [vmem:[#allocation28 + $0xf4] sm:$0xf]
    %v5354 = vld [vmem:[#allocation28 + $0xf8] sm:$0xf]
    %v5355 = vld [vmem:[#allocation28 + $0xfc] sm:$0xf]
    %v5372 = vunpack.c.l.b16 %v5340
    %v5373 = vunpack.c.l.b16 %v5341
    %v5374 = vunpack.c.l.b16 %v5342
    %v5375 = vunpack.c.l.b16 %v5343
    %v5376 = vunpack.c.l.b16 %v5344
    %v5377 = vunpack.c.l.b16 %v5345
    %v5378 = vunpack.c.l.b16 %v5346
    %v5379 = vunpack.c.l.b16 %v5347
    %v5380 = vunpack.c.l.b16 %v5348
    %v5381 = vunpack.c.l.b16 %v5349
    %v5382 = vunpack.c.l.b16 %v5350
    %v5383 = vunpack.c.l.b16 %v5351
    %v5384 = vunpack.c.l.b16 %v5352
    %v5385 = vunpack.c.l.b16 %v5353
    %v5386 = vunpack.c.l.b16 %v5354
    %v5387 = vunpack.c.l.b16 %v5355
    %v5388 = vpack.c.b16 %v5373, %v5372
    %v5389 = vpack.c.b16 %v5375, %v5374
    %v5390 = vpack.c.b16 %v5377, %v5376
    %v5391 = vpack.c.b16 %v5379, %v5378
    %v5392 = vpack.c.b16 %v5381, %v5380
    %v5393 = vpack.c.b16 %v5383, %v5382
    %v5394 = vpack.c.b16 %v5385, %v5384
    %v5395 = vpack.c.b16 %v5387, %v5386
    %5404 = vmatprep.subr.bf16.mxu0 0
    %5405 = vmatpush1.bf16.msra.mxu0 %v5395
    %5406 = vmatprep.subr.bf16.mxu0 0
    %5407 = vmatpush1.bf16.msra.mxu0 %v5394
    %5408 = vmatprep.subr.bf16.mxu0 0
    %5409 = vmatpush1.bf16.msra.mxu0 %v5393
    %5410 = vmatprep.subr.bf16.mxu0 0
    %5411 = vmatpush1.bf16.msra.mxu0 %v5392
    %5412 = vmatprep.subr.bf16.mxu0 0
    %5413 = vmatpush1.bf16.msra.mxu0 %v5391
    %5414 = vmatprep.subr.bf16.mxu0 0
    %5415 = vmatpush1.bf16.msra.mxu0 %v5390
    %5416 = vmatprep.subr.bf16.mxu0 0
    %5417 = vmatpush1.bf16.msra.mxu0 %v5389
    %5418 = vmatprep.subr.bf16.mxu0 0
    %5419 = vmatpush1.bf16.msra.mxu0 %v5388
    %5420 = vmatprep.subr.bf16.mxu0 0
    %5421 = vmatpush2.bf16.msra.mxu0 0
    %5422 = vmatprep.subr.bf16.mxu0 0
    %5423 = vmatpush2.bf16.msra.mxu0 0
    %5424 = vmatprep.subr.bf16.mxu0 0
    %5425 = vmatpush2.bf16.msra.mxu0 0
    %5426 = vmatprep.subr.bf16.mxu0 0
    %5427 = vmatpush2.bf16.msra.mxu0 0
    %5428 = vmatprep.subr.bf16.mxu0 0
    %5429 = vmatpush2.bf16.msra.mxu0 0
    %5430 = vmatprep.subr.bf16.mxu0 0
    %5431 = vmatpush2.bf16.msra.mxu0 0
    %5432 = vmatprep.subr.bf16.mxu0 0
    %5433 = vmatpush2.bf16.msra.mxu0 0
    %5434 = vmatprep.subr.bf16.mxu0 0
    %5435 = vmatpush2.bf16.msra.mxu0 0
    %5436 = vmatprep.mubr.bf16.mxu0 0
    %5437 = vmatmul.mubr.bf16.gmra.mxu0 %v4131
    %v5438 = vpop.f32.mrf.mxu0
    %v5439 = vadd.f32 0.0, %v5438
    %v5440 = vpop.f32.mrf.mxu0
    %v5441 = vpop.f32.mrf.mxu0
    %v5442 = vpop.f32.mrf.mxu0
    %5443 = vdwg.mxu0
    %v5444 = vadd.f32 %v5339, %v5439
    %v5445 = vld [vmem:[#allocation30 + $0xc0] sm:$0xf]
    %v5446 = vld [vmem:[#allocation30 + $0xc4] sm:$0xf]
    %v5447 = vld [vmem:[#allocation30 + $0xc8] sm:$0xf]
    %v5448 = vld [vmem:[#allocation30 + $0xcc] sm:$0xf]
    %v5449 = vld [vmem:[#allocation30 + $0xd0] sm:$0xf]
    %v5450 = vld [vmem:[#allocation30 + $0xd4] sm:$0xf]
    %v5451 = vld [vmem:[#allocation30 + $0xd8] sm:$0xf]
    %v5452 = vld [vmem:[#allocation30 + $0xdc] sm:$0xf]
    %v5453 = vld [vmem:[#allocation30 + $0xe0] sm:$0xf]
    %v5454 = vld [vmem:[#allocation30 + $0xe4] sm:$0xf]
    %v5455 = vld [vmem:[#allocation30 + $0xe8] sm:$0xf]
    %v5456 = vld [vmem:[#allocation30 + $0xec] sm:$0xf]
    %v5457 = vld [vmem:[#allocation30 + $0xf0] sm:$0xf]
    %v5458 = vld [vmem:[#allocation30 + $0xf4] sm:$0xf]
    %v5459 = vld [vmem:[#allocation30 + $0xf8] sm:$0xf]
    %v5460 = vld [vmem:[#allocation30 + $0xfc] sm:$0xf]
    %v5477 = vunpack.c.l.b16 %v5445
    %v5478 = vunpack.c.l.b16 %v5446
    %v5479 = vunpack.c.l.b16 %v5447
    %v5480 = vunpack.c.l.b16 %v5448
    %v5481 = vunpack.c.l.b16 %v5449
    %v5482 = vunpack.c.l.b16 %v5450
    %v5483 = vunpack.c.l.b16 %v5451
    %v5484 = vunpack.c.l.b16 %v5452
    %v5485 = vunpack.c.l.b16 %v5453
    %v5486 = vunpack.c.l.b16 %v5454
    %v5487 = vunpack.c.l.b16 %v5455
    %v5488 = vunpack.c.l.b16 %v5456
    %v5489 = vunpack.c.l.b16 %v5457
    %v5490 = vunpack.c.l.b16 %v5458
    %v5491 = vunpack.c.l.b16 %v5459
    %v5492 = vunpack.c.l.b16 %v5460
    %v5493 = vpack.c.b16 %v5478, %v5477
    %v5494 = vpack.c.b16 %v5480, %v5479
    %v5495 = vpack.c.b16 %v5482, %v5481
    %v5496 = vpack.c.b16 %v5484, %v5483
    %v5497 = vpack.c.b16 %v5486, %v5485
    %v5498 = vpack.c.b16 %v5488, %v5487
    %v5499 = vpack.c.b16 %v5490, %v5489
    %v5500 = vpack.c.b16 %v5492, %v5491
    %5509 = vmatprep.subr.bf16.mxu0 0
    %5510 = vmatpush1.bf16.msra.mxu0 %v5500
    %5511 = vmatprep.subr.bf16.mxu0 0
    %5512 = vmatpush1.bf16.msra.mxu0 %v5499
    %5513 = vmatprep.subr.bf16.mxu0 0
    %5514 = vmatpush1.bf16.msra.mxu0 %v5498
    %5515 = vmatprep.subr.bf16.mxu0 0
    %5516 = vmatpush1.bf16.msra.mxu0 %v5497
    %5517 = vmatprep.subr.bf16.mxu0 0
    %5518 = vmatpush1.bf16.msra.mxu0 %v5496
    %5519 = vmatprep.subr.bf16.mxu0 0
    %5520 = vmatpush1.bf16.msra.mxu0 %v5495
    %5521 = vmatprep.subr.bf16.mxu0 0
    %5522 = vmatpush1.bf16.msra.mxu0 %v5494
    %5523 = vmatprep.subr.bf16.mxu0 0
    %5524 = vmatpush1.bf16.msra.mxu0 %v5493
    %5525 = vmatprep.subr.bf16.mxu0 0
    %5526 = vmatpush2.bf16.msra.mxu0 0
    %5527 = vmatprep.subr.bf16.mxu0 0
    %5528 = vmatpush2.bf16.msra.mxu0 0
    %5529 = vmatprep.subr.bf16.mxu0 0
    %5530 = vmatpush2.bf16.msra.mxu0 0
    %5531 = vmatprep.subr.bf16.mxu0 0
    %5532 = vmatpush2.bf16.msra.mxu0 0
    %5533 = vmatprep.subr.bf16.mxu0 0
    %5534 = vmatpush2.bf16.msra.mxu0 0
    %5535 = vmatprep.subr.bf16.mxu0 0
    %5536 = vmatpush2.bf16.msra.mxu0 0
    %5537 = vmatprep.subr.bf16.mxu0 0
    %5538 = vmatpush2.bf16.msra.mxu0 0
    %5539 = vmatprep.subr.bf16.mxu0 0
    %5540 = vmatpush2.bf16.msra.mxu0 0
    %5541 = vmatprep.mubr.bf16.mxu0 0
    %5542 = vmatmul.mubr.bf16.gmra.mxu0 %v4582
    %v5543 = vpop.f32.mrf.mxu0
    %v5544 = vadd.f32 0.0, %v5543
    %v5545 = vpop.f32.mrf.mxu0
    %v5546 = vpop.f32.mrf.mxu0
    %v5547 = vpop.f32.mrf.mxu0
    %5548 = vdwg.mxu0
    %v5549 = vadd.f32 %v5444, %v5544
    %v5550 = vld [vmem:[#allocation28 + $0x100] sm:$0xf]
    %v5551 = vld [vmem:[#allocation28 + $0x104] sm:$0xf]
    %v5552 = vld [vmem:[#allocation28 + $0x108] sm:$0xf]
    %v5553 = vld [vmem:[#allocation28 + $0x10c] sm:$0xf]
    %v5554 = vld [vmem:[#allocation28 + $0x110] sm:$0xf]
    %v5555 = vld [vmem:[#allocation28 + $0x114] sm:$0xf]
    %v5556 = vld [vmem:[#allocation28 + $0x118] sm:$0xf]
    %v5557 = vld [vmem:[#allocation28 + $0x11c] sm:$0xf]
    %v5558 = vld [vmem:[#allocation28 + $0x120] sm:$0xf]
    %v5559 = vld [vmem:[#allocation28 + $0x124] sm:$0xf]
    %v5560 = vld [vmem:[#allocation28 + $0x128] sm:$0xf]
    %v5561 = vld [vmem:[#allocation28 + $0x12c] sm:$0xf]
    %v5562 = vld [vmem:[#allocation28 + $0x130] sm:$0xf]
    %v5563 = vld [vmem:[#allocation28 + $0x134] sm:$0xf]
    %v5564 = vld [vmem:[#allocation28 + $0x138] sm:$0xf]
    %v5565 = vld [vmem:[#allocation28 + $0x13c] sm:$0xf]
    %v5582 = vunpack.c.l.b16 %v5550
    %v5583 = vunpack.c.l.b16 %v5551
    %v5584 = vunpack.c.l.b16 %v5552
    %v5585 = vunpack.c.l.b16 %v5553
    %v5586 = vunpack.c.l.b16 %v5554
    %v5587 = vunpack.c.l.b16 %v5555
    %v5588 = vunpack.c.l.b16 %v5556
    %v5589 = vunpack.c.l.b16 %v5557
    %v5590 = vunpack.c.l.b16 %v5558
    %v5591 = vunpack.c.l.b16 %v5559
    %v5592 = vunpack.c.l.b16 %v5560
    %v5593 = vunpack.c.l.b16 %v5561
    %v5594 = vunpack.c.l.b16 %v5562
    %v5595 = vunpack.c.l.b16 %v5563
    %v5596 = vunpack.c.l.b16 %v5564
    %v5597 = vunpack.c.l.b16 %v5565
    %v5598 = vpack.c.b16 %v5583, %v5582
    %v5599 = vpack.c.b16 %v5585, %v5584
    %v5600 = vpack.c.b16 %v5587, %v5586
    %v5601 = vpack.c.b16 %v5589, %v5588
    %v5602 = vpack.c.b16 %v5591, %v5590
    %v5603 = vpack.c.b16 %v5593, %v5592
    %v5604 = vpack.c.b16 %v5595, %v5594
    %v5605 = vpack.c.b16 %v5597, %v5596
    %5614 = vmatprep.subr.bf16.mxu0 0
    %5615 = vmatpush1.bf16.msra.mxu0 %v5605
    %5616 = vmatprep.subr.bf16.mxu0 0
    %5617 = vmatpush1.bf16.msra.mxu0 %v5604
    %5618 = vmatprep.subr.bf16.mxu0 0
    %5619 = vmatpush1.bf16.msra.mxu0 %v5603
    %5620 = vmatprep.subr.bf16.mxu0 0
    %5621 = vmatpush1.bf16.msra.mxu0 %v5602
    %5622 = vmatprep.subr.bf16.mxu0 0
    %5623 = vmatpush1.bf16.msra.mxu0 %v5601
    %5624 = vmatprep.subr.bf16.mxu0 0
    %5625 = vmatpush1.bf16.msra.mxu0 %v5600
    %5626 = vmatprep.subr.bf16.mxu0 0
    %5627 = vmatpush1.bf16.msra.mxu0 %v5599
    %5628 = vmatprep.subr.bf16.mxu0 0
    %5629 = vmatpush1.bf16.msra.mxu0 %v5598
    %5630 = vmatprep.subr.bf16.mxu0 0
    %5631 = vmatpush2.bf16.msra.mxu0 0
    %5632 = vmatprep.subr.bf16.mxu0 0
    %5633 = vmatpush2.bf16.msra.mxu0 0
    %5634 = vmatprep.subr.bf16.mxu0 0
    %5635 = vmatpush2.bf16.msra.mxu0 0
    %5636 = vmatprep.subr.bf16.mxu0 0
    %5637 = vmatpush2.bf16.msra.mxu0 0
    %5638 = vmatprep.subr.bf16.mxu0 0
    %5639 = vmatpush2.bf16.msra.mxu0 0
    %5640 = vmatprep.subr.bf16.mxu0 0
    %5641 = vmatpush2.bf16.msra.mxu0 0
    %5642 = vmatprep.subr.bf16.mxu0 0
    %5643 = vmatpush2.bf16.msra.mxu0 0
    %5644 = vmatprep.subr.bf16.mxu0 0
    %5645 = vmatpush2.bf16.msra.mxu0 0
    %5646 = vmatprep.mubr.bf16.mxu0 0
    %5647 = vmatmul.mubr.bf16.gmra.mxu0 %v4174
    %v5648 = vpop.f32.mrf.mxu0
    %v5649 = vadd.f32 0.0, %v5648
    %v5650 = vpop.f32.mrf.mxu0
    %v5651 = vpop.f32.mrf.mxu0
    %v5652 = vpop.f32.mrf.mxu0
    %5653 = vdwg.mxu0
    %v5654 = vadd.f32 %v5549, %v5649
    %v5655 = vld [vmem:[#allocation30 + $0x100] sm:$0xf]
    %v5656 = vld [vmem:[#allocation30 + $0x104] sm:$0xf]
    %v5657 = vld [vmem:[#allocation30 + $0x108] sm:$0xf]
    %v5658 = vld [vmem:[#allocation30 + $0x10c] sm:$0xf]
    %v5659 = vld [vmem:[#allocation30 + $0x110] sm:$0xf]
    %v5660 = vld [vmem:[#allocation30 + $0x114] sm:$0xf]
    %v5661 = vld [vmem:[#allocation30 + $0x118] sm:$0xf]
    %v5662 = vld [vmem:[#allocation30 + $0x11c] sm:$0xf]
    %v5663 = vld [vmem:[#allocation30 + $0x120] sm:$0xf]
    %v5664 = vld [vmem:[#allocation30 + $0x124] sm:$0xf]
    %v5665 = vld [vmem:[#allocation30 + $0x128] sm:$0xf]
    %v5666 = vld [vmem:[#allocation30 + $0x12c] sm:$0xf]
    %v5667 = vld [vmem:[#allocation30 + $0x130] sm:$0xf]
    %v5668 = vld [vmem:[#allocation30 + $0x134] sm:$0xf]
    %v5669 = vld [vmem:[#allocation30 + $0x138] sm:$0xf]
    %v5670 = vld [vmem:[#allocation30 + $0x13c] sm:$0xf]
    %v5687 = vunpack.c.l.b16 %v5655
    %v5688 = vunpack.c.l.b16 %v5656
    %v5689 = vunpack.c.l.b16 %v5657
    %v5690 = vunpack.c.l.b16 %v5658
    %v5691 = vunpack.c.l.b16 %v5659
    %v5692 = vunpack.c.l.b16 %v5660
    %v5693 = vunpack.c.l.b16 %v5661
    %v5694 = vunpack.c.l.b16 %v5662
    %v5695 = vunpack.c.l.b16 %v5663
    %v5696 = vunpack.c.l.b16 %v5664
    %v5697 = vunpack.c.l.b16 %v5665
    %v5698 = vunpack.c.l.b16 %v5666
    %v5699 = vunpack.c.l.b16 %v5667
    %v5700 = vunpack.c.l.b16 %v5668
    %v5701 = vunpack.c.l.b16 %v5669
    %v5702 = vunpack.c.l.b16 %v5670
    %v5703 = vpack.c.b16 %v5688, %v5687
    %v5704 = vpack.c.b16 %v5690, %v5689
    %v5705 = vpack.c.b16 %v5692, %v5691
    %v5706 = vpack.c.b16 %v5694, %v5693
    %v5707 = vpack.c.b16 %v5696, %v5695
    %v5708 = vpack.c.b16 %v5698, %v5697
    %v5709 = vpack.c.b16 %v5700, %v5699
    %v5710 = vpack.c.b16 %v5702, %v5701
    %5719 = vmatprep.subr.bf16.mxu0 0
    %5720 = vmatpush1.bf16.msra.mxu0 %v5710
    %5721 = vmatprep.subr.bf16.mxu0 0
    %5722 = vmatpush1.bf16.msra.mxu0 %v5709
    %5723 = vmatprep.subr.bf16.mxu0 0
    %5724 = vmatpush1.bf16.msra.mxu0 %v5708
    %5725 = vmatprep.subr.bf16.mxu0 0
    %5726 = vmatpush1.bf16.msra.mxu0 %v5707
    %5727 = vmatprep.subr.bf16.mxu0 0
    %5728 = vmatpush1.bf16.msra.mxu0 %v5706
    %5729 = vmatprep.subr.bf16.mxu0 0
    %5730 = vmatpush1.bf16.msra.mxu0 %v5705
    %5731 = vmatprep.subr.bf16.mxu0 0
    %5732 = vmatpush1.bf16.msra.mxu0 %v5704
    %5733 = vmatprep.subr.bf16.mxu0 0
    %5734 = vmatpush1.bf16.msra.mxu0 %v5703
    %5735 = vmatprep.subr.bf16.mxu0 0
    %5736 = vmatpush2.bf16.msra.mxu0 0
    %5737 = vmatprep.subr.bf16.mxu0 0
    %5738 = vmatpush2.bf16.msra.mxu0 0
    %5739 = vmatprep.subr.bf16.mxu0 0
    %5740 = vmatpush2.bf16.msra.mxu0 0
    %5741 = vmatprep.subr.bf16.mxu0 0
    %5742 = vmatpush2.bf16.msra.mxu0 0
    %5743 = vmatprep.subr.bf16.mxu0 0
    %5744 = vmatpush2.bf16.msra.mxu0 0
    %5745 = vmatprep.subr.bf16.mxu0 0
    %5746 = vmatpush2.bf16.msra.mxu0 0
    %5747 = vmatprep.subr.bf16.mxu0 0
    %5748 = vmatpush2.bf16.msra.mxu0 0
    %5749 = vmatprep.subr.bf16.mxu0 0
    %5750 = vmatpush2.bf16.msra.mxu0 0
    %5751 = vmatprep.mubr.bf16.mxu0 0
    %5752 = vmatmul.mubr.bf16.gmra.mxu0 %v4539
    %v5753 = vpop.f32.mrf.mxu0
    %v5754 = vadd.f32 0.0, %v5753
    %v5755 = vpop.f32.mrf.mxu0
    %v5756 = vpop.f32.mrf.mxu0
    %v5757 = vpop.f32.mrf.mxu0
    %5758 = vdwg.mxu0
    %v5759 = vadd.f32 %v5654, %v5754
    %v5760 = vld [vmem:[#allocation28 + $0x140] sm:$0xf]
    %v5761 = vld [vmem:[#allocation28 + $0x144] sm:$0xf]
    %v5762 = vld [vmem:[#allocation28 + $0x148] sm:$0xf]
    %v5763 = vld [vmem:[#allocation28 + $0x14c] sm:$0xf]
    %v5764 = vld [vmem:[#allocation28 + $0x150] sm:$0xf]
    %v5765 = vld [vmem:[#allocation28 + $0x154] sm:$0xf]
    %v5766 = vld [vmem:[#allocation28 + $0x158] sm:$0xf]
    %v5767 = vld [vmem:[#allocation28 + $0x15c] sm:$0xf]
    %v5768 = vld [vmem:[#allocation28 + $0x160] sm:$0xf]
    %v5769 = vld [vmem:[#allocation28 + $0x164] sm:$0xf]
    %v5770 = vld [vmem:[#allocation28 + $0x168] sm:$0xf]
    %v5771 = vld [vmem:[#allocation28 + $0x16c] sm:$0xf]
    %v5772 = vld [vmem:[#allocation28 + $0x170] sm:$0xf]
    %v5773 = vld [vmem:[#allocation28 + $0x174] sm:$0xf]
    %v5774 = vld [vmem:[#allocation28 + $0x178] sm:$0xf]
    %v5775 = vld [vmem:[#allocation28 + $0x17c] sm:$0xf]
    %v5792 = vunpack.c.l.b16 %v5760
    %v5793 = vunpack.c.l.b16 %v5761
    %v5794 = vunpack.c.l.b16 %v5762
    %v5795 = vunpack.c.l.b16 %v5763
    %v5796 = vunpack.c.l.b16 %v5764
    %v5797 = vunpack.c.l.b16 %v5765
    %v5798 = vunpack.c.l.b16 %v5766
    %v5799 = vunpack.c.l.b16 %v5767
    %v5800 = vunpack.c.l.b16 %v5768
    %v5801 = vunpack.c.l.b16 %v5769
    %v5802 = vunpack.c.l.b16 %v5770
    %v5803 = vunpack.c.l.b16 %v5771
    %v5804 = vunpack.c.l.b16 %v5772
    %v5805 = vunpack.c.l.b16 %v5773
    %v5806 = vunpack.c.l.b16 %v5774
    %v5807 = vunpack.c.l.b16 %v5775
    %v5808 = vpack.c.b16 %v5793, %v5792
    %v5809 = vpack.c.b16 %v5795, %v5794
    %v5810 = vpack.c.b16 %v5797, %v5796
    %v5811 = vpack.c.b16 %v5799, %v5798
    %v5812 = vpack.c.b16 %v5801, %v5800
    %v5813 = vpack.c.b16 %v5803, %v5802
    %v5814 = vpack.c.b16 %v5805, %v5804
    %v5815 = vpack.c.b16 %v5807, %v5806
    %5824 = vmatprep.subr.bf16.mxu0 0
    %5825 = vmatpush1.bf16.msra.mxu0 %v5815
    %5826 = vmatprep.subr.bf16.mxu0 0
    %5827 = vmatpush1.bf16.msra.mxu0 %v5814
    %5828 = vmatprep.subr.bf16.mxu0 0
    %5829 = vmatpush1.bf16.msra.mxu0 %v5813
    %5830 = vmatprep.subr.bf16.mxu0 0
    %5831 = vmatpush1.bf16.msra.mxu0 %v5812
    %5832 = vmatprep.subr.bf16.mxu0 0
    %5833 = vmatpush1.bf16.msra.mxu0 %v5811
    %5834 = vmatprep.subr.bf16.mxu0 0
    %5835 = vmatpush1.bf16.msra.mxu0 %v5810
    %5836 = vmatprep.subr.bf16.mxu0 0
    %5837 = vmatpush1.bf16.msra.mxu0 %v5809
    %5838 = vmatprep.subr.bf16.mxu0 0
    %5839 = vmatpush1.bf16.msra.mxu0 %v5808
    %5840 = vmatprep.subr.bf16.mxu0 0
    %5841 = vmatpush2.bf16.msra.mxu0 0
    %5842 = vmatprep.subr.bf16.mxu0 0
    %5843 = vmatpush2.bf16.msra.mxu0 0
    %5844 = vmatprep.subr.bf16.mxu0 0
    %5845 = vmatpush2.bf16.msra.mxu0 0
    %5846 = vmatprep.subr.bf16.mxu0 0
    %5847 = vmatpush2.bf16.msra.mxu0 0
    %5848 = vmatprep.subr.bf16.mxu0 0
    %5849 = vmatpush2.bf16.msra.mxu0 0
    %5850 = vmatprep.subr.bf16.mxu0 0
    %5851 = vmatpush2.bf16.msra.mxu0 0
    %5852 = vmatprep.subr.bf16.mxu0 0
    %5853 = vmatpush2.bf16.msra.mxu0 0
    %5854 = vmatprep.subr.bf16.mxu0 0
    %5855 = vmatpush2.bf16.msra.mxu0 0
    %5856 = vmatprep.mubr.bf16.mxu0 0
    %5857 = vmatmul.mubr.bf16.gmra.mxu0 %v4217
    %v5858 = vpop.f32.mrf.mxu0
    %v5859 = vadd.f32 0.0, %v5858
    %v5860 = vpop.f32.mrf.mxu0
    %v5861 = vpop.f32.mrf.mxu0
    %v5862 = vpop.f32.mrf.mxu0
    %5863 = vdwg.mxu0
    %v5864 = vadd.f32 %v5759, %v5859
    %v5865 = vld [vmem:[#allocation30 + $0x140] sm:$0xf]
    %v5866 = vld [vmem:[#allocation30 + $0x144] sm:$0xf]
    %v5867 = vld [vmem:[#allocation30 + $0x148] sm:$0xf]
    %v5868 = vld [vmem:[#allocation30 + $0x14c] sm:$0xf]
    %v5869 = vld [vmem:[#allocation30 + $0x150] sm:$0xf]
    %v5870 = vld [vmem:[#allocation30 + $0x154] sm:$0xf]
    %v5871 = vld [vmem:[#allocation30 + $0x158] sm:$0xf]
    %v5872 = vld [vmem:[#allocation30 + $0x15c] sm:$0xf]
    %v5873 = vld [vmem:[#allocation30 + $0x160] sm:$0xf]
    %v5874 = vld [vmem:[#allocation30 + $0x164] sm:$0xf]
    %v5875 = vld [vmem:[#allocation30 + $0x168] sm:$0xf]
    %v5876 = vld [vmem:[#allocation30 + $0x16c] sm:$0xf]
    %v5877 = vld [vmem:[#allocation30 + $0x170] sm:$0xf]
    %v5878 = vld [vmem:[#allocation30 + $0x174] sm:$0xf]
    %v5879 = vld [vmem:[#allocation30 + $0x178] sm:$0xf]
    %v5880 = vld [vmem:[#allocation30 + $0x17c] sm:$0xf]
    %v5897 = vunpack.c.l.b16 %v5865
    %v5898 = vunpack.c.l.b16 %v5866
    %v5899 = vunpack.c.l.b16 %v5867
    %v5900 = vunpack.c.l.b16 %v5868
    %v5901 = vunpack.c.l.b16 %v5869
    %v5902 = vunpack.c.l.b16 %v5870
    %v5903 = vunpack.c.l.b16 %v5871
    %v5904 = vunpack.c.l.b16 %v5872
    %v5905 = vunpack.c.l.b16 %v5873
    %v5906 = vunpack.c.l.b16 %v5874
    %v5907 = vunpack.c.l.b16 %v5875
    %v5908 = vunpack.c.l.b16 %v5876
    %v5909 = vunpack.c.l.b16 %v5877
    %v5910 = vunpack.c.l.b16 %v5878
    %v5911 = vunpack.c.l.b16 %v5879
    %v5912 = vunpack.c.l.b16 %v5880
    %v5913 = vpack.c.b16 %v5898, %v5897
    %v5914 = vpack.c.b16 %v5900, %v5899
    %v5915 = vpack.c.b16 %v5902, %v5901
    %v5916 = vpack.c.b16 %v5904, %v5903
    %v5917 = vpack.c.b16 %v5906, %v5905
    %v5918 = vpack.c.b16 %v5908, %v5907
    %v5919 = vpack.c.b16 %v5910, %v5909
    %v5920 = vpack.c.b16 %v5912, %v5911
    %5929 = vmatprep.subr.bf16.mxu0 0
    %5930 = vmatpush1.bf16.msra.mxu0 %v5920
    %5931 = vmatprep.subr.bf16.mxu0 0
    %5932 = vmatpush1.bf16.msra.mxu0 %v5919
    %5933 = vmatprep.subr.bf16.mxu0 0
    %5934 = vmatpush1.bf16.msra.mxu0 %v5918
    %5935 = vmatprep.subr.bf16.mxu0 0
    %5936 = vmatpush1.bf16.msra.mxu0 %v5917
    %5937 = vmatprep.subr.bf16.mxu0 0
    %5938 = vmatpush1.bf16.msra.mxu0 %v5916
    %5939 = vmatprep.subr.bf16.mxu0 0
    %5940 = vmatpush1.bf16.msra.mxu0 %v5915
    %5941 = vmatprep.subr.bf16.mxu0 0
    %5942 = vmatpush1.bf16.msra.mxu0 %v5914
    %5943 = vmatprep.subr.bf16.mxu0 0
    %5944 = vmatpush1.bf16.msra.mxu0 %v5913
    %5945 = vmatprep.subr.bf16.mxu0 0
    %5946 = vmatpush2.bf16.msra.mxu0 0
    %5947 = vmatprep.subr.bf16.mxu0 0
    %5948 = vmatpush2.bf16.msra.mxu0 0
    %5949 = vmatprep.subr.bf16.mxu0 0
    %5950 = vmatpush2.bf16.msra.mxu0 0
    %5951 = vmatprep.subr.bf16.mxu0 0
    %5952 = vmatpush2.bf16.msra.mxu0 0
    %5953 = vmatprep.subr.bf16.mxu0 0
    %5954 = vmatpush2.bf16.msra.mxu0 0
    %5955 = vmatprep.subr.bf16.mxu0 0
    %5956 = vmatpush2.bf16.msra.mxu0 0
    %5957 = vmatprep.subr.bf16.mxu0 0
    %5958 = vmatpush2.bf16.msra.mxu0 0
    %5959 = vmatprep.subr.bf16.mxu0 0
    %5960 = vmatpush2.bf16.msra.mxu0 0
    %5961 = vmatprep.mubr.bf16.mxu0 0
    %5962 = vmatmul.mubr.bf16.gmra.mxu0 %v4496
    %v5963 = vpop.f32.mrf.mxu0
    %v5964 = vadd.f32 0.0, %v5963
    %v5965 = vpop.f32.mrf.mxu0
    %v5966 = vpop.f32.mrf.mxu0
    %v5967 = vpop.f32.mrf.mxu0
    %5968 = vdwg.mxu0
    %v5969 = vadd.f32 %v5864, %v5964
    %v5970 = vld [vmem:[#allocation28 + $0x180] sm:$0xf]
    %v5971 = vld [vmem:[#allocation28 + $0x184] sm:$0xf]
    %v5972 = vld [vmem:[#allocation28 + $0x188] sm:$0xf]
    %v5973 = vld [vmem:[#allocation28 + $0x18c] sm:$0xf]
    %v5974 = vld [vmem:[#allocation28 + $0x190] sm:$0xf]
    %v5975 = vld [vmem:[#allocation28 + $0x194] sm:$0xf]
    %v5976 = vld [vmem:[#allocation28 + $0x198] sm:$0xf]
    %v5977 = vld [vmem:[#allocation28 + $0x19c] sm:$0xf]
    %v5978 = vld [vmem:[#allocation28 + $0x1a0] sm:$0xf]
    %v5979 = vld [vmem:[#allocation28 + $0x1a4] sm:$0xf]
    %v5980 = vld [vmem:[#allocation28 + $0x1a8] sm:$0xf]
    %v5981 = vld [vmem:[#allocation28 + $0x1ac] sm:$0xf]
    %v5982 = vld [vmem:[#allocation28 + $0x1b0] sm:$0xf]
    %v5983 = vld [vmem:[#allocation28 + $0x1b4] sm:$0xf]
    %v5984 = vld [vmem:[#allocation28 + $0x1b8] sm:$0xf]
    %v5985 = vld [vmem:[#allocation28 + $0x1bc] sm:$0xf]
    %v6002 = vunpack.c.l.b16 %v5970
    %v6003 = vunpack.c.l.b16 %v5971
    %v6004 = vunpack.c.l.b16 %v5972
    %v6005 = vunpack.c.l.b16 %v5973
    %v6006 = vunpack.c.l.b16 %v5974
    %v6007 = vunpack.c.l.b16 %v5975
    %v6008 = vunpack.c.l.b16 %v5976
    %v6009 = vunpack.c.l.b16 %v5977
    %v6010 = vunpack.c.l.b16 %v5978
    %v6011 = vunpack.c.l.b16 %v5979
    %v6012 = vunpack.c.l.b16 %v5980
    %v6013 = vunpack.c.l.b16 %v5981
    %v6014 = vunpack.c.l.b16 %v5982
    %v6015 = vunpack.c.l.b16 %v5983
    %v6016 = vunpack.c.l.b16 %v5984
    %v6017 = vunpack.c.l.b16 %v5985
    %v6018 = vpack.c.b16 %v6003, %v6002
    %v6019 = vpack.c.b16 %v6005, %v6004
    %v6020 = vpack.c.b16 %v6007, %v6006
    %v6021 = vpack.c.b16 %v6009, %v6008
    %v6022 = vpack.c.b16 %v6011, %v6010
    %v6023 = vpack.c.b16 %v6013, %v6012
    %v6024 = vpack.c.b16 %v6015, %v6014
    %v6025 = vpack.c.b16 %v6017, %v6016
    %6034 = vmatprep.subr.bf16.mxu0 0
    %6035 = vmatpush1.bf16.msra.mxu0 %v6025
    %6036 = vmatprep.subr.bf16.mxu0 0
    %6037 = vmatpush1.bf16.msra.mxu0 %v6024
    %6038 = vmatprep.subr.bf16.mxu0 0
    %6039 = vmatpush1.bf16.msra.mxu0 %v6023
    %6040 = vmatprep.subr.bf16.mxu0 0
    %6041 = vmatpush1.bf16.msra.mxu0 %v6022
    %6042 = vmatprep.subr.bf16.mxu0 0
    %6043 = vmatpush1.bf16.msra.mxu0 %v6021
    %6044 = vmatprep.subr.bf16.mxu0 0
    %6045 = vmatpush1.bf16.msra.mxu0 %v6020
    %6046 = vmatprep.subr.bf16.mxu0 0
    %6047 = vmatpush1.bf16.msra.mxu0 %v6019
    %6048 = vmatprep.subr.bf16.mxu0 0
    %6049 = vmatpush1.bf16.msra.mxu0 %v6018
    %6050 = vmatprep.subr.bf16.mxu0 0
    %6051 = vmatpush2.bf16.msra.mxu0 0
    %6052 = vmatprep.subr.bf16.mxu0 0
    %6053 = vmatpush2.bf16.msra.mxu0 0
    %6054 = vmatprep.subr.bf16.mxu0 0
    %6055 = vmatpush2.bf16.msra.mxu0 0
    %6056 = vmatprep.subr.bf16.mxu0 0
    %6057 = vmatpush2.bf16.msra.mxu0 0
    %6058 = vmatprep.subr.bf16.mxu0 0
    %6059 = vmatpush2.bf16.msra.mxu0 0
    %6060 = vmatprep.subr.bf16.mxu0 0
    %6061 = vmatpush2.bf16.msra.mxu0 0
    %6062 = vmatprep.subr.bf16.mxu0 0
    %6063 = vmatpush2.bf16.msra.mxu0 0
    %6064 = vmatprep.subr.bf16.mxu0 0
    %6065 = vmatpush2.bf16.msra.mxu0 0
    %6066 = vmatprep.mubr.bf16.mxu0 0
    %6067 = vmatmul.mubr.bf16.gmra.mxu0 %v4260
    %v6068 = vpop.f32.mrf.mxu0
    %v6069 = vadd.f32 0.0, %v6068
    %v6070 = vpop.f32.mrf.mxu0
    %v6071 = vpop.f32.mrf.mxu0
    %v6072 = vpop.f32.mrf.mxu0
    %6073 = vdwg.mxu0
    %v6074 = vadd.f32 %v5969, %v6069
    %v6075 = vld [vmem:[#allocation30 + $0x180] sm:$0xf]
    %v6076 = vld [vmem:[#allocation30 + $0x184] sm:$0xf]
    %v6077 = vld [vmem:[#allocation30 + $0x188] sm:$0xf]
    %v6078 = vld [vmem:[#allocation30 + $0x18c] sm:$0xf]
    %v6079 = vld [vmem:[#allocation30 + $0x190] sm:$0xf]
    %v6080 = vld [vmem:[#allocation30 + $0x194] sm:$0xf]
    %v6081 = vld [vmem:[#allocation30 + $0x198] sm:$0xf]
    %v6082 = vld [vmem:[#allocation30 + $0x19c] sm:$0xf]
    %v6083 = vld [vmem:[#allocation30 + $0x1a0] sm:$0xf]
    %v6084 = vld [vmem:[#allocation30 + $0x1a4] sm:$0xf]
    %v6085 = vld [vmem:[#allocation30 + $0x1a8] sm:$0xf]
    %v6086 = vld [vmem:[#allocation30 + $0x1ac] sm:$0xf]
    %v6087 = vld [vmem:[#allocation30 + $0x1b0] sm:$0xf]
    %v6088 = vld [vmem:[#allocation30 + $0x1b4] sm:$0xf]
    %v6089 = vld [vmem:[#allocation30 + $0x1b8] sm:$0xf]
    %v6090 = vld [vmem:[#allocation30 + $0x1bc] sm:$0xf]
    %v6107 = vunpack.c.l.b16 %v6075
    %v6108 = vunpack.c.l.b16 %v6076
    %v6109 = vunpack.c.l.b16 %v6077
    %v6110 = vunpack.c.l.b16 %v6078
    %v6111 = vunpack.c.l.b16 %v6079
    %v6112 = vunpack.c.l.b16 %v6080
    %v6113 = vunpack.c.l.b16 %v6081
    %v6114 = vunpack.c.l.b16 %v6082
    %v6115 = vunpack.c.l.b16 %v6083
    %v6116 = vunpack.c.l.b16 %v6084
    %v6117 = vunpack.c.l.b16 %v6085
    %v6118 = vunpack.c.l.b16 %v6086
    %v6119 = vunpack.c.l.b16 %v6087
    %v6120 = vunpack.c.l.b16 %v6088
    %v6121 = vunpack.c.l.b16 %v6089
    %v6122 = vunpack.c.l.b16 %v6090
    %v6123 = vpack.c.b16 %v6108, %v6107
    %v6124 = vpack.c.b16 %v6110, %v6109
    %v6125 = vpack.c.b16 %v6112, %v6111
    %v6126 = vpack.c.b16 %v6114, %v6113
    %v6127 = vpack.c.b16 %v6116, %v6115
    %v6128 = vpack.c.b16 %v6118, %v6117
    %v6129 = vpack.c.b16 %v6120, %v6119
    %v6130 = vpack.c.b16 %v6122, %v6121
    %6139 = vmatprep.subr.bf16.mxu0 0
    %6140 = vmatpush1.bf16.msra.mxu0 %v6130
    %6141 = vmatprep.subr.bf16.mxu0 0
    %6142 = vmatpush1.bf16.msra.mxu0 %v6129
    %6143 = vmatprep.subr.bf16.mxu0 0
    %6144 = vmatpush1.bf16.msra.mxu0 %v6128
    %6145 = vmatprep.subr.bf16.mxu0 0
    %6146 = vmatpush1.bf16.msra.mxu0 %v6127
    %6147 = vmatprep.subr.bf16.mxu0 0
    %6148 = vmatpush1.bf16.msra.mxu0 %v6126
    %6149 = vmatprep.subr.bf16.mxu0 0
    %6150 = vmatpush1.bf16.msra.mxu0 %v6125
    %6151 = vmatprep.subr.bf16.mxu0 0
    %6152 = vmatpush1.bf16.msra.mxu0 %v6124
    %6153 = vmatprep.subr.bf16.mxu0 0
    %6154 = vmatpush1.bf16.msra.mxu0 %v6123
    %6155 = vmatprep.subr.bf16.mxu0 0
    %6156 = vmatpush2.bf16.msra.mxu0 0
    %6157 = vmatprep.subr.bf16.mxu0 0
    %6158 = vmatpush2.bf16.msra.mxu0 0
    %6159 = vmatprep.subr.bf16.mxu0 0
    %6160 = vmatpush2.bf16.msra.mxu0 0
    %6161 = vmatprep.subr.bf16.mxu0 0
    %6162 = vmatpush2.bf16.msra.mxu0 0
    %6163 = vmatprep.subr.bf16.mxu0 0
    %6164 = vmatpush2.bf16.msra.mxu0 0
    %6165 = vmatprep.subr.bf16.mxu0 0
    %6166 = vmatpush2.bf16.msra.mxu0 0
    %6167 = vmatprep.subr.bf16.mxu0 0
    %6168 = vmatpush2.bf16.msra.mxu0 0
    %6169 = vmatprep.subr.bf16.mxu0 0
    %6170 = vmatpush2.bf16.msra.mxu0 0
    %6171 = vmatprep.mubr.bf16.mxu0 0
    %6172 = vmatmul.mubr.bf16.gmra.mxu0 %v4453
    %v6173 = vpop.f32.mrf.mxu0
    %v6174 = vadd.f32 0.0, %v6173
    %v6175 = vpop.f32.mrf.mxu0
    %v6176 = vpop.f32.mrf.mxu0
    %v6177 = vpop.f32.mrf.mxu0
    %6178 = vdwg.mxu0
    %v6179 = vadd.f32 %v6074, %v6174
    %v6180 = vpack.c.bf16 %v4302, %v4302
    %v6181 = vld [vmem:[#allocation28 + $0x1c0] sm:$0xf]
    %v6182 = vld [vmem:[#allocation28 + $0x1c4] sm:$0xf]
    %v6183 = vld [vmem:[#allocation28 + $0x1c8] sm:$0xf]
    %v6184 = vld [vmem:[#allocation28 + $0x1cc] sm:$0xf]
    %v6185 = vld [vmem:[#allocation28 + $0x1d0] sm:$0xf]
    %v6186 = vld [vmem:[#allocation28 + $0x1d4] sm:$0xf]
    %v6187 = vld [vmem:[#allocation28 + $0x1d8] sm:$0xf]
    %v6188 = vld [vmem:[#allocation28 + $0x1dc] sm:$0xf]
    %v6189 = vld [vmem:[#allocation28 + $0x1e0] sm:$0xf]
    %v6190 = vld [vmem:[#allocation28 + $0x1e4] sm:$0xf]
    %v6191 = vld [vmem:[#allocation28 + $0x1e8] sm:$0xf]
    %v6192 = vld [vmem:[#allocation28 + $0x1ec] sm:$0xf]
    %v6193 = vld [vmem:[#allocation28 + $0x1f0] sm:$0xf]
    %v6194 = vld [vmem:[#allocation28 + $0x1f4] sm:$0xf]
    %v6195 = vld [vmem:[#allocation28 + $0x1f8] sm:$0xf]
    %v6196 = vld [vmem:[#allocation28 + $0x1fc] sm:$0xf]
    %v6213 = vunpack.c.l.b16 %v6181
    %v6214 = vunpack.c.l.b16 %v6182
    %v6215 = vunpack.c.l.b16 %v6183
    %v6216 = vunpack.c.l.b16 %v6184
    %v6217 = vunpack.c.l.b16 %v6185
    %v6218 = vunpack.c.l.b16 %v6186
    %v6219 = vunpack.c.l.b16 %v6187
    %v6220 = vunpack.c.l.b16 %v6188
    %v6221 = vunpack.c.l.b16 %v6189
    %v6222 = vunpack.c.l.b16 %v6190
    %v6223 = vunpack.c.l.b16 %v6191
    %v6224 = vunpack.c.l.b16 %v6192
    %v6225 = vunpack.c.l.b16 %v6193
    %v6226 = vunpack.c.l.b16 %v6194
    %v6227 = vunpack.c.l.b16 %v6195
    %v6228 = vunpack.c.l.b16 %v6196
    %v6229 = vpack.c.b16 %v6214, %v6213
    %v6230 = vpack.c.b16 %v6216, %v6215
    %v6231 = vpack.c.b16 %v6218, %v6217
    %v6232 = vpack.c.b16 %v6220, %v6219
    %v6233 = vpack.c.b16 %v6222, %v6221
    %v6234 = vpack.c.b16 %v6224, %v6223
    %v6235 = vpack.c.b16 %v6226, %v6225
    %v6236 = vpack.c.b16 %v6228, %v6227
    %6245 = vmatprep.subr.bf16.mxu0 0
    %6246 = vmatpush1.bf16.msra.mxu0 %v6236
    %6247 = vmatprep.subr.bf16.mxu0 0
    %6248 = vmatpush1.bf16.msra.mxu0 %v6235
    %6249 = vmatprep.subr.bf16.mxu0 0
    %6250 = vmatpush1.bf16.msra.mxu0 %v6234
    %6251 = vmatprep.subr.bf16.mxu0 0
    %6252 = vmatpush1.bf16.msra.mxu0 %v6233
    %6253 = vmatprep.subr.bf16.mxu0 0
    %6254 = vmatpush1.bf16.msra.mxu0 %v6232
    %6255 = vmatprep.subr.bf16.mxu0 0
    %6256 = vmatpush1.bf16.msra.mxu0 %v6231
    %6257 = vmatprep.subr.bf16.mxu0 0
    %6258 = vmatpush1.bf16.msra.mxu0 %v6230
    %6259 = vmatprep.subr.bf16.mxu0 0
    %6260 = vmatpush1.bf16.msra.mxu0 %v6229
    %6261 = vmatprep.subr.bf16.mxu0 0
    %6262 = vmatpush2.bf16.msra.mxu0 0
    %6263 = vmatprep.subr.bf16.mxu0 0
    %6264 = vmatpush2.bf16.msra.mxu0 0
    %6265 = vmatprep.subr.bf16.mxu0 0
    %6266 = vmatpush2.bf16.msra.mxu0 0
    %6267 = vmatprep.subr.bf16.mxu0 0
    %6268 = vmatpush2.bf16.msra.mxu0 0
    %6269 = vmatprep.subr.bf16.mxu0 0
    %6270 = vmatpush2.bf16.msra.mxu0 0
    %6271 = vmatprep.subr.bf16.mxu0 0
    %6272 = vmatpush2.bf16.msra.mxu0 0
    %6273 = vmatprep.subr.bf16.mxu0 0
    %6274 = vmatpush2.bf16.msra.mxu0 0
    %6275 = vmatprep.subr.bf16.mxu0 0
    %6276 = vmatpush2.bf16.msra.mxu0 0
    %6277 = vmatprep.mubr.bf16.mxu0 0
    %6278 = vmatmul.mubr.bf16.gmra.mxu0 %v6180
    %v6279 = vpop.f32.mrf.mxu0
    %v6280 = vadd.f32 0.0, %v6279
    %v6281 = vpop.f32.mrf.mxu0
    %v6282 = vpop.f32.mrf.mxu0
    %v6283 = vpop.f32.mrf.mxu0
    %6284 = vdwg.mxu0
    %v6285 = vadd.f32 %v6179, %v6280
    %v6286 = vld [vmem:[#allocation30 + $0x1c0] sm:$0xf]
    %v6287 = vld [vmem:[#allocation30 + $0x1c4] sm:$0xf]
    %v6288 = vld [vmem:[#allocation30 + $0x1c8] sm:$0xf]
    %v6289 = vld [vmem:[#allocation30 + $0x1cc] sm:$0xf]
    %v6290 = vld [vmem:[#allocation30 + $0x1d0] sm:$0xf]
    %v6291 = vld [vmem:[#allocation30 + $0x1d4] sm:$0xf]
    %v6292 = vld [vmem:[#allocation30 + $0x1d8] sm:$0xf]
    %v6293 = vld [vmem:[#allocation30 + $0x1dc] sm:$0xf]
    %v6294 = vld [vmem:[#allocation30 + $0x1e0] sm:$0xf]
    %v6295 = vld [vmem:[#allocation30 + $0x1e4] sm:$0xf]
    %v6296 = vld [vmem:[#allocation30 + $0x1e8] sm:$0xf]
    %v6297 = vld [vmem:[#allocation30 + $0x1ec] sm:$0xf]
    %v6298 = vld [vmem:[#allocation30 + $0x1f0] sm:$0xf]
    %v6299 = vld [vmem:[#allocation30 + $0x1f4] sm:$0xf]
    %v6300 = vld [vmem:[#allocation30 + $0x1f8] sm:$0xf]
    %v6301 = vld [vmem:[#allocation30 + $0x1fc] sm:$0xf]
    %v6318 = vunpack.c.l.b16 %v6286
    %v6319 = vunpack.c.l.b16 %v6287
    %v6320 = vunpack.c.l.b16 %v6288
    %v6321 = vunpack.c.l.b16 %v6289
    %v6322 = vunpack.c.l.b16 %v6290
    %v6323 = vunpack.c.l.b16 %v6291
    %v6324 = vunpack.c.l.b16 %v6292
    %v6325 = vunpack.c.l.b16 %v6293
    %v6326 = vunpack.c.l.b16 %v6294
    %v6327 = vunpack.c.l.b16 %v6295
    %v6328 = vunpack.c.l.b16 %v6296
    %v6329 = vunpack.c.l.b16 %v6297
    %v6330 = vunpack.c.l.b16 %v6298
    %v6331 = vunpack.c.l.b16 %v6299
    %v6332 = vunpack.c.l.b16 %v6300
    %v6333 = vunpack.c.l.b16 %v6301
    %v6334 = vpack.c.b16 %v6319, %v6318
    %v6335 = vpack.c.b16 %v6321, %v6320
    %v6336 = vpack.c.b16 %v6323, %v6322
    %v6337 = vpack.c.b16 %v6325, %v6324
    %v6338 = vpack.c.b16 %v6327, %v6326
    %v6339 = vpack.c.b16 %v6329, %v6328
    %v6340 = vpack.c.b16 %v6331, %v6330
    %v6341 = vpack.c.b16 %v6333, %v6332
    %6350 = vmatprep.subr.bf16.mxu0 0
    %6351 = vmatpush1.bf16.msra.mxu0 %v6341
    %6352 = vmatprep.subr.bf16.mxu0 0
    %6353 = vmatpush1.bf16.msra.mxu0 %v6340
    %6354 = vmatprep.subr.bf16.mxu0 0
    %6355 = vmatpush1.bf16.msra.mxu0 %v6339
    %6356 = vmatprep.subr.bf16.mxu0 0
    %6357 = vmatpush1.bf16.msra.mxu0 %v6338
    %6358 = vmatprep.subr.bf16.mxu0 0
    %6359 = vmatpush1.bf16.msra.mxu0 %v6337
    %6360 = vmatprep.subr.bf16.mxu0 0
    %6361 = vmatpush1.bf16.msra.mxu0 %v6336
    %6362 = vmatprep.subr.bf16.mxu0 0
    %6363 = vmatpush1.bf16.msra.mxu0 %v6335
    %6364 = vmatprep.subr.bf16.mxu0 0
    %6365 = vmatpush1.bf16.msra.mxu0 %v6334
    %6366 = vmatprep.subr.bf16.mxu0 0
    %6367 = vmatpush2.bf16.msra.mxu0 0
    %6368 = vmatprep.subr.bf16.mxu0 0
    %6369 = vmatpush2.bf16.msra.mxu0 0
    %6370 = vmatprep.subr.bf16.mxu0 0
    %6371 = vmatpush2.bf16.msra.mxu0 0
    %6372 = vmatprep.subr.bf16.mxu0 0
    %6373 = vmatpush2.bf16.msra.mxu0 0
    %6374 = vmatprep.subr.bf16.mxu0 0
    %6375 = vmatpush2.bf16.msra.mxu0 0
    %6376 = vmatprep.subr.bf16.mxu0 0
    %6377 = vmatpush2.bf16.msra.mxu0 0
    %6378 = vmatprep.subr.bf16.mxu0 0
    %6379 = vmatpush2.bf16.msra.mxu0 0
    %6380 = vmatprep.subr.bf16.mxu0 0
    %6381 = vmatpush2.bf16.msra.mxu0 0
    %6382 = vmatprep.mubr.bf16.mxu0 0
    %6383 = vmatmul.mubr.bf16.gmra.mxu0 %v4410
    %v6384 = vpop.f32.mrf.mxu0
    %v6385 = vadd.f32 0.0, %v6384
    %v6386 = vpop.f32.mrf.mxu0
    %v6387 = vpop.f32.mrf.mxu0
    %v6388 = vpop.f32.mrf.mxu0
    %6389 = vdwg.mxu0
    %v6390 = vadd.f32 %v6285, %v6385
    %v6391 = vld [vmem:[%s24] sm:$0x1]
    %v6393 = vlaneseq
    %v6394 = vshrl.u32 %v6393, 7
    %v6395 = vsub.s32 0, %v6394
    %v6396 = vrot.slane %v6391, %v6395
    %v6398 = vadd.f32 %v6390, %v6396
    %v6399 = vpack.c.bf16 %v6398, %v6398
    %v6400 = vld [vmem:[%s25] sm:$0xf]
    %v6401 = vld [vmem:[%s25 + $0x4] sm:$0xf]
    %v6402 = vld [vmem:[%s25 + $0x8] sm:$0xf]
    %v6403 = vld [vmem:[%s25 + $0xc] sm:$0xf]
    %v6404 = vld [vmem:[%s25 + $0x10] sm:$0xf]
    %v6405 = vld [vmem:[%s25 + $0x14] sm:$0xf]
    %v6406 = vld [vmem:[%s25 + $0x18] sm:$0xf]
    %v6407 = vld [vmem:[%s25 + $0x1c] sm:$0xf]
    %v6408 = vld [vmem:[%s26] sm:$0x1]
    %v6410 = vlaneseq
    %v6411 = vshrl.u32 %v6410, 7
    %v6412 = vsub.s32 0, %v6411
    %v6413 = vrot.slane %v6408, %v6412
    %v6423 = vunpack.c.l.b16 %v6400
    %v6424 = vunpack.c.l.b16 %v6401
    %v6425 = vunpack.c.l.b16 %v6402
    %v6426 = vunpack.c.l.b16 %v6403
    %v6427 = vunpack.c.l.b16 %v6404
    %v6428 = vunpack.c.l.b16 %v6405
    %v6429 = vunpack.c.l.b16 %v6406
    %v6430 = vunpack.c.l.b16 %v6407
    %v6431 = vpack.c.b16 %v6424, %v6423
    %v6432 = vpack.c.b16 %v6426, %v6425
    %v6433 = vpack.c.b16 %v6428, %v6427
    %v6434 = vpack.c.b16 %v6430, %v6429
    %vm6439 = vcmask 523264
    %v6441 = vsel %vm6439, %v6399, 0
    %6443 = vmatprep.subr.bf16.mxu0 0
    %6444 = vmatpush1.bf16.msra.mxu0 0
    %6445 = vmatprep.subr.bf16.mxu0 0
    %6446 = vmatpush1.bf16.msra.mxu0 0
    %6447 = vmatprep.subr.bf16.mxu0 0
    %6448 = vmatpush1.bf16.msra.mxu0 0
    %6449 = vmatprep.subr.bf16.mxu0 0
    %6450 = vmatpush1.bf16.msra.mxu0 0
    %6451 = vmatprep.subr.bf16.mxu0 0
    %6452 = vmatpush1.bf16.msra.mxu0 %v6434
    %6453 = vmatprep.subr.bf16.mxu0 0
    %6454 = vmatpush1.bf16.msra.mxu0 %v6433
    %6455 = vmatprep.subr.bf16.mxu0 0
    %6456 = vmatpush1.bf16.msra.mxu0 %v6432
    %6457 = vmatprep.subr.bf16.mxu0 0
    %6458 = vmatpush1.bf16.msra.mxu0 %v6431
    %6459 = vmatprep.subr.bf16.mxu0 0
    %6460 = vmatpush2.bf16.msra.mxu0 0
    %6461 = vmatprep.subr.bf16.mxu0 0
    %6462 = vmatpush2.bf16.msra.mxu0 0
    %6463 = vmatprep.subr.bf16.mxu0 0
    %6464 = vmatpush2.bf16.msra.mxu0 0
    %6465 = vmatprep.subr.bf16.mxu0 0
    %6466 = vmatpush2.bf16.msra.mxu0 0
    %6467 = vmatprep.subr.bf16.mxu0 0
    %6468 = vmatpush2.bf16.msra.mxu0 0
    %6469 = vmatprep.subr.bf16.mxu0 0
    %6470 = vmatpush2.bf16.msra.mxu0 0
    %6471 = vmatprep.subr.bf16.mxu0 0
    %6472 = vmatpush2.bf16.msra.mxu0 0
    %6473 = vmatprep.subr.bf16.mxu0 0
    %6474 = vmatpush2.bf16.msra.mxu0 0
    %6475 = vmatprep.mubr.bf16.mxu0 0
    %6476 = vmatmul.mubr.bf16.gmra.mxu0 %v6441
    %v6477 = vpop.f32.mrf.mxu0
    %v6478 = vadd.f32 %v6413, %v6477
    %v6479 = vpop.f32.mrf.mxu0
    %v6480 = vpop.f32.mrf.mxu0
    %v6481 = vpop.f32.mrf.mxu0
    %6482 = vdwg.mxu0
    %vm6483 = vcmask 15360
    %6484 = vst.msk [vmem:[%s27] sm:$0xff] %vm6483, %v6478
    // Predicated region
    $region186: #{rnne_forward.1} parent=1 // pred_check
      _
    $region187: #{rnne_forward.1} parent=1 // pred_check_branch
      %6486 = sbr.rel (0) target = $region189
    $region188: #{rnne_forward.1} parent=1 // pred_region
      _
    $region189: #{rnne_forward.1} parent=1 // pred_fallthru
      _
    // Predicated region
    $region190: #{rnne_forward.1} parent=1 // pred_check
      _
    $region191: #{rnne_forward.1} parent=1 // pred_check_branch
      %6488 = sbr.rel (0) target = $region193
    $region192: #{rnne_forward.1} parent=1 // pred_region
      _
    $region193: #{rnne_forward.1} parent=1 // pred_fallthru
      _
    %6489 = vsyncpa [#allocation3], 1
    %6490 = vsyncpa [#allocation5], 1
    %6491 = vsyncpa [#allocation8], 1
    %6492 = vsyncpa [#allocation11], 1
    %6493 = vsyncpa [#allocation14], 1
    %6494 = vsyncpa [#allocation17], 1
    %6495 = vsyncpa [#allocation20], 1
    %6496 = vsyncpa [#allocation23], 1
    %6497 = vsyncpa [#allocation26], 1
    %6498 = vsyncpa [#allocation29], 1

</llo_original>
